<compile_context>
chip_gen: v7x
topology: tpu7x:2x2x1
jax: 0.10.0
libtpu: 0.0.40
codegen_flags: <defaults>
</compile_context>

<pallas_src>
import jax
import jax.numpy as jnp
from jax.experimental import pallas as pl
from jax.experimental.pallas import tpu as pltpu

CP = 128  # lane-padded channel width for all internal activations


def _row_tile(H, W):
    for tr in (8, 4, 2, 1):
        if H % tr == 0 and tr * W <= 2048:
            return tr
    return 1


# ----------------------------------------------------------------------------
# Pallas conv kernel: same-padded KHxKW conv as a single im2col matmul per
# (batch, row-tile) grid step.  bf16 inputs, f32 accumulation, bias (+ReLU).
# ----------------------------------------------------------------------------
def _make_conv_kernel(KH, KW, TR, W, relu):
    span = TR + KH - 1  # rows of the (padded) input needed by one row tile

    def finish(patches, w_ref, b_ref, o_ref):
        acc = jnp.dot(patches, w_ref[...], preferred_element_type=jnp.float32)
        acc = acc + b_ref[...]                    # (1, CP) f32 bias broadcast
        if relu:
            acc = jnp.maximum(acc, 0.0)
        o_ref[0] = acc.reshape(TR, W, CP).astype(o_ref.dtype)

    if KH == 1 and KW == 1:
        def kernel(x_ref, w_ref, b_ref, o_ref):
            row0 = pl.multiple_of(pl.program_id(1) * TR, TR)
            band = x_ref[0, pl.ds(row0, span), :, :]          # (TR, W, CP)
            finish(band.reshape(TR * W, CP), w_ref, b_ref, o_ref)
    else:
        def kernel(x_ref, w_ref, b_ref, o_ref, p_ref):
            row0 = pl.multiple_of(pl.program_id(1) * TR, TR)
            band = x_ref[0, pl.ds(row0, span), :, :]          # (span, Wp, CP)
            # Build the im2col buffer once per tile (single relayout pass),
            # then feed the MXU with one big contraction (K = KH*KW*CP).
            for dy in range(KH):
                for dx in range(KW):
                    j = (dy * KW + dx) * CP
                    p_ref[:, j:j + CP] = (
                        band[dy:dy + TR, dx:dx + W, :].reshape(TR * W, CP))
            finish(p_ref[...], w_ref, b_ref, o_ref)

    return kernel


def conv2d_pallas(x, w, b, *, relu, out_dtype=jnp.bfloat16):
    """Same-padded conv on channel-padded NHWC activations.

    x: (N, H, W, CP) bf16, w: (KH, KW, Cin, Cout) f32 with Cin, Cout <= CP,
    b: (Cout,) f32.  Returns (N, H, W, CP); channels [Cout:CP] are zero.
    """
    N, H, W, cpin = x.shape
    assert cpin == CP
    KH, KW, Ci, Co = w.shape
    assert Ci <= CP and Co <= CP
    ph, pw = KH // 2, KW // 2

    # Host-side weight/bias prep: zero-pad channels, flatten taps, cast bf16,
    # so the kernel performs zero reshapes on the VMEM-resident weight ref.
    w_pad = jnp.zeros((KH, KW, CP, CP), jnp.float32).at[:, :, :Ci, :Co].set(w)
    w_mat = w_pad.reshape(KH * KW * CP, CP).astype(jnp.bfloat16)
    b_pad = jnp.zeros((1, CP), jnp.float32).at[0, :Co].set(b)

    if ph or pw:
        x = jnp.pad(x, ((0, 0), (ph, ph), (pw, pw), (0, 0)))
    Hp, Wp = H + 2 * ph, W + 2 * pw

    TR = _row_tile(H, W)
    n_tiles = H // TR
    kernel = _make_conv_kernel(KH, KW, TR, W, relu)

    scratch = []
    if not (KH == 1 and KW == 1):
        scratch = [pltpu.VMEM((TR * W, KH * KW * CP), jnp.bfloat16)]

    return pl.pallas_call(
        kernel,
        out_shape=jax.ShapeDtypeStruct((N, H, W, CP), out_dtype),
        grid_spec=pltpu.PrefetchScalarGridSpec(
            num_scalar_prefetch=0,
            grid=(N, n_tiles),
            in_specs=[
                pl.BlockSpec((1, Hp, Wp, CP), lambda n, t: (n, 0, 0, 0)),
                pl.BlockSpec((KH * KW * CP, CP), lambda n, t: (0, 0)),
                pl.BlockSpec((1, CP), lambda n, t: (0, 0)),
            ],
            out_specs=pl.BlockSpec((1, TR, W, CP), lambda n, t: (n, t, 0, 0)),
            scratch_shapes=scratch,
        ),
        compiler_params=pltpu.CompilerParams(
            dimension_semantics=("parallel", "parallel"),
            vmem_limit_bytes=48 * 1024 * 1024,
        ),
    )(x.astype(jnp.bfloat16), w_mat, b_pad)


# ----------------------------------------------------------------------------
# Plain-JAX glue: stride-2 subsample (== stride-2 conv after stride-1 conv)
# and nearest-neighbor upsample (only applied to nclasses-wide head outputs).
# ----------------------------------------------------------------------------
def downsample2(x):
    return x[:, ::2, ::2, :]


def upsample_nearest(x, factor):
    x = jnp.repeat(x, factor, axis=1)
    return jnp.repeat(x, factor, axis=2)


# ----------------------------------------------------------------------------
# Parameters (deterministic init).
# ----------------------------------------------------------------------------
def init_params(key, in_ch, nclasses, c1=16, c2=24, c3=32, c4=32):
    def conv_p(k, kh, kw, ci, co):
        kw_, kb_ = jax.random.split(k)
        scale = 1.0 / jnp.sqrt(kh * kw * ci)
        w = jax.random.normal(kw_, (kh, kw, ci, co), jnp.float32) * scale
        b = jax.random.normal(kb_, (co,), jnp.float32) * 0.01
        return w, b

    keys = jax.random.split(key, 8)
    p = {}
    p["w1"], p["b1"] = conv_p(keys[0], 3, 3, in_ch, c1)
    p["w2"], p["b2"] = conv_p(keys[1], 3, 3, c1, c2)
    p["w3"], p["b3"] = conv_p(keys[2], 3, 3, c2, c3)
    p["w4"], p["b4"] = conv_p(keys[3], 3, 3, c3, c4)
    p["w_head"], p["b_head"] = conv_p(keys[4], 1, 1, c1 + c4, nclasses)
    p["w_aux2"], p["b_aux2"] = conv_p(keys[5], 1, 1, c2, nclasses)
    p["w_aux3"], p["b_aux3"] = conv_p(keys[6], 1, 1, c3, nclasses)
    p["w_aux4"], p["b_aux4"] = conv_p(keys[7], 1, 1, c4, nclasses)
    return p


# ----------------------------------------------------------------------------
# CENet forward (aux=True): returns [out, res_2, res_3, res_4], each NCHW with
# nclasses channels at full input resolution.
# ----------------------------------------------------------------------------
def cenet_forward(params, x_nchw):
    N, Cin, H, W = x_nchw.shape
    assert H % 8 == 0 and W % 8 == 0, "CENet requires H, W divisible by 8"
    ncl = params["b_head"].shape[0]
    c1 = params["w1"].shape[-1]

    # NCHW -> NHWC, cast bf16, zero-pad channels to CP (lane-dense layout).
    x = jnp.transpose(x_nchw, (0, 2, 3, 1)).astype(jnp.bfloat16)
    x = jnp.pad(x, ((0, 0), (0, 0), (0, 0), (0, CP - Cin)))

    # encoder (3x3 conv + ReLU, progressive /2 downsampling)
    x1 = conv2d_pallas(x, params["w1"], params["b1"], relu=True)                # 1/1
    x2 = conv2d_pallas(downsample2(x1), params["w2"], params["b2"], relu=True)  # 1/2
    x3 = conv2d_pallas(downsample2(x2), params["w3"], params["b3"], relu=True)  # 1/4
    x4 = conv2d_pallas(downsample2(x3), params["w4"], params["b4"], relu=True)  # 1/8

    # Fused main head:
    # conv1x1(concat(x1, up8(x4))) == conv1x1_a(x1) + up8(conv1x1_b(x4))
    # (exact for nearest-neighbor upsampling + pointwise conv).
    w_a = params["w_head"][:, :, :c1, :]
    w_b = params["w_head"][:, :, c1:, :]
    h_a = conv2d_pallas(x1, w_a, params["b_head"], relu=False,
                        out_dtype=jnp.float32)
    h_b = conv2d_pallas(x4, w_b, jnp.zeros_like(params["b_head"]), relu=False,
                        out_dtype=jnp.float32)
    out = h_a[..., :ncl] + upsample_nearest(h_b[..., :ncl], 8)

    # auxiliary heads (1x1 conv -> nclasses, upsampled back to full res)
    r2 = upsample_nearest(
        conv2d_pallas(x2, params["w_aux2"], params["b_aux2"], relu=False,
                      out_dtype=jnp.float32)[..., :ncl], 2)
    r3 = upsample_nearest(
        conv2d_pallas(x3, params["w_aux3"], params["b_aux3"], relu=False,
                      out_dtype=jnp.float32)[..., :ncl], 4)
    r4 = upsample_nearest(
        conv2d_pallas(x4, params["w_aux4"], params["b_aux4"], relu=False,
                      out_dtype=jnp.float32)[..., :ncl], 8)

    to_nchw = lambda t: jnp.transpose(t, (0, 3, 1, 2))
    return [to_nchw(out), to_nchw(r2), to_nchw(r3), to_nchw(r4)]


if __name__ == "__main__":
    N, C_IN, H, W = 2, 5, 16, 16
    NCLASSES = 6

    key = jax.random.PRNGKey(0)
    k_x, k_p = jax.random.split(key)
    x = jax.random.normal(k_x, (N, C_IN, H, W), jnp.float32)
    params = init_params(k_p, C_IN, NCLASSES)

    outs = jax.jit(cenet_forward)(params, x)
    outs = [jax.block_until_ready(o) for o in outs]

    assert len(outs) == 4
    for o in outs:
        assert o.shape == (N, NCLASSES, H, W), o.shape
        assert o.dtype == jnp.float32, o.dtype
        assert bool(jnp.all(jnp.isfinite(o)))

    print("KERNEL_OK")
</pallas_src>

<mosaic_0001>
module attributes {stable_mosaic.version = 11 : i64} {
  func.func @kernel(%arg0: i32, %arg1: i32, %arg2: memref<1x18x18x128xbf16, #tpu.memory_space<vmem>>, %arg3: memref<1152x128xbf16, #tpu.memory_space<vmem>>, %arg4: memref<1x128xf32, #tpu.memory_space<vmem>>, %arg5: memref<1x8x16x128xbf16, #tpu.memory_space<vmem>>, %arg6: memref<128x1152xbf16, #tpu.memory_space<vmem>>) attributes {dimension_semantics = [#tpu.dimension_semantics<parallel>, #tpu.dimension_semantics<parallel>], iteration_bounds = array<i64: 2, 2>, scalar_prefetch = 0 : i64, scratch_operands = 1 : i64, tpu.core_type = #tpu.core_type<tc>, window_params = [{transform_indices = @transform_0, window_bounds = array<i64: 1, 18, 18, 128>}, {pipeline_mode = #tpu.pipeline_mode<synchronous>, transform_indices = @transform_1, window_bounds = array<i64: 1152, 128>}, {pipeline_mode = #tpu.pipeline_mode<synchronous>, transform_indices = @transform_2, window_bounds = array<i64: 1, 128>}, {transform_indices = @transform_3, window_bounds = array<i64: 1, 8, 16, 128>}]} {
    %c8_i32 = arith.constant 8 : i32
    %0 = arith.muli %arg1, %c8_i32 : i32
    %1 = tpu.assume_multiple %0, 8 : i32
    %c0 = arith.constant 0 : index
    %2 = arith.index_cast %1 : i32 to index
    %c0_0 = arith.constant 0 : index
    %c0_1 = arith.constant 0 : index
    %3 = vector.load %arg2[%c0, %2, %c0_0, %c0_1] : memref<1x18x18x128xbf16, #tpu.memory_space<vmem>>, vector<1x10x18x128xbf16>
    %4 = vector.shape_cast %3 : vector<1x10x18x128xbf16> to vector<10x18x128xbf16>
    %5 = vector.extract_strided_slice %4 {offsets = [0, 0, 0], sizes = [8, 16, 128], strides = [1, 1, 1]} : vector<10x18x128xbf16> to vector<8x16x128xbf16>
    %6 = vector.shape_cast %5 : vector<8x16x128xbf16> to vector<128x128xbf16>
    %c0_2 = arith.constant 0 : index
    %c0_3 = arith.constant 0 : index
    %7 = vector.load %arg6[%c0_2, %c0_3] : memref<128x1152xbf16, #tpu.memory_space<vmem>>, vector<128x128xbf16>
    tpu.vector_store %arg6[%c0_2, %c0_3], %6 {strides = array<i32>} : memref<128x1152xbf16, #tpu.memory_space<vmem>>, vector<128x128xbf16>,
    %8 = vector.extract_strided_slice %4 {offsets = [0, 1, 0], sizes = [8, 16, 128], strides = [1, 1, 1]} : vector<10x18x128xbf16> to vector<8x16x128xbf16>
    %9 = vector.shape_cast %8 : vector<8x16x128xbf16> to vector<128x128xbf16>
    %c0_4 = arith.constant 0 : index
    %c128 = arith.constant 128 : index
    %10 = vector.load %arg6[%c0_4, %c128] : memref<128x1152xbf16, #tpu.memory_space<vmem>>, vector<128x128xbf16>
    tpu.vector_store %arg6[%c0_4, %c128], %9 {strides = array<i32>} : memref<128x1152xbf16, #tpu.memory_space<vmem>>, vector<128x128xbf16>,
    %11 = vector.extract_strided_slice %4 {offsets = [0, 2, 0], sizes = [8, 16, 128], strides = [1, 1, 1]} : vector<10x18x128xbf16> to vector<8x16x128xbf16>
    %12 = vector.shape_cast %11 : vector<8x16x128xbf16> to vector<128x128xbf16>
    %c0_5 = arith.constant 0 : index
    %c256 = arith.constant 256 : index
    %13 = vector.load %arg6[%c0_5, %c256] : memref<128x1152xbf16, #tpu.memory_space<vmem>>, vector<128x128xbf16>
    tpu.vector_store %arg6[%c0_5, %c256], %12 {strides = array<i32>} : memref<128x1152xbf16, #tpu.memory_space<vmem>>, vector<128x128xbf16>,
    %14 = vector.extract_strided_slice %4 {offsets = [1, 0, 0], sizes = [8, 16, 128], strides = [1, 1, 1]} : vector<10x18x128xbf16> to vector<8x16x128xbf16>
    %15 = vector.shape_cast %14 : vector<8x16x128xbf16> to vector<128x128xbf16>
    %c0_6 = arith.constant 0 : index
    %c384 = arith.constant 384 : index
    %16 = vector.load %arg6[%c0_6, %c384] : memref<128x1152xbf16, #tpu.memory_space<vmem>>, vector<128x128xbf16>
    tpu.vector_store %arg6[%c0_6, %c384], %15 {strides = array<i32>} : memref<128x1152xbf16, #tpu.memory_space<vmem>>, vector<128x128xbf16>,
    %17 = vector.extract_strided_slice %4 {offsets = [1, 1, 0], sizes = [8, 16, 128], strides = [1, 1, 1]} : vector<10x18x128xbf16> to vector<8x16x128xbf16>
    %18 = vector.shape_cast %17 : vector<8x16x128xbf16> to vector<128x128xbf16>
    %c0_7 = arith.constant 0 : index
    %c512 = arith.constant 512 : index
    %19 = vector.load %arg6[%c0_7, %c512] : memref<128x1152xbf16, #tpu.memory_space<vmem>>, vector<128x128xbf16>
    tpu.vector_store %arg6[%c0_7, %c512], %18 {strides = array<i32>} : memref<128x1152xbf16, #tpu.memory_space<vmem>>, vector<128x128xbf16>,
    %20 = vector.extract_strided_slice %4 {offsets = [1, 2, 0], sizes = [8, 16, 128], strides = [1, 1, 1]} : vector<10x18x128xbf16> to vector<8x16x128xbf16>
    %21 = vector.shape_cast %20 : vector<8x16x128xbf16> to vector<128x128xbf16>
    %c0_8 = arith.constant 0 : index
    %c640 = arith.constant 640 : index
    %22 = vector.load %arg6[%c0_8, %c640] : memref<128x1152xbf16, #tpu.memory_space<vmem>>, vector<128x128xbf16>
    tpu.vector_store %arg6[%c0_8, %c640], %21 {strides = array<i32>} : memref<128x1152xbf16, #tpu.memory_space<vmem>>, vector<128x128xbf16>,
    %23 = vector.extract_strided_slice %4 {offsets = [2, 0, 0], sizes = [8, 16, 128], strides = [1, 1, 1]} : vector<10x18x128xbf16> to vector<8x16x128xbf16>
    %24 = vector.shape_cast %23 : vector<8x16x128xbf16> to vector<128x128xbf16>
    %c0_9 = arith.constant 0 : index
    %c768 = arith.constant 768 : index
    %25 = vector.load %arg6[%c0_9, %c768] : memref<128x1152xbf16, #tpu.memory_space<vmem>>, vector<128x128xbf16>
    tpu.vector_store %arg6[%c0_9, %c768], %24 {strides = array<i32>} : memref<128x1152xbf16, #tpu.memory_space<vmem>>, vector<128x128xbf16>,
    %26 = vector.extract_strided_slice %4 {offsets = [2, 1, 0], sizes = [8, 16, 128], strides = [1, 1, 1]} : vector<10x18x128xbf16> to vector<8x16x128xbf16>
    %27 = vector.shape_cast %26 : vector<8x16x128xbf16> to vector<128x128xbf16>
    %c0_10 = arith.constant 0 : index
    %c896 = arith.constant 896 : index
    %28 = vector.load %arg6[%c0_10, %c896] : memref<128x1152xbf16, #tpu.memory_space<vmem>>, vector<128x128xbf16>
    tpu.vector_store %arg6[%c0_10, %c896], %27 {strides = array<i32>} : memref<128x1152xbf16, #tpu.memory_space<vmem>>, vector<128x128xbf16>,
    %29 = vector.extract_strided_slice %4 {offsets = [2, 2, 0], sizes = [8, 16, 128], strides = [1, 1, 1]} : vector<10x18x128xbf16> to vector<8x16x128xbf16>
    %30 = vector.shape_cast %29 : vector<8x16x128xbf16> to vector<128x128xbf16>
    %c0_11 = arith.constant 0 : index
    %c1024 = arith.constant 1024 : index
    %31 = vector.load %arg6[%c0_11, %c1024] : memref<128x1152xbf16, #tpu.memory_space<vmem>>, vector<128x128xbf16>
    tpu.vector_store %arg6[%c0_11, %c1024], %30 {strides = array<i32>} : memref<128x1152xbf16, #tpu.memory_space<vmem>>, vector<128x128xbf16>,
    %c0_12 = arith.constant 0 : index
    %c0_13 = arith.constant 0 : index
    %32 = vector.load %arg6[%c0_12, %c0_13] : memref<128x1152xbf16, #tpu.memory_space<vmem>>, vector<128x1152xbf16>
    %c0_14 = arith.constant 0 : index
    %c0_15 = arith.constant 0 : index
    %33 = vector.load %arg3[%c0_14, %c0_15] : memref<1152x128xbf16, #tpu.memory_space<vmem>>, vector<1152x128xbf16>
    %cst = arith.constant dense<0.000000e+00> : vector<128x128xf32>
    %34 = tpu.matmul %32, %33, %cst {dimension_numbers = #tpu.dot_dimension_numbers<[1], [0], [0], [1], [0, 0, 1, 1], [], []>} : vector<128x1152xbf16>, vector<1152x128xbf16>, vector<128x128xf32> -> vector<128x128xf32>
    %c0_16 = arith.constant 0 : index
    %c0_17 = arith.constant 0 : index
    %35 = vector.load %arg4[%c0_16, %c0_17] : memref<1x128xf32, #tpu.memory_space<vmem>>, vector<1x128xf32>
    %36 = vector.broadcast %35 : vector<1x128xf32> to vector<128x128xf32>
    %37 = arith.addf %34, %36 : vector<128x128xf32>
    %cst_18 = arith.constant 0.000000e+00 : f32
    %38 = vector.broadcast %cst_18 : f32 to vector<128x128xf32>
    %39 = arith.maximumf %37, %38 : vector<128x128xf32>
    %40 = vector.shape_cast %39 : vector<128x128xf32> to vector<8x16x128xf32>
    %41 = arith.truncf %40 : vector<8x16x128xf32> to vector<8x16x128xbf16>
    %c0_19 = arith.constant 0 : index
    %c0_20 = arith.constant 0 : index
    %c0_21 = arith.constant 0 : index
    %c0_22 = arith.constant 0 : index
    %42 = vector.load %arg5[%c0_19, %c0_20, %c0_21, %c0_22] : memref<1x8x16x128xbf16, #tpu.memory_space<vmem>>, vector<1x8x16x128xbf16>
    %43 = vector.shape_cast %42 : vector<1x8x16x128xbf16> to vector<8x16x128xbf16>
    %44 = vector.shape_cast %41 : vector<8x16x128xbf16> to vector<1x8x16x128xbf16>
    tpu.vector_store %arg5[%c0_19, %c0_20, %c0_21, %c0_22], %44 {strides = array<i32>} : memref<1x8x16x128xbf16, #tpu.memory_space<vmem>>, vector<1x8x16x128xbf16>,
    return
  }
  func.func @transform_0(%arg0: i32, %arg1: i32) -> (i32, i32, i32, i32) {
    %c0_i32 = arith.constant 0 : i32
    %c0_i32_0 = arith.constant 0 : i32
    %c0_i32_1 = arith.constant 0 : i32
    %c0_i32_2 = arith.constant 0 : i32
    return %arg0, %c0_i32, %c0_i32_0, %c0_i32_1 : i32, i32, i32, i32
  }
  func.func @transform_1(%arg0: i32, %arg1: i32) -> (i32, i32) {
    %c0_i32 = arith.constant 0 : i32
    %c0_i32_0 = arith.constant 0 : i32
    %c0_i32_1 = arith.constant 0 : i32
    return %c0_i32, %c0_i32_0 : i32, i32
  }
  func.func @transform_2(%arg0: i32, %arg1: i32) -> (i32, i32) {
    %c0_i32 = arith.constant 0 : i32
    %c0_i32_0 = arith.constant 0 : i32
    %c0_i32_1 = arith.constant 0 : i32
    return %c0_i32, %c0_i32_0 : i32, i32
  }
  func.func @transform_3(%arg0: i32, %arg1: i32) -> (i32, i32, i32, i32) {
    %c0_i32 = arith.constant 0 : i32
    %c0_i32_0 = arith.constant 0 : i32
    %c0_i32_1 = arith.constant 0 : i32
    return %arg0, %arg1, %c0_i32, %c0_i32_0 : i32, i32, i32, i32
  }
}

module attributes {stable_mosaic.version = 11 : i64} {
  func.func @kernel(%arg0: i32, %arg1: i32, %arg2: memref<1x6x6x128xbf16, #tpu.memory_space<vmem>>, %arg3: memref<1152x128xbf16, #tpu.memory_space<vmem>>, %arg4: memref<1x128xf32, #tpu.memory_space<vmem>>, %arg5: memref<1x4x4x128xbf16, #tpu.memory_space<vmem>>, %arg6: memref<16x1152xbf16, #tpu.memory_space<vmem>>) attributes {dimension_semantics = [#tpu.dimension_semantics<parallel>, #tpu.dimension_semantics<parallel>], iteration_bounds = array<i64: 2, 1>, scalar_prefetch = 0 : i64, scratch_operands = 1 : i64, tpu.core_type = #tpu.core_type<tc>, window_params = [{transform_indices = @transform_0, window_bounds = array<i64: 1, 6, 6, 128>}, {pipeline_mode = #tpu.pipeline_mode<synchronous>, transform_indices = @transform_1, window_bounds = array<i64: 1152, 128>}, {pipeline_mode = #tpu.pipeline_mode<synchronous>, transform_indices = @transform_2, window_bounds = array<i64: 1, 128>}, {transform_indices = @transform_3, window_bounds = array<i64: 1, 4, 4, 128>}]} {
    %c4_i32 = arith.constant 4 : i32
    %0 = arith.muli %arg1, %c4_i32 : i32
    %1 = tpu.assume_multiple %0, 4 : i32
    %c0 = arith.constant 0 : index
    %2 = arith.index_cast %1 : i32 to index
    %c0_0 = arith.constant 0 : index
    %c0_1 = arith.constant 0 : index
    %3 = vector.load %arg2[%c0, %2, %c0_0, %c0_1] : memref<1x6x6x128xbf16, #tpu.memory_space<vmem>>, vector<1x6x6x128xbf16>
    %4 = vector.shape_cast %3 : vector<1x6x6x128xbf16> to vector<6x6x128xbf16>
    %5 = vector.extract_strided_slice %4 {offsets = [0, 0, 0], sizes = [4, 4, 128], strides = [1, 1, 1]} : vector<6x6x128xbf16> to vector<4x4x128xbf16>
    %6 = vector.shape_cast %5 : vector<4x4x128xbf16> to vector<16x128xbf16>
    %c0_2 = arith.constant 0 : index
    %c0_3 = arith.constant 0 : index
    %7 = vector.load %arg6[%c0_2, %c0_3] : memref<16x1152xbf16, #tpu.memory_space<vmem>>, vector<16x128xbf16>
    tpu.vector_store %arg6[%c0_2, %c0_3], %6 {strides = array<i32>} : memref<16x1152xbf16, #tpu.memory_space<vmem>>, vector<16x128xbf16>,
    %8 = vector.extract_strided_slice %4 {offsets = [0, 1, 0], sizes = [4, 4, 128], strides = [1, 1, 1]} : vector<6x6x128xbf16> to vector<4x4x128xbf16>
    %9 = vector.shape_cast %8 : vector<4x4x128xbf16> to vector<16x128xbf16>
    %c0_4 = arith.constant 0 : index
    %c128 = arith.constant 128 : index
    %10 = vector.load %arg6[%c0_4, %c128] : memref<16x1152xbf16, #tpu.memory_space<vmem>>, vector<16x128xbf16>
    tpu.vector_store %arg6[%c0_4, %c128], %9 {strides = array<i32>} : memref<16x1152xbf16, #tpu.memory_space<vmem>>, vector<16x128xbf16>,
    %11 = vector.extract_strided_slice %4 {offsets = [0, 2, 0], sizes = [4, 4, 128], strides = [1, 1, 1]} : vector<6x6x128xbf16> to vector<4x4x128xbf16>
    %12 = vector.shape_cast %11 : vector<4x4x128xbf16> to vector<16x128xbf16>
    %c0_5 = arith.constant 0 : index
    %c256 = arith.constant 256 : index
    %13 = vector.load %arg6[%c0_5, %c256] : memref<16x1152xbf16, #tpu.memory_space<vmem>>, vector<16x128xbf16>
    tpu.vector_store %arg6[%c0_5, %c256], %12 {strides = array<i32>} : memref<16x1152xbf16, #tpu.memory_space<vmem>>, vector<16x128xbf16>,
    %14 = vector.extract_strided_slice %4 {offsets = [1, 0, 0], sizes = [4, 4, 128], strides = [1, 1, 1]} : vector<6x6x128xbf16> to vector<4x4x128xbf16>
    %15 = vector.shape_cast %14 : vector<4x4x128xbf16> to vector<16x128xbf16>
    %c0_6 = arith.constant 0 : index
    %c384 = arith.constant 384 : index
    %16 = vector.load %arg6[%c0_6, %c384] : memref<16x1152xbf16, #tpu.memory_space<vmem>>, vector<16x128xbf16>
    tpu.vector_store %arg6[%c0_6, %c384], %15 {strides = array<i32>} : memref<16x1152xbf16, #tpu.memory_space<vmem>>, vector<16x128xbf16>,
    %17 = vector.extract_strided_slice %4 {offsets = [1, 1, 0], sizes = [4, 4, 128], strides = [1, 1, 1]} : vector<6x6x128xbf16> to vector<4x4x128xbf16>
    %18 = vector.shape_cast %17 : vector<4x4x128xbf16> to vector<16x128xbf16>
    %c0_7 = arith.constant 0 : index
    %c512 = arith.constant 512 : index
    %19 = vector.load %arg6[%c0_7, %c512] : memref<16x1152xbf16, #tpu.memory_space<vmem>>, vector<16x128xbf16>
    tpu.vector_store %arg6[%c0_7, %c512], %18 {strides = array<i32>} : memref<16x1152xbf16, #tpu.memory_space<vmem>>, vector<16x128xbf16>,
    %20 = vector.extract_strided_slice %4 {offsets = [1, 2, 0], sizes = [4, 4, 128], strides = [1, 1, 1]} : vector<6x6x128xbf16> to vector<4x4x128xbf16>
    %21 = vector.shape_cast %20 : vector<4x4x128xbf16> to vector<16x128xbf16>
    %c0_8 = arith.constant 0 : index
    %c640 = arith.constant 640 : index
    %22 = vector.load %arg6[%c0_8, %c640] : memref<16x1152xbf16, #tpu.memory_space<vmem>>, vector<16x128xbf16>
    tpu.vector_store %arg6[%c0_8, %c640], %21 {strides = array<i32>} : memref<16x1152xbf16, #tpu.memory_space<vmem>>, vector<16x128xbf16>,
    %23 = vector.extract_strided_slice %4 {offsets = [2, 0, 0], sizes = [4, 4, 128], strides = [1, 1, 1]} : vector<6x6x128xbf16> to vector<4x4x128xbf16>
    %24 = vector.shape_cast %23 : vector<4x4x128xbf16> to vector<16x128xbf16>
    %c0_9 = arith.constant 0 : index
    %c768 = arith.constant 768 : index
    %25 = vector.load %arg6[%c0_9, %c768] : memref<16x1152xbf16, #tpu.memory_space<vmem>>, vector<16x128xbf16>
    tpu.vector_store %arg6[%c0_9, %c768], %24 {strides = array<i32>} : memref<16x1152xbf16, #tpu.memory_space<vmem>>, vector<16x128xbf16>,
    %26 = vector.extract_strided_slice %4 {offsets = [2, 1, 0], sizes = [4, 4, 128], strides = [1, 1, 1]} : vector<6x6x128xbf16> to vector<4x4x128xbf16>
    %27 = vector.shape_cast %26 : vector<4x4x128xbf16> to vector<16x128xbf16>
    %c0_10 = arith.constant 0 : index
    %c896 = arith.constant 896 : index
    %28 = vector.load %arg6[%c0_10, %c896] : memref<16x1152xbf16, #tpu.memory_space<vmem>>, vector<16x128xbf16>
    tpu.vector_store %arg6[%c0_10, %c896], %27 {strides = array<i32>} : memref<16x1152xbf16, #tpu.memory_space<vmem>>, vector<16x128xbf16>,
    %29 = vector.extract_strided_slice %4 {offsets = [2, 2, 0], sizes = [4, 4, 128], strides = [1, 1, 1]} : vector<6x6x128xbf16> to vector<4x4x128xbf16>
    %30 = vector.shape_cast %29 : vector<4x4x128xbf16> to vector<16x128xbf16>
    %c0_11 = arith.constant 0 : index
    %c1024 = arith.constant 1024 : index
    %31 = vector.load %arg6[%c0_11, %c1024] : memref<16x1152xbf16, #tpu.memory_space<vmem>>, vector<16x128xbf16>
    tpu.vector_store %arg6[%c0_11, %c1024], %30 {strides = array<i32>} : memref<16x1152xbf16, #tpu.memory_space<vmem>>, vector<16x128xbf16>,
    %c0_12 = arith.constant 0 : index
    %c0_13 = arith.constant 0 : index
    %32 = vector.load %arg6[%c0_12, %c0_13] : memref<16x1152xbf16, #tpu.memory_space<vmem>>, vector<16x1152xbf16>
    %c0_14 = arith.constant 0 : index
    %c0_15 = arith.constant 0 : index
    %33 = vector.load %arg3[%c0_14, %c0_15] : memref<1152x128xbf16, #tpu.memory_space<vmem>>, vector<1152x128xbf16>
    %cst = arith.constant dense<0.000000e+00> : vector<16x128xf32>
    %34 = tpu.matmul %32, %33, %cst {dimension_numbers = #tpu.dot_dimension_numbers<[1], [0], [0], [1], [0, 0, 1, 1], [], []>} : vector<16x1152xbf16>, vector<1152x128xbf16>, vector<16x128xf32> -> vector<16x128xf32>
    %c0_16 = arith.constant 0 : index
    %c0_17 = arith.constant 0 : index
    %35 = vector.load %arg4[%c0_16, %c0_17] : memref<1x128xf32, #tpu.memory_space<vmem>>, vector<1x128xf32>
    %36 = vector.broadcast %35 : vector<1x128xf32> to vector<16x128xf32>
    %37 = arith.addf %34, %36 : vector<16x128xf32>
    %cst_18 = arith.constant 0.000000e+00 : f32
    %38 = vector.broadcast %cst_18 : f32 to vector<16x128xf32>
    %39 = arith.maximumf %37, %38 : vector<16x128xf32>
    %40 = vector.shape_cast %39 : vector<16x128xf32> to vector<4x4x128xf32>
    %41 = arith.truncf %40 : vector<4x4x128xf32> to vector<4x4x128xbf16>
    %c0_19 = arith.constant 0 : index
    %c0_20 = arith.constant 0 : index
    %c0_21 = arith.constant 0 : index
    %c0_22 = arith.constant 0 : index
    %42 = vector.load %arg5[%c0_19, %c0_20, %c0_21, %c0_22] : memref<1x4x4x128xbf16, #tpu.memory_space<vmem>>, vector<1x4x4x128xbf16>
    %43 = vector.shape_cast %42 : vector<1x4x4x128xbf16> to vector<4x4x128xbf16>
    %44 = vector.shape_cast %41 : vector<4x4x128xbf16> to vector<1x4x4x128xbf16>
    tpu.vector_store %arg5[%c0_19, %c0_20, %c0_21, %c0_22], %44 {strides = array<i32>} : memref<1x4x4x128xbf16, #tpu.memory_space<vmem>>, vector<1x4x4x128xbf16>,
    return
  }
  func.func @transform_0(%arg0: i32, %arg1: i32) -> (i32, i32, i32, i32) {
    %c0_i32 = arith.constant 0 : i32
    %c0_i32_0 = arith.constant 0 : i32
    %c0_i32_1 = arith.constant 0 : i32
    %c0_i32_2 = arith.constant 0 : i32
    return %arg0, %c0_i32, %c0_i32_0, %c0_i32_1 : i32, i32, i32, i32
  }
  func.func @transform_1(%arg0: i32, %arg1: i32) -> (i32, i32) {
    %c0_i32 = arith.constant 0 : i32
    %c0_i32_0 = arith.constant 0 : i32
    %c0_i32_1 = arith.constant 0 : i32
    return %c0_i32, %c0_i32_0 : i32, i32
  }
  func.func @transform_2(%arg0: i32, %arg1: i32) -> (i32, i32) {
    %c0_i32 = arith.constant 0 : i32
    %c0_i32_0 = arith.constant 0 : i32
    %c0_i32_1 = arith.constant 0 : i32
    return %c0_i32, %c0_i32_0 : i32, i32
  }
  func.func @transform_3(%arg0: i32, %arg1: i32) -> (i32, i32, i32, i32) {
    %c0_i32 = arith.constant 0 : i32
    %c0_i32_0 = arith.constant 0 : i32
    %c0_i32_1 = arith.constant 0 : i32
    return %arg0, %arg1, %c0_i32, %c0_i32_0 : i32, i32, i32, i32
  }
}

module attributes {stable_mosaic.version = 11 : i64} {
  func.func @kernel(%arg0: i32, %arg1: i32, %arg2: memref<1x10x10x128xbf16, #tpu.memory_space<vmem>>, %arg3: memref<1152x128xbf16, #tpu.memory_space<vmem>>, %arg4: memref<1x128xf32, #tpu.memory_space<vmem>>, %arg5: memref<1x8x8x128xbf16, #tpu.memory_space<vmem>>, %arg6: memref<64x1152xbf16, #tpu.memory_space<vmem>>) attributes {dimension_semantics = [#tpu.dimension_semantics<parallel>, #tpu.dimension_semantics<parallel>], iteration_bounds = array<i64: 2, 1>, scalar_prefetch = 0 : i64, scratch_operands = 1 : i64, tpu.core_type = #tpu.core_type<tc>, window_params = [{transform_indices = @transform_0, window_bounds = array<i64: 1, 10, 10, 128>}, {pipeline_mode = #tpu.pipeline_mode<synchronous>, transform_indices = @transform_1, window_bounds = array<i64: 1152, 128>}, {pipeline_mode = #tpu.pipeline_mode<synchronous>, transform_indices = @transform_2, window_bounds = array<i64: 1, 128>}, {transform_indices = @transform_3, window_bounds = array<i64: 1, 8, 8, 128>}]} {
    %c8_i32 = arith.constant 8 : i32
    %0 = arith.muli %arg1, %c8_i32 : i32
    %1 = tpu.assume_multiple %0, 8 : i32
    %c0 = arith.constant 0 : index
    %2 = arith.index_cast %1 : i32 to index
    %c0_0 = arith.constant 0 : index
    %c0_1 = arith.constant 0 : index
    %3 = vector.load %arg2[%c0, %2, %c0_0, %c0_1] : memref<1x10x10x128xbf16, #tpu.memory_space<vmem>>, vector<1x10x10x128xbf16>
    %4 = vector.shape_cast %3 : vector<1x10x10x128xbf16> to vector<10x10x128xbf16>
    %5 = vector.extract_strided_slice %4 {offsets = [0, 0, 0], sizes = [8, 8, 128], strides = [1, 1, 1]} : vector<10x10x128xbf16> to vector<8x8x128xbf16>
    %6 = vector.shape_cast %5 : vector<8x8x128xbf16> to vector<64x128xbf16>
    %c0_2 = arith.constant 0 : index
    %c0_3 = arith.constant 0 : index
    %7 = vector.load %arg6[%c0_2, %c0_3] : memref<64x1152xbf16, #tpu.memory_space<vmem>>, vector<64x128xbf16>
    tpu.vector_store %arg6[%c0_2, %c0_3], %6 {strides = array<i32>} : memref<64x1152xbf16, #tpu.memory_space<vmem>>, vector<64x128xbf16>,
    %8 = vector.extract_strided_slice %4 {offsets = [0, 1, 0], sizes = [8, 8, 128], strides = [1, 1, 1]} : vector<10x10x128xbf16> to vector<8x8x128xbf16>
    %9 = vector.shape_cast %8 : vector<8x8x128xbf16> to vector<64x128xbf16>
    %c0_4 = arith.constant 0 : index
    %c128 = arith.constant 128 : index
    %10 = vector.load %arg6[%c0_4, %c128] : memref<64x1152xbf16, #tpu.memory_space<vmem>>, vector<64x128xbf16>
    tpu.vector_store %arg6[%c0_4, %c128], %9 {strides = array<i32>} : memref<64x1152xbf16, #tpu.memory_space<vmem>>, vector<64x128xbf16>,
    %11 = vector.extract_strided_slice %4 {offsets = [0, 2, 0], sizes = [8, 8, 128], strides = [1, 1, 1]} : vector<10x10x128xbf16> to vector<8x8x128xbf16>
    %12 = vector.shape_cast %11 : vector<8x8x128xbf16> to vector<64x128xbf16>
    %c0_5 = arith.constant 0 : index
    %c256 = arith.constant 256 : index
    %13 = vector.load %arg6[%c0_5, %c256] : memref<64x1152xbf16, #tpu.memory_space<vmem>>, vector<64x128xbf16>
    tpu.vector_store %arg6[%c0_5, %c256], %12 {strides = array<i32>} : memref<64x1152xbf16, #tpu.memory_space<vmem>>, vector<64x128xbf16>,
    %14 = vector.extract_strided_slice %4 {offsets = [1, 0, 0], sizes = [8, 8, 128], strides = [1, 1, 1]} : vector<10x10x128xbf16> to vector<8x8x128xbf16>
    %15 = vector.shape_cast %14 : vector<8x8x128xbf16> to vector<64x128xbf16>
    %c0_6 = arith.constant 0 : index
    %c384 = arith.constant 384 : index
    %16 = vector.load %arg6[%c0_6, %c384] : memref<64x1152xbf16, #tpu.memory_space<vmem>>, vector<64x128xbf16>
    tpu.vector_store %arg6[%c0_6, %c384], %15 {strides = array<i32>} : memref<64x1152xbf16, #tpu.memory_space<vmem>>, vector<64x128xbf16>,
    %17 = vector.extract_strided_slice %4 {offsets = [1, 1, 0], sizes = [8, 8, 128], strides = [1, 1, 1]} : vector<10x10x128xbf16> to vector<8x8x128xbf16>
    %18 = vector.shape_cast %17 : vector<8x8x128xbf16> to vector<64x128xbf16>
    %c0_7 = arith.constant 0 : index
    %c512 = arith.constant 512 : index
    %19 = vector.load %arg6[%c0_7, %c512] : memref<64x1152xbf16, #tpu.memory_space<vmem>>, vector<64x128xbf16>
    tpu.vector_store %arg6[%c0_7, %c512], %18 {strides = array<i32>} : memref<64x1152xbf16, #tpu.memory_space<vmem>>, vector<64x128xbf16>,
    %20 = vector.extract_strided_slice %4 {offsets = [1, 2, 0], sizes = [8, 8, 128], strides = [1, 1, 1]} : vector<10x10x128xbf16> to vector<8x8x128xbf16>
    %21 = vector.shape_cast %20 : vector<8x8x128xbf16> to vector<64x128xbf16>
    %c0_8 = arith.constant 0 : index
    %c640 = arith.constant 640 : index
    %22 = vector.load %arg6[%c0_8, %c640] : memref<64x1152xbf16, #tpu.memory_space<vmem>>, vector<64x128xbf16>
    tpu.vector_store %arg6[%c0_8, %c640], %21 {strides = array<i32>} : memref<64x1152xbf16, #tpu.memory_space<vmem>>, vector<64x128xbf16>,
    %23 = vector.extract_strided_slice %4 {offsets = [2, 0, 0], sizes = [8, 8, 128], strides = [1, 1, 1]} : vector<10x10x128xbf16> to vector<8x8x128xbf16>
    %24 = vector.shape_cast %23 : vector<8x8x128xbf16> to vector<64x128xbf16>
    %c0_9 = arith.constant 0 : index
    %c768 = arith.constant 768 : index
    %25 = vector.load %arg6[%c0_9, %c768] : memref<64x1152xbf16, #tpu.memory_space<vmem>>, vector<64x128xbf16>
    tpu.vector_store %arg6[%c0_9, %c768], %24 {strides = array<i32>} : memref<64x1152xbf16, #tpu.memory_space<vmem>>, vector<64x128xbf16>,
    %26 = vector.extract_strided_slice %4 {offsets = [2, 1, 0], sizes = [8, 8, 128], strides = [1, 1, 1]} : vector<10x10x128xbf16> to vector<8x8x128xbf16>
    %27 = vector.shape_cast %26 : vector<8x8x128xbf16> to vector<64x128xbf16>
    %c0_10 = arith.constant 0 : index
    %c896 = arith.constant 896 : index
    %28 = vector.load %arg6[%c0_10, %c896] : memref<64x1152xbf16, #tpu.memory_space<vmem>>, vector<64x128xbf16>
    tpu.vector_store %arg6[%c0_10, %c896], %27 {strides = array<i32>} : memref<64x1152xbf16, #tpu.memory_space<vmem>>, vector<64x128xbf16>,
    %29 = vector.extract_strided_slice %4 {offsets = [2, 2, 0], sizes = [8, 8, 128], strides = [1, 1, 1]} : vector<10x10x128xbf16> to vector<8x8x128xbf16>
    %30 = vector.shape_cast %29 : vector<8x8x128xbf16> to vector<64x128xbf16>
    %c0_11 = arith.constant 0 : index
    %c1024 = arith.constant 1024 : index
    %31 = vector.load %arg6[%c0_11, %c1024] : memref<64x1152xbf16, #tpu.memory_space<vmem>>, vector<64x128xbf16>
    tpu.vector_store %arg6[%c0_11, %c1024], %30 {strides = array<i32>} : memref<64x1152xbf16, #tpu.memory_space<vmem>>, vector<64x128xbf16>,
    %c0_12 = arith.constant 0 : index
    %c0_13 = arith.constant 0 : index
    %32 = vector.load %arg6[%c0_12, %c0_13] : memref<64x1152xbf16, #tpu.memory_space<vmem>>, vector<64x1152xbf16>
    %c0_14 = arith.constant 0 : index
    %c0_15 = arith.constant 0 : index
    %33 = vector.load %arg3[%c0_14, %c0_15] : memref<1152x128xbf16, #tpu.memory_space<vmem>>, vector<1152x128xbf16>
    %cst = arith.constant dense<0.000000e+00> : vector<64x128xf32>
    %34 = tpu.matmul %32, %33, %cst {dimension_numbers = #tpu.dot_dimension_numbers<[1], [0], [0], [1], [0, 0, 1, 1], [], []>} : vector<64x1152xbf16>, vector<1152x128xbf16>, vector<64x128xf32> -> vector<64x128xf32>
    %c0_16 = arith.constant 0 : index
    %c0_17 = arith.constant 0 : index
    %35 = vector.load %arg4[%c0_16, %c0_17] : memref<1x128xf32, #tpu.memory_space<vmem>>, vector<1x128xf32>
    %36 = vector.broadcast %35 : vector<1x128xf32> to vector<64x128xf32>
    %37 = arith.addf %34, %36 : vector<64x128xf32>
    %cst_18 = arith.constant 0.000000e+00 : f32
    %38 = vector.broadcast %cst_18 : f32 to vector<64x128xf32>
    %39 = arith.maximumf %37, %38 : vector<64x128xf32>
    %40 = vector.shape_cast %39 : vector<64x128xf32> to vector<8x8x128xf32>
    %41 = arith.truncf %40 : vector<8x8x128xf32> to vector<8x8x128xbf16>
    %c0_19 = arith.constant 0 : index
    %c0_20 = arith.constant 0 : index
    %c0_21 = arith.constant 0 : index
    %c0_22 = arith.constant 0 : index
    %42 = vector.load %arg5[%c0_19, %c0_20, %c0_21, %c0_22] : memref<1x8x8x128xbf16, #tpu.memory_space<vmem>>, vector<1x8x8x128xbf16>
    %43 = vector.shape_cast %42 : vector<1x8x8x128xbf16> to vector<8x8x128xbf16>
    %44 = vector.shape_cast %41 : vector<8x8x128xbf16> to vector<1x8x8x128xbf16>
    tpu.vector_store %arg5[%c0_19, %c0_20, %c0_21, %c0_22], %44 {strides = array<i32>} : memref<1x8x8x128xbf16, #tpu.memory_space<vmem>>, vector<1x8x8x128xbf16>,
    return
  }
  func.func @transform_0(%arg0: i32, %arg1: i32) -> (i32, i32, i32, i32) {
    %c0_i32 = arith.constant 0 : i32
    %c0_i32_0 = arith.constant 0 : i32
    %c0_i32_1 = arith.constant 0 : i32
    %c0_i32_2 = arith.constant 0 : i32
    return %arg0, %c0_i32, %c0_i32_0, %c0_i32_1 : i32, i32, i32, i32
  }
  func.func @transform_1(%arg0: i32, %arg1: i32) -> (i32, i32) {
    %c0_i32 = arith.constant 0 : i32
    %c0_i32_0 = arith.constant 0 : i32
    %c0_i32_1 = arith.constant 0 : i32
    return %c0_i32, %c0_i32_0 : i32, i32
  }
  func.func @transform_2(%arg0: i32, %arg1: i32) -> (i32, i32) {
    %c0_i32 = arith.constant 0 : i32
    %c0_i32_0 = arith.constant 0 : i32
    %c0_i32_1 = arith.constant 0 : i32
    return %c0_i32, %c0_i32_0 : i32, i32
  }
  func.func @transform_3(%arg0: i32, %arg1: i32) -> (i32, i32, i32, i32) {
    %c0_i32 = arith.constant 0 : i32
    %c0_i32_0 = arith.constant 0 : i32
    %c0_i32_1 = arith.constant 0 : i32
    return %arg0, %arg1, %c0_i32, %c0_i32_0 : i32, i32, i32, i32
  }
}

module attributes {stable_mosaic.version = 11 : i64} {
  func.func @kernel(%arg0: i32, %arg1: i32, %arg2: memref<1x4x4x128xbf16, #tpu.memory_space<vmem>>, %arg3: memref<1152x128xbf16, #tpu.memory_space<vmem>>, %arg4: memref<1x128xf32, #tpu.memory_space<vmem>>, %arg5: memref<1x2x2x128xbf16, #tpu.memory_space<vmem>>, %arg6: memref<4x1152xbf16, #tpu.memory_space<vmem>>) attributes {dimension_semantics = [#tpu.dimension_semantics<parallel>, #tpu.dimension_semantics<parallel>], iteration_bounds = array<i64: 2, 1>, scalar_prefetch = 0 : i64, scratch_operands = 1 : i64, tpu.core_type = #tpu.core_type<tc>, window_params = [{transform_indices = @transform_0, window_bounds = array<i64: 1, 4, 4, 128>}, {pipeline_mode = #tpu.pipeline_mode<synchronous>, transform_indices = @transform_1, window_bounds = array<i64: 1152, 128>}, {pipeline_mode = #tpu.pipeline_mode<synchronous>, transform_indices = @transform_2, window_bounds = array<i64: 1, 128>}, {transform_indices = @transform_3, window_bounds = array<i64: 1, 2, 2, 128>}]} {
    %c2_i32 = arith.constant 2 : i32
    %0 = arith.muli %arg1, %c2_i32 : i32
    %1 = tpu.assume_multiple %0, 2 : i32
    %c0 = arith.constant 0 : index
    %2 = arith.index_cast %1 : i32 to index
    %c0_0 = arith.constant 0 : index
    %c0_1 = arith.constant 0 : index
    %3 = vector.load %arg2[%c0, %2, %c0_0, %c0_1] : memref<1x4x4x128xbf16, #tpu.memory_space<vmem>>, vector<1x4x4x128xbf16>
    %4 = vector.shape_cast %3 : vector<1x4x4x128xbf16> to vector<4x4x128xbf16>
    %5 = vector.extract_strided_slice %4 {offsets = [0, 0, 0], sizes = [2, 2, 128], strides = [1, 1, 1]} : vector<4x4x128xbf16> to vector<2x2x128xbf16>
    %6 = vector.shape_cast %5 : vector<2x2x128xbf16> to vector<4x128xbf16>
    %c0_2 = arith.constant 0 : index
    %c0_3 = arith.constant 0 : index
    %7 = vector.load %arg6[%c0_2, %c0_3] : memref<4x1152xbf16, #tpu.memory_space<vmem>>, vector<4x128xbf16>
    tpu.vector_store %arg6[%c0_2, %c0_3], %6 {strides = array<i32>} : memref<4x1152xbf16, #tpu.memory_space<vmem>>, vector<4x128xbf16>,
    %8 = vector.extract_strided_slice %4 {offsets = [0, 1, 0], sizes = [2, 2, 128], strides = [1, 1, 1]} : vector<4x4x128xbf16> to vector<2x2x128xbf16>
    %9 = vector.shape_cast %8 : vector<2x2x128xbf16> to vector<4x128xbf16>
    %c0_4 = arith.constant 0 : index
    %c128 = arith.constant 128 : index
    %10 = vector.load %arg6[%c0_4, %c128] : memref<4x1152xbf16, #tpu.memory_space<vmem>>, vector<4x128xbf16>
    tpu.vector_store %arg6[%c0_4, %c128], %9 {strides = array<i32>} : memref<4x1152xbf16, #tpu.memory_space<vmem>>, vector<4x128xbf16>,
    %11 = vector.extract_strided_slice %4 {offsets = [0, 2, 0], sizes = [2, 2, 128], strides = [1, 1, 1]} : vector<4x4x128xbf16> to vector<2x2x128xbf16>
    %12 = vector.shape_cast %11 : vector<2x2x128xbf16> to vector<4x128xbf16>
    %c0_5 = arith.constant 0 : index
    %c256 = arith.constant 256 : index
    %13 = vector.load %arg6[%c0_5, %c256] : memref<4x1152xbf16, #tpu.memory_space<vmem>>, vector<4x128xbf16>
    tpu.vector_store %arg6[%c0_5, %c256], %12 {strides = array<i32>} : memref<4x1152xbf16, #tpu.memory_space<vmem>>, vector<4x128xbf16>,
    %14 = vector.extract_strided_slice %4 {offsets = [1, 0, 0], sizes = [2, 2, 128], strides = [1, 1, 1]} : vector<4x4x128xbf16> to vector<2x2x128xbf16>
    %15 = vector.shape_cast %14 : vector<2x2x128xbf16> to vector<4x128xbf16>
    %c0_6 = arith.constant 0 : index
    %c384 = arith.constant 384 : index
    %16 = vector.load %arg6[%c0_6, %c384] : memref<4x1152xbf16, #tpu.memory_space<vmem>>, vector<4x128xbf16>
    tpu.vector_store %arg6[%c0_6, %c384], %15 {strides = array<i32>} : memref<4x1152xbf16, #tpu.memory_space<vmem>>, vector<4x128xbf16>,
    %17 = vector.extract_strided_slice %4 {offsets = [1, 1, 0], sizes = [2, 2, 128], strides = [1, 1, 1]} : vector<4x4x128xbf16> to vector<2x2x128xbf16>
    %18 = vector.shape_cast %17 : vector<2x2x128xbf16> to vector<4x128xbf16>
    %c0_7 = arith.constant 0 : index
    %c512 = arith.constant 512 : index
    %19 = vector.load %arg6[%c0_7, %c512] : memref<4x1152xbf16, #tpu.memory_space<vmem>>, vector<4x128xbf16>
    tpu.vector_store %arg6[%c0_7, %c512], %18 {strides = array<i32>} : memref<4x1152xbf16, #tpu.memory_space<vmem>>, vector<4x128xbf16>,
    %20 = vector.extract_strided_slice %4 {offsets = [1, 2, 0], sizes = [2, 2, 128], strides = [1, 1, 1]} : vector<4x4x128xbf16> to vector<2x2x128xbf16>
    %21 = vector.shape_cast %20 : vector<2x2x128xbf16> to vector<4x128xbf16>
    %c0_8 = arith.constant 0 : index
    %c640 = arith.constant 640 : index
    %22 = vector.load %arg6[%c0_8, %c640] : memref<4x1152xbf16, #tpu.memory_space<vmem>>, vector<4x128xbf16>
    tpu.vector_store %arg6[%c0_8, %c640], %21 {strides = array<i32>} : memref<4x1152xbf16, #tpu.memory_space<vmem>>, vector<4x128xbf16>,
    %23 = vector.extract_strided_slice %4 {offsets = [2, 0, 0], sizes = [2, 2, 128], strides = [1, 1, 1]} : vector<4x4x128xbf16> to vector<2x2x128xbf16>
    %24 = vector.shape_cast %23 : vector<2x2x128xbf16> to vector<4x128xbf16>
    %c0_9 = arith.constant 0 : index
    %c768 = arith.constant 768 : index
    %25 = vector.load %arg6[%c0_9, %c768] : memref<4x1152xbf16, #tpu.memory_space<vmem>>, vector<4x128xbf16>
    tpu.vector_store %arg6[%c0_9, %c768], %24 {strides = array<i32>} : memref<4x1152xbf16, #tpu.memory_space<vmem>>, vector<4x128xbf16>,
    %26 = vector.extract_strided_slice %4 {offsets = [2, 1, 0], sizes = [2, 2, 128], strides = [1, 1, 1]} : vector<4x4x128xbf16> to vector<2x2x128xbf16>
    %27 = vector.shape_cast %26 : vector<2x2x128xbf16> to vector<4x128xbf16>
    %c0_10 = arith.constant 0 : index
    %c896 = arith.constant 896 : index
    %28 = vector.load %arg6[%c0_10, %c896] : memref<4x1152xbf16, #tpu.memory_space<vmem>>, vector<4x128xbf16>
    tpu.vector_store %arg6[%c0_10, %c896], %27 {strides = array<i32>} : memref<4x1152xbf16, #tpu.memory_space<vmem>>, vector<4x128xbf16>,
    %29 = vector.extract_strided_slice %4 {offsets = [2, 2, 0], sizes = [2, 2, 128], strides = [1, 1, 1]} : vector<4x4x128xbf16> to vector<2x2x128xbf16>
    %30 = vector.shape_cast %29 : vector<2x2x128xbf16> to vector<4x128xbf16>
    %c0_11 = arith.constant 0 : index
    %c1024 = arith.constant 1024 : index
    %31 = vector.load %arg6[%c0_11, %c1024] : memref<4x1152xbf16, #tpu.memory_space<vmem>>, vector<4x128xbf16>
    tpu.vector_store %arg6[%c0_11, %c1024], %30 {strides = array<i32>} : memref<4x1152xbf16, #tpu.memory_space<vmem>>, vector<4x128xbf16>,
    %c0_12 = arith.constant 0 : index
    %c0_13 = arith.constant 0 : index
    %32 = vector.load %arg6[%c0_12, %c0_13] : memref<4x1152xbf16, #tpu.memory_space<vmem>>, vector<4x1152xbf16>
    %c0_14 = arith.constant 0 : index
    %c0_15 = arith.constant 0 : index
    %33 = vector.load %arg3[%c0_14, %c0_15] : memref<1152x128xbf16, #tpu.memory_space<vmem>>, vector<1152x128xbf16>
    %cst = arith.constant dense<0.000000e+00> : vector<4x128xf32>
    %34 = tpu.matmul %32, %33, %cst {dimension_numbers = #tpu.dot_dimension_numbers<[1], [0], [0], [1], [0, 0, 1, 1], [], []>} : vector<4x1152xbf16>, vector<1152x128xbf16>, vector<4x128xf32> -> vector<4x128xf32>
    %c0_16 = arith.constant 0 : index
    %c0_17 = arith.constant 0 : index
    %35 = vector.load %arg4[%c0_16, %c0_17] : memref<1x128xf32, #tpu.memory_space<vmem>>, vector<1x128xf32>
    %36 = vector.broadcast %35 : vector<1x128xf32> to vector<4x128xf32>
    %37 = arith.addf %34, %36 : vector<4x128xf32>
    %cst_18 = arith.constant 0.000000e+00 : f32
    %38 = vector.broadcast %cst_18 : f32 to vector<4x128xf32>
    %39 = arith.maximumf %37, %38 : vector<4x128xf32>
    %40 = vector.shape_cast %39 : vector<4x128xf32> to vector<2x2x128xf32>
    %41 = arith.truncf %40 : vector<2x2x128xf32> to vector<2x2x128xbf16>
    %c0_19 = arith.constant 0 : index
    %c0_20 = arith.constant 0 : index
    %c0_21 = arith.constant 0 : index
    %c0_22 = arith.constant 0 : index
    %42 = vector.load %arg5[%c0_19, %c0_20, %c0_21, %c0_22] : memref<1x2x2x128xbf16, #tpu.memory_space<vmem>>, vector<1x2x2x128xbf16>
    %43 = vector.shape_cast %42 : vector<1x2x2x128xbf16> to vector<2x2x128xbf16>
    %44 = vector.shape_cast %41 : vector<2x2x128xbf16> to vector<1x2x2x128xbf16>
    tpu.vector_store %arg5[%c0_19, %c0_20, %c0_21, %c0_22], %44 {strides = array<i32>} : memref<1x2x2x128xbf16, #tpu.memory_space<vmem>>, vector<1x2x2x128xbf16>,
    return
  }
  func.func @transform_0(%arg0: i32, %arg1: i32) -> (i32, i32, i32, i32) {
    %c0_i32 = arith.constant 0 : i32
    %c0_i32_0 = arith.constant 0 : i32
    %c0_i32_1 = arith.constant 0 : i32
    %c0_i32_2 = arith.constant 0 : i32
    return %arg0, %c0_i32, %c0_i32_0, %c0_i32_1 : i32, i32, i32, i32
  }
  func.func @transform_1(%arg0: i32, %arg1: i32) -> (i32, i32) {
    %c0_i32 = arith.constant 0 : i32
    %c0_i32_0 = arith.constant 0 : i32
    %c0_i32_1 = arith.constant 0 : i32
    return %c0_i32, %c0_i32_0 : i32, i32
  }
  func.func @transform_2(%arg0: i32, %arg1: i32) -> (i32, i32) {
    %c0_i32 = arith.constant 0 : i32
    %c0_i32_0 = arith.constant 0 : i32
    %c0_i32_1 = arith.constant 0 : i32
    return %c0_i32, %c0_i32_0 : i32, i32
  }
  func.func @transform_3(%arg0: i32, %arg1: i32) -> (i32, i32, i32, i32) {
    %c0_i32 = arith.constant 0 : i32
    %c0_i32_0 = arith.constant 0 : i32
    %c0_i32_1 = arith.constant 0 : i32
    return %arg0, %arg1, %c0_i32, %c0_i32_0 : i32, i32, i32, i32
  }
}

module attributes {stable_mosaic.version = 11 : i64} {
  func.func @kernel(%arg0: i32, %arg1: i32, %arg2: memref<1x2x2x128xbf16, #tpu.memory_space<vmem>>, %arg3: memref<128x128xbf16, #tpu.memory_space<vmem>>, %arg4: memref<1x128xf32, #tpu.memory_space<vmem>>, %arg5: memref<1x2x2x128xf32, #tpu.memory_space<vmem>>) attributes {dimension_semantics = [#tpu.dimension_semantics<parallel>, #tpu.dimension_semantics<parallel>], iteration_bounds = array<i64: 2, 1>, scalar_prefetch = 0 : i64, scratch_operands = 0 : i64, tpu.core_type = #tpu.core_type<tc>, window_params = [{transform_indices = @transform_0, window_bounds = array<i64: 1, 2, 2, 128>}, {pipeline_mode = #tpu.pipeline_mode<synchronous>, transform_indices = @transform_1, window_bounds = array<i64: 128, 128>}, {pipeline_mode = #tpu.pipeline_mode<synchronous>, transform_indices = @transform_2, window_bounds = array<i64: 1, 128>}, {transform_indices = @transform_3, window_bounds = array<i64: 1, 2, 2, 128>}]} {
    %c2_i32 = arith.constant 2 : i32
    %0 = arith.muli %arg1, %c2_i32 : i32
    %1 = tpu.assume_multiple %0, 2 : i32
    %c0 = arith.constant 0 : index
    %2 = arith.index_cast %1 : i32 to index
    %c0_0 = arith.constant 0 : index
    %c0_1 = arith.constant 0 : index
    %3 = vector.load %arg2[%c0, %2, %c0_0, %c0_1] : memref<1x2x2x128xbf16, #tpu.memory_space<vmem>>, vector<1x2x2x128xbf16>
    %4 = vector.shape_cast %3 : vector<1x2x2x128xbf16> to vector<2x2x128xbf16>
    %5 = vector.shape_cast %4 : vector<2x2x128xbf16> to vector<4x128xbf16>
    %c0_2 = arith.constant 0 : index
    %c0_3 = arith.constant 0 : index
    %6 = vector.load %arg3[%c0_2, %c0_3] : memref<128x128xbf16, #tpu.memory_space<vmem>>, vector<128x128xbf16>
    %cst = arith.constant dense<0.000000e+00> : vector<4x128xf32>
    %7 = tpu.matmul %5, %6, %cst {dimension_numbers = #tpu.dot_dimension_numbers<[1], [0], [0], [1], [0, 0, 1, 1], [], []>} : vector<4x128xbf16>, vector<128x128xbf16>, vector<4x128xf32> -> vector<4x128xf32>
    %c0_4 = arith.constant 0 : index
    %c0_5 = arith.constant 0 : index
    %8 = vector.load %arg4[%c0_4, %c0_5] : memref<1x128xf32, #tpu.memory_space<vmem>>, vector<1x128xf32>
    %9 = vector.broadcast %8 : vector<1x128xf32> to vector<4x128xf32>
    %10 = arith.addf %7, %9 : vector<4x128xf32>
    %11 = vector.shape_cast %10 : vector<4x128xf32> to vector<2x2x128xf32>
    %c0_6 = arith.constant 0 : index
    %c0_7 = arith.constant 0 : index
    %c0_8 = arith.constant 0 : index
    %c0_9 = arith.constant 0 : index
    %12 = vector.load %arg5[%c0_6, %c0_7, %c0_8, %c0_9] : memref<1x2x2x128xf32, #tpu.memory_space<vmem>>, vector<1x2x2x128xf32>
    %13 = vector.shape_cast %12 : vector<1x2x2x128xf32> to vector<2x2x128xf32>
    %14 = vector.shape_cast %11 : vector<2x2x128xf32> to vector<1x2x2x128xf32>
    tpu.vector_store %arg5[%c0_6, %c0_7, %c0_8, %c0_9], %14 {strides = array<i32>} : memref<1x2x2x128xf32, #tpu.memory_space<vmem>>, vector<1x2x2x128xf32>,
    return
  }
  func.func @transform_0(%arg0: i32, %arg1: i32) -> (i32, i32, i32, i32) {
    %c0_i32 = arith.constant 0 : i32
    %c0_i32_0 = arith.constant 0 : i32
    %c0_i32_1 = arith.constant 0 : i32
    %c0_i32_2 = arith.constant 0 : i32
    return %arg0, %c0_i32, %c0_i32_0, %c0_i32_1 : i32, i32, i32, i32
  }
  func.func @transform_1(%arg0: i32, %arg1: i32) -> (i32, i32) {
    %c0_i32 = arith.constant 0 : i32
    %c0_i32_0 = arith.constant 0 : i32
    %c0_i32_1 = arith.constant 0 : i32
    return %c0_i32, %c0_i32_0 : i32, i32
  }
  func.func @transform_2(%arg0: i32, %arg1: i32) -> (i32, i32) {
    %c0_i32 = arith.constant 0 : i32
    %c0_i32_0 = arith.constant 0 : i32
    %c0_i32_1 = arith.constant 0 : i32
    return %c0_i32, %c0_i32_0 : i32, i32
  }
  func.func @transform_3(%arg0: i32, %arg1: i32) -> (i32, i32, i32, i32) {
    %c0_i32 = arith.constant 0 : i32
    %c0_i32_0 = arith.constant 0 : i32
    %c0_i32_1 = arith.constant 0 : i32
    return %arg0, %arg1, %c0_i32, %c0_i32_0 : i32, i32, i32, i32
  }
}

module attributes {stable_mosaic.version = 11 : i64} {
  func.func @kernel(%arg0: i32, %arg1: i32, %arg2: memref<1x16x16x128xbf16, #tpu.memory_space<vmem>>, %arg3: memref<128x128xbf16, #tpu.memory_space<vmem>>, %arg4: memref<1x128xf32, #tpu.memory_space<vmem>>, %arg5: memref<1x8x16x128xf32, #tpu.memory_space<vmem>>) attributes {dimension_semantics = [#tpu.dimension_semantics<parallel>, #tpu.dimension_semantics<parallel>], iteration_bounds = array<i64: 2, 2>, scalar_prefetch = 0 : i64, scratch_operands = 0 : i64, tpu.core_type = #tpu.core_type<tc>, window_params = [{transform_indices = @transform_0, window_bounds = array<i64: 1, 16, 16, 128>}, {pipeline_mode = #tpu.pipeline_mode<synchronous>, transform_indices = @transform_1, window_bounds = array<i64: 128, 128>}, {pipeline_mode = #tpu.pipeline_mode<synchronous>, transform_indices = @transform_2, window_bounds = array<i64: 1, 128>}, {transform_indices = @transform_3, window_bounds = array<i64: 1, 8, 16, 128>}]} {
    %c8_i32 = arith.constant 8 : i32
    %0 = arith.muli %arg1, %c8_i32 : i32
    %1 = tpu.assume_multiple %0, 8 : i32
    %c0 = arith.constant 0 : index
    %2 = arith.index_cast %1 : i32 to index
    %c0_0 = arith.constant 0 : index
    %c0_1 = arith.constant 0 : index
    %3 = vector.load %arg2[%c0, %2, %c0_0, %c0_1] : memref<1x16x16x128xbf16, #tpu.memory_space<vmem>>, vector<1x8x16x128xbf16>
    %4 = vector.shape_cast %3 : vector<1x8x16x128xbf16> to vector<8x16x128xbf16>
    %5 = vector.shape_cast %4 : vector<8x16x128xbf16> to vector<128x128xbf16>
    %c0_2 = arith.constant 0 : index
    %c0_3 = arith.constant 0 : index
    %6 = vector.load %arg3[%c0_2, %c0_3] : memref<128x128xbf16, #tpu.memory_space<vmem>>, vector<128x128xbf16>
    %cst = arith.constant dense<0.000000e+00> : vector<128x128xf32>
    %7 = tpu.matmul %5, %6, %cst {dimension_numbers = #tpu.dot_dimension_numbers<[1], [0], [0], [1], [0, 0, 1, 1], [], []>} : vector<128x128xbf16>, vector<128x128xbf16>, vector<128x128xf32> -> vector<128x128xf32>
    %c0_4 = arith.constant 0 : index
    %c0_5 = arith.constant 0 : index
    %8 = vector.load %arg4[%c0_4, %c0_5] : memref<1x128xf32, #tpu.memory_space<vmem>>, vector<1x128xf32>
    %9 = vector.broadcast %8 : vector<1x128xf32> to vector<128x128xf32>
    %10 = arith.addf %7, %9 : vector<128x128xf32>
    %11 = vector.shape_cast %10 : vector<128x128xf32> to vector<8x16x128xf32>
    %c0_6 = arith.constant 0 : index
    %c0_7 = arith.constant 0 : index
    %c0_8 = arith.constant 0 : index
    %c0_9 = arith.constant 0 : index
    %12 = vector.load %arg5[%c0_6, %c0_7, %c0_8, %c0_9] : memref<1x8x16x128xf32, #tpu.memory_space<vmem>>, vector<1x8x16x128xf32>
    %13 = vector.shape_cast %12 : vector<1x8x16x128xf32> to vector<8x16x128xf32>
    %14 = vector.shape_cast %11 : vector<8x16x128xf32> to vector<1x8x16x128xf32>
    tpu.vector_store %arg5[%c0_6, %c0_7, %c0_8, %c0_9], %14 {strides = array<i32>} : memref<1x8x16x128xf32, #tpu.memory_space<vmem>>, vector<1x8x16x128xf32>,
    return
  }
  func.func @transform_0(%arg0: i32, %arg1: i32) -> (i32, i32, i32, i32) {
    %c0_i32 = arith.constant 0 : i32
    %c0_i32_0 = arith.constant 0 : i32
    %c0_i32_1 = arith.constant 0 : i32
    %c0_i32_2 = arith.constant 0 : i32
    return %arg0, %c0_i32, %c0_i32_0, %c0_i32_1 : i32, i32, i32, i32
  }
  func.func @transform_1(%arg0: i32, %arg1: i32) -> (i32, i32) {
    %c0_i32 = arith.constant 0 : i32
    %c0_i32_0 = arith.constant 0 : i32
    %c0_i32_1 = arith.constant 0 : i32
    return %c0_i32, %c0_i32_0 : i32, i32
  }
  func.func @transform_2(%arg0: i32, %arg1: i32) -> (i32, i32) {
    %c0_i32 = arith.constant 0 : i32
    %c0_i32_0 = arith.constant 0 : i32
    %c0_i32_1 = arith.constant 0 : i32
    return %c0_i32, %c0_i32_0 : i32, i32
  }
  func.func @transform_3(%arg0: i32, %arg1: i32) -> (i32, i32, i32, i32) {
    %c0_i32 = arith.constant 0 : i32
    %c0_i32_0 = arith.constant 0 : i32
    %c0_i32_1 = arith.constant 0 : i32
    return %arg0, %arg1, %c0_i32, %c0_i32_0 : i32, i32, i32, i32
  }
}

module attributes {stable_mosaic.version = 11 : i64} {
  func.func @kernel(%arg0: i32, %arg1: i32, %arg2: memref<1x4x4x128xbf16, #tpu.memory_space<vmem>>, %arg3: memref<128x128xbf16, #tpu.memory_space<vmem>>, %arg4: memref<1x128xf32, #tpu.memory_space<vmem>>, %arg5: memref<1x4x4x128xf32, #tpu.memory_space<vmem>>) attributes {dimension_semantics = [#tpu.dimension_semantics<parallel>, #tpu.dimension_semantics<parallel>], iteration_bounds = array<i64: 2, 1>, scalar_prefetch = 0 : i64, scratch_operands = 0 : i64, tpu.core_type = #tpu.core_type<tc>, window_params = [{transform_indices = @transform_0, window_bounds = array<i64: 1, 4, 4, 128>}, {pipeline_mode = #tpu.pipeline_mode<synchronous>, transform_indices = @transform_1, window_bounds = array<i64: 128, 128>}, {pipeline_mode = #tpu.pipeline_mode<synchronous>, transform_indices = @transform_2, window_bounds = array<i64: 1, 128>}, {transform_indices = @transform_3, window_bounds = array<i64: 1, 4, 4, 128>}]} {
    %c4_i32 = arith.constant 4 : i32
    %0 = arith.muli %arg1, %c4_i32 : i32
    %1 = tpu.assume_multiple %0, 4 : i32
    %c0 = arith.constant 0 : index
    %2 = arith.index_cast %1 : i32 to index
    %c0_0 = arith.constant 0 : index
    %c0_1 = arith.constant 0 : index
    %3 = vector.load %arg2[%c0, %2, %c0_0, %c0_1] : memref<1x4x4x128xbf16, #tpu.memory_space<vmem>>, vector<1x4x4x128xbf16>
    %4 = vector.shape_cast %3 : vector<1x4x4x128xbf16> to vector<4x4x128xbf16>
    %5 = vector.shape_cast %4 : vector<4x4x128xbf16> to vector<16x128xbf16>
    %c0_2 = arith.constant 0 : index
    %c0_3 = arith.constant 0 : index
    %6 = vector.load %arg3[%c0_2, %c0_3] : memref<128x128xbf16, #tpu.memory_space<vmem>>, vector<128x128xbf16>
    %cst = arith.constant dense<0.000000e+00> : vector<16x128xf32>
    %7 = tpu.matmul %5, %6, %cst {dimension_numbers = #tpu.dot_dimension_numbers<[1], [0], [0], [1], [0, 0, 1, 1], [], []>} : vector<16x128xbf16>, vector<128x128xbf16>, vector<16x128xf32> -> vector<16x128xf32>
    %c0_4 = arith.constant 0 : index
    %c0_5 = arith.constant 0 : index
    %8 = vector.load %arg4[%c0_4, %c0_5] : memref<1x128xf32, #tpu.memory_space<vmem>>, vector<1x128xf32>
    %9 = vector.broadcast %8 : vector<1x128xf32> to vector<16x128xf32>
    %10 = arith.addf %7, %9 : vector<16x128xf32>
    %11 = vector.shape_cast %10 : vector<16x128xf32> to vector<4x4x128xf32>
    %c0_6 = arith.constant 0 : index
    %c0_7 = arith.constant 0 : index
    %c0_8 = arith.constant 0 : index
    %c0_9 = arith.constant 0 : index
    %12 = vector.load %arg5[%c0_6, %c0_7, %c0_8, %c0_9] : memref<1x4x4x128xf32, #tpu.memory_space<vmem>>, vector<1x4x4x128xf32>
    %13 = vector.shape_cast %12 : vector<1x4x4x128xf32> to vector<4x4x128xf32>
    %14 = vector.shape_cast %11 : vector<4x4x128xf32> to vector<1x4x4x128xf32>
    tpu.vector_store %arg5[%c0_6, %c0_7, %c0_8, %c0_9], %14 {strides = array<i32>} : memref<1x4x4x128xf32, #tpu.memory_space<vmem>>, vector<1x4x4x128xf32>,
    return
  }
  func.func @transform_0(%arg0: i32, %arg1: i32) -> (i32, i32, i32, i32) {
    %c0_i32 = arith.constant 0 : i32
    %c0_i32_0 = arith.constant 0 : i32
    %c0_i32_1 = arith.constant 0 : i32
    %c0_i32_2 = arith.constant 0 : i32
    return %arg0, %c0_i32, %c0_i32_0, %c0_i32_1 : i32, i32, i32, i32
  }
  func.func @transform_1(%arg0: i32, %arg1: i32) -> (i32, i32) {
    %c0_i32 = arith.constant 0 : i32
    %c0_i32_0 = arith.constant 0 : i32
    %c0_i32_1 = arith.constant 0 : i32
    return %c0_i32, %c0_i32_0 : i32, i32
  }
  func.func @transform_2(%arg0: i32, %arg1: i32) -> (i32, i32) {
    %c0_i32 = arith.constant 0 : i32
    %c0_i32_0 = arith.constant 0 : i32
    %c0_i32_1 = arith.constant 0 : i32
    return %c0_i32, %c0_i32_0 : i32, i32
  }
  func.func @transform_3(%arg0: i32, %arg1: i32) -> (i32, i32, i32, i32) {
    %c0_i32 = arith.constant 0 : i32
    %c0_i32_0 = arith.constant 0 : i32
    %c0_i32_1 = arith.constant 0 : i32
    return %arg0, %arg1, %c0_i32, %c0_i32_0 : i32, i32, i32, i32
  }
}

module attributes {stable_mosaic.version = 11 : i64} {
  func.func @kernel(%arg0: i32, %arg1: i32, %arg2: memref<1x8x8x128xbf16, #tpu.memory_space<vmem>>, %arg3: memref<128x128xbf16, #tpu.memory_space<vmem>>, %arg4: memref<1x128xf32, #tpu.memory_space<vmem>>, %arg5: memref<1x8x8x128xf32, #tpu.memory_space<vmem>>) attributes {dimension_semantics = [#tpu.dimension_semantics<parallel>, #tpu.dimension_semantics<parallel>], iteration_bounds = array<i64: 2, 1>, scalar_prefetch = 0 : i64, scratch_operands = 0 : i64, tpu.core_type = #tpu.core_type<tc>, window_params = [{transform_indices = @transform_0, window_bounds = array<i64: 1, 8, 8, 128>}, {pipeline_mode = #tpu.pipeline_mode<synchronous>, transform_indices = @transform_1, window_bounds = array<i64: 128, 128>}, {pipeline_mode = #tpu.pipeline_mode<synchronous>, transform_indices = @transform_2, window_bounds = array<i64: 1, 128>}, {transform_indices = @transform_3, window_bounds = array<i64: 1, 8, 8, 128>}]} {
    %c8_i32 = arith.constant 8 : i32
    %0 = arith.muli %arg1, %c8_i32 : i32
    %1 = tpu.assume_multiple %0, 8 : i32
    %c0 = arith.constant 0 : index
    %2 = arith.index_cast %1 : i32 to index
    %c0_0 = arith.constant 0 : index
    %c0_1 = arith.constant 0 : index
    %3 = vector.load %arg2[%c0, %2, %c0_0, %c0_1] : memref<1x8x8x128xbf16, #tpu.memory_space<vmem>>, vector<1x8x8x128xbf16>
    %4 = vector.shape_cast %3 : vector<1x8x8x128xbf16> to vector<8x8x128xbf16>
    %5 = vector.shape_cast %4 : vector<8x8x128xbf16> to vector<64x128xbf16>
    %c0_2 = arith.constant 0 : index
    %c0_3 = arith.constant 0 : index
    %6 = vector.load %arg3[%c0_2, %c0_3] : memref<128x128xbf16, #tpu.memory_space<vmem>>, vector<128x128xbf16>
    %cst = arith.constant dense<0.000000e+00> : vector<64x128xf32>
    %7 = tpu.matmul %5, %6, %cst {dimension_numbers = #tpu.dot_dimension_numbers<[1], [0], [0], [1], [0, 0, 1, 1], [], []>} : vector<64x128xbf16>, vector<128x128xbf16>, vector<64x128xf32> -> vector<64x128xf32>
    %c0_4 = arith.constant 0 : index
    %c0_5 = arith.constant 0 : index
    %8 = vector.load %arg4[%c0_4, %c0_5] : memref<1x128xf32, #tpu.memory_space<vmem>>, vector<1x128xf32>
    %9 = vector.broadcast %8 : vector<1x128xf32> to vector<64x128xf32>
    %10 = arith.addf %7, %9 : vector<64x128xf32>
    %11 = vector.shape_cast %10 : vector<64x128xf32> to vector<8x8x128xf32>
    %c0_6 = arith.constant 0 : index
    %c0_7 = arith.constant 0 : index
    %c0_8 = arith.constant 0 : index
    %c0_9 = arith.constant 0 : index
    %12 = vector.load %arg5[%c0_6, %c0_7, %c0_8, %c0_9] : memref<1x8x8x128xf32, #tpu.memory_space<vmem>>, vector<1x8x8x128xf32>
    %13 = vector.shape_cast %12 : vector<1x8x8x128xf32> to vector<8x8x128xf32>
    %14 = vector.shape_cast %11 : vector<8x8x128xf32> to vector<1x8x8x128xf32>
    tpu.vector_store %arg5[%c0_6, %c0_7, %c0_8, %c0_9], %14 {strides = array<i32>} : memref<1x8x8x128xf32, #tpu.memory_space<vmem>>, vector<1x8x8x128xf32>,
    return
  }
  func.func @transform_0(%arg0: i32, %arg1: i32) -> (i32, i32, i32, i32) {
    %c0_i32 = arith.constant 0 : i32
    %c0_i32_0 = arith.constant 0 : i32
    %c0_i32_1 = arith.constant 0 : i32
    %c0_i32_2 = arith.constant 0 : i32
    return %arg0, %c0_i32, %c0_i32_0, %c0_i32_1 : i32, i32, i32, i32
  }
  func.func @transform_1(%arg0: i32, %arg1: i32) -> (i32, i32) {
    %c0_i32 = arith.constant 0 : i32
    %c0_i32_0 = arith.constant 0 : i32
    %c0_i32_1 = arith.constant 0 : i32
    return %c0_i32, %c0_i32_0 : i32, i32
  }
  func.func @transform_2(%arg0: i32, %arg1: i32) -> (i32, i32) {
    %c0_i32 = arith.constant 0 : i32
    %c0_i32_0 = arith.constant 0 : i32
    %c0_i32_1 = arith.constant 0 : i32
    return %c0_i32, %c0_i32_0 : i32, i32
  }
  func.func @transform_3(%arg0: i32, %arg1: i32) -> (i32, i32, i32, i32) {
    %c0_i32 = arith.constant 0 : i32
    %c0_i32_0 = arith.constant 0 : i32
    %c0_i32_1 = arith.constant 0 : i32
    return %arg0, %arg1, %c0_i32, %c0_i32_0 : i32, i32, i32, i32
  }
}

</mosaic_0001>

<llo_original>
// kernel: cenet_forward.11
$region0: #{cenet_forward.11}
  #allocation0 [shape = 'u32[]', space=smem, size = 0x4, offset = 0x4, fixed_abs, tag = 'smem constant byte address 0x4 - core index']
  #allocation1 [shape = 'u32[144,128]{1,0:T(1,128)}', space=vmem, size = 0x12000, scoped, tag = 'internal scratch']
  #allocation2 [shape = 'bf16[16,1152]{1,0:T(16,128)(2,1)}', space=vmem, size = 0x9000, scoped, tag = 'scratch operand']
  %s0 = inlined_call_operand.vmem [shape: bf16[2,6,6,128], index: 0, kind: input, shape index: {}]
  %s1 = inlined_call_operand.vmem [shape: bf16[1152,128], index: 1, kind: input, shape index: {}]
  %s2 = inlined_call_operand.vmem [shape: f32[1,128], index: 2, kind: input, shape index: {}]
  %s3 = inlined_call_operand.vmem [shape: bf16[2,4,4,128], index: 3, kind: output, shape index: {}]
  %s4 = sld [smem:[#allocation0]]
  $region45: #{cenet_forward.11} parent=0
    _
  %s6 = ssub.s32 1, %s4
  %s7 = scalar_select 0, %s6, %s4
  loop: start=0, step=1, limit=4
  $region2: #{cenet_forward.11} parent=0 // loop_pre_header
    _
  $region3: #{cenet_forward.11} parent=0 // loop_header
    %s9 = sphi 0, %s13
    %p10 = scmp.ge.s32.totalorder %s9, 4
    %s16 = sphi 0, %s28
    %s17 = sphi 0, %s24
    %s18 = sphi 0, %s16
    %s19 = sphi 0, %s17
    %s20 = sphi 0, %s18
    %s21 = sphi 0, %s19
    %s31 = sphi 0, %s33
    %s34 = sphi 0, %s31
    %s35 = sphi 0, %s34
    %s51 = sphi 0, %s35
    %s55 = sphi 0, %s55
    %s57 = sphi 0, %s55
    %s58 = sphi 0, %s57
    %s72 = sphi 0, %s58
    %s76 = sphi 0, %s76
    %s78 = sphi 0, %s76
    %s79 = sphi 0, %s78
    %s93 = sphi 0, %s79
    %s101 = sphi 0, %s103
    %s104 = sphi 0, %s101
    %s105 = sphi 0, %s104
    %s121 = sphi 0, %s105
  $region4: #{cenet_forward.11} parent=0 // loop_header_branch
    %12 = sbr.rel (%p10) target = $region8
  $region5: #{cenet_forward.11} parent=0 // loop_body
    %s14 = ssub.s32 %s9, 1
    %s15 = ssub.s32 %s9, 2
    %s22 = sadd.s32 1, %s17
    %p23 = scmp.ge.s32.totalorder %s22, 1
    %s24 = scalar_select %p23, 0, %s22
    %s25 = sadd.s32 1, %s16
    %s26 = scalar_select %p23, %s25, %s16
    %p27 = scmp.ge.s32.totalorder %s26, 2
    %s28 = scalar_select %p27, 0, %s26
    %s29 = ssub.s32 %s16, %s28
    %p30 = scmp.eq.s32.totalorder %s29, 0
    %s32 = sadd.s32 %s31, 1
    %s33 = scalar_select %p30, %s31, %s32
    %p36 = pneg %p30
    %p37 = scmp.eq.s32.totalorder %s9, 1
    %p38 = por %p36, %p37
    %p39 = scmp.ne.s32.totalorder %s31, %s34
    %p40 = scmp.eq.s32.totalorder %s9, 0
    %p41 = por %p39, %p40
    %p42 = scmp.ne.s32.totalorder %s31, %s34
    %p43 = scmp.eq.s32.totalorder %s14, 1
    %p44 = por %p42, %p43
    %p45 = scmp.ne.s32.totalorder %s34, %s35
    %p46 = scmp.eq.s32.totalorder %s14, 0
    %p47 = por %p45, %p46
    %p48 = scmp.ne.s32.totalorder %s34, %s35
    %p49 = scmp.eq.s32.totalorder %s15, 1
    %p50 = por %p48, %p49
    %p52 = scmp.ne.s32.totalorder %s35, %s51
    %p53 = scmp.eq.s32.totalorder %s15, 0
    %p54 = por %p52, %p53
    %s56 = sadd.s32 %s55, 1
    %p59 = scmp.eq.s32.totalorder %s9, 1
    %p60 = scmp.ne.s32.totalorder %s55, %s57
    %p61 = scmp.eq.s32.totalorder %s9, 0
    %p62 = por %p60, %p61
    %p63 = scmp.ne.s32.totalorder %s55, %s57
    %p64 = scmp.eq.s32.totalorder %s14, 1
    %p65 = por %p63, %p64
    %p66 = scmp.ne.s32.totalorder %s57, %s58
    %p67 = scmp.eq.s32.totalorder %s14, 0
    %p68 = por %p66, %p67
    %p69 = scmp.ne.s32.totalorder %s57, %s58
    %p70 = scmp.eq.s32.totalorder %s15, 1
    %p71 = por %p69, %p70
    %p73 = scmp.ne.s32.totalorder %s58, %s72
    %p74 = scmp.eq.s32.totalorder %s15, 0
    %p75 = por %p73, %p74
    %s77 = sadd.s32 %s76, 1
    %p80 = scmp.eq.s32.totalorder %s9, 1
    %p81 = scmp.ne.s32.totalorder %s76, %s78
    %p82 = scmp.eq.s32.totalorder %s9, 0
    %p83 = por %p81, %p82
    %p84 = scmp.ne.s32.totalorder %s76, %s78
    %p85 = scmp.eq.s32.totalorder %s14, 1
    %p86 = por %p84, %p85
    %p87 = scmp.ne.s32.totalorder %s78, %s79
    %p88 = scmp.eq.s32.totalorder %s14, 0
    %p89 = por %p87, %p88
    %p90 = scmp.ne.s32.totalorder %s78, %s79
    %p91 = scmp.eq.s32.totalorder %s15, 1
    %p92 = por %p90, %p91
    %p94 = scmp.ne.s32.totalorder %s79, %s93
    %p95 = scmp.eq.s32.totalorder %s15, 0
    %p96 = por %p94, %p95
    %s97 = ssub.s32 %s16, %s28
    %s98 = ssub.s32 %s17, %s24
    %s99 = sor.u32 %s97, %s98
    %p100 = scmp.eq.s32.totalorder %s99, 0
    %s102 = sadd.s32 %s101, 1
    %s103 = scalar_select %p100, %s101, %s102
    %p106 = pneg %p100
    %p107 = scmp.eq.s32.totalorder %s9, 1
    %p108 = por %p106, %p107
    %p109 = scmp.ne.s32.totalorder %s101, %s104
    %p110 = scmp.eq.s32.totalorder %s9, 0
    %p111 = por %p109, %p110
    %p112 = scmp.ne.s32.totalorder %s101, %s104
    %p113 = scmp.eq.s32.totalorder %s14, 1
    %p114 = por %p112, %p113
    %p115 = scmp.ne.s32.totalorder %s104, %s105
    %p116 = scmp.eq.s32.totalorder %s14, 0
    %p117 = por %p115, %p116
    %p118 = scmp.ne.s32.totalorder %s104, %s105
    %p119 = scmp.eq.s32.totalorder %s15, 1
    %p120 = por %p118, %p119
    %p122 = scmp.ne.s32.totalorder %s105, %s121
    %p123 = scmp.eq.s32.totalorder %s15, 0
    %p124 = por %p122, %p123
    %p125 = scmp.le.s32.totalorder 1, %s9
    %p126 = scmp.lt.s32.totalorder %s9, 3
    %p127 = pnand %p125, %p126
    %p128 = pneg %p127
    // Predicated region
    $region9: #{cenet_forward.11} parent=5 // pred_check
      _
    $region10: #{cenet_forward.11} parent=5 // pred_check_branch
      %130 = sbr.rel (%p127) target = $region12
    $region11: #{cenet_forward.11} parent=5 // pred_region
      %s131 = ssub.s32 %s9, 1
      // Predicated region
      $region13: #{cenet_forward.11} parent=11 // pred_check
        %p132 = pneg %p68
      $region14: #{cenet_forward.11} parent=11 // pred_check_branch
        %134 = sbr.rel (%p132) target = $region16
      $region15: #{cenet_forward.11} parent=11 // pred_region
        _
      $region16: #{cenet_forward.11} parent=11 // pred_fallthru
        _
      // Predicated region
      $region17: #{cenet_forward.11} parent=11 // pred_check
        %p135 = pneg %p89
      $region18: #{cenet_forward.11} parent=11 // pred_check_branch
        %137 = sbr.rel (%p135) target = $region20
      $region19: #{cenet_forward.11} parent=11 // pred_region
        _
      $region20: #{cenet_forward.11} parent=11 // pred_fallthru
        _
    $region12: #{cenet_forward.11} parent=5 // pred_fallthru
      _
    %p138 = scmp.lt.s32.totalorder %s9, 2
    // Predicated region
    $region21: #{cenet_forward.11} parent=5 // pred_check
      %p139 = pneg %p138
    $region22: #{cenet_forward.11} parent=5 // pred_check_branch
      %141 = sbr.rel (%p139) target = $region24
    $region23: #{cenet_forward.11} parent=5 // pred_region
      // Predicated region
      $region25: #{cenet_forward.11} parent=23 // pred_check
        %p142 = pneg %p41
      $region26: #{cenet_forward.11} parent=23 // pred_check_branch
        %144 = sbr.rel (%p142) target = $region28
      $region27: #{cenet_forward.11} parent=23 // pred_region
        %p145 = scmp.lt.s32.totalorder %s16, 1
        %s146 = scalar_select %p145, %s16, 1
        %s147 = smul.addr %s146, 6
        %s148 = smul.addr %s147, 4
        %s149 = scalar_lea.vmem %s0, %s148
      $region28: #{cenet_forward.11} parent=23 // pred_fallthru
        _
    $region24: #{cenet_forward.11} parent=5 // pred_fallthru
      _
    %p150 = scmp.le.s32.totalorder 1, %s9
    %p151 = scmp.lt.s32.totalorder %s9, 3
    %p152 = pnand %p150, %p151
    %p153 = pneg %p152
    // Predicated region
    $region29: #{cenet_forward.11} parent=5 // pred_check
      _
    $region30: #{cenet_forward.11} parent=5 // pred_check_branch
      %155 = sbr.rel (%p152) target = $region32
    $region31: #{cenet_forward.11} parent=5 // pred_region
      %s156 = ssub.s32 %s9, 1
      %p157 = scmp.lt.s32.totalorder %s18, 1
      %s158 = scalar_select %p157, %s18, 1
      %s159 = smul.addr %s158, 6
      %s160 = smul.addr %s159, 4
      %s161 = scalar_lea.vmem %s0, %s160
      %p162 = pneg %p47
      %p163 = pneg %p44
      %p164 = pneg %p68
      %p165 = pneg %p65
      %p166 = pneg %p89
      %p167 = pneg %p86
      %p168 = pneg %p117
      %p169 = pneg %p114
      %s170 = smul.u32 4, %s19
      %p171 = scmp.lt.s32.totalorder %s18, 1
      %s172 = scalar_select %p171, %s18, 1
      %p173 = scmp.lt.s32.totalorder %s170, 3
      %s174 = scalar_select %p173, %s170, 3
      %s175 = smul.addr %s172, 4
      %s176 = sadd.s32 %s174, %s175
      %s177 = smul.addr %s176, 2
      %s178 = scalar_lea.vmem %s3, %s177
      %p179 = scmp.lt.s32.totalorder %s18, 1
      %s180 = scalar_select %p179, %s18, 1
      %s181 = smul.addr %s180, 6
      %s182 = smul.addr %s181, 4
      %s183 = scalar_lea.vmem %s0, %s182
      %s184 = smul.u32 4, %s19
      %p185 = scmp.lt.s32.totalorder %s18, 1
      %s186 = scalar_select %p185, %s18, 1
      %p187 = scmp.lt.s32.totalorder %s184, 3
      %s188 = scalar_select %p187, %s184, 3
      %s189 = smul.addr %s186, 4
      %s190 = sadd.s32 %s188, %s189
      %s191 = smul.addr %s190, 2
      %s192 = scalar_lea.vmem %s3, %s191
      %s193 = smul.u32 4, %s19
      %s195 = smul.u32 %s19, 4
      %s196 = smul.addr %s195, 4
      %s197 = scalar_lea.vmem %s183, %s196
      %v198 = vld [vmem:[%s197] sm:$0x7]
      %v199 = vld [vmem:[%s197 + $0x4] sm:$0x7]
      %v200 = vld [vmem:[%s197 + $0x8] sm:$0x7]
      %v201 = vld [vmem:[%s197 + $0xc] sm:$0x7]
      %v202 = vld [vmem:[%s197 + $0x10] sm:$0x7]
      %v203 = vld [vmem:[%s197 + $0x14] sm:$0x7]
      %v208 = vcombine.low %v198, %v199
      %v209 = vcombine.low %v200, %v201
      %v211 = vunpack.c.l.s4 1983009808
      %v212 = vunpack.c.0.s8 %v211
      %v213 = vlaneseq
      %v214 = vshrl.u32 %v213, 7
      %v215 = vsub.s32 %v212, %v214
      %v216 = vrot.slane %v208, %v215
      %v218 = vunpack.c.l.s4 1983009808
      %v219 = vunpack.c.0.s8 %v218
      %v220 = vlaneseq
      %v221 = vshrl.u32 %v220, 7
      %v222 = vsub.s32 %v219, %v221
      %v223 = vrot.slane %v209, %v222
      %v224 = vcombine.low %v216, %v223
      %226 = vst [vmem:[#allocation2] sm:$0xff] %v224
      %v228 = vunpack.c.l.s4 1983009808
      %v229 = vunpack.c.0.s8 %v228
      %v230 = vlaneseq
      %v231 = vshrl.u32 %v230, 7
      %v232 = vsub.s32 %v229, %v231
      %v233 = vrot.slane %v198, %v232
      %v234 = vcombine.high %v233, %v233
      %v236 = vunpack.c.l.s4 1983009808
      %v237 = vunpack.c.0.s8 %v236
      %v238 = vlaneseq
      %v239 = vshrl.u32 %v238, 7
      %v240 = vsub.s32 %v237, %v239
      %v241 = vrot.slane %v199, %v240
      %v242 = vcombine.high %v241, %v241
      %v244 = vunpack.c.l.s4 1983009808
      %v245 = vunpack.c.0.s8 %v244
      %v246 = vlaneseq
      %v247 = vshrl.u32 %v246, 7
      %v248 = vsub.s32 %v245, %v247
      %v249 = vrot.slane %v200, %v248
      %v250 = vcombine.high %v249, %v249
      %v252 = vunpack.c.l.s4 1983009808
      %v253 = vunpack.c.0.s8 %v252
      %v254 = vlaneseq
      %v255 = vshrl.u32 %v254, 7
      %v256 = vsub.s32 %v253, %v255
      %v257 = vrot.slane %v201, %v256
      %v258 = vcombine.high %v257, %v257
      %vm259 = vsmask.f32 1280
      %vm260 = vsmask.f32 3336
      %vm261 = vmor %vm259, %vm260
      %vm262 = vsmask.f32 5392
      %vm263 = vmor %vm261, %vm262
      %vm264 = vsmask.f32 7448
      %vm265 = vmor %vm263, %vm264
      %v267 = vshrl.u32 %v233, 16
      %v269 = vrot.slane %v267, 6
      %v270 = vshll.u32 %v233, 16
      %v272 = vrot.slane %v270, 7
      %v273 = vor.u32 %v269, %v272
      %v274 = vrot.slane %v273, 2
      %v276 = vshll.u32 %v234, 16
      %v278 = vrot.slane %v276, 7
      %v279 = vsel %vm265, %v274, %v278
      %v281 = vshrl.u32 %v241, 16
      %v283 = vrot.slane %v281, 6
      %v284 = vshll.u32 %v241, 16
      %v286 = vrot.slane %v284, 7
      %v287 = vor.u32 %v283, %v286
      %v288 = vrot.slane %v287, 2
      %v290 = vshll.u32 %v242, 16
      %v292 = vrot.slane %v290, 7
      %v293 = vsel %vm265, %v288, %v292
      %v295 = vshrl.u32 %v249, 16
      %v297 = vrot.slane %v295, 6
      %v298 = vshll.u32 %v249, 16
      %v300 = vrot.slane %v298, 7
      %v301 = vor.u32 %v297, %v300
      %v302 = vrot.slane %v301, 2
      %v304 = vshll.u32 %v250, 16
      %v306 = vrot.slane %v304, 7
      %v307 = vsel %vm265, %v302, %v306
      %v309 = vshrl.u32 %v257, 16
      %v311 = vrot.slane %v309, 6
      %v312 = vshll.u32 %v257, 16
      %v314 = vrot.slane %v312, 7
      %v315 = vor.u32 %v311, %v314
      %v316 = vrot.slane %v315, 2
      %v318 = vshll.u32 %v258, 16
      %v320 = vrot.slane %v318, 7
      %v321 = vsel %vm265, %v316, %v320
      %v322 = vcombine.low %v279, %v293
      %v323 = vcombine.low %v307, %v321
      %v325 = vunpack.c.l.s4 1983009808
      %v326 = vunpack.c.0.s8 %v325
      %v327 = vlaneseq
      %v328 = vshrl.u32 %v327, 7
      %v329 = vsub.s32 %v326, %v328
      %v330 = vrot.slane %v322, %v329
      %v332 = vunpack.c.l.s4 1983009808
      %v333 = vunpack.c.0.s8 %v332
      %v334 = vlaneseq
      %v335 = vshrl.u32 %v334, 7
      %v336 = vsub.s32 %v333, %v335
      %v337 = vrot.slane %v323, %v336
      %v338 = vcombine.low %v330, %v337
      %340 = vst [vmem:[#allocation2 + $0x8] sm:$0xff] %v338
      %vm341 = vcmask 1040384
      %vm342 = vcmask 1042434
      %vm343 = vmor %vm341, %vm342
      %vm344 = vcmask 1044484
      %vm345 = vmor %vm343, %vm344
      %vm346 = vcmask 1046534
      %vm347 = vmor %vm345, %vm346
      %v348 = vrot.slane %v233, 7
      %v349 = vrot.slane %v348, 2
      %v350 = vrot.slane %v234, 7
      %v351 = vsel %vm347, %v349, %v350
      %v352 = vrot.slane %v241, 7
      %v353 = vrot.slane %v352, 2
      %v354 = vrot.slane %v242, 7
      %v355 = vsel %vm347, %v353, %v354
      %v356 = vrot.slane %v249, 7
      %v357 = vrot.slane %v356, 2
      %v358 = vrot.slane %v250, 7
      %v359 = vsel %vm347, %v357, %v358
      %v360 = vrot.slane %v257, 7
      %v361 = vrot.slane %v360, 2
      %v362 = vrot.slane %v258, 7
      %v363 = vsel %vm347, %v361, %v362
      %v364 = vcombine.low %v351, %v355
      %v365 = vcombine.low %v359, %v363
      %v367 = vunpack.c.l.s4 1983009808
      %v368 = vunpack.c.0.s8 %v367
      %v369 = vlaneseq
      %v370 = vshrl.u32 %v369, 7
      %v371 = vsub.s32 %v368, %v370
      %v372 = vrot.slane %v364, %v371
      %v374 = vunpack.c.l.s4 1983009808
      %v375 = vunpack.c.0.s8 %v374
      %v376 = vlaneseq
      %v377 = vshrl.u32 %v376, 7
      %v378 = vsub.s32 %v375, %v377
      %v379 = vrot.slane %v365, %v378
      %v380 = vcombine.low %v372, %v379
      %382 = vst [vmem:[#allocation2 + $0x10] sm:$0xff] %v380
      %v384 = vcombine.low %v199, %v200
      %v385 = vcombine.low %v201, %v202
      %v387 = vunpack.c.l.s4 1983009808
      %v388 = vunpack.c.0.s8 %v387
      %v389 = vlaneseq
      %v390 = vshrl.u32 %v389, 7
      %v391 = vsub.s32 %v388, %v390
      %v392 = vrot.slane %v384, %v391
      %v394 = vunpack.c.l.s4 1983009808
      %v395 = vunpack.c.0.s8 %v394
      %v396 = vlaneseq
      %v397 = vshrl.u32 %v396, 7
      %v398 = vsub.s32 %v395, %v397
      %v399 = vrot.slane %v385, %v398
      %v400 = vcombine.low %v392, %v399
      %402 = vst [vmem:[#allocation2 + $0x18] sm:$0xff] %v400
      %v404 = vunpack.c.l.s4 1983009808
      %v405 = vunpack.c.0.s8 %v404
      %v406 = vlaneseq
      %v407 = vshrl.u32 %v406, 7
      %v408 = vsub.s32 %v405, %v407
      %v409 = vrot.slane %v202, %v408
      %v410 = vcombine.high %v409, %v409
      %v412 = vshrl.u32 %v409, 16
      %v414 = vrot.slane %v412, 6
      %v415 = vshll.u32 %v409, 16
      %v417 = vrot.slane %v415, 7
      %v418 = vor.u32 %v414, %v417
      %v419 = vrot.slane %v418, 2
      %v421 = vshll.u32 %v410, 16
      %v423 = vrot.slane %v421, 7
      %v424 = vsel %vm265, %v419, %v423
      %v425 = vcombine.low %v293, %v307
      %v426 = vcombine.low %v321, %v424
      %v428 = vunpack.c.l.s4 1983009808
      %v429 = vunpack.c.0.s8 %v428
      %v430 = vlaneseq
      %v431 = vshrl.u32 %v430, 7
      %v432 = vsub.s32 %v429, %v431
      %v433 = vrot.slane %v425, %v432
      %v435 = vunpack.c.l.s4 1983009808
      %v436 = vunpack.c.0.s8 %v435
      %v437 = vlaneseq
      %v438 = vshrl.u32 %v437, 7
      %v439 = vsub.s32 %v436, %v438
      %v440 = vrot.slane %v426, %v439
      %v441 = vcombine.low %v433, %v440
      %443 = vst [vmem:[#allocation2 + $0x20] sm:$0xff] %v441
      %v444 = vrot.slane %v409, 7
      %v445 = vrot.slane %v444, 2
      %v446 = vrot.slane %v410, 7
      %v447 = vsel %vm347, %v445, %v446
      %v448 = vcombine.low %v355, %v359
      %v449 = vcombine.low %v363, %v447
      %v451 = vunpack.c.l.s4 1983009808
      %v452 = vunpack.c.0.s8 %v451
      %v453 = vlaneseq
      %v454 = vshrl.u32 %v453, 7
      %v455 = vsub.s32 %v452, %v454
      %v456 = vrot.slane %v448, %v455
      %v458 = vunpack.c.l.s4 1983009808
      %v459 = vunpack.c.0.s8 %v458
      %v460 = vlaneseq
      %v461 = vshrl.u32 %v460, 7
      %v462 = vsub.s32 %v459, %v461
      %v463 = vrot.slane %v449, %v462
      %v464 = vcombine.low %v456, %v463
      %466 = vst [vmem:[#allocation2 + $0x28] sm:$0xff] %v464
      %v468 = vcombine.low %v202, %v203
      %v470 = vunpack.c.l.s4 1983009808
      %v471 = vunpack.c.0.s8 %v470
      %v472 = vlaneseq
      %v473 = vshrl.u32 %v472, 7
      %v474 = vsub.s32 %v471, %v473
      %v475 = vrot.slane %v468, %v474
      %v476 = vcombine.low %v223, %v475
      %478 = vst [vmem:[#allocation2 + $0x30] sm:$0xff] %v476
      %v480 = vunpack.c.l.s4 1983009808
      %v481 = vunpack.c.0.s8 %v480
      %v482 = vlaneseq
      %v483 = vshrl.u32 %v482, 7
      %v484 = vsub.s32 %v481, %v483
      %v485 = vrot.slane %v203, %v484
      %v486 = vcombine.high %v485, %v485
      %v488 = vshrl.u32 %v485, 16
      %v490 = vrot.slane %v488, 6
      %v491 = vshll.u32 %v485, 16
      %v493 = vrot.slane %v491, 7
      %v494 = vor.u32 %v490, %v493
      %v495 = vrot.slane %v494, 2
      %v497 = vshll.u32 %v486, 16
      %v499 = vrot.slane %v497, 7
      %v500 = vsel %vm265, %v495, %v499
      %v501 = vcombine.low %v424, %v500
      %v503 = vunpack.c.l.s4 1983009808
      %v504 = vunpack.c.0.s8 %v503
      %v505 = vlaneseq
      %v506 = vshrl.u32 %v505, 7
      %v507 = vsub.s32 %v504, %v506
      %v508 = vrot.slane %v501, %v507
      %v509 = vcombine.low %v337, %v508
      %511 = vst [vmem:[#allocation2 + $0x38] sm:$0xff] %v509
      %v512 = vrot.slane %v485, 7
      %v513 = vrot.slane %v512, 2
      %v514 = vrot.slane %v486, 7
      %v515 = vsel %vm347, %v513, %v514
      %v516 = vcombine.low %v447, %v515
      %v518 = vunpack.c.l.s4 1983009808
      %v519 = vunpack.c.0.s8 %v518
      %v520 = vlaneseq
      %v521 = vshrl.u32 %v520, 7
      %v522 = vsub.s32 %v519, %v521
      %v523 = vrot.slane %v516, %v522
      %v524 = vcombine.low %v379, %v523
      %526 = vst [vmem:[#allocation2 + $0x40] sm:$0xff] %v524
      %v527 = vld [vmem:[#allocation2] sm:$0xff]
      %v528 = vld [vmem:[#allocation2 + $0x8] sm:$0xff]
      %v529 = vld [vmem:[#allocation2 + $0x10] sm:$0xff]
      %v530 = vld [vmem:[#allocation2 + $0x18] sm:$0xff]
      %v531 = vld [vmem:[#allocation2 + $0x20] sm:$0xff]
      %v532 = vld [vmem:[#allocation2 + $0x28] sm:$0xff]
      %v533 = vld [vmem:[#allocation2 + $0x30] sm:$0xff]
      %v534 = vld [vmem:[#allocation2 + $0x38] sm:$0xff]
      %v535 = vld [vmem:[#allocation2 + $0x40] sm:$0xff]
      %v536 = vld [vmem:[%s1] sm:$0xf]
      %v537 = vld [vmem:[%s1 + $0x4] sm:$0xf]
      %v538 = vld [vmem:[%s1 + $0x8] sm:$0xf]
      %v539 = vld [vmem:[%s1 + $0xc] sm:$0xf]
      %v540 = vld [vmem:[%s1 + $0x10] sm:$0xf]
      %v541 = vld [vmem:[%s1 + $0x14] sm:$0xf]
      %v542 = vld [vmem:[%s1 + $0x18] sm:$0xf]
      %v543 = vld [vmem:[%s1 + $0x1c] sm:$0xf]
      %v544 = vld [vmem:[%s1 + $0x20] sm:$0xf]
      %v545 = vld [vmem:[%s1 + $0x24] sm:$0xf]
      %v546 = vld [vmem:[%s1 + $0x28] sm:$0xf]
      %v547 = vld [vmem:[%s1 + $0x2c] sm:$0xf]
      %v548 = vld [vmem:[%s1 + $0x30] sm:$0xf]
      %v549 = vld [vmem:[%s1 + $0x34] sm:$0xf]
      %v550 = vld [vmem:[%s1 + $0x38] sm:$0xf]
      %v551 = vld [vmem:[%s1 + $0x3c] sm:$0xf]
      %v552 = vld [vmem:[%s1 + $0x40] sm:$0xf]
      %v553 = vld [vmem:[%s1 + $0x44] sm:$0xf]
      %v554 = vld [vmem:[%s1 + $0x48] sm:$0xf]
      %v555 = vld [vmem:[%s1 + $0x4c] sm:$0xf]
      %v556 = vld [vmem:[%s1 + $0x50] sm:$0xf]
      %v557 = vld [vmem:[%s1 + $0x54] sm:$0xf]
      %v558 = vld [vmem:[%s1 + $0x58] sm:$0xf]
      %v559 = vld [vmem:[%s1 + $0x5c] sm:$0xf]
      %v560 = vld [vmem:[%s1 + $0x60] sm:$0xf]
      %v561 = vld [vmem:[%s1 + $0x64] sm:$0xf]
      %v562 = vld [vmem:[%s1 + $0x68] sm:$0xf]
      %v563 = vld [vmem:[%s1 + $0x6c] sm:$0xf]
      %v564 = vld [vmem:[%s1 + $0x70] sm:$0xf]
      %v565 = vld [vmem:[%s1 + $0x74] sm:$0xf]
      %v566 = vld [vmem:[%s1 + $0x78] sm:$0xf]
      %v567 = vld [vmem:[%s1 + $0x7c] sm:$0xf]
      %v568 = vld [vmem:[%s1 + $0x80] sm:$0xf]
      %v569 = vld [vmem:[%s1 + $0x84] sm:$0xf]
      %v570 = vld [vmem:[%s1 + $0x88] sm:$0xf]
      %v571 = vld [vmem:[%s1 + $0x8c] sm:$0xf]
      %v572 = vld [vmem:[%s1 + $0x90] sm:$0xf]
      %v573 = vld [vmem:[%s1 + $0x94] sm:$0xf]
      %v574 = vld [vmem:[%s1 + $0x98] sm:$0xf]
      %v575 = vld [vmem:[%s1 + $0x9c] sm:$0xf]
      %v576 = vld [vmem:[%s1 + $0xa0] sm:$0xf]
      %v577 = vld [vmem:[%s1 + $0xa4] sm:$0xf]
      %v578 = vld [vmem:[%s1 + $0xa8] sm:$0xf]
      %v579 = vld [vmem:[%s1 + $0xac] sm:$0xf]
      %v580 = vld [vmem:[%s1 + $0xb0] sm:$0xf]
      %v581 = vld [vmem:[%s1 + $0xb4] sm:$0xf]
      %v582 = vld [vmem:[%s1 + $0xb8] sm:$0xf]
      %v583 = vld [vmem:[%s1 + $0xbc] sm:$0xf]
      %v584 = vld [vmem:[%s1 + $0xc0] sm:$0xf]
      %v585 = vld [vmem:[%s1 + $0xc4] sm:$0xf]
      %v586 = vld [vmem:[%s1 + $0xc8] sm:$0xf]
      %v587 = vld [vmem:[%s1 + $0xcc] sm:$0xf]
      %v588 = vld [vmem:[%s1 + $0xd0] sm:$0xf]
      %v589 = vld [vmem:[%s1 + $0xd4] sm:$0xf]
      %v590 = vld [vmem:[%s1 + $0xd8] sm:$0xf]
      %v591 = vld [vmem:[%s1 + $0xdc] sm:$0xf]
      %v592 = vld [vmem:[%s1 + $0xe0] sm:$0xf]
      %v593 = vld [vmem:[%s1 + $0xe4] sm:$0xf]
      %v594 = vld [vmem:[%s1 + $0xe8] sm:$0xf]
      %v595 = vld [vmem:[%s1 + $0xec] sm:$0xf]
      %v596 = vld [vmem:[%s1 + $0xf0] sm:$0xf]
      %v597 = vld [vmem:[%s1 + $0xf4] sm:$0xf]
      %v598 = vld [vmem:[%s1 + $0xf8] sm:$0xf]
      %v599 = vld [vmem:[%s1 + $0xfc] sm:$0xf]
      %v600 = vld [vmem:[%s1 + $0x100] sm:$0xf]
      %v601 = vld [vmem:[%s1 + $0x104] sm:$0xf]
      %v602 = vld [vmem:[%s1 + $0x108] sm:$0xf]
      %v603 = vld [vmem:[%s1 + $0x10c] sm:$0xf]
      %v604 = vld [vmem:[%s1 + $0x110] sm:$0xf]
      %v605 = vld [vmem:[%s1 + $0x114] sm:$0xf]
      %v606 = vld [vmem:[%s1 + $0x118] sm:$0xf]
      %v607 = vld [vmem:[%s1 + $0x11c] sm:$0xf]
      %v608 = vld [vmem:[%s1 + $0x120] sm:$0xf]
      %v609 = vld [vmem:[%s1 + $0x124] sm:$0xf]
      %v610 = vld [vmem:[%s1 + $0x128] sm:$0xf]
      %v611 = vld [vmem:[%s1 + $0x12c] sm:$0xf]
      %v612 = vld [vmem:[%s1 + $0x130] sm:$0xf]
      %v613 = vld [vmem:[%s1 + $0x134] sm:$0xf]
      %v614 = vld [vmem:[%s1 + $0x138] sm:$0xf]
      %v615 = vld [vmem:[%s1 + $0x13c] sm:$0xf]
      %v616 = vld [vmem:[%s1 + $0x140] sm:$0xf]
      %v617 = vld [vmem:[%s1 + $0x144] sm:$0xf]
      %v618 = vld [vmem:[%s1 + $0x148] sm:$0xf]
      %v619 = vld [vmem:[%s1 + $0x14c] sm:$0xf]
      %v620 = vld [vmem:[%s1 + $0x150] sm:$0xf]
      %v621 = vld [vmem:[%s1 + $0x154] sm:$0xf]
      %v622 = vld [vmem:[%s1 + $0x158] sm:$0xf]
      %v623 = vld [vmem:[%s1 + $0x15c] sm:$0xf]
      %v624 = vld [vmem:[%s1 + $0x160] sm:$0xf]
      %v625 = vld [vmem:[%s1 + $0x164] sm:$0xf]
      %v626 = vld [vmem:[%s1 + $0x168] sm:$0xf]
      %v627 = vld [vmem:[%s1 + $0x16c] sm:$0xf]
      %v628 = vld [vmem:[%s1 + $0x170] sm:$0xf]
      %v629 = vld [vmem:[%s1 + $0x174] sm:$0xf]
      %v630 = vld [vmem:[%s1 + $0x178] sm:$0xf]
      %v631 = vld [vmem:[%s1 + $0x17c] sm:$0xf]
      %v632 = vld [vmem:[%s1 + $0x180] sm:$0xf]
      %v633 = vld [vmem:[%s1 + $0x184] sm:$0xf]
      %v634 = vld [vmem:[%s1 + $0x188] sm:$0xf]
      %v635 = vld [vmem:[%s1 + $0x18c] sm:$0xf]
      %v636 = vld [vmem:[%s1 + $0x190] sm:$0xf]
      %v637 = vld [vmem:[%s1 + $0x194] sm:$0xf]
      %v638 = vld [vmem:[%s1 + $0x198] sm:$0xf]
      %v639 = vld [vmem:[%s1 + $0x19c] sm:$0xf]
      %v640 = vld [vmem:[%s1 + $0x1a0] sm:$0xf]
      %v641 = vld [vmem:[%s1 + $0x1a4] sm:$0xf]
      %v642 = vld [vmem:[%s1 + $0x1a8] sm:$0xf]
      %v643 = vld [vmem:[%s1 + $0x1ac] sm:$0xf]
      %v644 = vld [vmem:[%s1 + $0x1b0] sm:$0xf]
      %v645 = vld [vmem:[%s1 + $0x1b4] sm:$0xf]
      %v646 = vld [vmem:[%s1 + $0x1b8] sm:$0xf]
      %v647 = vld [vmem:[%s1 + $0x1bc] sm:$0xf]
      %v648 = vld [vmem:[%s1 + $0x1c0] sm:$0xf]
      %v649 = vld [vmem:[%s1 + $0x1c4] sm:$0xf]
      %v650 = vld [vmem:[%s1 + $0x1c8] sm:$0xf]
      %v651 = vld [vmem:[%s1 + $0x1cc] sm:$0xf]
      %v652 = vld [vmem:[%s1 + $0x1d0] sm:$0xf]
      %v653 = vld [vmem:[%s1 + $0x1d4] sm:$0xf]
      %v654 = vld [vmem:[%s1 + $0x1d8] sm:$0xf]
      %v655 = vld [vmem:[%s1 + $0x1dc] sm:$0xf]
      %v656 = vld [vmem:[%s1 + $0x1e0] sm:$0xf]
      %v657 = vld [vmem:[%s1 + $0x1e4] sm:$0xf]
      %v658 = vld [vmem:[%s1 + $0x1e8] sm:$0xf]
      %v659 = vld [vmem:[%s1 + $0x1ec] sm:$0xf]
      %v660 = vld [vmem:[%s1 + $0x1f0] sm:$0xf]
      %v661 = vld [vmem:[%s1 + $0x1f4] sm:$0xf]
      %v662 = vld [vmem:[%s1 + $0x1f8] sm:$0xf]
      %v663 = vld [vmem:[%s1 + $0x1fc] sm:$0xf]
      %v664 = vld [vmem:[%s1 + $0x200] sm:$0xf]
      %v665 = vld [vmem:[%s1 + $0x204] sm:$0xf]
      %v666 = vld [vmem:[%s1 + $0x208] sm:$0xf]
      %v667 = vld [vmem:[%s1 + $0x20c] sm:$0xf]
      %v668 = vld [vmem:[%s1 + $0x210] sm:$0xf]
      %v669 = vld [vmem:[%s1 + $0x214] sm:$0xf]
      %v670 = vld [vmem:[%s1 + $0x218] sm:$0xf]
      %v671 = vld [vmem:[%s1 + $0x21c] sm:$0xf]
      %v672 = vld [vmem:[%s1 + $0x220] sm:$0xf]
      %v673 = vld [vmem:[%s1 + $0x224] sm:$0xf]
      %v674 = vld [vmem:[%s1 + $0x228] sm:$0xf]
      %v675 = vld [vmem:[%s1 + $0x22c] sm:$0xf]
      %v676 = vld [vmem:[%s1 + $0x230] sm:$0xf]
      %v677 = vld [vmem:[%s1 + $0x234] sm:$0xf]
      %v678 = vld [vmem:[%s1 + $0x238] sm:$0xf]
      %v679 = vld [vmem:[%s1 + $0x23c] sm:$0xf]
      %v680 = vld [vmem:[%s2] sm:$0x1]
      %v682 = vlaneseq
      %v683 = vshrl.u32 %v682, 7
      %v684 = vsub.s32 0, %v683
      %v685 = vrot.slane %v680, %v684
      %v831 = vunpack.c.l.b16 %v536
      %v832 = vunpack.c.l.b16 %v537
      %v833 = vunpack.c.l.b16 %v538
      %v834 = vunpack.c.l.b16 %v539
      %v835 = vunpack.c.l.b16 %v540
      %v836 = vunpack.c.l.b16 %v541
      %v837 = vunpack.c.l.b16 %v542
      %v838 = vunpack.c.l.b16 %v543
      %v839 = vunpack.c.l.b16 %v544
      %v840 = vunpack.c.l.b16 %v545
      %v841 = vunpack.c.l.b16 %v546
      %v842 = vunpack.c.l.b16 %v547
      %v843 = vunpack.c.l.b16 %v548
      %v844 = vunpack.c.l.b16 %v549
      %v845 = vunpack.c.l.b16 %v550
      %v846 = vunpack.c.l.b16 %v551
      %v847 = vunpack.c.l.b16 %v552
      %v848 = vunpack.c.l.b16 %v553
      %v849 = vunpack.c.l.b16 %v554
      %v850 = vunpack.c.l.b16 %v555
      %v851 = vunpack.c.l.b16 %v556
      %v852 = vunpack.c.l.b16 %v557
      %v853 = vunpack.c.l.b16 %v558
      %v854 = vunpack.c.l.b16 %v559
      %v855 = vunpack.c.l.b16 %v560
      %v856 = vunpack.c.l.b16 %v561
      %v857 = vunpack.c.l.b16 %v562
      %v858 = vunpack.c.l.b16 %v563
      %v859 = vunpack.c.l.b16 %v564
      %v860 = vunpack.c.l.b16 %v565
      %v861 = vunpack.c.l.b16 %v566
      %v862 = vunpack.c.l.b16 %v567
      %v863 = vunpack.c.l.b16 %v568
      %v864 = vunpack.c.l.b16 %v569
      %v865 = vunpack.c.l.b16 %v570
      %v866 = vunpack.c.l.b16 %v571
      %v867 = vunpack.c.l.b16 %v572
      %v868 = vunpack.c.l.b16 %v573
      %v869 = vunpack.c.l.b16 %v574
      %v870 = vunpack.c.l.b16 %v575
      %v871 = vunpack.c.l.b16 %v576
      %v872 = vunpack.c.l.b16 %v577
      %v873 = vunpack.c.l.b16 %v578
      %v874 = vunpack.c.l.b16 %v579
      %v875 = vunpack.c.l.b16 %v580
      %v876 = vunpack.c.l.b16 %v581
      %v877 = vunpack.c.l.b16 %v582
      %v878 = vunpack.c.l.b16 %v583
      %v879 = vunpack.c.l.b16 %v584
      %v880 = vunpack.c.l.b16 %v585
      %v881 = vunpack.c.l.b16 %v586
      %v882 = vunpack.c.l.b16 %v587
      %v883 = vunpack.c.l.b16 %v588
      %v884 = vunpack.c.l.b16 %v589
      %v885 = vunpack.c.l.b16 %v590
      %v886 = vunpack.c.l.b16 %v591
      %v887 = vunpack.c.l.b16 %v592
      %v888 = vunpack.c.l.b16 %v593
      %v889 = vunpack.c.l.b16 %v594
      %v890 = vunpack.c.l.b16 %v595
      %v891 = vunpack.c.l.b16 %v596
      %v892 = vunpack.c.l.b16 %v597
      %v893 = vunpack.c.l.b16 %v598
      %v894 = vunpack.c.l.b16 %v599
      %v895 = vunpack.c.l.b16 %v600
      %v896 = vunpack.c.l.b16 %v601
      %v897 = vunpack.c.l.b16 %v602
      %v898 = vunpack.c.l.b16 %v603
      %v899 = vunpack.c.l.b16 %v604
      %v900 = vunpack.c.l.b16 %v605
      %v901 = vunpack.c.l.b16 %v606
      %v902 = vunpack.c.l.b16 %v607
      %v903 = vunpack.c.l.b16 %v608
      %v904 = vunpack.c.l.b16 %v609
      %v905 = vunpack.c.l.b16 %v610
      %v906 = vunpack.c.l.b16 %v611
      %v907 = vunpack.c.l.b16 %v612
      %v908 = vunpack.c.l.b16 %v613
      %v909 = vunpack.c.l.b16 %v614
      %v910 = vunpack.c.l.b16 %v615
      %v911 = vunpack.c.l.b16 %v616
      %v912 = vunpack.c.l.b16 %v617
      %v913 = vunpack.c.l.b16 %v618
      %v914 = vunpack.c.l.b16 %v619
      %v915 = vunpack.c.l.b16 %v620
      %v916 = vunpack.c.l.b16 %v621
      %v917 = vunpack.c.l.b16 %v622
      %v918 = vunpack.c.l.b16 %v623
      %v919 = vunpack.c.l.b16 %v624
      %v920 = vunpack.c.l.b16 %v625
      %v921 = vunpack.c.l.b16 %v626
      %v922 = vunpack.c.l.b16 %v627
      %v923 = vunpack.c.l.b16 %v628
      %v924 = vunpack.c.l.b16 %v629
      %v925 = vunpack.c.l.b16 %v630
      %v926 = vunpack.c.l.b16 %v631
      %v927 = vunpack.c.l.b16 %v632
      %v928 = vunpack.c.l.b16 %v633
      %v929 = vunpack.c.l.b16 %v634
      %v930 = vunpack.c.l.b16 %v635
      %v931 = vunpack.c.l.b16 %v636
      %v932 = vunpack.c.l.b16 %v637
      %v933 = vunpack.c.l.b16 %v638
      %v934 = vunpack.c.l.b16 %v639
      %v935 = vunpack.c.l.b16 %v640
      %v936 = vunpack.c.l.b16 %v641
      %v937 = vunpack.c.l.b16 %v642
      %v938 = vunpack.c.l.b16 %v643
      %v939 = vunpack.c.l.b16 %v644
      %v940 = vunpack.c.l.b16 %v645
      %v941 = vunpack.c.l.b16 %v646
      %v942 = vunpack.c.l.b16 %v647
      %v943 = vunpack.c.l.b16 %v648
      %v944 = vunpack.c.l.b16 %v649
      %v945 = vunpack.c.l.b16 %v650
      %v946 = vunpack.c.l.b16 %v651
      %v947 = vunpack.c.l.b16 %v652
      %v948 = vunpack.c.l.b16 %v653
      %v949 = vunpack.c.l.b16 %v654
      %v950 = vunpack.c.l.b16 %v655
      %v951 = vunpack.c.l.b16 %v656
      %v952 = vunpack.c.l.b16 %v657
      %v953 = vunpack.c.l.b16 %v658
      %v954 = vunpack.c.l.b16 %v659
      %v955 = vunpack.c.l.b16 %v660
      %v956 = vunpack.c.l.b16 %v661
      %v957 = vunpack.c.l.b16 %v662
      %v958 = vunpack.c.l.b16 %v663
      %v959 = vunpack.c.l.b16 %v664
      %v960 = vunpack.c.l.b16 %v665
      %v961 = vunpack.c.l.b16 %v666
      %v962 = vunpack.c.l.b16 %v667
      %v963 = vunpack.c.l.b16 %v668
      %v964 = vunpack.c.l.b16 %v669
      %v965 = vunpack.c.l.b16 %v670
      %v966 = vunpack.c.l.b16 %v671
      %v967 = vunpack.c.l.b16 %v672
      %v968 = vunpack.c.l.b16 %v673
      %v969 = vunpack.c.l.b16 %v674
      %v970 = vunpack.c.l.b16 %v675
      %v971 = vunpack.c.l.b16 %v676
      %v972 = vunpack.c.l.b16 %v677
      %v973 = vunpack.c.l.b16 %v678
      %v974 = vunpack.c.l.b16 %v679
      %v975 = vpack.c.b16 %v832, %v831
      %v976 = vpack.c.b16 %v834, %v833
      %v977 = vpack.c.b16 %v836, %v835
      %v978 = vpack.c.b16 %v838, %v837
      %v979 = vpack.c.b16 %v840, %v839
      %v980 = vpack.c.b16 %v842, %v841
      %v981 = vpack.c.b16 %v844, %v843
      %v982 = vpack.c.b16 %v846, %v845
      %v983 = vpack.c.b16 %v848, %v847
      %v984 = vpack.c.b16 %v850, %v849
      %v985 = vpack.c.b16 %v852, %v851
      %v986 = vpack.c.b16 %v854, %v853
      %v987 = vpack.c.b16 %v856, %v855
      %v988 = vpack.c.b16 %v858, %v857
      %v989 = vpack.c.b16 %v860, %v859
      %v990 = vpack.c.b16 %v862, %v861
      %v991 = vpack.c.b16 %v864, %v863
      %v992 = vpack.c.b16 %v866, %v865
      %v993 = vpack.c.b16 %v868, %v867
      %v994 = vpack.c.b16 %v870, %v869
      %v995 = vpack.c.b16 %v872, %v871
      %v996 = vpack.c.b16 %v874, %v873
      %v997 = vpack.c.b16 %v876, %v875
      %v998 = vpack.c.b16 %v878, %v877
      %v999 = vpack.c.b16 %v880, %v879
      %v1000 = vpack.c.b16 %v882, %v881
      %v1001 = vpack.c.b16 %v884, %v883
      %v1002 = vpack.c.b16 %v886, %v885
      %v1003 = vpack.c.b16 %v888, %v887
      %v1004 = vpack.c.b16 %v890, %v889
      %v1005 = vpack.c.b16 %v892, %v891
      %v1006 = vpack.c.b16 %v894, %v893
      %v1007 = vpack.c.b16 %v896, %v895
      %v1008 = vpack.c.b16 %v898, %v897
      %v1009 = vpack.c.b16 %v900, %v899
      %v1010 = vpack.c.b16 %v902, %v901
      %v1011 = vpack.c.b16 %v904, %v903
      %v1012 = vpack.c.b16 %v906, %v905
      %v1013 = vpack.c.b16 %v908, %v907
      %v1014 = vpack.c.b16 %v910, %v909
      %v1015 = vpack.c.b16 %v912, %v911
      %v1016 = vpack.c.b16 %v914, %v913
      %v1017 = vpack.c.b16 %v916, %v915
      %v1018 = vpack.c.b16 %v918, %v917
      %v1019 = vpack.c.b16 %v920, %v919
      %v1020 = vpack.c.b16 %v922, %v921
      %v1021 = vpack.c.b16 %v924, %v923
      %v1022 = vpack.c.b16 %v926, %v925
      %v1023 = vpack.c.b16 %v928, %v927
      %v1024 = vpack.c.b16 %v930, %v929
      %v1025 = vpack.c.b16 %v932, %v931
      %v1026 = vpack.c.b16 %v934, %v933
      %v1027 = vpack.c.b16 %v936, %v935
      %v1028 = vpack.c.b16 %v938, %v937
      %v1029 = vpack.c.b16 %v940, %v939
      %v1030 = vpack.c.b16 %v942, %v941
      %v1031 = vpack.c.b16 %v944, %v943
      %v1032 = vpack.c.b16 %v946, %v945
      %v1033 = vpack.c.b16 %v948, %v947
      %v1034 = vpack.c.b16 %v950, %v949
      %v1035 = vpack.c.b16 %v952, %v951
      %v1036 = vpack.c.b16 %v954, %v953
      %v1037 = vpack.c.b16 %v956, %v955
      %v1038 = vpack.c.b16 %v958, %v957
      %v1039 = vpack.c.b16 %v960, %v959
      %v1040 = vpack.c.b16 %v962, %v961
      %v1041 = vpack.c.b16 %v964, %v963
      %v1042 = vpack.c.b16 %v966, %v965
      %v1043 = vpack.c.b16 %v968, %v967
      %v1044 = vpack.c.b16 %v970, %v969
      %v1045 = vpack.c.b16 %v972, %v971
      %v1046 = vpack.c.b16 %v974, %v973
      %1119 = vmatprep.subr.bf16.mxu0 0
      %1120 = vmatpush1.bf16.msra.mxu0 %v975
      %1121 = vmatprep.subr.bf16.mxu0 0
      %1122 = vmatpush1.bf16.msra.mxu0 %v976
      %1123 = vmatprep.subr.bf16.mxu0 0
      %1124 = vmatpush1.bf16.msra.mxu0 %v977
      %1125 = vmatprep.subr.bf16.mxu0 0
      %1126 = vmatpush1.bf16.msra.mxu0 %v978
      %1127 = vmatprep.subr.bf16.mxu0 0
      %1128 = vmatpush1.bf16.msra.mxu0 %v979
      %1129 = vmatprep.subr.bf16.mxu0 0
      %1130 = vmatpush1.bf16.msra.mxu0 %v980
      %1131 = vmatprep.subr.bf16.mxu0 0
      %1132 = vmatpush1.bf16.msra.mxu0 %v981
      %1133 = vmatprep.subr.bf16.mxu0 0
      %1134 = vmatpush1.bf16.msra.mxu0 %v982
      %1135 = vmatprep.subr.bf16.mxu0 0
      %1136 = vmatpush1.bf16.msra.mxu0 %v983
      %1137 = vmatprep.subr.bf16.mxu0 0
      %1138 = vmatpush1.bf16.msra.mxu0 %v984
      %1139 = vmatprep.subr.bf16.mxu0 0
      %1140 = vmatpush1.bf16.msra.mxu0 %v985
      %1141 = vmatprep.subr.bf16.mxu0 0
      %1142 = vmatpush1.bf16.msra.mxu0 %v986
      %1143 = vmatprep.subr.bf16.mxu0 0
      %1144 = vmatpush1.bf16.msra.mxu0 %v987
      %1145 = vmatprep.subr.bf16.mxu0 0
      %1146 = vmatpush1.bf16.msra.mxu0 %v988
      %1147 = vmatprep.subr.bf16.mxu0 0
      %1148 = vmatpush1.bf16.msra.mxu0 %v989
      %1149 = vmatprep.subr.bf16.mxu0 0
      %1150 = vmatpush1.bf16.msra.mxu0 %v990
      %1151 = vmatprep.mubr.bf16.mxu0 %v528
      %1152 = vmatmul.mubr.bf16.gmra.mrb[0].mxu0 %v527
      %v1153 = vpop.f32.mrb[0].mxu0
      %v1154 = vadd.f32 %v685, %v1153
      %v1155 = vpop.f32.mrb[0].mxu0
      %v1156 = vpop.f32.mrb[0].mxu0
      %v1157 = vadd.f32 %v685, %v1156
      %v1158 = vpop.f32.mrb[0].mxu0
      %1159 = vdwg.mxu0
      %1160 = vmatprep.subr.bf16.mxu0 0
      %1161 = vmatpush1.bf16.msra.mxu0 %v991
      %1162 = vmatprep.subr.bf16.mxu0 0
      %1163 = vmatpush1.bf16.msra.mxu0 %v992
      %1164 = vmatprep.subr.bf16.mxu0 0
      %1165 = vmatpush1.bf16.msra.mxu0 %v993
      %1166 = vmatprep.subr.bf16.mxu0 0
      %1167 = vmatpush1.bf16.msra.mxu0 %v994
      %1168 = vmatprep.subr.bf16.mxu0 0
      %1169 = vmatpush1.bf16.msra.mxu0 %v995
      %1170 = vmatprep.subr.bf16.mxu0 0
      %1171 = vmatpush1.bf16.msra.mxu0 %v996
      %1172 = vmatprep.subr.bf16.mxu0 0
      %1173 = vmatpush1.bf16.msra.mxu0 %v997
      %1174 = vmatprep.subr.bf16.mxu0 0
      %1175 = vmatpush1.bf16.msra.mxu0 %v998
      %1176 = vmatprep.subr.bf16.mxu0 0
      %1177 = vmatpush1.bf16.msra.mxu0 %v999
      %1178 = vmatprep.subr.bf16.mxu0 0
      %1179 = vmatpush1.bf16.msra.mxu0 %v1000
      %1180 = vmatprep.subr.bf16.mxu0 0
      %1181 = vmatpush1.bf16.msra.mxu0 %v1001
      %1182 = vmatprep.subr.bf16.mxu0 0
      %1183 = vmatpush1.bf16.msra.mxu0 %v1002
      %1184 = vmatprep.subr.bf16.mxu0 0
      %1185 = vmatpush1.bf16.msra.mxu0 %v1003
      %1186 = vmatprep.subr.bf16.mxu0 0
      %1187 = vmatpush1.bf16.msra.mxu0 %v1004
      %1188 = vmatprep.subr.bf16.mxu0 0
      %1189 = vmatpush1.bf16.msra.mxu0 %v1005
      %1190 = vmatprep.subr.bf16.mxu0 0
      %1191 = vmatpush1.bf16.msra.mxu0 %v1006
      %1192 = vmatprep.mubr.bf16.mxu0 %v530
      %1193 = vmatmul.mubr.bf16.gmra.mrb[0].mxu0 %v529
      %v1194 = vpop.f32.mrb[0].mxu0
      %v1195 = vadd.f32 %v1154, %v1194
      %v1196 = vpop.f32.mrb[0].mxu0
      %v1197 = vpop.f32.mrb[0].mxu0
      %v1198 = vadd.f32 %v1157, %v1197
      %v1199 = vpop.f32.mrb[0].mxu0
      %1200 = vdwg.mxu0
      %1201 = vmatprep.subr.bf16.mxu0 0
      %1202 = vmatpush1.bf16.msra.mxu0 %v1007
      %1203 = vmatprep.subr.bf16.mxu0 0
      %1204 = vmatpush1.bf16.msra.mxu0 %v1008
      %1205 = vmatprep.subr.bf16.mxu0 0
      %1206 = vmatpush1.bf16.msra.mxu0 %v1009
      %1207 = vmatprep.subr.bf16.mxu0 0
      %1208 = vmatpush1.bf16.msra.mxu0 %v1010
      %1209 = vmatprep.subr.bf16.mxu0 0
      %1210 = vmatpush1.bf16.msra.mxu0 %v1011
      %1211 = vmatprep.subr.bf16.mxu0 0
      %1212 = vmatpush1.bf16.msra.mxu0 %v1012
      %1213 = vmatprep.subr.bf16.mxu0 0
      %1214 = vmatpush1.bf16.msra.mxu0 %v1013
      %1215 = vmatprep.subr.bf16.mxu0 0
      %1216 = vmatpush1.bf16.msra.mxu0 %v1014
      %1217 = vmatprep.subr.bf16.mxu0 0
      %1218 = vmatpush1.bf16.msra.mxu0 %v1015
      %1219 = vmatprep.subr.bf16.mxu0 0
      %1220 = vmatpush1.bf16.msra.mxu0 %v1016
      %1221 = vmatprep.subr.bf16.mxu0 0
      %1222 = vmatpush1.bf16.msra.mxu0 %v1017
      %1223 = vmatprep.subr.bf16.mxu0 0
      %1224 = vmatpush1.bf16.msra.mxu0 %v1018
      %1225 = vmatprep.subr.bf16.mxu0 0
      %1226 = vmatpush1.bf16.msra.mxu0 %v1019
      %1227 = vmatprep.subr.bf16.mxu0 0
      %1228 = vmatpush1.bf16.msra.mxu0 %v1020
      %1229 = vmatprep.subr.bf16.mxu0 0
      %1230 = vmatpush1.bf16.msra.mxu0 %v1021
      %1231 = vmatprep.subr.bf16.mxu0 0
      %1232 = vmatpush1.bf16.msra.mxu0 %v1022
      %1233 = vmatprep.mubr.bf16.mxu0 %v532
      %1234 = vmatmul.mubr.bf16.gmra.mrb[0].mxu0 %v531
      %v1235 = vpop.f32.mrb[0].mxu0
      %v1236 = vadd.f32 %v1195, %v1235
      %v1237 = vpop.f32.mrb[0].mxu0
      %v1238 = vpop.f32.mrb[0].mxu0
      %v1239 = vadd.f32 %v1198, %v1238
      %v1240 = vpop.f32.mrb[0].mxu0
      %1241 = vdwg.mxu0
      %1242 = vmatprep.subr.bf16.mxu0 0
      %1243 = vmatpush1.bf16.msra.mxu0 %v1023
      %1244 = vmatprep.subr.bf16.mxu0 0
      %1245 = vmatpush1.bf16.msra.mxu0 %v1024
      %1246 = vmatprep.subr.bf16.mxu0 0
      %1247 = vmatpush1.bf16.msra.mxu0 %v1025
      %1248 = vmatprep.subr.bf16.mxu0 0
      %1249 = vmatpush1.bf16.msra.mxu0 %v1026
      %1250 = vmatprep.subr.bf16.mxu0 0
      %1251 = vmatpush1.bf16.msra.mxu0 %v1027
      %1252 = vmatprep.subr.bf16.mxu0 0
      %1253 = vmatpush1.bf16.msra.mxu0 %v1028
      %1254 = vmatprep.subr.bf16.mxu0 0
      %1255 = vmatpush1.bf16.msra.mxu0 %v1029
      %1256 = vmatprep.subr.bf16.mxu0 0
      %1257 = vmatpush1.bf16.msra.mxu0 %v1030
      %1258 = vmatprep.subr.bf16.mxu0 0
      %1259 = vmatpush1.bf16.msra.mxu0 %v1031
      %1260 = vmatprep.subr.bf16.mxu0 0
      %1261 = vmatpush1.bf16.msra.mxu0 %v1032
      %1262 = vmatprep.subr.bf16.mxu0 0
      %1263 = vmatpush1.bf16.msra.mxu0 %v1033
      %1264 = vmatprep.subr.bf16.mxu0 0
      %1265 = vmatpush1.bf16.msra.mxu0 %v1034
      %1266 = vmatprep.subr.bf16.mxu0 0
      %1267 = vmatpush1.bf16.msra.mxu0 %v1035
      %1268 = vmatprep.subr.bf16.mxu0 0
      %1269 = vmatpush1.bf16.msra.mxu0 %v1036
      %1270 = vmatprep.subr.bf16.mxu0 0
      %1271 = vmatpush1.bf16.msra.mxu0 %v1037
      %1272 = vmatprep.subr.bf16.mxu0 0
      %1273 = vmatpush1.bf16.msra.mxu0 %v1038
      %1274 = vmatprep.mubr.bf16.mxu0 %v534
      %1275 = vmatmul.mubr.bf16.gmra.mrb[0].mxu0 %v533
      %v1276 = vpop.f32.mrb[0].mxu0
      %v1277 = vadd.f32 %v1236, %v1276
      %v1278 = vpop.f32.mrb[0].mxu0
      %v1279 = vpop.f32.mrb[0].mxu0
      %v1280 = vadd.f32 %v1239, %v1279
      %v1281 = vpop.f32.mrb[0].mxu0
      %1282 = vdwg.mxu0
      %1283 = vmatprep.subr.bf16.mxu0 0
      %1284 = vmatpush1.bf16.msra.mxu0 %v1039
      %1285 = vmatprep.subr.bf16.mxu0 0
      %1286 = vmatpush1.bf16.msra.mxu0 %v1040
      %1287 = vmatprep.subr.bf16.mxu0 0
      %1288 = vmatpush1.bf16.msra.mxu0 %v1041
      %1289 = vmatprep.subr.bf16.mxu0 0
      %1290 = vmatpush1.bf16.msra.mxu0 %v1042
      %1291 = vmatprep.subr.bf16.mxu0 0
      %1292 = vmatpush1.bf16.msra.mxu0 %v1043
      %1293 = vmatprep.subr.bf16.mxu0 0
      %1294 = vmatpush1.bf16.msra.mxu0 %v1044
      %1295 = vmatprep.subr.bf16.mxu0 0
      %1296 = vmatpush1.bf16.msra.mxu0 %v1045
      %1297 = vmatprep.subr.bf16.mxu0 0
      %1298 = vmatpush1.bf16.msra.mxu0 %v1046
      %1299 = vmatprep.subr.bf16.mxu0 0
      %1300 = vmatpush1.bf16.msra.mxu0 0
      %1301 = vmatprep.subr.bf16.mxu0 0
      %1302 = vmatpush1.bf16.msra.mxu0 0
      %1303 = vmatprep.subr.bf16.mxu0 0
      %1304 = vmatpush1.bf16.msra.mxu0 0
      %1305 = vmatprep.subr.bf16.mxu0 0
      %1306 = vmatpush1.bf16.msra.mxu0 0
      %1307 = vmatprep.subr.bf16.mxu0 0
      %1308 = vmatpush1.bf16.msra.mxu0 0
      %1309 = vmatprep.subr.bf16.mxu0 0
      %1310 = vmatpush1.bf16.msra.mxu0 0
      %1311 = vmatprep.subr.bf16.mxu0 0
      %1312 = vmatpush1.bf16.msra.mxu0 0
      %1313 = vmatprep.subr.bf16.mxu0 0
      %1314 = vmatpush1.bf16.msra.mxu0 0
      %1315 = vmatprep.mubr.bf16.mxu0 0
      %1316 = vmatmul.mubr.bf16.gmra.mrb[0].mxu0 %v535
      %v1317 = vpop.f32.mrb[0].mxu0
      %v1318 = vadd.f32 %v1277, %v1317
      %v1319 = vpop.f32.mrb[0].mxu0
      %v1320 = vpop.f32.mrb[0].mxu0
      %v1321 = vadd.f32 %v1280, %v1320
      %v1322 = vpop.f32.mrb[0].mxu0
      %1323 = vdwg.mxu0
      %v1324 = vmax.f32 %v1318, 0.0
      %v1325 = vmax.f32 %v1321, 0.0
      %v1328 = vcombine.high %v1324, %v1324
      %v1329 = vcombine.high %v1325, %v1325
      %v1332 = vpack.c.bf16 %v1324, %v1324
      %v1333 = vpack.c.bf16 %v1328, %v1328
      %v1334 = vpack.c.bf16 %v1325, %v1325
      %v1335 = vpack.c.bf16 %v1329, %v1329
      %1336 = vst [vmem:[%s192] sm:$0x3] %v1332
      %1337 = vst [vmem:[%s192 + $0x2] sm:$0x3] %v1333
      %1338 = vst [vmem:[%s192 + $0x4] sm:$0x3] %v1334
      %1339 = vst [vmem:[%s192 + $0x6] sm:$0x3] %v1335
      %s1340 = smul.u32 4, %s19
      %p1341 = scmp.lt.s32.totalorder %s18, 1
      %s1342 = scalar_select %p1341, %s18, 1
      %p1343 = scmp.lt.s32.totalorder %s1340, 3
      %s1344 = scalar_select %p1343, %s1340, 3
      %s1345 = smul.addr %s1342, 4
      %s1346 = sadd.s32 %s1344, %s1345
      %s1347 = smul.addr %s1346, 2
      %s1348 = scalar_lea.vmem %s3, %s1347
      // Predicated region
      $region33: #{cenet_forward.11} parent=31 // pred_check
        %p1349 = pneg %p114
      $region34: #{cenet_forward.11} parent=31 // pred_check_branch
        %1351 = sbr.rel (%p1349) target = $region36
      $region35: #{cenet_forward.11} parent=31 // pred_region
        %s1352 = smul.u32 4, %s19
      $region36: #{cenet_forward.11} parent=31 // pred_fallthru
        _
    $region32: #{cenet_forward.11} parent=5 // pred_fallthru
      _
    %p1353 = scmp.le.s32.totalorder 2, %s9
    // Predicated region
    $region37: #{cenet_forward.11} parent=5 // pred_check
      %p1354 = pneg %p1353
    $region38: #{cenet_forward.11} parent=5 // pred_check_branch
      %1356 = sbr.rel (%p1354) target = $region40
    $region39: #{cenet_forward.11} parent=5 // pred_region
      %s1357 = ssub.s32 %s9, 2
      // Predicated region
      $region41: #{cenet_forward.11} parent=39 // pred_check
        %p1358 = pneg %p120
      $region42: #{cenet_forward.11} parent=39 // pred_check_branch
        %1360 = sbr.rel (%p1358) target = $region44
      $region43: #{cenet_forward.11} parent=39 // pred_region
        %s1361 = smul.u32 4, %s21
        %p1362 = scmp.lt.s32.totalorder %s20, 1
        %s1363 = scalar_select %p1362, %s20, 1
        %p1364 = scmp.lt.s32.totalorder %s1361, 3
        %s1365 = scalar_select %p1364, %s1361, 3
        %s1366 = smul.addr %s1363, 4
        %s1367 = sadd.s32 %s1365, %s1366
        %s1368 = smul.addr %s1367, 2
        %s1369 = scalar_lea.vmem %s3, %s1368
      $region44: #{cenet_forward.11} parent=39 // pred_fallthru
        _
    $region40: #{cenet_forward.11} parent=5 // pred_fallthru
      _
  $region6: #{cenet_forward.11} parent=0 // loop_footer
    %s13 = sadd.s32 1, %s9
  $region7: #{cenet_forward.11} parent=0 // loop_footer_branch
    %8 = sbr.rel target = $region3
  $region8: #{cenet_forward.11} parent=0 // loop_exit
    _

// kernel: cenet_forward.10
$region0: #{cenet_forward.10}
  #allocation0 [shape = 'u32[]', space=smem, size = 0x4, offset = 0x4, fixed_abs, tag = 'smem constant byte address 0x4 - core index']
  #allocation1 [shape = 'u32[144,128]{1,0:T(1,128)}', space=vmem, size = 0x12000, scoped, tag = 'internal scratch']
  #allocation2 [shape = 'bf16[64,1152]{1,0:T(16,128)(2,1)}', space=vmem, size = 0x24000, scoped, tag = 'scratch operand']
  %s0 = inlined_call_operand.vmem [shape: bf16[2,10,10,128], index: 0, kind: input, shape index: {}]
  %s1 = inlined_call_operand.vmem [shape: bf16[1152,128], index: 1, kind: input, shape index: {}]
  %s2 = inlined_call_operand.vmem [shape: f32[1,128], index: 2, kind: input, shape index: {}]
  %s3 = inlined_call_operand.vmem [shape: bf16[2,8,8,128], index: 3, kind: output, shape index: {}]
  %s4 = sld [smem:[#allocation0]]
  $region45: #{cenet_forward.10} parent=0
    _
  %s6 = ssub.s32 1, %s4
  %s7 = scalar_select 0, %s6, %s4
  loop: start=0, step=1, limit=4
  $region2: #{cenet_forward.10} parent=0 // loop_pre_header
    _
  $region3: #{cenet_forward.10} parent=0 // loop_header
    %s9 = sphi 0, %s13
    %p10 = scmp.ge.s32.totalorder %s9, 4
    %s16 = sphi 0, %s28
    %s17 = sphi 0, %s24
    %s18 = sphi 0, %s16
    %s19 = sphi 0, %s17
    %s20 = sphi 0, %s18
    %s21 = sphi 0, %s19
    %s31 = sphi 0, %s33
    %s34 = sphi 0, %s31
    %s35 = sphi 0, %s34
    %s51 = sphi 0, %s35
    %s55 = sphi 0, %s55
    %s57 = sphi 0, %s55
    %s58 = sphi 0, %s57
    %s72 = sphi 0, %s58
    %s76 = sphi 0, %s76
    %s78 = sphi 0, %s76
    %s79 = sphi 0, %s78
    %s93 = sphi 0, %s79
    %s101 = sphi 0, %s103
    %s104 = sphi 0, %s101
    %s105 = sphi 0, %s104
    %s121 = sphi 0, %s105
  $region4: #{cenet_forward.10} parent=0 // loop_header_branch
    %12 = sbr.rel (%p10) target = $region8
  $region5: #{cenet_forward.10} parent=0 // loop_body
    %s14 = ssub.s32 %s9, 1
    %s15 = ssub.s32 %s9, 2
    %s22 = sadd.s32 1, %s17
    %p23 = scmp.ge.s32.totalorder %s22, 1
    %s24 = scalar_select %p23, 0, %s22
    %s25 = sadd.s32 1, %s16
    %s26 = scalar_select %p23, %s25, %s16
    %p27 = scmp.ge.s32.totalorder %s26, 2
    %s28 = scalar_select %p27, 0, %s26
    %s29 = ssub.s32 %s16, %s28
    %p30 = scmp.eq.s32.totalorder %s29, 0
    %s32 = sadd.s32 %s31, 1
    %s33 = scalar_select %p30, %s31, %s32
    %p36 = pneg %p30
    %p37 = scmp.eq.s32.totalorder %s9, 1
    %p38 = por %p36, %p37
    %p39 = scmp.ne.s32.totalorder %s31, %s34
    %p40 = scmp.eq.s32.totalorder %s9, 0
    %p41 = por %p39, %p40
    %p42 = scmp.ne.s32.totalorder %s31, %s34
    %p43 = scmp.eq.s32.totalorder %s14, 1
    %p44 = por %p42, %p43
    %p45 = scmp.ne.s32.totalorder %s34, %s35
    %p46 = scmp.eq.s32.totalorder %s14, 0
    %p47 = por %p45, %p46
    %p48 = scmp.ne.s32.totalorder %s34, %s35
    %p49 = scmp.eq.s32.totalorder %s15, 1
    %p50 = por %p48, %p49
    %p52 = scmp.ne.s32.totalorder %s35, %s51
    %p53 = scmp.eq.s32.totalorder %s15, 0
    %p54 = por %p52, %p53
    %s56 = sadd.s32 %s55, 1
    %p59 = scmp.eq.s32.totalorder %s9, 1
    %p60 = scmp.ne.s32.totalorder %s55, %s57
    %p61 = scmp.eq.s32.totalorder %s9, 0
    %p62 = por %p60, %p61
    %p63 = scmp.ne.s32.totalorder %s55, %s57
    %p64 = scmp.eq.s32.totalorder %s14, 1
    %p65 = por %p63, %p64
    %p66 = scmp.ne.s32.totalorder %s57, %s58
    %p67 = scmp.eq.s32.totalorder %s14, 0
    %p68 = por %p66, %p67
    %p69 = scmp.ne.s32.totalorder %s57, %s58
    %p70 = scmp.eq.s32.totalorder %s15, 1
    %p71 = por %p69, %p70
    %p73 = scmp.ne.s32.totalorder %s58, %s72
    %p74 = scmp.eq.s32.totalorder %s15, 0
    %p75 = por %p73, %p74
    %s77 = sadd.s32 %s76, 1
    %p80 = scmp.eq.s32.totalorder %s9, 1
    %p81 = scmp.ne.s32.totalorder %s76, %s78
    %p82 = scmp.eq.s32.totalorder %s9, 0
    %p83 = por %p81, %p82
    %p84 = scmp.ne.s32.totalorder %s76, %s78
    %p85 = scmp.eq.s32.totalorder %s14, 1
    %p86 = por %p84, %p85
    %p87 = scmp.ne.s32.totalorder %s78, %s79
    %p88 = scmp.eq.s32.totalorder %s14, 0
    %p89 = por %p87, %p88
    %p90 = scmp.ne.s32.totalorder %s78, %s79
    %p91 = scmp.eq.s32.totalorder %s15, 1
    %p92 = por %p90, %p91
    %p94 = scmp.ne.s32.totalorder %s79, %s93
    %p95 = scmp.eq.s32.totalorder %s15, 0
    %p96 = por %p94, %p95
    %s97 = ssub.s32 %s16, %s28
    %s98 = ssub.s32 %s17, %s24
    %s99 = sor.u32 %s97, %s98
    %p100 = scmp.eq.s32.totalorder %s99, 0
    %s102 = sadd.s32 %s101, 1
    %s103 = scalar_select %p100, %s101, %s102
    %p106 = pneg %p100
    %p107 = scmp.eq.s32.totalorder %s9, 1
    %p108 = por %p106, %p107
    %p109 = scmp.ne.s32.totalorder %s101, %s104
    %p110 = scmp.eq.s32.totalorder %s9, 0
    %p111 = por %p109, %p110
    %p112 = scmp.ne.s32.totalorder %s101, %s104
    %p113 = scmp.eq.s32.totalorder %s14, 1
    %p114 = por %p112, %p113
    %p115 = scmp.ne.s32.totalorder %s104, %s105
    %p116 = scmp.eq.s32.totalorder %s14, 0
    %p117 = por %p115, %p116
    %p118 = scmp.ne.s32.totalorder %s104, %s105
    %p119 = scmp.eq.s32.totalorder %s15, 1
    %p120 = por %p118, %p119
    %p122 = scmp.ne.s32.totalorder %s105, %s121
    %p123 = scmp.eq.s32.totalorder %s15, 0
    %p124 = por %p122, %p123
    %p125 = scmp.le.s32.totalorder 1, %s9
    %p126 = scmp.lt.s32.totalorder %s9, 3
    %p127 = pnand %p125, %p126
    %p128 = pneg %p127
    // Predicated region
    $region9: #{cenet_forward.10} parent=5 // pred_check
      _
    $region10: #{cenet_forward.10} parent=5 // pred_check_branch
      %130 = sbr.rel (%p127) target = $region12
    $region11: #{cenet_forward.10} parent=5 // pred_region
      %s131 = ssub.s32 %s9, 1
      // Predicated region
      $region13: #{cenet_forward.10} parent=11 // pred_check
        %p132 = pneg %p68
      $region14: #{cenet_forward.10} parent=11 // pred_check_branch
        %134 = sbr.rel (%p132) target = $region16
      $region15: #{cenet_forward.10} parent=11 // pred_region
        _
      $region16: #{cenet_forward.10} parent=11 // pred_fallthru
        _
      // Predicated region
      $region17: #{cenet_forward.10} parent=11 // pred_check
        %p135 = pneg %p89
      $region18: #{cenet_forward.10} parent=11 // pred_check_branch
        %137 = sbr.rel (%p135) target = $region20
      $region19: #{cenet_forward.10} parent=11 // pred_region
        _
      $region20: #{cenet_forward.10} parent=11 // pred_fallthru
        _
    $region12: #{cenet_forward.10} parent=5 // pred_fallthru
      _
    %p138 = scmp.lt.s32.totalorder %s9, 2
    // Predicated region
    $region21: #{cenet_forward.10} parent=5 // pred_check
      %p139 = pneg %p138
    $region22: #{cenet_forward.10} parent=5 // pred_check_branch
      %141 = sbr.rel (%p139) target = $region24
    $region23: #{cenet_forward.10} parent=5 // pred_region
      // Predicated region
      $region25: #{cenet_forward.10} parent=23 // pred_check
        %p142 = pneg %p41
      $region26: #{cenet_forward.10} parent=23 // pred_check_branch
        %144 = sbr.rel (%p142) target = $region28
      $region27: #{cenet_forward.10} parent=23 // pred_region
        %p145 = scmp.lt.s32.totalorder %s16, 1
        %s146 = scalar_select %p145, %s16, 1
        %s147 = smul.addr %s146, 20
        %s148 = smul.addr %s147, 4
        %s149 = scalar_lea.vmem %s0, %s148
      $region28: #{cenet_forward.10} parent=23 // pred_fallthru
        _
    $region24: #{cenet_forward.10} parent=5 // pred_fallthru
      _
    %p150 = scmp.le.s32.totalorder 1, %s9
    %p151 = scmp.lt.s32.totalorder %s9, 3
    %p152 = pnand %p150, %p151
    %p153 = pneg %p152
    // Predicated region
    $region29: #{cenet_forward.10} parent=5 // pred_check
      _
    $region30: #{cenet_forward.10} parent=5 // pred_check_branch
      %155 = sbr.rel (%p152) target = $region32
    $region31: #{cenet_forward.10} parent=5 // pred_region
      %s156 = ssub.s32 %s9, 1
      %p157 = scmp.lt.s32.totalorder %s18, 1
      %s158 = scalar_select %p157, %s18, 1
      %s159 = smul.addr %s158, 20
      %s160 = smul.addr %s159, 4
      %s161 = scalar_lea.vmem %s0, %s160
      %p162 = pneg %p47
      %p163 = pneg %p44
      %p164 = pneg %p68
      %p165 = pneg %p65
      %p166 = pneg %p89
      %p167 = pneg %p86
      %p168 = pneg %p117
      %p169 = pneg %p114
      %s170 = smul.u32 8, %s19
      %p171 = scmp.lt.s32.totalorder %s18, 1
      %s172 = scalar_select %p171, %s18, 1
      %p173 = scmp.lt.s32.totalorder %s170, 7
      %s174 = scalar_select %p173, %s170, 7
      %s175 = smul.addr %s172, 8
      %s176 = sadd.s32 %s174, %s175
      %s177 = smul.addr %s176, 4
      %s178 = scalar_lea.vmem %s3, %s177
      %p179 = scmp.lt.s32.totalorder %s18, 1
      %s180 = scalar_select %p179, %s18, 1
      %s181 = smul.addr %s180, 20
      %s182 = smul.addr %s181, 4
      %s183 = scalar_lea.vmem %s0, %s182
      %s184 = smul.u32 8, %s19
      %p185 = scmp.lt.s32.totalorder %s18, 1
      %s186 = scalar_select %p185, %s18, 1
      %p187 = scmp.lt.s32.totalorder %s184, 7
      %s188 = scalar_select %p187, %s184, 7
      %s189 = smul.addr %s186, 8
      %s190 = sadd.s32 %s188, %s189
      %s191 = smul.addr %s190, 4
      %s192 = scalar_lea.vmem %s3, %s191
      %s193 = smul.u32 8, %s19
      %s195 = smul.u32 %s19, 8
      %s196 = smul.u32 %s195, 2
      %s197 = smul.addr %s196, 4
      %s198 = scalar_lea.vmem %s183, %s197
      %v199 = vld [vmem:[%s198] sm:$0xf]
      %v200 = vld [vmem:[%s198 + $0x4] sm:$0x1]
      %v201 = vld [vmem:[%s198 + $0x8] sm:$0xf]
      %v202 = vld [vmem:[%s198 + $0xc] sm:$0x1]
      %v203 = vld [vmem:[%s198 + $0x10] sm:$0xf]
      %v204 = vld [vmem:[%s198 + $0x14] sm:$0x1]
      %v205 = vld [vmem:[%s198 + $0x18] sm:$0xf]
      %v206 = vld [vmem:[%s198 + $0x1c] sm:$0x1]
      %v207 = vld [vmem:[%s198 + $0x20] sm:$0xf]
      %v208 = vld [vmem:[%s198 + $0x24] sm:$0x1]
      %v209 = vld [vmem:[%s198 + $0x28] sm:$0xf]
      %v210 = vld [vmem:[%s198 + $0x2c] sm:$0x1]
      %v211 = vld [vmem:[%s198 + $0x30] sm:$0xf]
      %v212 = vld [vmem:[%s198 + $0x34] sm:$0x1]
      %v213 = vld [vmem:[%s198 + $0x38] sm:$0xf]
      %v214 = vld [vmem:[%s198 + $0x3c] sm:$0x1]
      %v215 = vld [vmem:[%s198 + $0x40] sm:$0xf]
      %v216 = vld [vmem:[%s198 + $0x44] sm:$0x1]
      %v217 = vld [vmem:[%s198 + $0x48] sm:$0xf]
      %v218 = vld [vmem:[%s198 + $0x4c] sm:$0x1]
      %v227 = vunpack.c.l.b16 %v199
      %v228 = vunpack.c.l.b16 %v201
      %v229 = vunpack.c.l.b16 %v203
      %v230 = vunpack.c.l.b16 %v205
      %v231 = vunpack.c.l.b16 %v207
      %v232 = vunpack.c.l.b16 %v209
      %v233 = vunpack.c.l.b16 %v211
      %v234 = vunpack.c.l.b16 %v213
      %v235 = vpack.c.b16 %v228, %v227
      %v236 = vpack.c.b16 %v230, %v229
      %v237 = vpack.c.b16 %v232, %v231
      %v238 = vpack.c.b16 %v234, %v233
      %243 = vst [vmem:[#allocation2] sm:$0xff] %v235
      %244 = vst [vmem:[#allocation2 + $0x48] sm:$0xff] %v236
      %245 = vst [vmem:[#allocation2 + $0x90] sm:$0xff] %v237
      %246 = vst [vmem:[#allocation2 + $0xd8] sm:$0xff] %v238
      %vm247 = vsmask.f32 3328
      %vm248 = vsmask.f32 7440
      %vm249 = vmor %vm247, %vm248
      %v251 = vshrl.u32 %v199, 16
      %v253 = vrot.slane %v251, 4
      %v254 = vshll.u32 %v199, 16
      %v256 = vrot.slane %v254, 5
      %v257 = vor.u32 %v253, %v256
      %v258 = vrot.slane %v257, 4
      %v260 = vshll.u32 %v200, 16
      %v262 = vrot.slane %v260, 5
      %v263 = vsel %vm249, %v258, %v262
      %v265 = vshrl.u32 %v201, 16
      %v267 = vrot.slane %v265, 4
      %v268 = vshll.u32 %v201, 16
      %v270 = vrot.slane %v268, 5
      %v271 = vor.u32 %v267, %v270
      %v272 = vrot.slane %v271, 4
      %v274 = vshll.u32 %v202, 16
      %v276 = vrot.slane %v274, 5
      %v277 = vsel %vm249, %v272, %v276
      %v279 = vshrl.u32 %v203, 16
      %v281 = vrot.slane %v279, 4
      %v282 = vshll.u32 %v203, 16
      %v284 = vrot.slane %v282, 5
      %v285 = vor.u32 %v281, %v284
      %v286 = vrot.slane %v285, 4
      %v288 = vshll.u32 %v204, 16
      %v290 = vrot.slane %v288, 5
      %v291 = vsel %vm249, %v286, %v290
      %v293 = vshrl.u32 %v205, 16
      %v295 = vrot.slane %v293, 4
      %v296 = vshll.u32 %v205, 16
      %v298 = vrot.slane %v296, 5
      %v299 = vor.u32 %v295, %v298
      %v300 = vrot.slane %v299, 4
      %v302 = vshll.u32 %v206, 16
      %v304 = vrot.slane %v302, 5
      %v305 = vsel %vm249, %v300, %v304
      %v307 = vshrl.u32 %v207, 16
      %v309 = vrot.slane %v307, 4
      %v310 = vshll.u32 %v207, 16
      %v312 = vrot.slane %v310, 5
      %v313 = vor.u32 %v309, %v312
      %v314 = vrot.slane %v313, 4
      %v316 = vshll.u32 %v208, 16
      %v318 = vrot.slane %v316, 5
      %v319 = vsel %vm249, %v314, %v318
      %v321 = vshrl.u32 %v209, 16
      %v323 = vrot.slane %v321, 4
      %v324 = vshll.u32 %v209, 16
      %v326 = vrot.slane %v324, 5
      %v327 = vor.u32 %v323, %v326
      %v328 = vrot.slane %v327, 4
      %v330 = vshll.u32 %v210, 16
      %v332 = vrot.slane %v330, 5
      %v333 = vsel %vm249, %v328, %v332
      %v335 = vshrl.u32 %v211, 16
      %v337 = vrot.slane %v335, 4
      %v338 = vshll.u32 %v211, 16
      %v340 = vrot.slane %v338, 5
      %v341 = vor.u32 %v337, %v340
      %v342 = vrot.slane %v341, 4
      %v344 = vshll.u32 %v212, 16
      %v346 = vrot.slane %v344, 5
      %v347 = vsel %vm249, %v342, %v346
      %v349 = vshrl.u32 %v213, 16
      %v351 = vrot.slane %v349, 4
      %v352 = vshll.u32 %v213, 16
      %v354 = vrot.slane %v352, 5
      %v355 = vor.u32 %v351, %v354
      %v356 = vrot.slane %v355, 4
      %v358 = vshll.u32 %v214, 16
      %v360 = vrot.slane %v358, 5
      %v361 = vsel %vm249, %v356, %v360
      %v362 = vunpack.c.l.b16 %v263
      %v363 = vunpack.c.l.b16 %v277
      %v364 = vunpack.c.l.b16 %v291
      %v365 = vunpack.c.l.b16 %v305
      %v366 = vunpack.c.l.b16 %v319
      %v367 = vunpack.c.l.b16 %v333
      %v368 = vunpack.c.l.b16 %v347
      %v369 = vunpack.c.l.b16 %v361
      %v370 = vpack.c.b16 %v363, %v362
      %v371 = vpack.c.b16 %v365, %v364
      %v372 = vpack.c.b16 %v367, %v366
      %v373 = vpack.c.b16 %v369, %v368
      %378 = vst [vmem:[#allocation2 + $0x8] sm:$0xff] %v370
      %379 = vst [vmem:[#allocation2 + $0x50] sm:$0xff] %v371
      %380 = vst [vmem:[#allocation2 + $0x98] sm:$0xff] %v372
      %381 = vst [vmem:[#allocation2 + $0xe0] sm:$0xff] %v373
      %vm390 = vcmask 1042432
      %vm391 = vcmask 1046532
      %vm392 = vmor %vm390, %vm391
      %v393 = vrot.slane %v199, 5
      %v394 = vrot.slane %v393, 4
      %v395 = vrot.slane %v200, 5
      %v396 = vsel %vm392, %v394, %v395
      %v397 = vrot.slane %v201, 5
      %v398 = vrot.slane %v397, 4
      %v399 = vrot.slane %v202, 5
      %v400 = vsel %vm392, %v398, %v399
      %v401 = vrot.slane %v203, 5
      %v402 = vrot.slane %v401, 4
      %v403 = vrot.slane %v204, 5
      %v404 = vsel %vm392, %v402, %v403
      %v405 = vrot.slane %v205, 5
      %v406 = vrot.slane %v405, 4
      %v407 = vrot.slane %v206, 5
      %v408 = vsel %vm392, %v406, %v407
      %v409 = vrot.slane %v207, 5
      %v410 = vrot.slane %v409, 4
      %v411 = vrot.slane %v208, 5
      %v412 = vsel %vm392, %v410, %v411
      %v413 = vrot.slane %v209, 5
      %v414 = vrot.slane %v413, 4
      %v415 = vrot.slane %v210, 5
      %v416 = vsel %vm392, %v414, %v415
      %v417 = vrot.slane %v211, 5
      %v418 = vrot.slane %v417, 4
      %v419 = vrot.slane %v212, 5
      %v420 = vsel %vm392, %v418, %v419
      %v421 = vrot.slane %v213, 5
      %v422 = vrot.slane %v421, 4
      %v423 = vrot.slane %v214, 5
      %v424 = vsel %vm392, %v422, %v423
      %v425 = vunpack.c.l.b16 %v396
      %v426 = vunpack.c.l.b16 %v400
      %v427 = vunpack.c.l.b16 %v404
      %v428 = vunpack.c.l.b16 %v408
      %v429 = vunpack.c.l.b16 %v412
      %v430 = vunpack.c.l.b16 %v416
      %v431 = vunpack.c.l.b16 %v420
      %v432 = vunpack.c.l.b16 %v424
      %v433 = vpack.c.b16 %v426, %v425
      %v434 = vpack.c.b16 %v428, %v427
      %v435 = vpack.c.b16 %v430, %v429
      %v436 = vpack.c.b16 %v432, %v431
      %441 = vst [vmem:[#allocation2 + $0x10] sm:$0xff] %v433
      %442 = vst [vmem:[#allocation2 + $0x58] sm:$0xff] %v434
      %443 = vst [vmem:[#allocation2 + $0xa0] sm:$0xff] %v435
      %444 = vst [vmem:[#allocation2 + $0xe8] sm:$0xff] %v436
      %v446 = vunpack.c.l.b16 %v215
      %v447 = vpack.c.b16 %v229, %v228
      %v448 = vpack.c.b16 %v231, %v230
      %v449 = vpack.c.b16 %v233, %v232
      %v450 = vpack.c.b16 %v446, %v234
      %455 = vst [vmem:[#allocation2 + $0x18] sm:$0xff] %v447
      %456 = vst [vmem:[#allocation2 + $0x60] sm:$0xff] %v448
      %457 = vst [vmem:[#allocation2 + $0xa8] sm:$0xff] %v449
      %458 = vst [vmem:[#allocation2 + $0xf0] sm:$0xff] %v450
      %v460 = vshrl.u32 %v215, 16
      %v462 = vrot.slane %v460, 4
      %v463 = vshll.u32 %v215, 16
      %v465 = vrot.slane %v463, 5
      %v466 = vor.u32 %v462, %v465
      %v467 = vrot.slane %v466, 4
      %v469 = vshll.u32 %v216, 16
      %v471 = vrot.slane %v469, 5
      %v472 = vsel %vm249, %v467, %v471
      %v473 = vunpack.c.l.b16 %v472
      %v474 = vpack.c.b16 %v364, %v363
      %v475 = vpack.c.b16 %v366, %v365
      %v476 = vpack.c.b16 %v368, %v367
      %v477 = vpack.c.b16 %v473, %v369
      %482 = vst [vmem:[#allocation2 + $0x20] sm:$0xff] %v474
      %483 = vst [vmem:[#allocation2 + $0x68] sm:$0xff] %v475
      %484 = vst [vmem:[#allocation2 + $0xb0] sm:$0xff] %v476
      %485 = vst [vmem:[#allocation2 + $0xf8] sm:$0xff] %v477
      %v487 = vrot.slane %v215, 5
      %v488 = vrot.slane %v487, 4
      %v489 = vrot.slane %v216, 5
      %v490 = vsel %vm392, %v488, %v489
      %v491 = vunpack.c.l.b16 %v490
      %v492 = vpack.c.b16 %v427, %v426
      %v493 = vpack.c.b16 %v429, %v428
      %v494 = vpack.c.b16 %v431, %v430
      %v495 = vpack.c.b16 %v491, %v432
      %500 = vst [vmem:[#allocation2 + $0x28] sm:$0xff] %v492
      %501 = vst [vmem:[#allocation2 + $0x70] sm:$0xff] %v493
      %502 = vst [vmem:[#allocation2 + $0xb8] sm:$0xff] %v494
      %503 = vst [vmem:[#allocation2 + $0x100] sm:$0xff] %v495
      %v505 = vunpack.c.l.b16 %v217
      %v506 = vpack.c.b16 %v505, %v446
      %508 = vst [vmem:[#allocation2 + $0x30] sm:$0xff] %v236
      %509 = vst [vmem:[#allocation2 + $0x78] sm:$0xff] %v237
      %510 = vst [vmem:[#allocation2 + $0xc0] sm:$0xff] %v238
      %511 = vst [vmem:[#allocation2 + $0x108] sm:$0xff] %v506
      %v513 = vshrl.u32 %v217, 16
      %v515 = vrot.slane %v513, 4
      %v516 = vshll.u32 %v217, 16
      %v518 = vrot.slane %v516, 5
      %v519 = vor.u32 %v515, %v518
      %v520 = vrot.slane %v519, 4
      %v522 = vshll.u32 %v218, 16
      %v524 = vrot.slane %v522, 5
      %v525 = vsel %vm249, %v520, %v524
      %v526 = vunpack.c.l.b16 %v525
      %v527 = vpack.c.b16 %v526, %v473
      %529 = vst [vmem:[#allocation2 + $0x38] sm:$0xff] %v371
      %530 = vst [vmem:[#allocation2 + $0x80] sm:$0xff] %v372
      %531 = vst [vmem:[#allocation2 + $0xc8] sm:$0xff] %v373
      %532 = vst [vmem:[#allocation2 + $0x110] sm:$0xff] %v527
      %v534 = vrot.slane %v217, 5
      %v535 = vrot.slane %v534, 4
      %v536 = vrot.slane %v218, 5
      %v537 = vsel %vm392, %v535, %v536
      %v538 = vunpack.c.l.b16 %v537
      %v539 = vpack.c.b16 %v538, %v491
      %541 = vst [vmem:[#allocation2 + $0x40] sm:$0xff] %v434
      %542 = vst [vmem:[#allocation2 + $0x88] sm:$0xff] %v435
      %543 = vst [vmem:[#allocation2 + $0xd0] sm:$0xff] %v436
      %544 = vst [vmem:[#allocation2 + $0x118] sm:$0xff] %v539
      %v545 = vld [vmem:[#allocation2] sm:$0xff]
      %v546 = vld [vmem:[#allocation2 + $0x8] sm:$0xff]
      %v547 = vld [vmem:[#allocation2 + $0x10] sm:$0xff]
      %v548 = vld [vmem:[#allocation2 + $0x18] sm:$0xff]
      %v549 = vld [vmem:[#allocation2 + $0x20] sm:$0xff]
      %v550 = vld [vmem:[#allocation2 + $0x28] sm:$0xff]
      %v551 = vld [vmem:[#allocation2 + $0x30] sm:$0xff]
      %v552 = vld [vmem:[#allocation2 + $0x38] sm:$0xff]
      %v553 = vld [vmem:[#allocation2 + $0x40] sm:$0xff]
      %v554 = vld [vmem:[#allocation2 + $0x48] sm:$0xff]
      %v555 = vld [vmem:[#allocation2 + $0x50] sm:$0xff]
      %v556 = vld [vmem:[#allocation2 + $0x58] sm:$0xff]
      %v557 = vld [vmem:[#allocation2 + $0x60] sm:$0xff]
      %v558 = vld [vmem:[#allocation2 + $0x68] sm:$0xff]
      %v559 = vld [vmem:[#allocation2 + $0x70] sm:$0xff]
      %v560 = vld [vmem:[#allocation2 + $0x78] sm:$0xff]
      %v561 = vld [vmem:[#allocation2 + $0x80] sm:$0xff]
      %v562 = vld [vmem:[#allocation2 + $0x88] sm:$0xff]
      %v563 = vld [vmem:[#allocation2 + $0x90] sm:$0xff]
      %v564 = vld [vmem:[#allocation2 + $0x98] sm:$0xff]
      %v565 = vld [vmem:[#allocation2 + $0xa0] sm:$0xff]
      %v566 = vld [vmem:[#allocation2 + $0xa8] sm:$0xff]
      %v567 = vld [vmem:[#allocation2 + $0xb0] sm:$0xff]
      %v568 = vld [vmem:[#allocation2 + $0xb8] sm:$0xff]
      %v569 = vld [vmem:[#allocation2 + $0xc0] sm:$0xff]
      %v570 = vld [vmem:[#allocation2 + $0xc8] sm:$0xff]
      %v571 = vld [vmem:[#allocation2 + $0xd0] sm:$0xff]
      %v572 = vld [vmem:[#allocation2 + $0xd8] sm:$0xff]
      %v573 = vld [vmem:[#allocation2 + $0xe0] sm:$0xff]
      %v574 = vld [vmem:[#allocation2 + $0xe8] sm:$0xff]
      %v575 = vld [vmem:[#allocation2 + $0xf0] sm:$0xff]
      %v576 = vld [vmem:[#allocation2 + $0xf8] sm:$0xff]
      %v577 = vld [vmem:[#allocation2 + $0x100] sm:$0xff]
      %v578 = vld [vmem:[#allocation2 + $0x108] sm:$0xff]
      %v579 = vld [vmem:[#allocation2 + $0x110] sm:$0xff]
      %v580 = vld [vmem:[#allocation2 + $0x118] sm:$0xff]
      %v581 = vld [vmem:[%s1] sm:$0xf]
      %v582 = vld [vmem:[%s1 + $0x4] sm:$0xf]
      %v583 = vld [vmem:[%s1 + $0x8] sm:$0xf]
      %v584 = vld [vmem:[%s1 + $0xc] sm:$0xf]
      %v585 = vld [vmem:[%s1 + $0x10] sm:$0xf]
      %v586 = vld [vmem:[%s1 + $0x14] sm:$0xf]
      %v587 = vld [vmem:[%s1 + $0x18] sm:$0xf]
      %v588 = vld [vmem:[%s1 + $0x1c] sm:$0xf]
      %v589 = vld [vmem:[%s1 + $0x20] sm:$0xf]
      %v590 = vld [vmem:[%s1 + $0x24] sm:$0xf]
      %v591 = vld [vmem:[%s1 + $0x28] sm:$0xf]
      %v592 = vld [vmem:[%s1 + $0x2c] sm:$0xf]
      %v593 = vld [vmem:[%s1 + $0x30] sm:$0xf]
      %v594 = vld [vmem:[%s1 + $0x34] sm:$0xf]
      %v595 = vld [vmem:[%s1 + $0x38] sm:$0xf]
      %v596 = vld [vmem:[%s1 + $0x3c] sm:$0xf]
      %v597 = vld [vmem:[%s1 + $0x40] sm:$0xf]
      %v598 = vld [vmem:[%s1 + $0x44] sm:$0xf]
      %v599 = vld [vmem:[%s1 + $0x48] sm:$0xf]
      %v600 = vld [vmem:[%s1 + $0x4c] sm:$0xf]
      %v601 = vld [vmem:[%s1 + $0x50] sm:$0xf]
      %v602 = vld [vmem:[%s1 + $0x54] sm:$0xf]
      %v603 = vld [vmem:[%s1 + $0x58] sm:$0xf]
      %v604 = vld [vmem:[%s1 + $0x5c] sm:$0xf]
      %v605 = vld [vmem:[%s1 + $0x60] sm:$0xf]
      %v606 = vld [vmem:[%s1 + $0x64] sm:$0xf]
      %v607 = vld [vmem:[%s1 + $0x68] sm:$0xf]
      %v608 = vld [vmem:[%s1 + $0x6c] sm:$0xf]
      %v609 = vld [vmem:[%s1 + $0x70] sm:$0xf]
      %v610 = vld [vmem:[%s1 + $0x74] sm:$0xf]
      %v611 = vld [vmem:[%s1 + $0x78] sm:$0xf]
      %v612 = vld [vmem:[%s1 + $0x7c] sm:$0xf]
      %v613 = vld [vmem:[%s1 + $0x80] sm:$0xf]
      %v614 = vld [vmem:[%s1 + $0x84] sm:$0xf]
      %v615 = vld [vmem:[%s1 + $0x88] sm:$0xf]
      %v616 = vld [vmem:[%s1 + $0x8c] sm:$0xf]
      %v617 = vld [vmem:[%s1 + $0x90] sm:$0xf]
      %v618 = vld [vmem:[%s1 + $0x94] sm:$0xf]
      %v619 = vld [vmem:[%s1 + $0x98] sm:$0xf]
      %v620 = vld [vmem:[%s1 + $0x9c] sm:$0xf]
      %v621 = vld [vmem:[%s1 + $0xa0] sm:$0xf]
      %v622 = vld [vmem:[%s1 + $0xa4] sm:$0xf]
      %v623 = vld [vmem:[%s1 + $0xa8] sm:$0xf]
      %v624 = vld [vmem:[%s1 + $0xac] sm:$0xf]
      %v625 = vld [vmem:[%s1 + $0xb0] sm:$0xf]
      %v626 = vld [vmem:[%s1 + $0xb4] sm:$0xf]
      %v627 = vld [vmem:[%s1 + $0xb8] sm:$0xf]
      %v628 = vld [vmem:[%s1 + $0xbc] sm:$0xf]
      %v629 = vld [vmem:[%s1 + $0xc0] sm:$0xf]
      %v630 = vld [vmem:[%s1 + $0xc4] sm:$0xf]
      %v631 = vld [vmem:[%s1 + $0xc8] sm:$0xf]
      %v632 = vld [vmem:[%s1 + $0xcc] sm:$0xf]
      %v633 = vld [vmem:[%s1 + $0xd0] sm:$0xf]
      %v634 = vld [vmem:[%s1 + $0xd4] sm:$0xf]
      %v635 = vld [vmem:[%s1 + $0xd8] sm:$0xf]
      %v636 = vld [vmem:[%s1 + $0xdc] sm:$0xf]
      %v637 = vld [vmem:[%s1 + $0xe0] sm:$0xf]
      %v638 = vld [vmem:[%s1 + $0xe4] sm:$0xf]
      %v639 = vld [vmem:[%s1 + $0xe8] sm:$0xf]
      %v640 = vld [vmem:[%s1 + $0xec] sm:$0xf]
      %v641 = vld [vmem:[%s1 + $0xf0] sm:$0xf]
      %v642 = vld [vmem:[%s1 + $0xf4] sm:$0xf]
      %v643 = vld [vmem:[%s1 + $0xf8] sm:$0xf]
      %v644 = vld [vmem:[%s1 + $0xfc] sm:$0xf]
      %v645 = vld [vmem:[%s1 + $0x100] sm:$0xf]
      %v646 = vld [vmem:[%s1 + $0x104] sm:$0xf]
      %v647 = vld [vmem:[%s1 + $0x108] sm:$0xf]
      %v648 = vld [vmem:[%s1 + $0x10c] sm:$0xf]
      %v649 = vld [vmem:[%s1 + $0x110] sm:$0xf]
      %v650 = vld [vmem:[%s1 + $0x114] sm:$0xf]
      %v651 = vld [vmem:[%s1 + $0x118] sm:$0xf]
      %v652 = vld [vmem:[%s1 + $0x11c] sm:$0xf]
      %v653 = vld [vmem:[%s1 + $0x120] sm:$0xf]
      %v654 = vld [vmem:[%s1 + $0x124] sm:$0xf]
      %v655 = vld [vmem:[%s1 + $0x128] sm:$0xf]
      %v656 = vld [vmem:[%s1 + $0x12c] sm:$0xf]
      %v657 = vld [vmem:[%s1 + $0x130] sm:$0xf]
      %v658 = vld [vmem:[%s1 + $0x134] sm:$0xf]
      %v659 = vld [vmem:[%s1 + $0x138] sm:$0xf]
      %v660 = vld [vmem:[%s1 + $0x13c] sm:$0xf]
      %v661 = vld [vmem:[%s1 + $0x140] sm:$0xf]
      %v662 = vld [vmem:[%s1 + $0x144] sm:$0xf]
      %v663 = vld [vmem:[%s1 + $0x148] sm:$0xf]
      %v664 = vld [vmem:[%s1 + $0x14c] sm:$0xf]
      %v665 = vld [vmem:[%s1 + $0x150] sm:$0xf]
      %v666 = vld [vmem:[%s1 + $0x154] sm:$0xf]
      %v667 = vld [vmem:[%s1 + $0x158] sm:$0xf]
      %v668 = vld [vmem:[%s1 + $0x15c] sm:$0xf]
      %v669 = vld [vmem:[%s1 + $0x160] sm:$0xf]
      %v670 = vld [vmem:[%s1 + $0x164] sm:$0xf]
      %v671 = vld [vmem:[%s1 + $0x168] sm:$0xf]
      %v672 = vld [vmem:[%s1 + $0x16c] sm:$0xf]
      %v673 = vld [vmem:[%s1 + $0x170] sm:$0xf]
      %v674 = vld [vmem:[%s1 + $0x174] sm:$0xf]
      %v675 = vld [vmem:[%s1 + $0x178] sm:$0xf]
      %v676 = vld [vmem:[%s1 + $0x17c] sm:$0xf]
      %v677 = vld [vmem:[%s1 + $0x180] sm:$0xf]
      %v678 = vld [vmem:[%s1 + $0x184] sm:$0xf]
      %v679 = vld [vmem:[%s1 + $0x188] sm:$0xf]
      %v680 = vld [vmem:[%s1 + $0x18c] sm:$0xf]
      %v681 = vld [vmem:[%s1 + $0x190] sm:$0xf]
      %v682 = vld [vmem:[%s1 + $0x194] sm:$0xf]
      %v683 = vld [vmem:[%s1 + $0x198] sm:$0xf]
      %v684 = vld [vmem:[%s1 + $0x19c] sm:$0xf]
      %v685 = vld [vmem:[%s1 + $0x1a0] sm:$0xf]
      %v686 = vld [vmem:[%s1 + $0x1a4] sm:$0xf]
      %v687 = vld [vmem:[%s1 + $0x1a8] sm:$0xf]
      %v688 = vld [vmem:[%s1 + $0x1ac] sm:$0xf]
      %v689 = vld [vmem:[%s1 + $0x1b0] sm:$0xf]
      %v690 = vld [vmem:[%s1 + $0x1b4] sm:$0xf]
      %v691 = vld [vmem:[%s1 + $0x1b8] sm:$0xf]
      %v692 = vld [vmem:[%s1 + $0x1bc] sm:$0xf]
      %v693 = vld [vmem:[%s1 + $0x1c0] sm:$0xf]
      %v694 = vld [vmem:[%s1 + $0x1c4] sm:$0xf]
      %v695 = vld [vmem:[%s1 + $0x1c8] sm:$0xf]
      %v696 = vld [vmem:[%s1 + $0x1cc] sm:$0xf]
      %v697 = vld [vmem:[%s1 + $0x1d0] sm:$0xf]
      %v698 = vld [vmem:[%s1 + $0x1d4] sm:$0xf]
      %v699 = vld [vmem:[%s1 + $0x1d8] sm:$0xf]
      %v700 = vld [vmem:[%s1 + $0x1dc] sm:$0xf]
      %v701 = vld [vmem:[%s1 + $0x1e0] sm:$0xf]
      %v702 = vld [vmem:[%s1 + $0x1e4] sm:$0xf]
      %v703 = vld [vmem:[%s1 + $0x1e8] sm:$0xf]
      %v704 = vld [vmem:[%s1 + $0x1ec] sm:$0xf]
      %v705 = vld [vmem:[%s1 + $0x1f0] sm:$0xf]
      %v706 = vld [vmem:[%s1 + $0x1f4] sm:$0xf]
      %v707 = vld [vmem:[%s1 + $0x1f8] sm:$0xf]
      %v708 = vld [vmem:[%s1 + $0x1fc] sm:$0xf]
      %v709 = vld [vmem:[%s1 + $0x200] sm:$0xf]
      %v710 = vld [vmem:[%s1 + $0x204] sm:$0xf]
      %v711 = vld [vmem:[%s1 + $0x208] sm:$0xf]
      %v712 = vld [vmem:[%s1 + $0x20c] sm:$0xf]
      %v713 = vld [vmem:[%s1 + $0x210] sm:$0xf]
      %v714 = vld [vmem:[%s1 + $0x214] sm:$0xf]
      %v715 = vld [vmem:[%s1 + $0x218] sm:$0xf]
      %v716 = vld [vmem:[%s1 + $0x21c] sm:$0xf]
      %v717 = vld [vmem:[%s1 + $0x220] sm:$0xf]
      %v718 = vld [vmem:[%s1 + $0x224] sm:$0xf]
      %v719 = vld [vmem:[%s1 + $0x228] sm:$0xf]
      %v720 = vld [vmem:[%s1 + $0x22c] sm:$0xf]
      %v721 = vld [vmem:[%s1 + $0x230] sm:$0xf]
      %v722 = vld [vmem:[%s1 + $0x234] sm:$0xf]
      %v723 = vld [vmem:[%s1 + $0x238] sm:$0xf]
      %v724 = vld [vmem:[%s1 + $0x23c] sm:$0xf]
      %v725 = vld [vmem:[%s2] sm:$0x1]
      %v727 = vlaneseq
      %v728 = vshrl.u32 %v727, 7
      %v729 = vsub.s32 0, %v728
      %v730 = vrot.slane %v725, %v729
      %v876 = vunpack.c.l.b16 %v581
      %v877 = vunpack.c.l.b16 %v582
      %v878 = vunpack.c.l.b16 %v583
      %v879 = vunpack.c.l.b16 %v584
      %v880 = vunpack.c.l.b16 %v585
      %v881 = vunpack.c.l.b16 %v586
      %v882 = vunpack.c.l.b16 %v587
      %v883 = vunpack.c.l.b16 %v588
      %v884 = vunpack.c.l.b16 %v589
      %v885 = vunpack.c.l.b16 %v590
      %v886 = vunpack.c.l.b16 %v591
      %v887 = vunpack.c.l.b16 %v592
      %v888 = vunpack.c.l.b16 %v593
      %v889 = vunpack.c.l.b16 %v594
      %v890 = vunpack.c.l.b16 %v595
      %v891 = vunpack.c.l.b16 %v596
      %v892 = vunpack.c.l.b16 %v597
      %v893 = vunpack.c.l.b16 %v598
      %v894 = vunpack.c.l.b16 %v599
      %v895 = vunpack.c.l.b16 %v600
      %v896 = vunpack.c.l.b16 %v601
      %v897 = vunpack.c.l.b16 %v602
      %v898 = vunpack.c.l.b16 %v603
      %v899 = vunpack.c.l.b16 %v604
      %v900 = vunpack.c.l.b16 %v605
      %v901 = vunpack.c.l.b16 %v606
      %v902 = vunpack.c.l.b16 %v607
      %v903 = vunpack.c.l.b16 %v608
      %v904 = vunpack.c.l.b16 %v609
      %v905 = vunpack.c.l.b16 %v610
      %v906 = vunpack.c.l.b16 %v611
      %v907 = vunpack.c.l.b16 %v612
      %v908 = vunpack.c.l.b16 %v613
      %v909 = vunpack.c.l.b16 %v614
      %v910 = vunpack.c.l.b16 %v615
      %v911 = vunpack.c.l.b16 %v616
      %v912 = vunpack.c.l.b16 %v617
      %v913 = vunpack.c.l.b16 %v618
      %v914 = vunpack.c.l.b16 %v619
      %v915 = vunpack.c.l.b16 %v620
      %v916 = vunpack.c.l.b16 %v621
      %v917 = vunpack.c.l.b16 %v622
      %v918 = vunpack.c.l.b16 %v623
      %v919 = vunpack.c.l.b16 %v624
      %v920 = vunpack.c.l.b16 %v625
      %v921 = vunpack.c.l.b16 %v626
      %v922 = vunpack.c.l.b16 %v627
      %v923 = vunpack.c.l.b16 %v628
      %v924 = vunpack.c.l.b16 %v629
      %v925 = vunpack.c.l.b16 %v630
      %v926 = vunpack.c.l.b16 %v631
      %v927 = vunpack.c.l.b16 %v632
      %v928 = vunpack.c.l.b16 %v633
      %v929 = vunpack.c.l.b16 %v634
      %v930 = vunpack.c.l.b16 %v635
      %v931 = vunpack.c.l.b16 %v636
      %v932 = vunpack.c.l.b16 %v637
      %v933 = vunpack.c.l.b16 %v638
      %v934 = vunpack.c.l.b16 %v639
      %v935 = vunpack.c.l.b16 %v640
      %v936 = vunpack.c.l.b16 %v641
      %v937 = vunpack.c.l.b16 %v642
      %v938 = vunpack.c.l.b16 %v643
      %v939 = vunpack.c.l.b16 %v644
      %v940 = vunpack.c.l.b16 %v645
      %v941 = vunpack.c.l.b16 %v646
      %v942 = vunpack.c.l.b16 %v647
      %v943 = vunpack.c.l.b16 %v648
      %v944 = vunpack.c.l.b16 %v649
      %v945 = vunpack.c.l.b16 %v650
      %v946 = vunpack.c.l.b16 %v651
      %v947 = vunpack.c.l.b16 %v652
      %v948 = vunpack.c.l.b16 %v653
      %v949 = vunpack.c.l.b16 %v654
      %v950 = vunpack.c.l.b16 %v655
      %v951 = vunpack.c.l.b16 %v656
      %v952 = vunpack.c.l.b16 %v657
      %v953 = vunpack.c.l.b16 %v658
      %v954 = vunpack.c.l.b16 %v659
      %v955 = vunpack.c.l.b16 %v660
      %v956 = vunpack.c.l.b16 %v661
      %v957 = vunpack.c.l.b16 %v662
      %v958 = vunpack.c.l.b16 %v663
      %v959 = vunpack.c.l.b16 %v664
      %v960 = vunpack.c.l.b16 %v665
      %v961 = vunpack.c.l.b16 %v666
      %v962 = vunpack.c.l.b16 %v667
      %v963 = vunpack.c.l.b16 %v668
      %v964 = vunpack.c.l.b16 %v669
      %v965 = vunpack.c.l.b16 %v670
      %v966 = vunpack.c.l.b16 %v671
      %v967 = vunpack.c.l.b16 %v672
      %v968 = vunpack.c.l.b16 %v673
      %v969 = vunpack.c.l.b16 %v674
      %v970 = vunpack.c.l.b16 %v675
      %v971 = vunpack.c.l.b16 %v676
      %v972 = vunpack.c.l.b16 %v677
      %v973 = vunpack.c.l.b16 %v678
      %v974 = vunpack.c.l.b16 %v679
      %v975 = vunpack.c.l.b16 %v680
      %v976 = vunpack.c.l.b16 %v681
      %v977 = vunpack.c.l.b16 %v682
      %v978 = vunpack.c.l.b16 %v683
      %v979 = vunpack.c.l.b16 %v684
      %v980 = vunpack.c.l.b16 %v685
      %v981 = vunpack.c.l.b16 %v686
      %v982 = vunpack.c.l.b16 %v687
      %v983 = vunpack.c.l.b16 %v688
      %v984 = vunpack.c.l.b16 %v689
      %v985 = vunpack.c.l.b16 %v690
      %v986 = vunpack.c.l.b16 %v691
      %v987 = vunpack.c.l.b16 %v692
      %v988 = vunpack.c.l.b16 %v693
      %v989 = vunpack.c.l.b16 %v694
      %v990 = vunpack.c.l.b16 %v695
      %v991 = vunpack.c.l.b16 %v696
      %v992 = vunpack.c.l.b16 %v697
      %v993 = vunpack.c.l.b16 %v698
      %v994 = vunpack.c.l.b16 %v699
      %v995 = vunpack.c.l.b16 %v700
      %v996 = vunpack.c.l.b16 %v701
      %v997 = vunpack.c.l.b16 %v702
      %v998 = vunpack.c.l.b16 %v703
      %v999 = vunpack.c.l.b16 %v704
      %v1000 = vunpack.c.l.b16 %v705
      %v1001 = vunpack.c.l.b16 %v706
      %v1002 = vunpack.c.l.b16 %v707
      %v1003 = vunpack.c.l.b16 %v708
      %v1004 = vunpack.c.l.b16 %v709
      %v1005 = vunpack.c.l.b16 %v710
      %v1006 = vunpack.c.l.b16 %v711
      %v1007 = vunpack.c.l.b16 %v712
      %v1008 = vunpack.c.l.b16 %v713
      %v1009 = vunpack.c.l.b16 %v714
      %v1010 = vunpack.c.l.b16 %v715
      %v1011 = vunpack.c.l.b16 %v716
      %v1012 = vunpack.c.l.b16 %v717
      %v1013 = vunpack.c.l.b16 %v718
      %v1014 = vunpack.c.l.b16 %v719
      %v1015 = vunpack.c.l.b16 %v720
      %v1016 = vunpack.c.l.b16 %v721
      %v1017 = vunpack.c.l.b16 %v722
      %v1018 = vunpack.c.l.b16 %v723
      %v1019 = vunpack.c.l.b16 %v724
      %v1020 = vpack.c.b16 %v877, %v876
      %v1021 = vpack.c.b16 %v879, %v878
      %v1022 = vpack.c.b16 %v881, %v880
      %v1023 = vpack.c.b16 %v883, %v882
      %v1024 = vpack.c.b16 %v885, %v884
      %v1025 = vpack.c.b16 %v887, %v886
      %v1026 = vpack.c.b16 %v889, %v888
      %v1027 = vpack.c.b16 %v891, %v890
      %v1028 = vpack.c.b16 %v893, %v892
      %v1029 = vpack.c.b16 %v895, %v894
      %v1030 = vpack.c.b16 %v897, %v896
      %v1031 = vpack.c.b16 %v899, %v898
      %v1032 = vpack.c.b16 %v901, %v900
      %v1033 = vpack.c.b16 %v903, %v902
      %v1034 = vpack.c.b16 %v905, %v904
      %v1035 = vpack.c.b16 %v907, %v906
      %v1036 = vpack.c.b16 %v909, %v908
      %v1037 = vpack.c.b16 %v911, %v910
      %v1038 = vpack.c.b16 %v913, %v912
      %v1039 = vpack.c.b16 %v915, %v914
      %v1040 = vpack.c.b16 %v917, %v916
      %v1041 = vpack.c.b16 %v919, %v918
      %v1042 = vpack.c.b16 %v921, %v920
      %v1043 = vpack.c.b16 %v923, %v922
      %v1044 = vpack.c.b16 %v925, %v924
      %v1045 = vpack.c.b16 %v927, %v926
      %v1046 = vpack.c.b16 %v929, %v928
      %v1047 = vpack.c.b16 %v931, %v930
      %v1048 = vpack.c.b16 %v933, %v932
      %v1049 = vpack.c.b16 %v935, %v934
      %v1050 = vpack.c.b16 %v937, %v936
      %v1051 = vpack.c.b16 %v939, %v938
      %v1052 = vpack.c.b16 %v941, %v940
      %v1053 = vpack.c.b16 %v943, %v942
      %v1054 = vpack.c.b16 %v945, %v944
      %v1055 = vpack.c.b16 %v947, %v946
      %v1056 = vpack.c.b16 %v949, %v948
      %v1057 = vpack.c.b16 %v951, %v950
      %v1058 = vpack.c.b16 %v953, %v952
      %v1059 = vpack.c.b16 %v955, %v954
      %v1060 = vpack.c.b16 %v957, %v956
      %v1061 = vpack.c.b16 %v959, %v958
      %v1062 = vpack.c.b16 %v961, %v960
      %v1063 = vpack.c.b16 %v963, %v962
      %v1064 = vpack.c.b16 %v965, %v964
      %v1065 = vpack.c.b16 %v967, %v966
      %v1066 = vpack.c.b16 %v969, %v968
      %v1067 = vpack.c.b16 %v971, %v970
      %v1068 = vpack.c.b16 %v973, %v972
      %v1069 = vpack.c.b16 %v975, %v974
      %v1070 = vpack.c.b16 %v977, %v976
      %v1071 = vpack.c.b16 %v979, %v978
      %v1072 = vpack.c.b16 %v981, %v980
      %v1073 = vpack.c.b16 %v983, %v982
      %v1074 = vpack.c.b16 %v985, %v984
      %v1075 = vpack.c.b16 %v987, %v986
      %v1076 = vpack.c.b16 %v989, %v988
      %v1077 = vpack.c.b16 %v991, %v990
      %v1078 = vpack.c.b16 %v993, %v992
      %v1079 = vpack.c.b16 %v995, %v994
      %v1080 = vpack.c.b16 %v997, %v996
      %v1081 = vpack.c.b16 %v999, %v998
      %v1082 = vpack.c.b16 %v1001, %v1000
      %v1083 = vpack.c.b16 %v1003, %v1002
      %v1084 = vpack.c.b16 %v1005, %v1004
      %v1085 = vpack.c.b16 %v1007, %v1006
      %v1086 = vpack.c.b16 %v1009, %v1008
      %v1087 = vpack.c.b16 %v1011, %v1010
      %v1088 = vpack.c.b16 %v1013, %v1012
      %v1089 = vpack.c.b16 %v1015, %v1014
      %v1090 = vpack.c.b16 %v1017, %v1016
      %v1091 = vpack.c.b16 %v1019, %v1018
      %1164 = vmatprep.subr.bf16.mxu0 0
      %1165 = vmatpush1.bf16.msra.mxu0 %v1020
      %1166 = vmatprep.subr.bf16.mxu0 0
      %1167 = vmatpush1.bf16.msra.mxu0 %v1021
      %1168 = vmatprep.subr.bf16.mxu0 0
      %1169 = vmatpush1.bf16.msra.mxu0 %v1022
      %1170 = vmatprep.subr.bf16.mxu0 0
      %1171 = vmatpush1.bf16.msra.mxu0 %v1023
      %1172 = vmatprep.subr.bf16.mxu0 0
      %1173 = vmatpush1.bf16.msra.mxu0 %v1024
      %1174 = vmatprep.subr.bf16.mxu0 0
      %1175 = vmatpush1.bf16.msra.mxu0 %v1025
      %1176 = vmatprep.subr.bf16.mxu0 0
      %1177 = vmatpush1.bf16.msra.mxu0 %v1026
      %1178 = vmatprep.subr.bf16.mxu0 0
      %1179 = vmatpush1.bf16.msra.mxu0 %v1027
      %1180 = vmatprep.subr.bf16.mxu0 0
      %1181 = vmatpush1.bf16.msra.mxu0 %v1028
      %1182 = vmatprep.subr.bf16.mxu0 0
      %1183 = vmatpush1.bf16.msra.mxu0 %v1029
      %1184 = vmatprep.subr.bf16.mxu0 0
      %1185 = vmatpush1.bf16.msra.mxu0 %v1030
      %1186 = vmatprep.subr.bf16.mxu0 0
      %1187 = vmatpush1.bf16.msra.mxu0 %v1031
      %1188 = vmatprep.subr.bf16.mxu0 0
      %1189 = vmatpush1.bf16.msra.mxu0 %v1032
      %1190 = vmatprep.subr.bf16.mxu0 0
      %1191 = vmatpush1.bf16.msra.mxu0 %v1033
      %1192 = vmatprep.subr.bf16.mxu0 0
      %1193 = vmatpush1.bf16.msra.mxu0 %v1034
      %1194 = vmatprep.subr.bf16.mxu0 0
      %1195 = vmatpush1.bf16.msra.mxu0 %v1035
      %1196 = vmatprep.mubr.bf16.mxu0 %v546
      %1197 = vmatmul.mubr.bf16.gmra.mrb[0].mxu0 %v545
      %v1198 = vpop.f32.mrb[0].mxu0
      %v1199 = vadd.f32 %v730, %v1198
      %v1200 = vpop.f32.mrb[0].mxu0
      %v1201 = vpop.f32.mrb[0].mxu0
      %v1202 = vadd.f32 %v730, %v1201
      %v1203 = vpop.f32.mrb[0].mxu0
      %1204 = vmatprep.mubr.bf16.mxu0 %v555
      %1205 = vmatmul.mubr.bf16.gmra.mrb[0].mxu0 %v554
      %v1206 = vpop.f32.mrb[0].mxu0
      %v1207 = vadd.f32 %v730, %v1206
      %v1208 = vpop.f32.mrb[0].mxu0
      %v1209 = vpop.f32.mrb[0].mxu0
      %v1210 = vadd.f32 %v730, %v1209
      %v1211 = vpop.f32.mrb[0].mxu0
      %1212 = vmatprep.mubr.bf16.mxu0 %v564
      %1213 = vmatmul.mubr.bf16.gmra.mrb[0].mxu0 %v563
      %v1214 = vpop.f32.mrb[0].mxu0
      %v1215 = vadd.f32 %v730, %v1214
      %v1216 = vpop.f32.mrb[0].mxu0
      %v1217 = vpop.f32.mrb[0].mxu0
      %v1218 = vadd.f32 %v730, %v1217
      %v1219 = vpop.f32.mrb[0].mxu0
      %1220 = vmatprep.mubr.bf16.mxu0 %v573
      %1221 = vmatmul.mubr.bf16.gmra.mrb[0].mxu0 %v572
      %v1222 = vpop.f32.mrb[0].mxu0
      %v1223 = vadd.f32 %v730, %v1222
      %v1224 = vpop.f32.mrb[0].mxu0
      %v1225 = vpop.f32.mrb[0].mxu0
      %v1226 = vadd.f32 %v730, %v1225
      %v1227 = vpop.f32.mrb[0].mxu0
      %1228 = vdwg.mxu0
      %1229 = vmatprep.subr.bf16.mxu0 0
      %1230 = vmatpush1.bf16.msra.mxu0 %v1036
      %1231 = vmatprep.subr.bf16.mxu0 0
      %1232 = vmatpush1.bf16.msra.mxu0 %v1037
      %1233 = vmatprep.subr.bf16.mxu0 0
      %1234 = vmatpush1.bf16.msra.mxu0 %v1038
      %1235 = vmatprep.subr.bf16.mxu0 0
      %1236 = vmatpush1.bf16.msra.mxu0 %v1039
      %1237 = vmatprep.subr.bf16.mxu0 0
      %1238 = vmatpush1.bf16.msra.mxu0 %v1040
      %1239 = vmatprep.subr.bf16.mxu0 0
      %1240 = vmatpush1.bf16.msra.mxu0 %v1041
      %1241 = vmatprep.subr.bf16.mxu0 0
      %1242 = vmatpush1.bf16.msra.mxu0 %v1042
      %1243 = vmatprep.subr.bf16.mxu0 0
      %1244 = vmatpush1.bf16.msra.mxu0 %v1043
      %1245 = vmatprep.subr.bf16.mxu0 0
      %1246 = vmatpush1.bf16.msra.mxu0 %v1044
      %1247 = vmatprep.subr.bf16.mxu0 0
      %1248 = vmatpush1.bf16.msra.mxu0 %v1045
      %1249 = vmatprep.subr.bf16.mxu0 0
      %1250 = vmatpush1.bf16.msra.mxu0 %v1046
      %1251 = vmatprep.subr.bf16.mxu0 0
      %1252 = vmatpush1.bf16.msra.mxu0 %v1047
      %1253 = vmatprep.subr.bf16.mxu0 0
      %1254 = vmatpush1.bf16.msra.mxu0 %v1048
      %1255 = vmatprep.subr.bf16.mxu0 0
      %1256 = vmatpush1.bf16.msra.mxu0 %v1049
      %1257 = vmatprep.subr.bf16.mxu0 0
      %1258 = vmatpush1.bf16.msra.mxu0 %v1050
      %1259 = vmatprep.subr.bf16.mxu0 0
      %1260 = vmatpush1.bf16.msra.mxu0 %v1051
      %1261 = vmatprep.mubr.bf16.mxu0 %v548
      %1262 = vmatmul.mubr.bf16.gmra.mrb[0].mxu0 %v547
      %v1263 = vpop.f32.mrb[0].mxu0
      %v1264 = vadd.f32 %v1199, %v1263
      %v1265 = vpop.f32.mrb[0].mxu0
      %v1266 = vpop.f32.mrb[0].mxu0
      %v1267 = vadd.f32 %v1202, %v1266
      %v1268 = vpop.f32.mrb[0].mxu0
      %1269 = vmatprep.mubr.bf16.mxu0 %v557
      %1270 = vmatmul.mubr.bf16.gmra.mrb[0].mxu0 %v556
      %v1271 = vpop.f32.mrb[0].mxu0
      %v1272 = vadd.f32 %v1207, %v1271
      %v1273 = vpop.f32.mrb[0].mxu0
      %v1274 = vpop.f32.mrb[0].mxu0
      %v1275 = vadd.f32 %v1210, %v1274
      %v1276 = vpop.f32.mrb[0].mxu0
      %1277 = vmatprep.mubr.bf16.mxu0 %v566
      %1278 = vmatmul.mubr.bf16.gmra.mrb[0].mxu0 %v565
      %v1279 = vpop.f32.mrb[0].mxu0
      %v1280 = vadd.f32 %v1215, %v1279
      %v1281 = vpop.f32.mrb[0].mxu0
      %v1282 = vpop.f32.mrb[0].mxu0
      %v1283 = vadd.f32 %v1218, %v1282
      %v1284 = vpop.f32.mrb[0].mxu0
      %1285 = vmatprep.mubr.bf16.mxu0 %v575
      %1286 = vmatmul.mubr.bf16.gmra.mrb[0].mxu0 %v574
      %v1287 = vpop.f32.mrb[0].mxu0
      %v1288 = vadd.f32 %v1223, %v1287
      %v1289 = vpop.f32.mrb[0].mxu0
      %v1290 = vpop.f32.mrb[0].mxu0
      %v1291 = vadd.f32 %v1226, %v1290
      %v1292 = vpop.f32.mrb[0].mxu0
      %1293 = vdwg.mxu0
      %1294 = vmatprep.subr.bf16.mxu0 0
      %1295 = vmatpush1.bf16.msra.mxu0 %v1052
      %1296 = vmatprep.subr.bf16.mxu0 0
      %1297 = vmatpush1.bf16.msra.mxu0 %v1053
      %1298 = vmatprep.subr.bf16.mxu0 0
      %1299 = vmatpush1.bf16.msra.mxu0 %v1054
      %1300 = vmatprep.subr.bf16.mxu0 0
      %1301 = vmatpush1.bf16.msra.mxu0 %v1055
      %1302 = vmatprep.subr.bf16.mxu0 0
      %1303 = vmatpush1.bf16.msra.mxu0 %v1056
      %1304 = vmatprep.subr.bf16.mxu0 0
      %1305 = vmatpush1.bf16.msra.mxu0 %v1057
      %1306 = vmatprep.subr.bf16.mxu0 0
      %1307 = vmatpush1.bf16.msra.mxu0 %v1058
      %1308 = vmatprep.subr.bf16.mxu0 0
      %1309 = vmatpush1.bf16.msra.mxu0 %v1059
      %1310 = vmatprep.subr.bf16.mxu0 0
      %1311 = vmatpush1.bf16.msra.mxu0 %v1060
      %1312 = vmatprep.subr.bf16.mxu0 0
      %1313 = vmatpush1.bf16.msra.mxu0 %v1061
      %1314 = vmatprep.subr.bf16.mxu0 0
      %1315 = vmatpush1.bf16.msra.mxu0 %v1062
      %1316 = vmatprep.subr.bf16.mxu0 0
      %1317 = vmatpush1.bf16.msra.mxu0 %v1063
      %1318 = vmatprep.subr.bf16.mxu0 0
      %1319 = vmatpush1.bf16.msra.mxu0 %v1064
      %1320 = vmatprep.subr.bf16.mxu0 0
      %1321 = vmatpush1.bf16.msra.mxu0 %v1065
      %1322 = vmatprep.subr.bf16.mxu0 0
      %1323 = vmatpush1.bf16.msra.mxu0 %v1066
      %1324 = vmatprep.subr.bf16.mxu0 0
      %1325 = vmatpush1.bf16.msra.mxu0 %v1067
      %1326 = vmatprep.mubr.bf16.mxu0 %v550
      %1327 = vmatmul.mubr.bf16.gmra.mrb[0].mxu0 %v549
      %v1328 = vpop.f32.mrb[0].mxu0
      %v1329 = vadd.f32 %v1264, %v1328
      %v1330 = vpop.f32.mrb[0].mxu0
      %v1331 = vpop.f32.mrb[0].mxu0
      %v1332 = vadd.f32 %v1267, %v1331
      %v1333 = vpop.f32.mrb[0].mxu0
      %1334 = vmatprep.mubr.bf16.mxu0 %v559
      %1335 = vmatmul.mubr.bf16.gmra.mrb[0].mxu0 %v558
      %v1336 = vpop.f32.mrb[0].mxu0
      %v1337 = vadd.f32 %v1272, %v1336
      %v1338 = vpop.f32.mrb[0].mxu0
      %v1339 = vpop.f32.mrb[0].mxu0
      %v1340 = vadd.f32 %v1275, %v1339
      %v1341 = vpop.f32.mrb[0].mxu0
      %1342 = vmatprep.mubr.bf16.mxu0 %v568
      %1343 = vmatmul.mubr.bf16.gmra.mrb[0].mxu0 %v567
      %v1344 = vpop.f32.mrb[0].mxu0
      %v1345 = vadd.f32 %v1280, %v1344
      %v1346 = vpop.f32.mrb[0].mxu0
      %v1347 = vpop.f32.mrb[0].mxu0
      %v1348 = vadd.f32 %v1283, %v1347
      %v1349 = vpop.f32.mrb[0].mxu0
      %1350 = vmatprep.mubr.bf16.mxu0 %v577
      %1351 = vmatmul.mubr.bf16.gmra.mrb[0].mxu0 %v576
      %v1352 = vpop.f32.mrb[0].mxu0
      %v1353 = vadd.f32 %v1288, %v1352
      %v1354 = vpop.f32.mrb[0].mxu0
      %v1355 = vpop.f32.mrb[0].mxu0
      %v1356 = vadd.f32 %v1291, %v1355
      %v1357 = vpop.f32.mrb[0].mxu0
      %1358 = vdwg.mxu0
      %1359 = vmatprep.subr.bf16.mxu0 0
      %1360 = vmatpush1.bf16.msra.mxu0 %v1068
      %1361 = vmatprep.subr.bf16.mxu0 0
      %1362 = vmatpush1.bf16.msra.mxu0 %v1069
      %1363 = vmatprep.subr.bf16.mxu0 0
      %1364 = vmatpush1.bf16.msra.mxu0 %v1070
      %1365 = vmatprep.subr.bf16.mxu0 0
      %1366 = vmatpush1.bf16.msra.mxu0 %v1071
      %1367 = vmatprep.subr.bf16.mxu0 0
      %1368 = vmatpush1.bf16.msra.mxu0 %v1072
      %1369 = vmatprep.subr.bf16.mxu0 0
      %1370 = vmatpush1.bf16.msra.mxu0 %v1073
      %1371 = vmatprep.subr.bf16.mxu0 0
      %1372 = vmatpush1.bf16.msra.mxu0 %v1074
      %1373 = vmatprep.subr.bf16.mxu0 0
      %1374 = vmatpush1.bf16.msra.mxu0 %v1075
      %1375 = vmatprep.subr.bf16.mxu0 0
      %1376 = vmatpush1.bf16.msra.mxu0 %v1076
      %1377 = vmatprep.subr.bf16.mxu0 0
      %1378 = vmatpush1.bf16.msra.mxu0 %v1077
      %1379 = vmatprep.subr.bf16.mxu0 0
      %1380 = vmatpush1.bf16.msra.mxu0 %v1078
      %1381 = vmatprep.subr.bf16.mxu0 0
      %1382 = vmatpush1.bf16.msra.mxu0 %v1079
      %1383 = vmatprep.subr.bf16.mxu0 0
      %1384 = vmatpush1.bf16.msra.mxu0 %v1080
      %1385 = vmatprep.subr.bf16.mxu0 0
      %1386 = vmatpush1.bf16.msra.mxu0 %v1081
      %1387 = vmatprep.subr.bf16.mxu0 0
      %1388 = vmatpush1.bf16.msra.mxu0 %v1082
      %1389 = vmatprep.subr.bf16.mxu0 0
      %1390 = vmatpush1.bf16.msra.mxu0 %v1083
      %1391 = vmatprep.mubr.bf16.mxu0 %v552
      %1392 = vmatmul.mubr.bf16.gmra.mrb[0].mxu0 %v551
      %v1393 = vpop.f32.mrb[0].mxu0
      %v1394 = vadd.f32 %v1329, %v1393
      %v1395 = vpop.f32.mrb[0].mxu0
      %v1396 = vpop.f32.mrb[0].mxu0
      %v1397 = vadd.f32 %v1332, %v1396
      %v1398 = vpop.f32.mrb[0].mxu0
      %1399 = vmatprep.mubr.bf16.mxu0 %v561
      %1400 = vmatmul.mubr.bf16.gmra.mrb[0].mxu0 %v560
      %v1401 = vpop.f32.mrb[0].mxu0
      %v1402 = vadd.f32 %v1337, %v1401
      %v1403 = vpop.f32.mrb[0].mxu0
      %v1404 = vpop.f32.mrb[0].mxu0
      %v1405 = vadd.f32 %v1340, %v1404
      %v1406 = vpop.f32.mrb[0].mxu0
      %1407 = vmatprep.mubr.bf16.mxu0 %v570
      %1408 = vmatmul.mubr.bf16.gmra.mrb[0].mxu0 %v569
      %v1409 = vpop.f32.mrb[0].mxu0
      %v1410 = vadd.f32 %v1345, %v1409
      %v1411 = vpop.f32.mrb[0].mxu0
      %v1412 = vpop.f32.mrb[0].mxu0
      %v1413 = vadd.f32 %v1348, %v1412
      %v1414 = vpop.f32.mrb[0].mxu0
      %1415 = vmatprep.mubr.bf16.mxu0 %v579
      %1416 = vmatmul.mubr.bf16.gmra.mrb[0].mxu0 %v578
      %v1417 = vpop.f32.mrb[0].mxu0
      %v1418 = vadd.f32 %v1353, %v1417
      %v1419 = vpop.f32.mrb[0].mxu0
      %v1420 = vpop.f32.mrb[0].mxu0
      %v1421 = vadd.f32 %v1356, %v1420
      %v1422 = vpop.f32.mrb[0].mxu0
      %1423 = vdwg.mxu0
      %1424 = vmatprep.subr.bf16.mxu0 0
      %1425 = vmatpush1.bf16.msra.mxu0 %v1084
      %1426 = vmatprep.subr.bf16.mxu0 0
      %1427 = vmatpush1.bf16.msra.mxu0 %v1085
      %1428 = vmatprep.subr.bf16.mxu0 0
      %1429 = vmatpush1.bf16.msra.mxu0 %v1086
      %1430 = vmatprep.subr.bf16.mxu0 0
      %1431 = vmatpush1.bf16.msra.mxu0 %v1087
      %1432 = vmatprep.subr.bf16.mxu0 0
      %1433 = vmatpush1.bf16.msra.mxu0 %v1088
      %1434 = vmatprep.subr.bf16.mxu0 0
      %1435 = vmatpush1.bf16.msra.mxu0 %v1089
      %1436 = vmatprep.subr.bf16.mxu0 0
      %1437 = vmatpush1.bf16.msra.mxu0 %v1090
      %1438 = vmatprep.subr.bf16.mxu0 0
      %1439 = vmatpush1.bf16.msra.mxu0 %v1091
      %1440 = vmatprep.subr.bf16.mxu0 0
      %1441 = vmatpush1.bf16.msra.mxu0 0
      %1442 = vmatprep.subr.bf16.mxu0 0
      %1443 = vmatpush1.bf16.msra.mxu0 0
      %1444 = vmatprep.subr.bf16.mxu0 0
      %1445 = vmatpush1.bf16.msra.mxu0 0
      %1446 = vmatprep.subr.bf16.mxu0 0
      %1447 = vmatpush1.bf16.msra.mxu0 0
      %1448 = vmatprep.subr.bf16.mxu0 0
      %1449 = vmatpush1.bf16.msra.mxu0 0
      %1450 = vmatprep.subr.bf16.mxu0 0
      %1451 = vmatpush1.bf16.msra.mxu0 0
      %1452 = vmatprep.subr.bf16.mxu0 0
      %1453 = vmatpush1.bf16.msra.mxu0 0
      %1454 = vmatprep.subr.bf16.mxu0 0
      %1455 = vmatpush1.bf16.msra.mxu0 0
      %1456 = vmatprep.mubr.bf16.mxu0 0
      %1457 = vmatmul.mubr.bf16.gmra.mrb[0].mxu0 %v553
      %v1458 = vpop.f32.mrb[0].mxu0
      %v1459 = vadd.f32 %v1394, %v1458
      %v1460 = vpop.f32.mrb[0].mxu0
      %v1461 = vpop.f32.mrb[0].mxu0
      %v1462 = vadd.f32 %v1397, %v1461
      %v1463 = vpop.f32.mrb[0].mxu0
      %1464 = vmatprep.mubr.bf16.mxu0 0
      %1465 = vmatmul.mubr.bf16.gmra.mrb[0].mxu0 %v562
      %v1466 = vpop.f32.mrb[0].mxu0
      %v1467 = vadd.f32 %v1402, %v1466
      %v1468 = vpop.f32.mrb[0].mxu0
      %v1469 = vpop.f32.mrb[0].mxu0
      %v1470 = vadd.f32 %v1405, %v1469
      %v1471 = vpop.f32.mrb[0].mxu0
      %1472 = vmatprep.mubr.bf16.mxu0 0
      %1473 = vmatmul.mubr.bf16.gmra.mrb[0].mxu0 %v571
      %v1474 = vpop.f32.mrb[0].mxu0
      %v1475 = vadd.f32 %v1410, %v1474
      %v1476 = vpop.f32.mrb[0].mxu0
      %v1477 = vpop.f32.mrb[0].mxu0
      %v1478 = vadd.f32 %v1413, %v1477
      %v1479 = vpop.f32.mrb[0].mxu0
      %1480 = vmatprep.mubr.bf16.mxu0 0
      %1481 = vmatmul.mubr.bf16.gmra.mrb[0].mxu0 %v580
      %v1482 = vpop.f32.mrb[0].mxu0
      %v1483 = vadd.f32 %v1418, %v1482
      %v1484 = vpop.f32.mrb[0].mxu0
      %v1485 = vpop.f32.mrb[0].mxu0
      %v1486 = vadd.f32 %v1421, %v1485
      %v1487 = vpop.f32.mrb[0].mxu0
      %1488 = vdwg.mxu0
      %v1489 = vmax.f32 %v1459, 0.0
      %v1490 = vmax.f32 %v1462, 0.0
      %v1491 = vmax.f32 %v1467, 0.0
      %v1492 = vmax.f32 %v1470, 0.0
      %v1493 = vmax.f32 %v1475, 0.0
      %v1494 = vmax.f32 %v1478, 0.0
      %v1495 = vmax.f32 %v1483, 0.0
      %v1496 = vmax.f32 %v1486, 0.0
      %v1497 = vpack.c.bf16 %v1489, %v1489
      %v1498 = vpack.c.bf16 %v1490, %v1490
      %v1499 = vpack.c.bf16 %v1491, %v1491
      %v1500 = vpack.c.bf16 %v1492, %v1492
      %v1501 = vpack.c.bf16 %v1493, %v1493
      %v1502 = vpack.c.bf16 %v1494, %v1494
      %v1503 = vpack.c.bf16 %v1495, %v1495
      %v1504 = vpack.c.bf16 %v1496, %v1496
      %1505 = vst [vmem:[%s192] sm:$0xf] %v1497
      %1506 = vst [vmem:[%s192 + $0x4] sm:$0xf] %v1498
      %1507 = vst [vmem:[%s192 + $0x8] sm:$0xf] %v1499
      %1508 = vst [vmem:[%s192 + $0xc] sm:$0xf] %v1500
      %1509 = vst [vmem:[%s192 + $0x10] sm:$0xf] %v1501
      %1510 = vst [vmem:[%s192 + $0x14] sm:$0xf] %v1502
      %1511 = vst [vmem:[%s192 + $0x18] sm:$0xf] %v1503
      %1512 = vst [vmem:[%s192 + $0x1c] sm:$0xf] %v1504
      %s1513 = smul.u32 8, %s19
      %p1514 = scmp.lt.s32.totalorder %s18, 1
      %s1515 = scalar_select %p1514, %s18, 1
      %p1516 = scmp.lt.s32.totalorder %s1513, 7
      %s1517 = scalar_select %p1516, %s1513, 7
      %s1518 = smul.addr %s1515, 8
      %s1519 = sadd.s32 %s1517, %s1518
      %s1520 = smul.addr %s1519, 4
      %s1521 = scalar_lea.vmem %s3, %s1520
      // Predicated region
      $region33: #{cenet_forward.10} parent=31 // pred_check
        %p1522 = pneg %p114
      $region34: #{cenet_forward.10} parent=31 // pred_check_branch
        %1524 = sbr.rel (%p1522) target = $region36
      $region35: #{cenet_forward.10} parent=31 // pred_region
        %s1525 = smul.u32 8, %s19
      $region36: #{cenet_forward.10} parent=31 // pred_fallthru
        _
    $region32: #{cenet_forward.10} parent=5 // pred_fallthru
      _
    %p1526 = scmp.le.s32.totalorder 2, %s9
    // Predicated region
    $region37: #{cenet_forward.10} parent=5 // pred_check
      %p1527 = pneg %p1526
    $region38: #{cenet_forward.10} parent=5 // pred_check_branch
      %1529 = sbr.rel (%p1527) target = $region40
    $region39: #{cenet_forward.10} parent=5 // pred_region
      %s1530 = ssub.s32 %s9, 2
      // Predicated region
      $region41: #{cenet_forward.10} parent=39 // pred_check
        %p1531 = pneg %p120
      $region42: #{cenet_forward.10} parent=39 // pred_check_branch
        %1533 = sbr.rel (%p1531) target = $region44
      $region43: #{cenet_forward.10} parent=39 // pred_region
        %s1534 = smul.u32 8, %s21
        %p1535 = scmp.lt.s32.totalorder %s20, 1
        %s1536 = scalar_select %p1535, %s20, 1
        %p1537 = scmp.lt.s32.totalorder %s1534, 7
        %s1538 = scalar_select %p1537, %s1534, 7
        %s1539 = smul.addr %s1536, 8
        %s1540 = sadd.s32 %s1538, %s1539
        %s1541 = smul.addr %s1540, 4
        %s1542 = scalar_lea.vmem %s3, %s1541
      $region44: #{cenet_forward.10} parent=39 // pred_fallthru
        _
    $region40: #{cenet_forward.10} parent=5 // pred_fallthru
      _
  $region6: #{cenet_forward.10} parent=0 // loop_footer
    %s13 = sadd.s32 1, %s9
  $region7: #{cenet_forward.10} parent=0 // loop_footer_branch
    %8 = sbr.rel target = $region3
  $region8: #{cenet_forward.10} parent=0 // loop_exit
    _

// kernel: cenet_forward.9
$region0: #{cenet_forward.9}
  #allocation0 [shape = 'u32[]', space=smem, size = 0x4, offset = 0x4, fixed_abs, tag = 'smem constant byte address 0x4 - core index']
  #allocation1 [shape = 'u32[144,128]{1,0:T(1,128)}', space=vmem, size = 0x12000, scoped, tag = 'internal scratch']
  #allocation2 [shape = 'bf16[128,1152]{1,0:T(16,128)(2,1)}', space=vmem, size = 0x48000, scoped, tag = 'scratch operand']
  %s0 = inlined_call_operand.vmem [shape: bf16[2,18,18,128], index: 0, kind: input, shape index: {}]
  %s1 = inlined_call_operand.vmem [shape: bf16[1152,128], index: 1, kind: input, shape index: {}]
  %s2 = inlined_call_operand.vmem [shape: f32[1,128], index: 2, kind: input, shape index: {}]
  %s3 = inlined_call_operand.vmem [shape: bf16[2,16,16,128], index: 3, kind: output, shape index: {}]
  %s4 = sld [smem:[#allocation0]]
  $region45: #{cenet_forward.9} parent=0
    _
  %s6 = ssub.s32 1, %s4
  %s7 = scalar_select 0, %s6, %s4
  loop: start=0, step=1, limit=6
  $region2: #{cenet_forward.9} parent=0 // loop_pre_header
    _
  $region3: #{cenet_forward.9} parent=0 // loop_header
    %s9 = sphi 0, %s13
    %p10 = scmp.ge.s32.totalorder %s9, 6
    %s16 = sphi 0, %s28
    %s17 = sphi 0, %s24
    %s18 = sphi 0, %s16
    %s19 = sphi 0, %s17
    %s20 = sphi 0, %s18
    %s21 = sphi 0, %s19
    %s31 = sphi 0, %s33
    %s34 = sphi 0, %s31
    %s35 = sphi 0, %s34
    %s51 = sphi 0, %s35
    %s55 = sphi 0, %s55
    %s57 = sphi 0, %s55
    %s58 = sphi 0, %s57
    %s72 = sphi 0, %s58
    %s76 = sphi 0, %s76
    %s78 = sphi 0, %s76
    %s79 = sphi 0, %s78
    %s93 = sphi 0, %s79
    %s101 = sphi 0, %s103
    %s104 = sphi 0, %s101
    %s105 = sphi 0, %s104
    %s121 = sphi 0, %s105
  $region4: #{cenet_forward.9} parent=0 // loop_header_branch
    %12 = sbr.rel (%p10) target = $region8
  $region5: #{cenet_forward.9} parent=0 // loop_body
    %s14 = ssub.s32 %s9, 1
    %s15 = ssub.s32 %s9, 2
    %s22 = sadd.s32 1, %s17
    %p23 = scmp.ge.s32.totalorder %s22, 2
    %s24 = scalar_select %p23, 0, %s22
    %s25 = sadd.s32 1, %s16
    %s26 = scalar_select %p23, %s25, %s16
    %p27 = scmp.ge.s32.totalorder %s26, 2
    %s28 = scalar_select %p27, 0, %s26
    %s29 = ssub.s32 %s16, %s28
    %p30 = scmp.eq.s32.totalorder %s29, 0
    %s32 = sadd.s32 %s31, 1
    %s33 = scalar_select %p30, %s31, %s32
    %p36 = pneg %p30
    %p37 = scmp.eq.s32.totalorder %s9, 3
    %p38 = por %p36, %p37
    %p39 = scmp.ne.s32.totalorder %s31, %s34
    %p40 = scmp.eq.s32.totalorder %s9, 0
    %p41 = por %p39, %p40
    %p42 = scmp.ne.s32.totalorder %s31, %s34
    %p43 = scmp.eq.s32.totalorder %s14, 3
    %p44 = por %p42, %p43
    %p45 = scmp.ne.s32.totalorder %s34, %s35
    %p46 = scmp.eq.s32.totalorder %s14, 0
    %p47 = por %p45, %p46
    %p48 = scmp.ne.s32.totalorder %s34, %s35
    %p49 = scmp.eq.s32.totalorder %s15, 3
    %p50 = por %p48, %p49
    %p52 = scmp.ne.s32.totalorder %s35, %s51
    %p53 = scmp.eq.s32.totalorder %s15, 0
    %p54 = por %p52, %p53
    %s56 = sadd.s32 %s55, 1
    %p59 = scmp.eq.s32.totalorder %s9, 3
    %p60 = scmp.ne.s32.totalorder %s55, %s57
    %p61 = scmp.eq.s32.totalorder %s9, 0
    %p62 = por %p60, %p61
    %p63 = scmp.ne.s32.totalorder %s55, %s57
    %p64 = scmp.eq.s32.totalorder %s14, 3
    %p65 = por %p63, %p64
    %p66 = scmp.ne.s32.totalorder %s57, %s58
    %p67 = scmp.eq.s32.totalorder %s14, 0
    %p68 = por %p66, %p67
    %p69 = scmp.ne.s32.totalorder %s57, %s58
    %p70 = scmp.eq.s32.totalorder %s15, 3
    %p71 = por %p69, %p70
    %p73 = scmp.ne.s32.totalorder %s58, %s72
    %p74 = scmp.eq.s32.totalorder %s15, 0
    %p75 = por %p73, %p74
    %s77 = sadd.s32 %s76, 1
    %p80 = scmp.eq.s32.totalorder %s9, 3
    %p81 = scmp.ne.s32.totalorder %s76, %s78
    %p82 = scmp.eq.s32.totalorder %s9, 0
    %p83 = por %p81, %p82
    %p84 = scmp.ne.s32.totalorder %s76, %s78
    %p85 = scmp.eq.s32.totalorder %s14, 3
    %p86 = por %p84, %p85
    %p87 = scmp.ne.s32.totalorder %s78, %s79
    %p88 = scmp.eq.s32.totalorder %s14, 0
    %p89 = por %p87, %p88
    %p90 = scmp.ne.s32.totalorder %s78, %s79
    %p91 = scmp.eq.s32.totalorder %s15, 3
    %p92 = por %p90, %p91
    %p94 = scmp.ne.s32.totalorder %s79, %s93
    %p95 = scmp.eq.s32.totalorder %s15, 0
    %p96 = por %p94, %p95
    %s97 = ssub.s32 %s16, %s28
    %s98 = ssub.s32 %s17, %s24
    %s99 = sor.u32 %s97, %s98
    %p100 = scmp.eq.s32.totalorder %s99, 0
    %s102 = sadd.s32 %s101, 1
    %s103 = scalar_select %p100, %s101, %s102
    %p106 = pneg %p100
    %p107 = scmp.eq.s32.totalorder %s9, 3
    %p108 = por %p106, %p107
    %p109 = scmp.ne.s32.totalorder %s101, %s104
    %p110 = scmp.eq.s32.totalorder %s9, 0
    %p111 = por %p109, %p110
    %p112 = scmp.ne.s32.totalorder %s101, %s104
    %p113 = scmp.eq.s32.totalorder %s14, 3
    %p114 = por %p112, %p113
    %p115 = scmp.ne.s32.totalorder %s104, %s105
    %p116 = scmp.eq.s32.totalorder %s14, 0
    %p117 = por %p115, %p116
    %p118 = scmp.ne.s32.totalorder %s104, %s105
    %p119 = scmp.eq.s32.totalorder %s15, 3
    %p120 = por %p118, %p119
    %p122 = scmp.ne.s32.totalorder %s105, %s121
    %p123 = scmp.eq.s32.totalorder %s15, 0
    %p124 = por %p122, %p123
    %p125 = scmp.le.s32.totalorder 1, %s9
    %p126 = scmp.lt.s32.totalorder %s9, 5
    %p127 = pnand %p125, %p126
    %p128 = pneg %p127
    // Predicated region
    $region9: #{cenet_forward.9} parent=5 // pred_check
      _
    $region10: #{cenet_forward.9} parent=5 // pred_check_branch
      %130 = sbr.rel (%p127) target = $region12
    $region11: #{cenet_forward.9} parent=5 // pred_region
      %s131 = ssub.s32 %s9, 1
      // Predicated region
      $region13: #{cenet_forward.9} parent=11 // pred_check
        %p132 = pneg %p68
      $region14: #{cenet_forward.9} parent=11 // pred_check_branch
        %134 = sbr.rel (%p132) target = $region16
      $region15: #{cenet_forward.9} parent=11 // pred_region
        _
      $region16: #{cenet_forward.9} parent=11 // pred_fallthru
        _
      // Predicated region
      $region17: #{cenet_forward.9} parent=11 // pred_check
        %p135 = pneg %p89
      $region18: #{cenet_forward.9} parent=11 // pred_check_branch
        %137 = sbr.rel (%p135) target = $region20
      $region19: #{cenet_forward.9} parent=11 // pred_region
        _
      $region20: #{cenet_forward.9} parent=11 // pred_fallthru
        _
    $region12: #{cenet_forward.9} parent=5 // pred_fallthru
      _
    %p138 = scmp.lt.s32.totalorder %s9, 4
    // Predicated region
    $region21: #{cenet_forward.9} parent=5 // pred_check
      %p139 = pneg %p138
    $region22: #{cenet_forward.9} parent=5 // pred_check_branch
      %141 = sbr.rel (%p139) target = $region24
    $region23: #{cenet_forward.9} parent=5 // pred_region
      // Predicated region
      $region25: #{cenet_forward.9} parent=23 // pred_check
        %p142 = pneg %p41
      $region26: #{cenet_forward.9} parent=23 // pred_check_branch
        %144 = sbr.rel (%p142) target = $region28
      $region27: #{cenet_forward.9} parent=23 // pred_region
        %p145 = scmp.lt.s32.totalorder %s16, 1
        %s146 = scalar_select %p145, %s16, 1
        %s147 = smul.addr %s146, 54
        %s148 = smul.addr %s147, 4
        %s149 = scalar_lea.vmem %s0, %s148
      $region28: #{cenet_forward.9} parent=23 // pred_fallthru
        _
    $region24: #{cenet_forward.9} parent=5 // pred_fallthru
      _
    %p150 = scmp.le.s32.totalorder 1, %s9
    %p151 = scmp.lt.s32.totalorder %s9, 5
    %p152 = pnand %p150, %p151
    %p153 = pneg %p152
    // Predicated region
    $region29: #{cenet_forward.9} parent=5 // pred_check
      _
    $region30: #{cenet_forward.9} parent=5 // pred_check_branch
      %155 = sbr.rel (%p152) target = $region32
    $region31: #{cenet_forward.9} parent=5 // pred_region
      %s156 = ssub.s32 %s9, 1
      %p157 = scmp.lt.s32.totalorder %s18, 1
      %s158 = scalar_select %p157, %s18, 1
      %s159 = smul.addr %s158, 54
      %s160 = smul.addr %s159, 4
      %s161 = scalar_lea.vmem %s0, %s160
      %p162 = pneg %p47
      %p163 = pneg %p44
      %p164 = pneg %p68
      %p165 = pneg %p65
      %p166 = pneg %p89
      %p167 = pneg %p86
      %p168 = pneg %p117
      %p169 = pneg %p114
      %s170 = smul.u32 8, %s19
      %p171 = scmp.lt.s32.totalorder %s18, 1
      %s172 = scalar_select %p171, %s18, 1
      %p173 = scmp.lt.s32.totalorder %s170, 15
      %s174 = scalar_select %p173, %s170, 15
      %s175 = smul.addr %s174, 2
      %s176 = smul.addr %s172, 32
      %s177 = sadd.s32 %s175, %s176
      %s178 = smul.addr %s177, 4
      %s179 = scalar_lea.vmem %s3, %s178
      %p180 = scmp.lt.s32.totalorder %s18, 1
      %s181 = scalar_select %p180, %s18, 1
      %s182 = smul.addr %s181, 54
      %s183 = smul.addr %s182, 4
      %s184 = scalar_lea.vmem %s0, %s183
      %s185 = smul.u32 8, %s19
      %p186 = scmp.lt.s32.totalorder %s18, 1
      %s187 = scalar_select %p186, %s18, 1
      %p188 = scmp.lt.s32.totalorder %s185, 15
      %s189 = scalar_select %p188, %s185, 15
      %s190 = smul.addr %s189, 2
      %s191 = smul.addr %s187, 32
      %s192 = sadd.s32 %s190, %s191
      %s193 = smul.addr %s192, 4
      %s194 = scalar_lea.vmem %s3, %s193
      %s195 = smul.u32 8, %s19
      %s197 = smul.u32 %s19, 8
      %s198 = smul.u32 %s197, 3
      %s199 = smul.addr %s198, 4
      %s200 = scalar_lea.vmem %s184, %s199
      %v201 = vld [vmem:[%s200] sm:$0xf]
      %v202 = vld [vmem:[%s200 + $0x4] sm:$0xf]
      %v203 = vld [vmem:[%s200 + $0x8] sm:$0x1]
      %v204 = vld [vmem:[%s200 + $0xc] sm:$0xf]
      %v205 = vld [vmem:[%s200 + $0x10] sm:$0xf]
      %v206 = vld [vmem:[%s200 + $0x14] sm:$0x1]
      %v207 = vld [vmem:[%s200 + $0x18] sm:$0xf]
      %v208 = vld [vmem:[%s200 + $0x1c] sm:$0xf]
      %v209 = vld [vmem:[%s200 + $0x20] sm:$0x1]
      %v210 = vld [vmem:[%s200 + $0x24] sm:$0xf]
      %v211 = vld [vmem:[%s200 + $0x28] sm:$0xf]
      %v212 = vld [vmem:[%s200 + $0x2c] sm:$0x1]
      %v213 = vld [vmem:[%s200 + $0x30] sm:$0xf]
      %v214 = vld [vmem:[%s200 + $0x34] sm:$0xf]
      %v215 = vld [vmem:[%s200 + $0x38] sm:$0x1]
      %v216 = vld [vmem:[%s200 + $0x3c] sm:$0xf]
      %v217 = vld [vmem:[%s200 + $0x40] sm:$0xf]
      %v218 = vld [vmem:[%s200 + $0x44] sm:$0x1]
      %v219 = vld [vmem:[%s200 + $0x48] sm:$0xf]
      %v220 = vld [vmem:[%s200 + $0x4c] sm:$0xf]
      %v221 = vld [vmem:[%s200 + $0x50] sm:$0x1]
      %v222 = vld [vmem:[%s200 + $0x54] sm:$0xf]
      %v223 = vld [vmem:[%s200 + $0x58] sm:$0xf]
      %v224 = vld [vmem:[%s200 + $0x5c] sm:$0x1]
      %v225 = vld [vmem:[%s200 + $0x60] sm:$0xf]
      %v226 = vld [vmem:[%s200 + $0x64] sm:$0xf]
      %v227 = vld [vmem:[%s200 + $0x68] sm:$0x1]
      %v228 = vld [vmem:[%s200 + $0x6c] sm:$0xf]
      %v229 = vld [vmem:[%s200 + $0x70] sm:$0xf]
      %v230 = vld [vmem:[%s200 + $0x74] sm:$0x1]
      %v247 = vunpack.c.l.b16 %v201
      %v248 = vunpack.c.l.b16 %v202
      %v249 = vunpack.c.l.b16 %v204
      %v250 = vunpack.c.l.b16 %v205
      %v251 = vunpack.c.l.b16 %v207
      %v252 = vunpack.c.l.b16 %v208
      %v253 = vunpack.c.l.b16 %v210
      %v254 = vunpack.c.l.b16 %v211
      %v255 = vunpack.c.l.b16 %v213
      %v256 = vunpack.c.l.b16 %v214
      %v257 = vunpack.c.l.b16 %v216
      %v258 = vunpack.c.l.b16 %v217
      %v259 = vunpack.c.l.b16 %v219
      %v260 = vunpack.c.l.b16 %v220
      %v261 = vunpack.c.l.b16 %v222
      %v262 = vunpack.c.l.b16 %v223
      %v263 = vpack.c.b16 %v248, %v247
      %v264 = vpack.c.b16 %v250, %v249
      %v265 = vpack.c.b16 %v252, %v251
      %v266 = vpack.c.b16 %v254, %v253
      %v267 = vpack.c.b16 %v256, %v255
      %v268 = vpack.c.b16 %v258, %v257
      %v269 = vpack.c.b16 %v260, %v259
      %v270 = vpack.c.b16 %v262, %v261
      %279 = vst [vmem:[#allocation2] sm:$0xff] %v263
      %280 = vst [vmem:[#allocation2 + $0x48] sm:$0xff] %v264
      %281 = vst [vmem:[#allocation2 + $0x90] sm:$0xff] %v265
      %282 = vst [vmem:[#allocation2 + $0xd8] sm:$0xff] %v266
      %283 = vst [vmem:[#allocation2 + $0x120] sm:$0xff] %v267
      %284 = vst [vmem:[#allocation2 + $0x168] sm:$0xff] %v268
      %285 = vst [vmem:[#allocation2 + $0x1b0] sm:$0xff] %v269
      %286 = vst [vmem:[#allocation2 + $0x1f8] sm:$0xff] %v270
      %vm287 = vsmask.f32 3328
      %vm288 = vsmask.f32 7440
      %vm289 = vmor %vm287, %vm288
      %v291 = vshrl.u32 %v201, 16
      %v293 = vrot.slane %v291, 4
      %v294 = vshll.u32 %v201, 16
      %v296 = vrot.slane %v294, 5
      %v297 = vor.u32 %v293, %v296
      %v298 = vrot.slane %v297, 4
      %v300 = vshll.u32 %v202, 16
      %v302 = vrot.slane %v300, 5
      %v303 = vsel %vm289, %v298, %v302
      %v304 = vshrl.u32 %v202, 16
      %v306 = vrot.slane %v304, 4
      %v307 = vor.u32 %v306, %v302
      %v308 = vrot.slane %v307, 4
      %v310 = vshll.u32 %v203, 16
      %v312 = vrot.slane %v310, 5
      %v313 = vsel %vm289, %v308, %v312
      %v315 = vshrl.u32 %v204, 16
      %v317 = vrot.slane %v315, 4
      %v318 = vshll.u32 %v204, 16
      %v320 = vrot.slane %v318, 5
      %v321 = vor.u32 %v317, %v320
      %v322 = vrot.slane %v321, 4
      %v324 = vshll.u32 %v205, 16
      %v326 = vrot.slane %v324, 5
      %v327 = vsel %vm289, %v322, %v326
      %v328 = vshrl.u32 %v205, 16
      %v330 = vrot.slane %v328, 4
      %v331 = vor.u32 %v330, %v326
      %v332 = vrot.slane %v331, 4
      %v334 = vshll.u32 %v206, 16
      %v336 = vrot.slane %v334, 5
      %v337 = vsel %vm289, %v332, %v336
      %v339 = vshrl.u32 %v207, 16
      %v341 = vrot.slane %v339, 4
      %v342 = vshll.u32 %v207, 16
      %v344 = vrot.slane %v342, 5
      %v345 = vor.u32 %v341, %v344
      %v346 = vrot.slane %v345, 4
      %v348 = vshll.u32 %v208, 16
      %v350 = vrot.slane %v348, 5
      %v351 = vsel %vm289, %v346, %v350
      %v352 = vshrl.u32 %v208, 16
      %v354 = vrot.slane %v352, 4
      %v355 = vor.u32 %v354, %v350
      %v356 = vrot.slane %v355, 4
      %v358 = vshll.u32 %v209, 16
      %v360 = vrot.slane %v358, 5
      %v361 = vsel %vm289, %v356, %v360
      %v363 = vshrl.u32 %v210, 16
      %v365 = vrot.slane %v363, 4
      %v366 = vshll.u32 %v210, 16
      %v368 = vrot.slane %v366, 5
      %v369 = vor.u32 %v365, %v368
      %v370 = vrot.slane %v369, 4
      %v372 = vshll.u32 %v211, 16
      %v374 = vrot.slane %v372, 5
      %v375 = vsel %vm289, %v370, %v374
      %v376 = vshrl.u32 %v211, 16
      %v378 = vrot.slane %v376, 4
      %v379 = vor.u32 %v378, %v374
      %v380 = vrot.slane %v379, 4
      %v382 = vshll.u32 %v212, 16
      %v384 = vrot.slane %v382, 5
      %v385 = vsel %vm289, %v380, %v384
      %v387 = vshrl.u32 %v213, 16
      %v389 = vrot.slane %v387, 4
      %v390 = vshll.u32 %v213, 16
      %v392 = vrot.slane %v390, 5
      %v393 = vor.u32 %v389, %v392
      %v394 = vrot.slane %v393, 4
      %v396 = vshll.u32 %v214, 16
      %v398 = vrot.slane %v396, 5
      %v399 = vsel %vm289, %v394, %v398
      %v400 = vshrl.u32 %v214, 16
      %v402 = vrot.slane %v400, 4
      %v403 = vor.u32 %v402, %v398
      %v404 = vrot.slane %v403, 4
      %v406 = vshll.u32 %v215, 16
      %v408 = vrot.slane %v406, 5
      %v409 = vsel %vm289, %v404, %v408
      %v411 = vshrl.u32 %v216, 16
      %v413 = vrot.slane %v411, 4
      %v414 = vshll.u32 %v216, 16
      %v416 = vrot.slane %v414, 5
      %v417 = vor.u32 %v413, %v416
      %v418 = vrot.slane %v417, 4
      %v420 = vshll.u32 %v217, 16
      %v422 = vrot.slane %v420, 5
      %v423 = vsel %vm289, %v418, %v422
      %v424 = vshrl.u32 %v217, 16
      %v426 = vrot.slane %v424, 4
      %v427 = vor.u32 %v426, %v422
      %v428 = vrot.slane %v427, 4
      %v430 = vshll.u32 %v218, 16
      %v432 = vrot.slane %v430, 5
      %v433 = vsel %vm289, %v428, %v432
      %v435 = vshrl.u32 %v219, 16
      %v437 = vrot.slane %v435, 4
      %v438 = vshll.u32 %v219, 16
      %v440 = vrot.slane %v438, 5
      %v441 = vor.u32 %v437, %v440
      %v442 = vrot.slane %v441, 4
      %v444 = vshll.u32 %v220, 16
      %v446 = vrot.slane %v444, 5
      %v447 = vsel %vm289, %v442, %v446
      %v448 = vshrl.u32 %v220, 16
      %v450 = vrot.slane %v448, 4
      %v451 = vor.u32 %v450, %v446
      %v452 = vrot.slane %v451, 4
      %v454 = vshll.u32 %v221, 16
      %v456 = vrot.slane %v454, 5
      %v457 = vsel %vm289, %v452, %v456
      %v459 = vshrl.u32 %v222, 16
      %v461 = vrot.slane %v459, 4
      %v462 = vshll.u32 %v222, 16
      %v464 = vrot.slane %v462, 5
      %v465 = vor.u32 %v461, %v464
      %v466 = vrot.slane %v465, 4
      %v468 = vshll.u32 %v223, 16
      %v470 = vrot.slane %v468, 5
      %v471 = vsel %vm289, %v466, %v470
      %v472 = vshrl.u32 %v223, 16
      %v474 = vrot.slane %v472, 4
      %v475 = vor.u32 %v474, %v470
      %v476 = vrot.slane %v475, 4
      %v478 = vshll.u32 %v224, 16
      %v480 = vrot.slane %v478, 5
      %v481 = vsel %vm289, %v476, %v480
      %v482 = vunpack.c.l.b16 %v303
      %v483 = vunpack.c.l.b16 %v313
      %v484 = vunpack.c.l.b16 %v327
      %v485 = vunpack.c.l.b16 %v337
      %v486 = vunpack.c.l.b16 %v351
      %v487 = vunpack.c.l.b16 %v361
      %v488 = vunpack.c.l.b16 %v375
      %v489 = vunpack.c.l.b16 %v385
      %v490 = vunpack.c.l.b16 %v399
      %v491 = vunpack.c.l.b16 %v409
      %v492 = vunpack.c.l.b16 %v423
      %v493 = vunpack.c.l.b16 %v433
      %v494 = vunpack.c.l.b16 %v447
      %v495 = vunpack.c.l.b16 %v457
      %v496 = vunpack.c.l.b16 %v471
      %v497 = vunpack.c.l.b16 %v481
      %v498 = vpack.c.b16 %v483, %v482
      %v499 = vpack.c.b16 %v485, %v484
      %v500 = vpack.c.b16 %v487, %v486
      %v501 = vpack.c.b16 %v489, %v488
      %v502 = vpack.c.b16 %v491, %v490
      %v503 = vpack.c.b16 %v493, %v492
      %v504 = vpack.c.b16 %v495, %v494
      %v505 = vpack.c.b16 %v497, %v496
      %514 = vst [vmem:[#allocation2 + $0x8] sm:$0xff] %v498
      %515 = vst [vmem:[#allocation2 + $0x50] sm:$0xff] %v499
      %516 = vst [vmem:[#allocation2 + $0x98] sm:$0xff] %v500
      %517 = vst [vmem:[#allocation2 + $0xe0] sm:$0xff] %v501
      %518 = vst [vmem:[#allocation2 + $0x128] sm:$0xff] %v502
      %519 = vst [vmem:[#allocation2 + $0x170] sm:$0xff] %v503
      %520 = vst [vmem:[#allocation2 + $0x1b8] sm:$0xff] %v504
      %521 = vst [vmem:[#allocation2 + $0x200] sm:$0xff] %v505
      %vm530 = vcmask 1042432
      %vm531 = vcmask 1046532
      %vm532 = vmor %vm530, %vm531
      %v533 = vrot.slane %v201, 5
      %v534 = vrot.slane %v533, 4
      %v535 = vrot.slane %v202, 5
      %v536 = vsel %vm532, %v534, %v535
      %v537 = vrot.slane %v535, 4
      %v538 = vrot.slane %v203, 5
      %v539 = vsel %vm532, %v537, %v538
      %v540 = vrot.slane %v204, 5
      %v541 = vrot.slane %v540, 4
      %v542 = vrot.slane %v205, 5
      %v543 = vsel %vm532, %v541, %v542
      %v544 = vrot.slane %v542, 4
      %v545 = vrot.slane %v206, 5
      %v546 = vsel %vm532, %v544, %v545
      %v547 = vrot.slane %v207, 5
      %v548 = vrot.slane %v547, 4
      %v549 = vrot.slane %v208, 5
      %v550 = vsel %vm532, %v548, %v549
      %v551 = vrot.slane %v549, 4
      %v552 = vrot.slane %v209, 5
      %v553 = vsel %vm532, %v551, %v552
      %v554 = vrot.slane %v210, 5
      %v555 = vrot.slane %v554, 4
      %v556 = vrot.slane %v211, 5
      %v557 = vsel %vm532, %v555, %v556
      %v558 = vrot.slane %v556, 4
      %v559 = vrot.slane %v212, 5
      %v560 = vsel %vm532, %v558, %v559
      %v561 = vrot.slane %v213, 5
      %v562 = vrot.slane %v561, 4
      %v563 = vrot.slane %v214, 5
      %v564 = vsel %vm532, %v562, %v563
      %v565 = vrot.slane %v563, 4
      %v566 = vrot.slane %v215, 5
      %v567 = vsel %vm532, %v565, %v566
      %v568 = vrot.slane %v216, 5
      %v569 = vrot.slane %v568, 4
      %v570 = vrot.slane %v217, 5
      %v571 = vsel %vm532, %v569, %v570
      %v572 = vrot.slane %v570, 4
      %v573 = vrot.slane %v218, 5
      %v574 = vsel %vm532, %v572, %v573
      %v575 = vrot.slane %v219, 5
      %v576 = vrot.slane %v575, 4
      %v577 = vrot.slane %v220, 5
      %v578 = vsel %vm532, %v576, %v577
      %v579 = vrot.slane %v577, 4
      %v580 = vrot.slane %v221, 5
      %v581 = vsel %vm532, %v579, %v580
      %v582 = vrot.slane %v222, 5
      %v583 = vrot.slane %v582, 4
      %v584 = vrot.slane %v223, 5
      %v585 = vsel %vm532, %v583, %v584
      %v586 = vrot.slane %v584, 4
      %v587 = vrot.slane %v224, 5
      %v588 = vsel %vm532, %v586, %v587
      %v589 = vunpack.c.l.b16 %v536
      %v590 = vunpack.c.l.b16 %v539
      %v591 = vunpack.c.l.b16 %v543
      %v592 = vunpack.c.l.b16 %v546
      %v593 = vunpack.c.l.b16 %v550
      %v594 = vunpack.c.l.b16 %v553
      %v595 = vunpack.c.l.b16 %v557
      %v596 = vunpack.c.l.b16 %v560
      %v597 = vunpack.c.l.b16 %v564
      %v598 = vunpack.c.l.b16 %v567
      %v599 = vunpack.c.l.b16 %v571
      %v600 = vunpack.c.l.b16 %v574
      %v601 = vunpack.c.l.b16 %v578
      %v602 = vunpack.c.l.b16 %v581
      %v603 = vunpack.c.l.b16 %v585
      %v604 = vunpack.c.l.b16 %v588
      %v605 = vpack.c.b16 %v590, %v589
      %v606 = vpack.c.b16 %v592, %v591
      %v607 = vpack.c.b16 %v594, %v593
      %v608 = vpack.c.b16 %v596, %v595
      %v609 = vpack.c.b16 %v598, %v597
      %v610 = vpack.c.b16 %v600, %v599
      %v611 = vpack.c.b16 %v602, %v601
      %v612 = vpack.c.b16 %v604, %v603
      %621 = vst [vmem:[#allocation2 + $0x10] sm:$0xff] %v605
      %622 = vst [vmem:[#allocation2 + $0x58] sm:$0xff] %v606
      %623 = vst [vmem:[#allocation2 + $0xa0] sm:$0xff] %v607
      %624 = vst [vmem:[#allocation2 + $0xe8] sm:$0xff] %v608
      %625 = vst [vmem:[#allocation2 + $0x130] sm:$0xff] %v609
      %626 = vst [vmem:[#allocation2 + $0x178] sm:$0xff] %v610
      %627 = vst [vmem:[#allocation2 + $0x1c0] sm:$0xff] %v611
      %628 = vst [vmem:[#allocation2 + $0x208] sm:$0xff] %v612
      %v631 = vunpack.c.l.b16 %v225
      %v632 = vunpack.c.l.b16 %v226
      %v633 = vpack.c.b16 %v632, %v631
      %635 = vst [vmem:[#allocation2 + $0x18] sm:$0xff] %v264
      %636 = vst [vmem:[#allocation2 + $0x60] sm:$0xff] %v265
      %637 = vst [vmem:[#allocation2 + $0xa8] sm:$0xff] %v266
      %638 = vst [vmem:[#allocation2 + $0xf0] sm:$0xff] %v267
      %639 = vst [vmem:[#allocation2 + $0x138] sm:$0xff] %v268
      %640 = vst [vmem:[#allocation2 + $0x180] sm:$0xff] %v269
      %641 = vst [vmem:[#allocation2 + $0x1c8] sm:$0xff] %v270
      %642 = vst [vmem:[#allocation2 + $0x210] sm:$0xff] %v633
      %v644 = vshrl.u32 %v225, 16
      %v646 = vrot.slane %v644, 4
      %v647 = vshll.u32 %v225, 16
      %v649 = vrot.slane %v647, 5
      %v650 = vor.u32 %v646, %v649
      %v651 = vrot.slane %v650, 4
      %v653 = vshll.u32 %v226, 16
      %v655 = vrot.slane %v653, 5
      %v656 = vsel %vm289, %v651, %v655
      %v657 = vshrl.u32 %v226, 16
      %v659 = vrot.slane %v657, 4
      %v660 = vor.u32 %v659, %v655
      %v661 = vrot.slane %v660, 4
      %v663 = vshll.u32 %v227, 16
      %v665 = vrot.slane %v663, 5
      %v666 = vsel %vm289, %v661, %v665
      %v667 = vunpack.c.l.b16 %v656
      %v668 = vunpack.c.l.b16 %v666
      %v669 = vpack.c.b16 %v668, %v667
      %671 = vst [vmem:[#allocation2 + $0x20] sm:$0xff] %v499
      %672 = vst [vmem:[#allocation2 + $0x68] sm:$0xff] %v500
      %673 = vst [vmem:[#allocation2 + $0xb0] sm:$0xff] %v501
      %674 = vst [vmem:[#allocation2 + $0xf8] sm:$0xff] %v502
      %675 = vst [vmem:[#allocation2 + $0x140] sm:$0xff] %v503
      %676 = vst [vmem:[#allocation2 + $0x188] sm:$0xff] %v504
      %677 = vst [vmem:[#allocation2 + $0x1d0] sm:$0xff] %v505
      %678 = vst [vmem:[#allocation2 + $0x218] sm:$0xff] %v669
      %v680 = vrot.slane %v225, 5
      %v681 = vrot.slane %v680, 4
      %v682 = vrot.slane %v226, 5
      %v683 = vsel %vm532, %v681, %v682
      %v684 = vrot.slane %v682, 4
      %v685 = vrot.slane %v227, 5
      %v686 = vsel %vm532, %v684, %v685
      %v687 = vunpack.c.l.b16 %v683
      %v688 = vunpack.c.l.b16 %v686
      %v689 = vpack.c.b16 %v688, %v687
      %691 = vst [vmem:[#allocation2 + $0x28] sm:$0xff] %v606
      %692 = vst [vmem:[#allocation2 + $0x70] sm:$0xff] %v607
      %693 = vst [vmem:[#allocation2 + $0xb8] sm:$0xff] %v608
      %694 = vst [vmem:[#allocation2 + $0x100] sm:$0xff] %v609
      %695 = vst [vmem:[#allocation2 + $0x148] sm:$0xff] %v610
      %696 = vst [vmem:[#allocation2 + $0x190] sm:$0xff] %v611
      %697 = vst [vmem:[#allocation2 + $0x1d8] sm:$0xff] %v612
      %698 = vst [vmem:[#allocation2 + $0x220] sm:$0xff] %v689
      %v701 = vunpack.c.l.b16 %v228
      %v702 = vunpack.c.l.b16 %v229
      %v703 = vpack.c.b16 %v702, %v701
      %705 = vst [vmem:[#allocation2 + $0x30] sm:$0xff] %v265
      %706 = vst [vmem:[#allocation2 + $0x78] sm:$0xff] %v266
      %707 = vst [vmem:[#allocation2 + $0xc0] sm:$0xff] %v267
      %708 = vst [vmem:[#allocation2 + $0x108] sm:$0xff] %v268
      %709 = vst [vmem:[#allocation2 + $0x150] sm:$0xff] %v269
      %710 = vst [vmem:[#allocation2 + $0x198] sm:$0xff] %v270
      %711 = vst [vmem:[#allocation2 + $0x1e0] sm:$0xff] %v633
      %712 = vst [vmem:[#allocation2 + $0x228] sm:$0xff] %v703
      %v714 = vshrl.u32 %v228, 16
      %v716 = vrot.slane %v714, 4
      %v717 = vshll.u32 %v228, 16
      %v719 = vrot.slane %v717, 5
      %v720 = vor.u32 %v716, %v719
      %v721 = vrot.slane %v720, 4
      %v723 = vshll.u32 %v229, 16
      %v725 = vrot.slane %v723, 5
      %v726 = vsel %vm289, %v721, %v725
      %v727 = vshrl.u32 %v229, 16
      %v729 = vrot.slane %v727, 4
      %v730 = vor.u32 %v729, %v725
      %v731 = vrot.slane %v730, 4
      %v733 = vshll.u32 %v230, 16
      %v735 = vrot.slane %v733, 5
      %v736 = vsel %vm289, %v731, %v735
      %v737 = vunpack.c.l.b16 %v726
      %v738 = vunpack.c.l.b16 %v736
      %v739 = vpack.c.b16 %v738, %v737
      %741 = vst [vmem:[#allocation2 + $0x38] sm:$0xff] %v500
      %742 = vst [vmem:[#allocation2 + $0x80] sm:$0xff] %v501
      %743 = vst [vmem:[#allocation2 + $0xc8] sm:$0xff] %v502
      %744 = vst [vmem:[#allocation2 + $0x110] sm:$0xff] %v503
      %745 = vst [vmem:[#allocation2 + $0x158] sm:$0xff] %v504
      %746 = vst [vmem:[#allocation2 + $0x1a0] sm:$0xff] %v505
      %747 = vst [vmem:[#allocation2 + $0x1e8] sm:$0xff] %v669
      %748 = vst [vmem:[#allocation2 + $0x230] sm:$0xff] %v739
      %v750 = vrot.slane %v228, 5
      %v751 = vrot.slane %v750, 4
      %v752 = vrot.slane %v229, 5
      %v753 = vsel %vm532, %v751, %v752
      %v754 = vrot.slane %v752, 4
      %v755 = vrot.slane %v230, 5
      %v756 = vsel %vm532, %v754, %v755
      %v757 = vunpack.c.l.b16 %v753
      %v758 = vunpack.c.l.b16 %v756
      %v759 = vpack.c.b16 %v758, %v757
      %761 = vst [vmem:[#allocation2 + $0x40] sm:$0xff] %v607
      %762 = vst [vmem:[#allocation2 + $0x88] sm:$0xff] %v608
      %763 = vst [vmem:[#allocation2 + $0xd0] sm:$0xff] %v609
      %764 = vst [vmem:[#allocation2 + $0x118] sm:$0xff] %v610
      %765 = vst [vmem:[#allocation2 + $0x160] sm:$0xff] %v611
      %766 = vst [vmem:[#allocation2 + $0x1a8] sm:$0xff] %v612
      %767 = vst [vmem:[#allocation2 + $0x1f0] sm:$0xff] %v689
      %768 = vst [vmem:[#allocation2 + $0x238] sm:$0xff] %v759
      %v769 = vld [vmem:[#allocation2] sm:$0xff]
      %v770 = vld [vmem:[#allocation2 + $0x8] sm:$0xff]
      %v771 = vld [vmem:[#allocation2 + $0x10] sm:$0xff]
      %v772 = vld [vmem:[#allocation2 + $0x18] sm:$0xff]
      %v773 = vld [vmem:[#allocation2 + $0x20] sm:$0xff]
      %v774 = vld [vmem:[#allocation2 + $0x28] sm:$0xff]
      %v775 = vld [vmem:[#allocation2 + $0x30] sm:$0xff]
      %v776 = vld [vmem:[#allocation2 + $0x38] sm:$0xff]
      %v777 = vld [vmem:[#allocation2 + $0x40] sm:$0xff]
      %v778 = vld [vmem:[#allocation2 + $0x48] sm:$0xff]
      %v779 = vld [vmem:[#allocation2 + $0x50] sm:$0xff]
      %v780 = vld [vmem:[#allocation2 + $0x58] sm:$0xff]
      %v781 = vld [vmem:[#allocation2 + $0x60] sm:$0xff]
      %v782 = vld [vmem:[#allocation2 + $0x68] sm:$0xff]
      %v783 = vld [vmem:[#allocation2 + $0x70] sm:$0xff]
      %v784 = vld [vmem:[#allocation2 + $0x78] sm:$0xff]
      %v785 = vld [vmem:[#allocation2 + $0x80] sm:$0xff]
      %v786 = vld [vmem:[#allocation2 + $0x88] sm:$0xff]
      %v787 = vld [vmem:[#allocation2 + $0x90] sm:$0xff]
      %v788 = vld [vmem:[#allocation2 + $0x98] sm:$0xff]
      %v789 = vld [vmem:[#allocation2 + $0xa0] sm:$0xff]
      %v790 = vld [vmem:[#allocation2 + $0xa8] sm:$0xff]
      %v791 = vld [vmem:[#allocation2 + $0xb0] sm:$0xff]
      %v792 = vld [vmem:[#allocation2 + $0xb8] sm:$0xff]
      %v793 = vld [vmem:[#allocation2 + $0xc0] sm:$0xff]
      %v794 = vld [vmem:[#allocation2 + $0xc8] sm:$0xff]
      %v795 = vld [vmem:[#allocation2 + $0xd0] sm:$0xff]
      %v796 = vld [vmem:[#allocation2 + $0xd8] sm:$0xff]
      %v797 = vld [vmem:[#allocation2 + $0xe0] sm:$0xff]
      %v798 = vld [vmem:[#allocation2 + $0xe8] sm:$0xff]
      %v799 = vld [vmem:[#allocation2 + $0xf0] sm:$0xff]
      %v800 = vld [vmem:[#allocation2 + $0xf8] sm:$0xff]
      %v801 = vld [vmem:[#allocation2 + $0x100] sm:$0xff]
      %v802 = vld [vmem:[#allocation2 + $0x108] sm:$0xff]
      %v803 = vld [vmem:[#allocation2 + $0x110] sm:$0xff]
      %v804 = vld [vmem:[#allocation2 + $0x118] sm:$0xff]
      %v805 = vld [vmem:[#allocation2 + $0x120] sm:$0xff]
      %v806 = vld [vmem:[#allocation2 + $0x128] sm:$0xff]
      %v807 = vld [vmem:[#allocation2 + $0x130] sm:$0xff]
      %v808 = vld [vmem:[#allocation2 + $0x138] sm:$0xff]
      %v809 = vld [vmem:[#allocation2 + $0x140] sm:$0xff]
      %v810 = vld [vmem:[#allocation2 + $0x148] sm:$0xff]
      %v811 = vld [vmem:[#allocation2 + $0x150] sm:$0xff]
      %v812 = vld [vmem:[#allocation2 + $0x158] sm:$0xff]
      %v813 = vld [vmem:[#allocation2 + $0x160] sm:$0xff]
      %v814 = vld [vmem:[#allocation2 + $0x168] sm:$0xff]
      %v815 = vld [vmem:[#allocation2 + $0x170] sm:$0xff]
      %v816 = vld [vmem:[#allocation2 + $0x178] sm:$0xff]
      %v817 = vld [vmem:[#allocation2 + $0x180] sm:$0xff]
      %v818 = vld [vmem:[#allocation2 + $0x188] sm:$0xff]
      %v819 = vld [vmem:[#allocation2 + $0x190] sm:$0xff]
      %v820 = vld [vmem:[#allocation2 + $0x198] sm:$0xff]
      %v821 = vld [vmem:[#allocation2 + $0x1a0] sm:$0xff]
      %v822 = vld [vmem:[#allocation2 + $0x1a8] sm:$0xff]
      %v823 = vld [vmem:[#allocation2 + $0x1b0] sm:$0xff]
      %v824 = vld [vmem:[#allocation2 + $0x1b8] sm:$0xff]
      %v825 = vld [vmem:[#allocation2 + $0x1c0] sm:$0xff]
      %v826 = vld [vmem:[#allocation2 + $0x1c8] sm:$0xff]
      %v827 = vld [vmem:[#allocation2 + $0x1d0] sm:$0xff]
      %v828 = vld [vmem:[#allocation2 + $0x1d8] sm:$0xff]
      %v829 = vld [vmem:[#allocation2 + $0x1e0] sm:$0xff]
      %v830 = vld [vmem:[#allocation2 + $0x1e8] sm:$0xff]
      %v831 = vld [vmem:[#allocation2 + $0x1f0] sm:$0xff]
      %v832 = vld [vmem:[#allocation2 + $0x1f8] sm:$0xff]
      %v833 = vld [vmem:[#allocation2 + $0x200] sm:$0xff]
      %v834 = vld [vmem:[#allocation2 + $0x208] sm:$0xff]
      %v835 = vld [vmem:[#allocation2 + $0x210] sm:$0xff]
      %v836 = vld [vmem:[#allocation2 + $0x218] sm:$0xff]
      %v837 = vld [vmem:[#allocation2 + $0x220] sm:$0xff]
      %v838 = vld [vmem:[#allocation2 + $0x228] sm:$0xff]
      %v839 = vld [vmem:[#allocation2 + $0x230] sm:$0xff]
      %v840 = vld [vmem:[#allocation2 + $0x238] sm:$0xff]
      %v841 = vld [vmem:[%s1] sm:$0xf]
      %v842 = vld [vmem:[%s1 + $0x4] sm:$0xf]
      %v843 = vld [vmem:[%s1 + $0x8] sm:$0xf]
      %v844 = vld [vmem:[%s1 + $0xc] sm:$0xf]
      %v845 = vld [vmem:[%s1 + $0x10] sm:$0xf]
      %v846 = vld [vmem:[%s1 + $0x14] sm:$0xf]
      %v847 = vld [vmem:[%s1 + $0x18] sm:$0xf]
      %v848 = vld [vmem:[%s1 + $0x1c] sm:$0xf]
      %v849 = vld [vmem:[%s1 + $0x20] sm:$0xf]
      %v850 = vld [vmem:[%s1 + $0x24] sm:$0xf]
      %v851 = vld [vmem:[%s1 + $0x28] sm:$0xf]
      %v852 = vld [vmem:[%s1 + $0x2c] sm:$0xf]
      %v853 = vld [vmem:[%s1 + $0x30] sm:$0xf]
      %v854 = vld [vmem:[%s1 + $0x34] sm:$0xf]
      %v855 = vld [vmem:[%s1 + $0x38] sm:$0xf]
      %v856 = vld [vmem:[%s1 + $0x3c] sm:$0xf]
      %v857 = vld [vmem:[%s1 + $0x40] sm:$0xf]
      %v858 = vld [vmem:[%s1 + $0x44] sm:$0xf]
      %v859 = vld [vmem:[%s1 + $0x48] sm:$0xf]
      %v860 = vld [vmem:[%s1 + $0x4c] sm:$0xf]
      %v861 = vld [vmem:[%s1 + $0x50] sm:$0xf]
      %v862 = vld [vmem:[%s1 + $0x54] sm:$0xf]
      %v863 = vld [vmem:[%s1 + $0x58] sm:$0xf]
      %v864 = vld [vmem:[%s1 + $0x5c] sm:$0xf]
      %v865 = vld [vmem:[%s1 + $0x60] sm:$0xf]
      %v866 = vld [vmem:[%s1 + $0x64] sm:$0xf]
      %v867 = vld [vmem:[%s1 + $0x68] sm:$0xf]
      %v868 = vld [vmem:[%s1 + $0x6c] sm:$0xf]
      %v869 = vld [vmem:[%s1 + $0x70] sm:$0xf]
      %v870 = vld [vmem:[%s1 + $0x74] sm:$0xf]
      %v871 = vld [vmem:[%s1 + $0x78] sm:$0xf]
      %v872 = vld [vmem:[%s1 + $0x7c] sm:$0xf]
      %v873 = vld [vmem:[%s1 + $0x80] sm:$0xf]
      %v874 = vld [vmem:[%s1 + $0x84] sm:$0xf]
      %v875 = vld [vmem:[%s1 + $0x88] sm:$0xf]
      %v876 = vld [vmem:[%s1 + $0x8c] sm:$0xf]
      %v877 = vld [vmem:[%s1 + $0x90] sm:$0xf]
      %v878 = vld [vmem:[%s1 + $0x94] sm:$0xf]
      %v879 = vld [vmem:[%s1 + $0x98] sm:$0xf]
      %v880 = vld [vmem:[%s1 + $0x9c] sm:$0xf]
      %v881 = vld [vmem:[%s1 + $0xa0] sm:$0xf]
      %v882 = vld [vmem:[%s1 + $0xa4] sm:$0xf]
      %v883 = vld [vmem:[%s1 + $0xa8] sm:$0xf]
      %v884 = vld [vmem:[%s1 + $0xac] sm:$0xf]
      %v885 = vld [vmem:[%s1 + $0xb0] sm:$0xf]
      %v886 = vld [vmem:[%s1 + $0xb4] sm:$0xf]
      %v887 = vld [vmem:[%s1 + $0xb8] sm:$0xf]
      %v888 = vld [vmem:[%s1 + $0xbc] sm:$0xf]
      %v889 = vld [vmem:[%s1 + $0xc0] sm:$0xf]
      %v890 = vld [vmem:[%s1 + $0xc4] sm:$0xf]
      %v891 = vld [vmem:[%s1 + $0xc8] sm:$0xf]
      %v892 = vld [vmem:[%s1 + $0xcc] sm:$0xf]
      %v893 = vld [vmem:[%s1 + $0xd0] sm:$0xf]
      %v894 = vld [vmem:[%s1 + $0xd4] sm:$0xf]
      %v895 = vld [vmem:[%s1 + $0xd8] sm:$0xf]
      %v896 = vld [vmem:[%s1 + $0xdc] sm:$0xf]
      %v897 = vld [vmem:[%s1 + $0xe0] sm:$0xf]
      %v898 = vld [vmem:[%s1 + $0xe4] sm:$0xf]
      %v899 = vld [vmem:[%s1 + $0xe8] sm:$0xf]
      %v900 = vld [vmem:[%s1 + $0xec] sm:$0xf]
      %v901 = vld [vmem:[%s1 + $0xf0] sm:$0xf]
      %v902 = vld [vmem:[%s1 + $0xf4] sm:$0xf]
      %v903 = vld [vmem:[%s1 + $0xf8] sm:$0xf]
      %v904 = vld [vmem:[%s1 + $0xfc] sm:$0xf]
      %v905 = vld [vmem:[%s1 + $0x100] sm:$0xf]
      %v906 = vld [vmem:[%s1 + $0x104] sm:$0xf]
      %v907 = vld [vmem:[%s1 + $0x108] sm:$0xf]
      %v908 = vld [vmem:[%s1 + $0x10c] sm:$0xf]
      %v909 = vld [vmem:[%s1 + $0x110] sm:$0xf]
      %v910 = vld [vmem:[%s1 + $0x114] sm:$0xf]
      %v911 = vld [vmem:[%s1 + $0x118] sm:$0xf]
      %v912 = vld [vmem:[%s1 + $0x11c] sm:$0xf]
      %v913 = vld [vmem:[%s1 + $0x120] sm:$0xf]
      %v914 = vld [vmem:[%s1 + $0x124] sm:$0xf]
      %v915 = vld [vmem:[%s1 + $0x128] sm:$0xf]
      %v916 = vld [vmem:[%s1 + $0x12c] sm:$0xf]
      %v917 = vld [vmem:[%s1 + $0x130] sm:$0xf]
      %v918 = vld [vmem:[%s1 + $0x134] sm:$0xf]
      %v919 = vld [vmem:[%s1 + $0x138] sm:$0xf]
      %v920 = vld [vmem:[%s1 + $0x13c] sm:$0xf]
      %v921 = vld [vmem:[%s1 + $0x140] sm:$0xf]
      %v922 = vld [vmem:[%s1 + $0x144] sm:$0xf]
      %v923 = vld [vmem:[%s1 + $0x148] sm:$0xf]
      %v924 = vld [vmem:[%s1 + $0x14c] sm:$0xf]
      %v925 = vld [vmem:[%s1 + $0x150] sm:$0xf]
      %v926 = vld [vmem:[%s1 + $0x154] sm:$0xf]
      %v927 = vld [vmem:[%s1 + $0x158] sm:$0xf]
      %v928 = vld [vmem:[%s1 + $0x15c] sm:$0xf]
      %v929 = vld [vmem:[%s1 + $0x160] sm:$0xf]
      %v930 = vld [vmem:[%s1 + $0x164] sm:$0xf]
      %v931 = vld [vmem:[%s1 + $0x168] sm:$0xf]
      %v932 = vld [vmem:[%s1 + $0x16c] sm:$0xf]
      %v933 = vld [vmem:[%s1 + $0x170] sm:$0xf]
      %v934 = vld [vmem:[%s1 + $0x174] sm:$0xf]
      %v935 = vld [vmem:[%s1 + $0x178] sm:$0xf]
      %v936 = vld [vmem:[%s1 + $0x17c] sm:$0xf]
      %v937 = vld [vmem:[%s1 + $0x180] sm:$0xf]
      %v938 = vld [vmem:[%s1 + $0x184] sm:$0xf]
      %v939 = vld [vmem:[%s1 + $0x188] sm:$0xf]
      %v940 = vld [vmem:[%s1 + $0x18c] sm:$0xf]
      %v941 = vld [vmem:[%s1 + $0x190] sm:$0xf]
      %v942 = vld [vmem:[%s1 + $0x194] sm:$0xf]
      %v943 = vld [vmem:[%s1 + $0x198] sm:$0xf]
      %v944 = vld [vmem:[%s1 + $0x19c] sm:$0xf]
      %v945 = vld [vmem:[%s1 + $0x1a0] sm:$0xf]
      %v946 = vld [vmem:[%s1 + $0x1a4] sm:$0xf]
      %v947 = vld [vmem:[%s1 + $0x1a8] sm:$0xf]
      %v948 = vld [vmem:[%s1 + $0x1ac] sm:$0xf]
      %v949 = vld [vmem:[%s1 + $0x1b0] sm:$0xf]
      %v950 = vld [vmem:[%s1 + $0x1b4] sm:$0xf]
      %v951 = vld [vmem:[%s1 + $0x1b8] sm:$0xf]
      %v952 = vld [vmem:[%s1 + $0x1bc] sm:$0xf]
      %v953 = vld [vmem:[%s1 + $0x1c0] sm:$0xf]
      %v954 = vld [vmem:[%s1 + $0x1c4] sm:$0xf]
      %v955 = vld [vmem:[%s1 + $0x1c8] sm:$0xf]
      %v956 = vld [vmem:[%s1 + $0x1cc] sm:$0xf]
      %v957 = vld [vmem:[%s1 + $0x1d0] sm:$0xf]
      %v958 = vld [vmem:[%s1 + $0x1d4] sm:$0xf]
      %v959 = vld [vmem:[%s1 + $0x1d8] sm:$0xf]
      %v960 = vld [vmem:[%s1 + $0x1dc] sm:$0xf]
      %v961 = vld [vmem:[%s1 + $0x1e0] sm:$0xf]
      %v962 = vld [vmem:[%s1 + $0x1e4] sm:$0xf]
      %v963 = vld [vmem:[%s1 + $0x1e8] sm:$0xf]
      %v964 = vld [vmem:[%s1 + $0x1ec] sm:$0xf]
      %v965 = vld [vmem:[%s1 + $0x1f0] sm:$0xf]
      %v966 = vld [vmem:[%s1 + $0x1f4] sm:$0xf]
      %v967 = vld [vmem:[%s1 + $0x1f8] sm:$0xf]
      %v968 = vld [vmem:[%s1 + $0x1fc] sm:$0xf]
      %v969 = vld [vmem:[%s1 + $0x200] sm:$0xf]
      %v970 = vld [vmem:[%s1 + $0x204] sm:$0xf]
      %v971 = vld [vmem:[%s1 + $0x208] sm:$0xf]
      %v972 = vld [vmem:[%s1 + $0x20c] sm:$0xf]
      %v973 = vld [vmem:[%s1 + $0x210] sm:$0xf]
      %v974 = vld [vmem:[%s1 + $0x214] sm:$0xf]
      %v975 = vld [vmem:[%s1 + $0x218] sm:$0xf]
      %v976 = vld [vmem:[%s1 + $0x21c] sm:$0xf]
      %v977 = vld [vmem:[%s1 + $0x220] sm:$0xf]
      %v978 = vld [vmem:[%s1 + $0x224] sm:$0xf]
      %v979 = vld [vmem:[%s1 + $0x228] sm:$0xf]
      %v980 = vld [vmem:[%s1 + $0x22c] sm:$0xf]
      %v981 = vld [vmem:[%s1 + $0x230] sm:$0xf]
      %v982 = vld [vmem:[%s1 + $0x234] sm:$0xf]
      %v983 = vld [vmem:[%s1 + $0x238] sm:$0xf]
      %v984 = vld [vmem:[%s1 + $0x23c] sm:$0xf]
      %v985 = vld [vmem:[%s2] sm:$0x1]
      %v987 = vlaneseq
      %v988 = vshrl.u32 %v987, 7
      %v989 = vsub.s32 0, %v988
      %v990 = vrot.slane %v985, %v989
      %v1136 = vunpack.c.l.b16 %v841
      %v1137 = vunpack.c.l.b16 %v842
      %v1138 = vunpack.c.l.b16 %v843
      %v1139 = vunpack.c.l.b16 %v844
      %v1140 = vunpack.c.l.b16 %v845
      %v1141 = vunpack.c.l.b16 %v846
      %v1142 = vunpack.c.l.b16 %v847
      %v1143 = vunpack.c.l.b16 %v848
      %v1144 = vunpack.c.l.b16 %v849
      %v1145 = vunpack.c.l.b16 %v850
      %v1146 = vunpack.c.l.b16 %v851
      %v1147 = vunpack.c.l.b16 %v852
      %v1148 = vunpack.c.l.b16 %v853
      %v1149 = vunpack.c.l.b16 %v854
      %v1150 = vunpack.c.l.b16 %v855
      %v1151 = vunpack.c.l.b16 %v856
      %v1152 = vunpack.c.l.b16 %v857
      %v1153 = vunpack.c.l.b16 %v858
      %v1154 = vunpack.c.l.b16 %v859
      %v1155 = vunpack.c.l.b16 %v860
      %v1156 = vunpack.c.l.b16 %v861
      %v1157 = vunpack.c.l.b16 %v862
      %v1158 = vunpack.c.l.b16 %v863
      %v1159 = vunpack.c.l.b16 %v864
      %v1160 = vunpack.c.l.b16 %v865
      %v1161 = vunpack.c.l.b16 %v866
      %v1162 = vunpack.c.l.b16 %v867
      %v1163 = vunpack.c.l.b16 %v868
      %v1164 = vunpack.c.l.b16 %v869
      %v1165 = vunpack.c.l.b16 %v870
      %v1166 = vunpack.c.l.b16 %v871
      %v1167 = vunpack.c.l.b16 %v872
      %v1168 = vunpack.c.l.b16 %v873
      %v1169 = vunpack.c.l.b16 %v874
      %v1170 = vunpack.c.l.b16 %v875
      %v1171 = vunpack.c.l.b16 %v876
      %v1172 = vunpack.c.l.b16 %v877
      %v1173 = vunpack.c.l.b16 %v878
      %v1174 = vunpack.c.l.b16 %v879
      %v1175 = vunpack.c.l.b16 %v880
      %v1176 = vunpack.c.l.b16 %v881
      %v1177 = vunpack.c.l.b16 %v882
      %v1178 = vunpack.c.l.b16 %v883
      %v1179 = vunpack.c.l.b16 %v884
      %v1180 = vunpack.c.l.b16 %v885
      %v1181 = vunpack.c.l.b16 %v886
      %v1182 = vunpack.c.l.b16 %v887
      %v1183 = vunpack.c.l.b16 %v888
      %v1184 = vunpack.c.l.b16 %v889
      %v1185 = vunpack.c.l.b16 %v890
      %v1186 = vunpack.c.l.b16 %v891
      %v1187 = vunpack.c.l.b16 %v892
      %v1188 = vunpack.c.l.b16 %v893
      %v1189 = vunpack.c.l.b16 %v894
      %v1190 = vunpack.c.l.b16 %v895
      %v1191 = vunpack.c.l.b16 %v896
      %v1192 = vunpack.c.l.b16 %v897
      %v1193 = vunpack.c.l.b16 %v898
      %v1194 = vunpack.c.l.b16 %v899
      %v1195 = vunpack.c.l.b16 %v900
      %v1196 = vunpack.c.l.b16 %v901
      %v1197 = vunpack.c.l.b16 %v902
      %v1198 = vunpack.c.l.b16 %v903
      %v1199 = vunpack.c.l.b16 %v904
      %v1200 = vunpack.c.l.b16 %v905
      %v1201 = vunpack.c.l.b16 %v906
      %v1202 = vunpack.c.l.b16 %v907
      %v1203 = vunpack.c.l.b16 %v908
      %v1204 = vunpack.c.l.b16 %v909
      %v1205 = vunpack.c.l.b16 %v910
      %v1206 = vunpack.c.l.b16 %v911
      %v1207 = vunpack.c.l.b16 %v912
      %v1208 = vunpack.c.l.b16 %v913
      %v1209 = vunpack.c.l.b16 %v914
      %v1210 = vunpack.c.l.b16 %v915
      %v1211 = vunpack.c.l.b16 %v916
      %v1212 = vunpack.c.l.b16 %v917
      %v1213 = vunpack.c.l.b16 %v918
      %v1214 = vunpack.c.l.b16 %v919
      %v1215 = vunpack.c.l.b16 %v920
      %v1216 = vunpack.c.l.b16 %v921
      %v1217 = vunpack.c.l.b16 %v922
      %v1218 = vunpack.c.l.b16 %v923
      %v1219 = vunpack.c.l.b16 %v924
      %v1220 = vunpack.c.l.b16 %v925
      %v1221 = vunpack.c.l.b16 %v926
      %v1222 = vunpack.c.l.b16 %v927
      %v1223 = vunpack.c.l.b16 %v928
      %v1224 = vunpack.c.l.b16 %v929
      %v1225 = vunpack.c.l.b16 %v930
      %v1226 = vunpack.c.l.b16 %v931
      %v1227 = vunpack.c.l.b16 %v932
      %v1228 = vunpack.c.l.b16 %v933
      %v1229 = vunpack.c.l.b16 %v934
      %v1230 = vunpack.c.l.b16 %v935
      %v1231 = vunpack.c.l.b16 %v936
      %v1232 = vunpack.c.l.b16 %v937
      %v1233 = vunpack.c.l.b16 %v938
      %v1234 = vunpack.c.l.b16 %v939
      %v1235 = vunpack.c.l.b16 %v940
      %v1236 = vunpack.c.l.b16 %v941
      %v1237 = vunpack.c.l.b16 %v942
      %v1238 = vunpack.c.l.b16 %v943
      %v1239 = vunpack.c.l.b16 %v944
      %v1240 = vunpack.c.l.b16 %v945
      %v1241 = vunpack.c.l.b16 %v946
      %v1242 = vunpack.c.l.b16 %v947
      %v1243 = vunpack.c.l.b16 %v948
      %v1244 = vunpack.c.l.b16 %v949
      %v1245 = vunpack.c.l.b16 %v950
      %v1246 = vunpack.c.l.b16 %v951
      %v1247 = vunpack.c.l.b16 %v952
      %v1248 = vunpack.c.l.b16 %v953
      %v1249 = vunpack.c.l.b16 %v954
      %v1250 = vunpack.c.l.b16 %v955
      %v1251 = vunpack.c.l.b16 %v956
      %v1252 = vunpack.c.l.b16 %v957
      %v1253 = vunpack.c.l.b16 %v958
      %v1254 = vunpack.c.l.b16 %v959
      %v1255 = vunpack.c.l.b16 %v960
      %v1256 = vunpack.c.l.b16 %v961
      %v1257 = vunpack.c.l.b16 %v962
      %v1258 = vunpack.c.l.b16 %v963
      %v1259 = vunpack.c.l.b16 %v964
      %v1260 = vunpack.c.l.b16 %v965
      %v1261 = vunpack.c.l.b16 %v966
      %v1262 = vunpack.c.l.b16 %v967
      %v1263 = vunpack.c.l.b16 %v968
      %v1264 = vunpack.c.l.b16 %v969
      %v1265 = vunpack.c.l.b16 %v970
      %v1266 = vunpack.c.l.b16 %v971
      %v1267 = vunpack.c.l.b16 %v972
      %v1268 = vunpack.c.l.b16 %v973
      %v1269 = vunpack.c.l.b16 %v974
      %v1270 = vunpack.c.l.b16 %v975
      %v1271 = vunpack.c.l.b16 %v976
      %v1272 = vunpack.c.l.b16 %v977
      %v1273 = vunpack.c.l.b16 %v978
      %v1274 = vunpack.c.l.b16 %v979
      %v1275 = vunpack.c.l.b16 %v980
      %v1276 = vunpack.c.l.b16 %v981
      %v1277 = vunpack.c.l.b16 %v982
      %v1278 = vunpack.c.l.b16 %v983
      %v1279 = vunpack.c.l.b16 %v984
      %v1280 = vpack.c.b16 %v1137, %v1136
      %v1281 = vpack.c.b16 %v1139, %v1138
      %v1282 = vpack.c.b16 %v1141, %v1140
      %v1283 = vpack.c.b16 %v1143, %v1142
      %v1284 = vpack.c.b16 %v1145, %v1144
      %v1285 = vpack.c.b16 %v1147, %v1146
      %v1286 = vpack.c.b16 %v1149, %v1148
      %v1287 = vpack.c.b16 %v1151, %v1150
      %v1288 = vpack.c.b16 %v1153, %v1152
      %v1289 = vpack.c.b16 %v1155, %v1154
      %v1290 = vpack.c.b16 %v1157, %v1156
      %v1291 = vpack.c.b16 %v1159, %v1158
      %v1292 = vpack.c.b16 %v1161, %v1160
      %v1293 = vpack.c.b16 %v1163, %v1162
      %v1294 = vpack.c.b16 %v1165, %v1164
      %v1295 = vpack.c.b16 %v1167, %v1166
      %v1296 = vpack.c.b16 %v1169, %v1168
      %v1297 = vpack.c.b16 %v1171, %v1170
      %v1298 = vpack.c.b16 %v1173, %v1172
      %v1299 = vpack.c.b16 %v1175, %v1174
      %v1300 = vpack.c.b16 %v1177, %v1176
      %v1301 = vpack.c.b16 %v1179, %v1178
      %v1302 = vpack.c.b16 %v1181, %v1180
      %v1303 = vpack.c.b16 %v1183, %v1182
      %v1304 = vpack.c.b16 %v1185, %v1184
      %v1305 = vpack.c.b16 %v1187, %v1186
      %v1306 = vpack.c.b16 %v1189, %v1188
      %v1307 = vpack.c.b16 %v1191, %v1190
      %v1308 = vpack.c.b16 %v1193, %v1192
      %v1309 = vpack.c.b16 %v1195, %v1194
      %v1310 = vpack.c.b16 %v1197, %v1196
      %v1311 = vpack.c.b16 %v1199, %v1198
      %v1312 = vpack.c.b16 %v1201, %v1200
      %v1313 = vpack.c.b16 %v1203, %v1202
      %v1314 = vpack.c.b16 %v1205, %v1204
      %v1315 = vpack.c.b16 %v1207, %v1206
      %v1316 = vpack.c.b16 %v1209, %v1208
      %v1317 = vpack.c.b16 %v1211, %v1210
      %v1318 = vpack.c.b16 %v1213, %v1212
      %v1319 = vpack.c.b16 %v1215, %v1214
      %v1320 = vpack.c.b16 %v1217, %v1216
      %v1321 = vpack.c.b16 %v1219, %v1218
      %v1322 = vpack.c.b16 %v1221, %v1220
      %v1323 = vpack.c.b16 %v1223, %v1222
      %v1324 = vpack.c.b16 %v1225, %v1224
      %v1325 = vpack.c.b16 %v1227, %v1226
      %v1326 = vpack.c.b16 %v1229, %v1228
      %v1327 = vpack.c.b16 %v1231, %v1230
      %v1328 = vpack.c.b16 %v1233, %v1232
      %v1329 = vpack.c.b16 %v1235, %v1234
      %v1330 = vpack.c.b16 %v1237, %v1236
      %v1331 = vpack.c.b16 %v1239, %v1238
      %v1332 = vpack.c.b16 %v1241, %v1240
      %v1333 = vpack.c.b16 %v1243, %v1242
      %v1334 = vpack.c.b16 %v1245, %v1244
      %v1335 = vpack.c.b16 %v1247, %v1246
      %v1336 = vpack.c.b16 %v1249, %v1248
      %v1337 = vpack.c.b16 %v1251, %v1250
      %v1338 = vpack.c.b16 %v1253, %v1252
      %v1339 = vpack.c.b16 %v1255, %v1254
      %v1340 = vpack.c.b16 %v1257, %v1256
      %v1341 = vpack.c.b16 %v1259, %v1258
      %v1342 = vpack.c.b16 %v1261, %v1260
      %v1343 = vpack.c.b16 %v1263, %v1262
      %v1344 = vpack.c.b16 %v1265, %v1264
      %v1345 = vpack.c.b16 %v1267, %v1266
      %v1346 = vpack.c.b16 %v1269, %v1268
      %v1347 = vpack.c.b16 %v1271, %v1270
      %v1348 = vpack.c.b16 %v1273, %v1272
      %v1349 = vpack.c.b16 %v1275, %v1274
      %v1350 = vpack.c.b16 %v1277, %v1276
      %v1351 = vpack.c.b16 %v1279, %v1278
      %1424 = vmatprep.subr.bf16.mxu0 0
      %1425 = vmatpush1.bf16.msra.mxu0 %v1280
      %1426 = vmatprep.subr.bf16.mxu0 0
      %1427 = vmatpush1.bf16.msra.mxu0 %v1281
      %1428 = vmatprep.subr.bf16.mxu0 0
      %1429 = vmatpush1.bf16.msra.mxu0 %v1282
      %1430 = vmatprep.subr.bf16.mxu0 0
      %1431 = vmatpush1.bf16.msra.mxu0 %v1283
      %1432 = vmatprep.subr.bf16.mxu0 0
      %1433 = vmatpush1.bf16.msra.mxu0 %v1284
      %1434 = vmatprep.subr.bf16.mxu0 0
      %1435 = vmatpush1.bf16.msra.mxu0 %v1285
      %1436 = vmatprep.subr.bf16.mxu0 0
      %1437 = vmatpush1.bf16.msra.mxu0 %v1286
      %1438 = vmatprep.subr.bf16.mxu0 0
      %1439 = vmatpush1.bf16.msra.mxu0 %v1287
      %1440 = vmatprep.subr.bf16.mxu0 0
      %1441 = vmatpush1.bf16.msra.mxu0 %v1288
      %1442 = vmatprep.subr.bf16.mxu0 0
      %1443 = vmatpush1.bf16.msra.mxu0 %v1289
      %1444 = vmatprep.subr.bf16.mxu0 0
      %1445 = vmatpush1.bf16.msra.mxu0 %v1290
      %1446 = vmatprep.subr.bf16.mxu0 0
      %1447 = vmatpush1.bf16.msra.mxu0 %v1291
      %1448 = vmatprep.subr.bf16.mxu0 0
      %1449 = vmatpush1.bf16.msra.mxu0 %v1292
      %1450 = vmatprep.subr.bf16.mxu0 0
      %1451 = vmatpush1.bf16.msra.mxu0 %v1293
      %1452 = vmatprep.subr.bf16.mxu0 0
      %1453 = vmatpush1.bf16.msra.mxu0 %v1294
      %1454 = vmatprep.subr.bf16.mxu0 0
      %1455 = vmatpush1.bf16.msra.mxu0 %v1295
      %1456 = vmatprep.mubr.bf16.mxu0 %v770
      %1457 = vmatmul.mubr.bf16.gmra.mrb[0].mxu0 %v769
      %v1458 = vpop.f32.mrb[0].mxu0
      %v1459 = vadd.f32 %v990, %v1458
      %v1460 = vpop.f32.mrb[0].mxu0
      %v1461 = vpop.f32.mrb[0].mxu0
      %v1462 = vadd.f32 %v990, %v1461
      %v1463 = vpop.f32.mrb[0].mxu0
      %1464 = vmatprep.mubr.bf16.mxu0 %v779
      %1465 = vmatmul.mubr.bf16.gmra.mrb[0].mxu0 %v778
      %v1466 = vpop.f32.mrb[0].mxu0
      %v1467 = vadd.f32 %v990, %v1466
      %v1468 = vpop.f32.mrb[0].mxu0
      %v1469 = vpop.f32.mrb[0].mxu0
      %v1470 = vadd.f32 %v990, %v1469
      %v1471 = vpop.f32.mrb[0].mxu0
      %1472 = vmatprep.mubr.bf16.mxu0 %v788
      %1473 = vmatmul.mubr.bf16.gmra.mrb[0].mxu0 %v787
      %v1474 = vpop.f32.mrb[0].mxu0
      %v1475 = vadd.f32 %v990, %v1474
      %v1476 = vpop.f32.mrb[0].mxu0
      %v1477 = vpop.f32.mrb[0].mxu0
      %v1478 = vadd.f32 %v990, %v1477
      %v1479 = vpop.f32.mrb[0].mxu0
      %1480 = vmatprep.mubr.bf16.mxu0 %v797
      %1481 = vmatmul.mubr.bf16.gmra.mrb[0].mxu0 %v796
      %v1482 = vpop.f32.mrb[0].mxu0
      %v1483 = vadd.f32 %v990, %v1482
      %v1484 = vpop.f32.mrb[0].mxu0
      %v1485 = vpop.f32.mrb[0].mxu0
      %v1486 = vadd.f32 %v990, %v1485
      %v1487 = vpop.f32.mrb[0].mxu0
      %1488 = vmatprep.mubr.bf16.mxu0 %v806
      %1489 = vmatmul.mubr.bf16.gmra.mrb[0].mxu0 %v805
      %v1490 = vpop.f32.mrb[0].mxu0
      %v1491 = vadd.f32 %v990, %v1490
      %v1492 = vpop.f32.mrb[0].mxu0
      %v1493 = vpop.f32.mrb[0].mxu0
      %v1494 = vadd.f32 %v990, %v1493
      %v1495 = vpop.f32.mrb[0].mxu0
      %1496 = vmatprep.mubr.bf16.mxu0 %v815
      %1497 = vmatmul.mubr.bf16.gmra.mrb[0].mxu0 %v814
      %v1498 = vpop.f32.mrb[0].mxu0
      %v1499 = vadd.f32 %v990, %v1498
      %v1500 = vpop.f32.mrb[0].mxu0
      %v1501 = vpop.f32.mrb[0].mxu0
      %v1502 = vadd.f32 %v990, %v1501
      %v1503 = vpop.f32.mrb[0].mxu0
      %1504 = vmatprep.mubr.bf16.mxu0 %v824
      %1505 = vmatmul.mubr.bf16.gmra.mrb[0].mxu0 %v823
      %v1506 = vpop.f32.mrb[0].mxu0
      %v1507 = vadd.f32 %v990, %v1506
      %v1508 = vpop.f32.mrb[0].mxu0
      %v1509 = vpop.f32.mrb[0].mxu0
      %v1510 = vadd.f32 %v990, %v1509
      %v1511 = vpop.f32.mrb[0].mxu0
      %1512 = vmatprep.mubr.bf16.mxu0 %v833
      %1513 = vmatmul.mubr.bf16.gmra.mrb[0].mxu0 %v832
      %v1514 = vpop.f32.mrb[0].mxu0
      %v1515 = vadd.f32 %v990, %v1514
      %v1516 = vpop.f32.mrb[0].mxu0
      %v1517 = vpop.f32.mrb[0].mxu0
      %v1518 = vadd.f32 %v990, %v1517
      %v1519 = vpop.f32.mrb[0].mxu0
      %1520 = vdwg.mxu0
      %1521 = vmatprep.subr.bf16.mxu0 0
      %1522 = vmatpush1.bf16.msra.mxu0 %v1296
      %1523 = vmatprep.subr.bf16.mxu0 0
      %1524 = vmatpush1.bf16.msra.mxu0 %v1297
      %1525 = vmatprep.subr.bf16.mxu0 0
      %1526 = vmatpush1.bf16.msra.mxu0 %v1298
      %1527 = vmatprep.subr.bf16.mxu0 0
      %1528 = vmatpush1.bf16.msra.mxu0 %v1299
      %1529 = vmatprep.subr.bf16.mxu0 0
      %1530 = vmatpush1.bf16.msra.mxu0 %v1300
      %1531 = vmatprep.subr.bf16.mxu0 0
      %1532 = vmatpush1.bf16.msra.mxu0 %v1301
      %1533 = vmatprep.subr.bf16.mxu0 0
      %1534 = vmatpush1.bf16.msra.mxu0 %v1302
      %1535 = vmatprep.subr.bf16.mxu0 0
      %1536 = vmatpush1.bf16.msra.mxu0 %v1303
      %1537 = vmatprep.subr.bf16.mxu0 0
      %1538 = vmatpush1.bf16.msra.mxu0 %v1304
      %1539 = vmatprep.subr.bf16.mxu0 0
      %1540 = vmatpush1.bf16.msra.mxu0 %v1305
      %1541 = vmatprep.subr.bf16.mxu0 0
      %1542 = vmatpush1.bf16.msra.mxu0 %v1306
      %1543 = vmatprep.subr.bf16.mxu0 0
      %1544 = vmatpush1.bf16.msra.mxu0 %v1307
      %1545 = vmatprep.subr.bf16.mxu0 0
      %1546 = vmatpush1.bf16.msra.mxu0 %v1308
      %1547 = vmatprep.subr.bf16.mxu0 0
      %1548 = vmatpush1.bf16.msra.mxu0 %v1309
      %1549 = vmatprep.subr.bf16.mxu0 0
      %1550 = vmatpush1.bf16.msra.mxu0 %v1310
      %1551 = vmatprep.subr.bf16.mxu0 0
      %1552 = vmatpush1.bf16.msra.mxu0 %v1311
      %1553 = vmatprep.mubr.bf16.mxu0 %v772
      %1554 = vmatmul.mubr.bf16.gmra.mrb[0].mxu0 %v771
      %v1555 = vpop.f32.mrb[0].mxu0
      %v1556 = vadd.f32 %v1459, %v1555
      %v1557 = vpop.f32.mrb[0].mxu0
      %v1558 = vpop.f32.mrb[0].mxu0
      %v1559 = vadd.f32 %v1462, %v1558
      %v1560 = vpop.f32.mrb[0].mxu0
      %1561 = vmatprep.mubr.bf16.mxu0 %v781
      %1562 = vmatmul.mubr.bf16.gmra.mrb[0].mxu0 %v780
      %v1563 = vpop.f32.mrb[0].mxu0
      %v1564 = vadd.f32 %v1467, %v1563
      %v1565 = vpop.f32.mrb[0].mxu0
      %v1566 = vpop.f32.mrb[0].mxu0
      %v1567 = vadd.f32 %v1470, %v1566
      %v1568 = vpop.f32.mrb[0].mxu0
      %1569 = vmatprep.mubr.bf16.mxu0 %v790
      %1570 = vmatmul.mubr.bf16.gmra.mrb[0].mxu0 %v789
      %v1571 = vpop.f32.mrb[0].mxu0
      %v1572 = vadd.f32 %v1475, %v1571
      %v1573 = vpop.f32.mrb[0].mxu0
      %v1574 = vpop.f32.mrb[0].mxu0
      %v1575 = vadd.f32 %v1478, %v1574
      %v1576 = vpop.f32.mrb[0].mxu0
      %1577 = vmatprep.mubr.bf16.mxu0 %v799
      %1578 = vmatmul.mubr.bf16.gmra.mrb[0].mxu0 %v798
      %v1579 = vpop.f32.mrb[0].mxu0
      %v1580 = vadd.f32 %v1483, %v1579
      %v1581 = vpop.f32.mrb[0].mxu0
      %v1582 = vpop.f32.mrb[0].mxu0
      %v1583 = vadd.f32 %v1486, %v1582
      %v1584 = vpop.f32.mrb[0].mxu0
      %1585 = vmatprep.mubr.bf16.mxu0 %v808
      %1586 = vmatmul.mubr.bf16.gmra.mrb[0].mxu0 %v807
      %v1587 = vpop.f32.mrb[0].mxu0
      %v1588 = vadd.f32 %v1491, %v1587
      %v1589 = vpop.f32.mrb[0].mxu0
      %v1590 = vpop.f32.mrb[0].mxu0
      %v1591 = vadd.f32 %v1494, %v1590
      %v1592 = vpop.f32.mrb[0].mxu0
      %1593 = vmatprep.mubr.bf16.mxu0 %v817
      %1594 = vmatmul.mubr.bf16.gmra.mrb[0].mxu0 %v816
      %v1595 = vpop.f32.mrb[0].mxu0
      %v1596 = vadd.f32 %v1499, %v1595
      %v1597 = vpop.f32.mrb[0].mxu0
      %v1598 = vpop.f32.mrb[0].mxu0
      %v1599 = vadd.f32 %v1502, %v1598
      %v1600 = vpop.f32.mrb[0].mxu0
      %1601 = vmatprep.mubr.bf16.mxu0 %v826
      %1602 = vmatmul.mubr.bf16.gmra.mrb[0].mxu0 %v825
      %v1603 = vpop.f32.mrb[0].mxu0
      %v1604 = vadd.f32 %v1507, %v1603
      %v1605 = vpop.f32.mrb[0].mxu0
      %v1606 = vpop.f32.mrb[0].mxu0
      %v1607 = vadd.f32 %v1510, %v1606
      %v1608 = vpop.f32.mrb[0].mxu0
      %1609 = vmatprep.mubr.bf16.mxu0 %v835
      %1610 = vmatmul.mubr.bf16.gmra.mrb[0].mxu0 %v834
      %v1611 = vpop.f32.mrb[0].mxu0
      %v1612 = vadd.f32 %v1515, %v1611
      %v1613 = vpop.f32.mrb[0].mxu0
      %v1614 = vpop.f32.mrb[0].mxu0
      %v1615 = vadd.f32 %v1518, %v1614
      %v1616 = vpop.f32.mrb[0].mxu0
      %1617 = vdwg.mxu0
      %1618 = vmatprep.subr.bf16.mxu0 0
      %1619 = vmatpush1.bf16.msra.mxu0 %v1312
      %1620 = vmatprep.subr.bf16.mxu0 0
      %1621 = vmatpush1.bf16.msra.mxu0 %v1313
      %1622 = vmatprep.subr.bf16.mxu0 0
      %1623 = vmatpush1.bf16.msra.mxu0 %v1314
      %1624 = vmatprep.subr.bf16.mxu0 0
      %1625 = vmatpush1.bf16.msra.mxu0 %v1315
      %1626 = vmatprep.subr.bf16.mxu0 0
      %1627 = vmatpush1.bf16.msra.mxu0 %v1316
      %1628 = vmatprep.subr.bf16.mxu0 0
      %1629 = vmatpush1.bf16.msra.mxu0 %v1317
      %1630 = vmatprep.subr.bf16.mxu0 0
      %1631 = vmatpush1.bf16.msra.mxu0 %v1318
      %1632 = vmatprep.subr.bf16.mxu0 0
      %1633 = vmatpush1.bf16.msra.mxu0 %v1319
      %1634 = vmatprep.subr.bf16.mxu0 0
      %1635 = vmatpush1.bf16.msra.mxu0 %v1320
      %1636 = vmatprep.subr.bf16.mxu0 0
      %1637 = vmatpush1.bf16.msra.mxu0 %v1321
      %1638 = vmatprep.subr.bf16.mxu0 0
      %1639 = vmatpush1.bf16.msra.mxu0 %v1322
      %1640 = vmatprep.subr.bf16.mxu0 0
      %1641 = vmatpush1.bf16.msra.mxu0 %v1323
      %1642 = vmatprep.subr.bf16.mxu0 0
      %1643 = vmatpush1.bf16.msra.mxu0 %v1324
      %1644 = vmatprep.subr.bf16.mxu0 0
      %1645 = vmatpush1.bf16.msra.mxu0 %v1325
      %1646 = vmatprep.subr.bf16.mxu0 0
      %1647 = vmatpush1.bf16.msra.mxu0 %v1326
      %1648 = vmatprep.subr.bf16.mxu0 0
      %1649 = vmatpush1.bf16.msra.mxu0 %v1327
      %1650 = vmatprep.mubr.bf16.mxu0 %v774
      %1651 = vmatmul.mubr.bf16.gmra.mrb[0].mxu0 %v773
      %v1652 = vpop.f32.mrb[0].mxu0
      %v1653 = vadd.f32 %v1556, %v1652
      %v1654 = vpop.f32.mrb[0].mxu0
      %v1655 = vpop.f32.mrb[0].mxu0
      %v1656 = vadd.f32 %v1559, %v1655
      %v1657 = vpop.f32.mrb[0].mxu0
      %1658 = vmatprep.mubr.bf16.mxu0 %v783
      %1659 = vmatmul.mubr.bf16.gmra.mrb[0].mxu0 %v782
      %v1660 = vpop.f32.mrb[0].mxu0
      %v1661 = vadd.f32 %v1564, %v1660
      %v1662 = vpop.f32.mrb[0].mxu0
      %v1663 = vpop.f32.mrb[0].mxu0
      %v1664 = vadd.f32 %v1567, %v1663
      %v1665 = vpop.f32.mrb[0].mxu0
      %1666 = vmatprep.mubr.bf16.mxu0 %v792
      %1667 = vmatmul.mubr.bf16.gmra.mrb[0].mxu0 %v791
      %v1668 = vpop.f32.mrb[0].mxu0
      %v1669 = vadd.f32 %v1572, %v1668
      %v1670 = vpop.f32.mrb[0].mxu0
      %v1671 = vpop.f32.mrb[0].mxu0
      %v1672 = vadd.f32 %v1575, %v1671
      %v1673 = vpop.f32.mrb[0].mxu0
      %1674 = vmatprep.mubr.bf16.mxu0 %v801
      %1675 = vmatmul.mubr.bf16.gmra.mrb[0].mxu0 %v800
      %v1676 = vpop.f32.mrb[0].mxu0
      %v1677 = vadd.f32 %v1580, %v1676
      %v1678 = vpop.f32.mrb[0].mxu0
      %v1679 = vpop.f32.mrb[0].mxu0
      %v1680 = vadd.f32 %v1583, %v1679
      %v1681 = vpop.f32.mrb[0].mxu0
      %1682 = vmatprep.mubr.bf16.mxu0 %v810
      %1683 = vmatmul.mubr.bf16.gmra.mrb[0].mxu0 %v809
      %v1684 = vpop.f32.mrb[0].mxu0
      %v1685 = vadd.f32 %v1588, %v1684
      %v1686 = vpop.f32.mrb[0].mxu0
      %v1687 = vpop.f32.mrb[0].mxu0
      %v1688 = vadd.f32 %v1591, %v1687
      %v1689 = vpop.f32.mrb[0].mxu0
      %1690 = vmatprep.mubr.bf16.mxu0 %v819
      %1691 = vmatmul.mubr.bf16.gmra.mrb[0].mxu0 %v818
      %v1692 = vpop.f32.mrb[0].mxu0
      %v1693 = vadd.f32 %v1596, %v1692
      %v1694 = vpop.f32.mrb[0].mxu0
      %v1695 = vpop.f32.mrb[0].mxu0
      %v1696 = vadd.f32 %v1599, %v1695
      %v1697 = vpop.f32.mrb[0].mxu0
      %1698 = vmatprep.mubr.bf16.mxu0 %v828
      %1699 = vmatmul.mubr.bf16.gmra.mrb[0].mxu0 %v827
      %v1700 = vpop.f32.mrb[0].mxu0
      %v1701 = vadd.f32 %v1604, %v1700
      %v1702 = vpop.f32.mrb[0].mxu0
      %v1703 = vpop.f32.mrb[0].mxu0
      %v1704 = vadd.f32 %v1607, %v1703
      %v1705 = vpop.f32.mrb[0].mxu0
      %1706 = vmatprep.mubr.bf16.mxu0 %v837
      %1707 = vmatmul.mubr.bf16.gmra.mrb[0].mxu0 %v836
      %v1708 = vpop.f32.mrb[0].mxu0
      %v1709 = vadd.f32 %v1612, %v1708
      %v1710 = vpop.f32.mrb[0].mxu0
      %v1711 = vpop.f32.mrb[0].mxu0
      %v1712 = vadd.f32 %v1615, %v1711
      %v1713 = vpop.f32.mrb[0].mxu0
      %1714 = vdwg.mxu0
      %1715 = vmatprep.subr.bf16.mxu0 0
      %1716 = vmatpush1.bf16.msra.mxu0 %v1328
      %1717 = vmatprep.subr.bf16.mxu0 0
      %1718 = vmatpush1.bf16.msra.mxu0 %v1329
      %1719 = vmatprep.subr.bf16.mxu0 0
      %1720 = vmatpush1.bf16.msra.mxu0 %v1330
      %1721 = vmatprep.subr.bf16.mxu0 0
      %1722 = vmatpush1.bf16.msra.mxu0 %v1331
      %1723 = vmatprep.subr.bf16.mxu0 0
      %1724 = vmatpush1.bf16.msra.mxu0 %v1332
      %1725 = vmatprep.subr.bf16.mxu0 0
      %1726 = vmatpush1.bf16.msra.mxu0 %v1333
      %1727 = vmatprep.subr.bf16.mxu0 0
      %1728 = vmatpush1.bf16.msra.mxu0 %v1334
      %1729 = vmatprep.subr.bf16.mxu0 0
      %1730 = vmatpush1.bf16.msra.mxu0 %v1335
      %1731 = vmatprep.subr.bf16.mxu0 0
      %1732 = vmatpush1.bf16.msra.mxu0 %v1336
      %1733 = vmatprep.subr.bf16.mxu0 0
      %1734 = vmatpush1.bf16.msra.mxu0 %v1337
      %1735 = vmatprep.subr.bf16.mxu0 0
      %1736 = vmatpush1.bf16.msra.mxu0 %v1338
      %1737 = vmatprep.subr.bf16.mxu0 0
      %1738 = vmatpush1.bf16.msra.mxu0 %v1339
      %1739 = vmatprep.subr.bf16.mxu0 0
      %1740 = vmatpush1.bf16.msra.mxu0 %v1340
      %1741 = vmatprep.subr.bf16.mxu0 0
      %1742 = vmatpush1.bf16.msra.mxu0 %v1341
      %1743 = vmatprep.subr.bf16.mxu0 0
      %1744 = vmatpush1.bf16.msra.mxu0 %v1342
      %1745 = vmatprep.subr.bf16.mxu0 0
      %1746 = vmatpush1.bf16.msra.mxu0 %v1343
      %1747 = vmatprep.mubr.bf16.mxu0 %v776
      %1748 = vmatmul.mubr.bf16.gmra.mrb[0].mxu0 %v775
      %v1749 = vpop.f32.mrb[0].mxu0
      %v1750 = vadd.f32 %v1653, %v1749
      %v1751 = vpop.f32.mrb[0].mxu0
      %v1752 = vpop.f32.mrb[0].mxu0
      %v1753 = vadd.f32 %v1656, %v1752
      %v1754 = vpop.f32.mrb[0].mxu0
      %1755 = vmatprep.mubr.bf16.mxu0 %v785
      %1756 = vmatmul.mubr.bf16.gmra.mrb[0].mxu0 %v784
      %v1757 = vpop.f32.mrb[0].mxu0
      %v1758 = vadd.f32 %v1661, %v1757
      %v1759 = vpop.f32.mrb[0].mxu0
      %v1760 = vpop.f32.mrb[0].mxu0
      %v1761 = vadd.f32 %v1664, %v1760
      %v1762 = vpop.f32.mrb[0].mxu0
      %1763 = vmatprep.mubr.bf16.mxu0 %v794
      %1764 = vmatmul.mubr.bf16.gmra.mrb[0].mxu0 %v793
      %v1765 = vpop.f32.mrb[0].mxu0
      %v1766 = vadd.f32 %v1669, %v1765
      %v1767 = vpop.f32.mrb[0].mxu0
      %v1768 = vpop.f32.mrb[0].mxu0
      %v1769 = vadd.f32 %v1672, %v1768
      %v1770 = vpop.f32.mrb[0].mxu0
      %1771 = vmatprep.mubr.bf16.mxu0 %v803
      %1772 = vmatmul.mubr.bf16.gmra.mrb[0].mxu0 %v802
      %v1773 = vpop.f32.mrb[0].mxu0
      %v1774 = vadd.f32 %v1677, %v1773
      %v1775 = vpop.f32.mrb[0].mxu0
      %v1776 = vpop.f32.mrb[0].mxu0
      %v1777 = vadd.f32 %v1680, %v1776
      %v1778 = vpop.f32.mrb[0].mxu0
      %1779 = vmatprep.mubr.bf16.mxu0 %v812
      %1780 = vmatmul.mubr.bf16.gmra.mrb[0].mxu0 %v811
      %v1781 = vpop.f32.mrb[0].mxu0
      %v1782 = vadd.f32 %v1685, %v1781
      %v1783 = vpop.f32.mrb[0].mxu0
      %v1784 = vpop.f32.mrb[0].mxu0
      %v1785 = vadd.f32 %v1688, %v1784
      %v1786 = vpop.f32.mrb[0].mxu0
      %1787 = vmatprep.mubr.bf16.mxu0 %v821
      %1788 = vmatmul.mubr.bf16.gmra.mrb[0].mxu0 %v820
      %v1789 = vpop.f32.mrb[0].mxu0
      %v1790 = vadd.f32 %v1693, %v1789
      %v1791 = vpop.f32.mrb[0].mxu0
      %v1792 = vpop.f32.mrb[0].mxu0
      %v1793 = vadd.f32 %v1696, %v1792
      %v1794 = vpop.f32.mrb[0].mxu0
      %1795 = vmatprep.mubr.bf16.mxu0 %v830
      %1796 = vmatmul.mubr.bf16.gmra.mrb[0].mxu0 %v829
      %v1797 = vpop.f32.mrb[0].mxu0
      %v1798 = vadd.f32 %v1701, %v1797
      %v1799 = vpop.f32.mrb[0].mxu0
      %v1800 = vpop.f32.mrb[0].mxu0
      %v1801 = vadd.f32 %v1704, %v1800
      %v1802 = vpop.f32.mrb[0].mxu0
      %1803 = vmatprep.mubr.bf16.mxu0 %v839
      %1804 = vmatmul.mubr.bf16.gmra.mrb[0].mxu0 %v838
      %v1805 = vpop.f32.mrb[0].mxu0
      %v1806 = vadd.f32 %v1709, %v1805
      %v1807 = vpop.f32.mrb[0].mxu0
      %v1808 = vpop.f32.mrb[0].mxu0
      %v1809 = vadd.f32 %v1712, %v1808
      %v1810 = vpop.f32.mrb[0].mxu0
      %1811 = vdwg.mxu0
      %1812 = vmatprep.subr.bf16.mxu0 0
      %1813 = vmatpush1.bf16.msra.mxu0 %v1344
      %1814 = vmatprep.subr.bf16.mxu0 0
      %1815 = vmatpush1.bf16.msra.mxu0 %v1345
      %1816 = vmatprep.subr.bf16.mxu0 0
      %1817 = vmatpush1.bf16.msra.mxu0 %v1346
      %1818 = vmatprep.subr.bf16.mxu0 0
      %1819 = vmatpush1.bf16.msra.mxu0 %v1347
      %1820 = vmatprep.subr.bf16.mxu0 0
      %1821 = vmatpush1.bf16.msra.mxu0 %v1348
      %1822 = vmatprep.subr.bf16.mxu0 0
      %1823 = vmatpush1.bf16.msra.mxu0 %v1349
      %1824 = vmatprep.subr.bf16.mxu0 0
      %1825 = vmatpush1.bf16.msra.mxu0 %v1350
      %1826 = vmatprep.subr.bf16.mxu0 0
      %1827 = vmatpush1.bf16.msra.mxu0 %v1351
      %1828 = vmatprep.subr.bf16.mxu0 0
      %1829 = vmatpush1.bf16.msra.mxu0 0
      %1830 = vmatprep.subr.bf16.mxu0 0
      %1831 = vmatpush1.bf16.msra.mxu0 0
      %1832 = vmatprep.subr.bf16.mxu0 0
      %1833 = vmatpush1.bf16.msra.mxu0 0
      %1834 = vmatprep.subr.bf16.mxu0 0
      %1835 = vmatpush1.bf16.msra.mxu0 0
      %1836 = vmatprep.subr.bf16.mxu0 0
      %1837 = vmatpush1.bf16.msra.mxu0 0
      %1838 = vmatprep.subr.bf16.mxu0 0
      %1839 = vmatpush1.bf16.msra.mxu0 0
      %1840 = vmatprep.subr.bf16.mxu0 0
      %1841 = vmatpush1.bf16.msra.mxu0 0
      %1842 = vmatprep.subr.bf16.mxu0 0
      %1843 = vmatpush1.bf16.msra.mxu0 0
      %1844 = vmatprep.mubr.bf16.mxu0 0
      %1845 = vmatmul.mubr.bf16.gmra.mrb[0].mxu0 %v777
      %v1846 = vpop.f32.mrb[0].mxu0
      %v1847 = vadd.f32 %v1750, %v1846
      %v1848 = vpop.f32.mrb[0].mxu0
      %v1849 = vpop.f32.mrb[0].mxu0
      %v1850 = vadd.f32 %v1753, %v1849
      %v1851 = vpop.f32.mrb[0].mxu0
      %1852 = vmatprep.mubr.bf16.mxu0 0
      %1853 = vmatmul.mubr.bf16.gmra.mrb[0].mxu0 %v786
      %v1854 = vpop.f32.mrb[0].mxu0
      %v1855 = vadd.f32 %v1758, %v1854
      %v1856 = vpop.f32.mrb[0].mxu0
      %v1857 = vpop.f32.mrb[0].mxu0
      %v1858 = vadd.f32 %v1761, %v1857
      %v1859 = vpop.f32.mrb[0].mxu0
      %1860 = vmatprep.mubr.bf16.mxu0 0
      %1861 = vmatmul.mubr.bf16.gmra.mrb[0].mxu0 %v795
      %v1862 = vpop.f32.mrb[0].mxu0
      %v1863 = vadd.f32 %v1766, %v1862
      %v1864 = vpop.f32.mrb[0].mxu0
      %v1865 = vpop.f32.mrb[0].mxu0
      %v1866 = vadd.f32 %v1769, %v1865
      %v1867 = vpop.f32.mrb[0].mxu0
      %1868 = vmatprep.mubr.bf16.mxu0 0
      %1869 = vmatmul.mubr.bf16.gmra.mrb[0].mxu0 %v804
      %v1870 = vpop.f32.mrb[0].mxu0
      %v1871 = vadd.f32 %v1774, %v1870
      %v1872 = vpop.f32.mrb[0].mxu0
      %v1873 = vpop.f32.mrb[0].mxu0
      %v1874 = vadd.f32 %v1777, %v1873
      %v1875 = vpop.f32.mrb[0].mxu0
      %1876 = vmatprep.mubr.bf16.mxu0 0
      %1877 = vmatmul.mubr.bf16.gmra.mrb[0].mxu0 %v813
      %v1878 = vpop.f32.mrb[0].mxu0
      %v1879 = vadd.f32 %v1782, %v1878
      %v1880 = vpop.f32.mrb[0].mxu0
      %v1881 = vpop.f32.mrb[0].mxu0
      %v1882 = vadd.f32 %v1785, %v1881
      %v1883 = vpop.f32.mrb[0].mxu0
      %1884 = vmatprep.mubr.bf16.mxu0 0
      %1885 = vmatmul.mubr.bf16.gmra.mrb[0].mxu0 %v822
      %v1886 = vpop.f32.mrb[0].mxu0
      %v1887 = vadd.f32 %v1790, %v1886
      %v1888 = vpop.f32.mrb[0].mxu0
      %v1889 = vpop.f32.mrb[0].mxu0
      %v1890 = vadd.f32 %v1793, %v1889
      %v1891 = vpop.f32.mrb[0].mxu0
      %1892 = vmatprep.mubr.bf16.mxu0 0
      %1893 = vmatmul.mubr.bf16.gmra.mrb[0].mxu0 %v831
      %v1894 = vpop.f32.mrb[0].mxu0
      %v1895 = vadd.f32 %v1798, %v1894
      %v1896 = vpop.f32.mrb[0].mxu0
      %v1897 = vpop.f32.mrb[0].mxu0
      %v1898 = vadd.f32 %v1801, %v1897
      %v1899 = vpop.f32.mrb[0].mxu0
      %1900 = vmatprep.mubr.bf16.mxu0 0
      %1901 = vmatmul.mubr.bf16.gmra.mrb[0].mxu0 %v840
      %v1902 = vpop.f32.mrb[0].mxu0
      %v1903 = vadd.f32 %v1806, %v1902
      %v1904 = vpop.f32.mrb[0].mxu0
      %v1905 = vpop.f32.mrb[0].mxu0
      %v1906 = vadd.f32 %v1809, %v1905
      %v1907 = vpop.f32.mrb[0].mxu0
      %1908 = vdwg.mxu0
      %v1909 = vmax.f32 %v1847, 0.0
      %v1910 = vmax.f32 %v1850, 0.0
      %v1911 = vmax.f32 %v1855, 0.0
      %v1912 = vmax.f32 %v1858, 0.0
      %v1913 = vmax.f32 %v1863, 0.0
      %v1914 = vmax.f32 %v1866, 0.0
      %v1915 = vmax.f32 %v1871, 0.0
      %v1916 = vmax.f32 %v1874, 0.0
      %v1917 = vmax.f32 %v1879, 0.0
      %v1918 = vmax.f32 %v1882, 0.0
      %v1919 = vmax.f32 %v1887, 0.0
      %v1920 = vmax.f32 %v1890, 0.0
      %v1921 = vmax.f32 %v1895, 0.0
      %v1922 = vmax.f32 %v1898, 0.0
      %v1923 = vmax.f32 %v1903, 0.0
      %v1924 = vmax.f32 %v1906, 0.0
      %v1925 = vpack.c.bf16 %v1910, %v1909
      %v1926 = vpack.c.bf16 %v1912, %v1911
      %v1927 = vpack.c.bf16 %v1914, %v1913
      %v1928 = vpack.c.bf16 %v1916, %v1915
      %v1929 = vpack.c.bf16 %v1918, %v1917
      %v1930 = vpack.c.bf16 %v1920, %v1919
      %v1931 = vpack.c.bf16 %v1922, %v1921
      %v1932 = vpack.c.bf16 %v1924, %v1923
      %v1941 = vunpack.c.l.b16 %v1925
      %v1942 = vunpack.c.h.b16 %v1925
      %v1943 = vunpack.c.l.b16 %v1926
      %v1944 = vunpack.c.h.b16 %v1926
      %v1945 = vunpack.c.l.b16 %v1927
      %v1946 = vunpack.c.h.b16 %v1927
      %v1947 = vunpack.c.l.b16 %v1928
      %v1948 = vunpack.c.h.b16 %v1928
      %v1949 = vunpack.c.l.b16 %v1929
      %v1950 = vunpack.c.h.b16 %v1929
      %v1951 = vunpack.c.l.b16 %v1930
      %v1952 = vunpack.c.h.b16 %v1930
      %v1953 = vunpack.c.l.b16 %v1931
      %v1954 = vunpack.c.h.b16 %v1931
      %v1955 = vunpack.c.l.b16 %v1932
      %v1956 = vunpack.c.h.b16 %v1932
      %v1957 = vpack.c.b16 %v1941, %v1941
      %v1958 = vpack.c.b16 %v1942, %v1942
      %v1959 = vpack.c.b16 %v1943, %v1943
      %v1960 = vpack.c.b16 %v1944, %v1944
      %v1961 = vpack.c.b16 %v1945, %v1945
      %v1962 = vpack.c.b16 %v1946, %v1946
      %v1963 = vpack.c.b16 %v1947, %v1947
      %v1964 = vpack.c.b16 %v1948, %v1948
      %v1965 = vpack.c.b16 %v1949, %v1949
      %v1966 = vpack.c.b16 %v1950, %v1950
      %v1967 = vpack.c.b16 %v1951, %v1951
      %v1968 = vpack.c.b16 %v1952, %v1952
      %v1969 = vpack.c.b16 %v1953, %v1953
      %v1970 = vpack.c.b16 %v1954, %v1954
      %v1971 = vpack.c.b16 %v1955, %v1955
      %v1972 = vpack.c.b16 %v1956, %v1956
      %1989 = vst [vmem:[%s194] sm:$0xf] %v1957
      %1990 = vst [vmem:[%s194 + $0x4] sm:$0xf] %v1958
      %1991 = vst [vmem:[%s194 + $0x8] sm:$0xf] %v1959
      %1992 = vst [vmem:[%s194 + $0xc] sm:$0xf] %v1960
      %1993 = vst [vmem:[%s194 + $0x10] sm:$0xf] %v1961
      %1994 = vst [vmem:[%s194 + $0x14] sm:$0xf] %v1962
      %1995 = vst [vmem:[%s194 + $0x18] sm:$0xf] %v1963
      %1996 = vst [vmem:[%s194 + $0x1c] sm:$0xf] %v1964
      %1997 = vst [vmem:[%s194 + $0x20] sm:$0xf] %v1965
      %1998 = vst [vmem:[%s194 + $0x24] sm:$0xf] %v1966
      %1999 = vst [vmem:[%s194 + $0x28] sm:$0xf] %v1967
      %2000 = vst [vmem:[%s194 + $0x2c] sm:$0xf] %v1968
      %2001 = vst [vmem:[%s194 + $0x30] sm:$0xf] %v1969
      %2002 = vst [vmem:[%s194 + $0x34] sm:$0xf] %v1970
      %2003 = vst [vmem:[%s194 + $0x38] sm:$0xf] %v1971
      %2004 = vst [vmem:[%s194 + $0x3c] sm:$0xf] %v1972
      %s2005 = smul.u32 8, %s19
      %p2006 = scmp.lt.s32.totalorder %s18, 1
      %s2007 = scalar_select %p2006, %s18, 1
      %p2008 = scmp.lt.s32.totalorder %s2005, 15
      %s2009 = scalar_select %p2008, %s2005, 15
      %s2010 = smul.addr %s2009, 2
      %s2011 = smul.addr %s2007, 32
      %s2012 = sadd.s32 %s2010, %s2011
      %s2013 = smul.addr %s2012, 4
      %s2014 = scalar_lea.vmem %s3, %s2013
      // Predicated region
      $region33: #{cenet_forward.9} parent=31 // pred_check
        %p2015 = pneg %p114
      $region34: #{cenet_forward.9} parent=31 // pred_check_branch
        %2017 = sbr.rel (%p2015) target = $region36
      $region35: #{cenet_forward.9} parent=31 // pred_region
        %s2018 = smul.u32 8, %s19
      $region36: #{cenet_forward.9} parent=31 // pred_fallthru
        _
    $region32: #{cenet_forward.9} parent=5 // pred_fallthru
      _
    %p2019 = scmp.le.s32.totalorder 2, %s9
    // Predicated region
    $region37: #{cenet_forward.9} parent=5 // pred_check
      %p2020 = pneg %p2019
    $region38: #{cenet_forward.9} parent=5 // pred_check_branch
      %2022 = sbr.rel (%p2020) target = $region40
    $region39: #{cenet_forward.9} parent=5 // pred_region
      %s2023 = ssub.s32 %s9, 2
      // Predicated region
      $region41: #{cenet_forward.9} parent=39 // pred_check
        %p2024 = pneg %p120
      $region42: #{cenet_forward.9} parent=39 // pred_check_branch
        %2026 = sbr.rel (%p2024) target = $region44
      $region43: #{cenet_forward.9} parent=39 // pred_region
        %s2027 = smul.u32 8, %s21
        %p2028 = scmp.lt.s32.totalorder %s20, 1
        %s2029 = scalar_select %p2028, %s20, 1
        %p2030 = scmp.lt.s32.totalorder %s2027, 15
        %s2031 = scalar_select %p2030, %s2027, 15
        %s2032 = smul.addr %s2031, 2
        %s2033 = smul.addr %s2029, 32
        %s2034 = sadd.s32 %s2032, %s2033
        %s2035 = smul.addr %s2034, 4
        %s2036 = scalar_lea.vmem %s3, %s2035
      $region44: #{cenet_forward.9} parent=39 // pred_fallthru
        _
    $region40: #{cenet_forward.9} parent=5 // pred_fallthru
      _
  $region6: #{cenet_forward.9} parent=0 // loop_footer
    %s13 = sadd.s32 1, %s9
  $region7: #{cenet_forward.9} parent=0 // loop_footer_branch
    %8 = sbr.rel target = $region3
  $region8: #{cenet_forward.9} parent=0 // loop_exit
    _

// kernel: cenet_forward.14
$region0: #{cenet_forward.14}
  #allocation0 [shape = 'u32[]', space=smem, size = 0x4, offset = 0x4, fixed_abs, tag = 'smem constant byte address 0x4 - core index']
  #allocation1 [shape = 'u32[144,128]{1,0:T(1,128)}', space=vmem, size = 0x12000, scoped, tag = 'internal scratch']
  %s0 = inlined_call_operand.vmem [shape: bf16[2,2,2,128], index: 0, kind: input, shape index: {}]
  %s1 = inlined_call_operand.vmem [shape: bf16[128,128], index: 1, kind: input, shape index: {}]
  %s2 = inlined_call_operand.vmem [shape: f32[1,128], index: 2, kind: input, shape index: {}]
  %s3 = inlined_call_operand.vmem [shape: f32[2,2,2,128], index: 3, kind: output, shape index: {}]
  %s4 = sld [smem:[#allocation0]]
  $region45: #{cenet_forward.14} parent=0
    _
  %s6 = ssub.s32 1, %s4
  %s7 = scalar_select 0, %s6, %s4
  loop: start=0, step=1, limit=4
  $region2: #{cenet_forward.14} parent=0 // loop_pre_header
    _
  $region3: #{cenet_forward.14} parent=0 // loop_header
    %s9 = sphi 0, %s13
    %p10 = scmp.ge.s32.totalorder %s9, 4
    %s16 = sphi 0, %s28
    %s17 = sphi 0, %s24
    %s18 = sphi 0, %s16
    %s19 = sphi 0, %s17
    %s20 = sphi 0, %s18
    %s21 = sphi 0, %s19
    %s31 = sphi 0, %s33
    %s34 = sphi 0, %s31
    %s35 = sphi 0, %s34
    %s51 = sphi 0, %s35
    %s55 = sphi 0, %s55
    %s57 = sphi 0, %s55
    %s58 = sphi 0, %s57
    %s72 = sphi 0, %s58
    %s76 = sphi 0, %s76
    %s78 = sphi 0, %s76
    %s79 = sphi 0, %s78
    %s93 = sphi 0, %s79
    %s101 = sphi 0, %s103
    %s104 = sphi 0, %s101
    %s105 = sphi 0, %s104
    %s121 = sphi 0, %s105
  $region4: #{cenet_forward.14} parent=0 // loop_header_branch
    %12 = sbr.rel (%p10) target = $region8
  $region5: #{cenet_forward.14} parent=0 // loop_body
    %s14 = ssub.s32 %s9, 1
    %s15 = ssub.s32 %s9, 2
    %s22 = sadd.s32 1, %s17
    %p23 = scmp.ge.s32.totalorder %s22, 1
    %s24 = scalar_select %p23, 0, %s22
    %s25 = sadd.s32 1, %s16
    %s26 = scalar_select %p23, %s25, %s16
    %p27 = scmp.ge.s32.totalorder %s26, 2
    %s28 = scalar_select %p27, 0, %s26
    %s29 = ssub.s32 %s16, %s28
    %p30 = scmp.eq.s32.totalorder %s29, 0
    %s32 = sadd.s32 %s31, 1
    %s33 = scalar_select %p30, %s31, %s32
    %p36 = pneg %p30
    %p37 = scmp.eq.s32.totalorder %s9, 1
    %p38 = por %p36, %p37
    %p39 = scmp.ne.s32.totalorder %s31, %s34
    %p40 = scmp.eq.s32.totalorder %s9, 0
    %p41 = por %p39, %p40
    %p42 = scmp.ne.s32.totalorder %s31, %s34
    %p43 = scmp.eq.s32.totalorder %s14, 1
    %p44 = por %p42, %p43
    %p45 = scmp.ne.s32.totalorder %s34, %s35
    %p46 = scmp.eq.s32.totalorder %s14, 0
    %p47 = por %p45, %p46
    %p48 = scmp.ne.s32.totalorder %s34, %s35
    %p49 = scmp.eq.s32.totalorder %s15, 1
    %p50 = por %p48, %p49
    %p52 = scmp.ne.s32.totalorder %s35, %s51
    %p53 = scmp.eq.s32.totalorder %s15, 0
    %p54 = por %p52, %p53
    %s56 = sadd.s32 %s55, 1
    %p59 = scmp.eq.s32.totalorder %s9, 1
    %p60 = scmp.ne.s32.totalorder %s55, %s57
    %p61 = scmp.eq.s32.totalorder %s9, 0
    %p62 = por %p60, %p61
    %p63 = scmp.ne.s32.totalorder %s55, %s57
    %p64 = scmp.eq.s32.totalorder %s14, 1
    %p65 = por %p63, %p64
    %p66 = scmp.ne.s32.totalorder %s57, %s58
    %p67 = scmp.eq.s32.totalorder %s14, 0
    %p68 = por %p66, %p67
    %p69 = scmp.ne.s32.totalorder %s57, %s58
    %p70 = scmp.eq.s32.totalorder %s15, 1
    %p71 = por %p69, %p70
    %p73 = scmp.ne.s32.totalorder %s58, %s72
    %p74 = scmp.eq.s32.totalorder %s15, 0
    %p75 = por %p73, %p74
    %s77 = sadd.s32 %s76, 1
    %p80 = scmp.eq.s32.totalorder %s9, 1
    %p81 = scmp.ne.s32.totalorder %s76, %s78
    %p82 = scmp.eq.s32.totalorder %s9, 0
    %p83 = por %p81, %p82
    %p84 = scmp.ne.s32.totalorder %s76, %s78
    %p85 = scmp.eq.s32.totalorder %s14, 1
    %p86 = por %p84, %p85
    %p87 = scmp.ne.s32.totalorder %s78, %s79
    %p88 = scmp.eq.s32.totalorder %s14, 0
    %p89 = por %p87, %p88
    %p90 = scmp.ne.s32.totalorder %s78, %s79
    %p91 = scmp.eq.s32.totalorder %s15, 1
    %p92 = por %p90, %p91
    %p94 = scmp.ne.s32.totalorder %s79, %s93
    %p95 = scmp.eq.s32.totalorder %s15, 0
    %p96 = por %p94, %p95
    %s97 = ssub.s32 %s16, %s28
    %s98 = ssub.s32 %s17, %s24
    %s99 = sor.u32 %s97, %s98
    %p100 = scmp.eq.s32.totalorder %s99, 0
    %s102 = sadd.s32 %s101, 1
    %s103 = scalar_select %p100, %s101, %s102
    %p106 = pneg %p100
    %p107 = scmp.eq.s32.totalorder %s9, 1
    %p108 = por %p106, %p107
    %p109 = scmp.ne.s32.totalorder %s101, %s104
    %p110 = scmp.eq.s32.totalorder %s9, 0
    %p111 = por %p109, %p110
    %p112 = scmp.ne.s32.totalorder %s101, %s104
    %p113 = scmp.eq.s32.totalorder %s14, 1
    %p114 = por %p112, %p113
    %p115 = scmp.ne.s32.totalorder %s104, %s105
    %p116 = scmp.eq.s32.totalorder %s14, 0
    %p117 = por %p115, %p116
    %p118 = scmp.ne.s32.totalorder %s104, %s105
    %p119 = scmp.eq.s32.totalorder %s15, 1
    %p120 = por %p118, %p119
    %p122 = scmp.ne.s32.totalorder %s105, %s121
    %p123 = scmp.eq.s32.totalorder %s15, 0
    %p124 = por %p122, %p123
    %p125 = scmp.le.s32.totalorder 1, %s9
    %p126 = scmp.lt.s32.totalorder %s9, 3
    %p127 = pnand %p125, %p126
    %p128 = pneg %p127
    // Predicated region
    $region9: #{cenet_forward.14} parent=5 // pred_check
      _
    $region10: #{cenet_forward.14} parent=5 // pred_check_branch
      %130 = sbr.rel (%p127) target = $region12
    $region11: #{cenet_forward.14} parent=5 // pred_region
      %s131 = ssub.s32 %s9, 1
      // Predicated region
      $region13: #{cenet_forward.14} parent=11 // pred_check
        %p132 = pneg %p68
      $region14: #{cenet_forward.14} parent=11 // pred_check_branch
        %134 = sbr.rel (%p132) target = $region16
      $region15: #{cenet_forward.14} parent=11 // pred_region
        _
      $region16: #{cenet_forward.14} parent=11 // pred_fallthru
        _
      // Predicated region
      $region17: #{cenet_forward.14} parent=11 // pred_check
        %p135 = pneg %p89
      $region18: #{cenet_forward.14} parent=11 // pred_check_branch
        %137 = sbr.rel (%p135) target = $region20
      $region19: #{cenet_forward.14} parent=11 // pred_region
        _
      $region20: #{cenet_forward.14} parent=11 // pred_fallthru
        _
    $region12: #{cenet_forward.14} parent=5 // pred_fallthru
      _
    %p138 = scmp.lt.s32.totalorder %s9, 2
    // Predicated region
    $region21: #{cenet_forward.14} parent=5 // pred_check
      %p139 = pneg %p138
    $region22: #{cenet_forward.14} parent=5 // pred_check_branch
      %141 = sbr.rel (%p139) target = $region24
    $region23: #{cenet_forward.14} parent=5 // pred_region
      // Predicated region
      $region25: #{cenet_forward.14} parent=23 // pred_check
        %p142 = pneg %p41
      $region26: #{cenet_forward.14} parent=23 // pred_check_branch
        %144 = sbr.rel (%p142) target = $region28
      $region27: #{cenet_forward.14} parent=23 // pred_region
        %p145 = scmp.lt.s32.totalorder %s16, 1
        %s146 = scalar_select %p145, %s16, 1
        %s147 = smul.addr %s146, 2
        %s148 = scalar_lea.vmem %s0, %s147
      $region28: #{cenet_forward.14} parent=23 // pred_fallthru
        _
    $region24: #{cenet_forward.14} parent=5 // pred_fallthru
      _
    %p149 = scmp.le.s32.totalorder 1, %s9
    %p150 = scmp.lt.s32.totalorder %s9, 3
    %p151 = pnand %p149, %p150
    %p152 = pneg %p151
    // Predicated region
    $region29: #{cenet_forward.14} parent=5 // pred_check
      _
    $region30: #{cenet_forward.14} parent=5 // pred_check_branch
      %154 = sbr.rel (%p151) target = $region32
    $region31: #{cenet_forward.14} parent=5 // pred_region
      %s155 = ssub.s32 %s9, 1
      %p156 = scmp.lt.s32.totalorder %s18, 1
      %s157 = scalar_select %p156, %s18, 1
      %s158 = smul.addr %s157, 2
      %s159 = scalar_lea.vmem %s0, %s158
      %p160 = pneg %p47
      %p161 = pneg %p44
      %p162 = pneg %p68
      %p163 = pneg %p65
      %p164 = pneg %p89
      %p165 = pneg %p86
      %p166 = pneg %p117
      %p167 = pneg %p114
      %s168 = smul.u32 2, %s19
      %p169 = scmp.lt.s32.totalorder %s18, 1
      %s170 = scalar_select %p169, %s18, 1
      %p171 = scmp.lt.s32.totalorder %s168, 1
      %s172 = scalar_select %p171, %s168, 1
      %s173 = smul.addr %s170, 2
      %s174 = sadd.s32 %s172, %s173
      %s175 = smul.addr %s174, 2
      %s176 = scalar_lea.vmem %s3, %s175
      %p177 = scmp.lt.s32.totalorder %s18, 1
      %s178 = scalar_select %p177, %s18, 1
      %s179 = smul.addr %s178, 2
      %s180 = scalar_lea.vmem %s0, %s179
      %s181 = smul.u32 2, %s19
      %p182 = scmp.lt.s32.totalorder %s18, 1
      %s183 = scalar_select %p182, %s18, 1
      %p184 = scmp.lt.s32.totalorder %s181, 1
      %s185 = scalar_select %p184, %s181, 1
      %s186 = smul.addr %s183, 2
      %s187 = sadd.s32 %s185, %s186
      %s188 = smul.addr %s187, 2
      %s189 = scalar_lea.vmem %s3, %s188
      %s190 = smul.u32 2, %s19
      %s192 = smul.u32 %s19, 2
      %s193 = scalar_lea.vmem %s180, %s192
      %v194 = vld [vmem:[%s193] sm:$0x1]
      %v195 = vld [vmem:[%s193 + $0x1] sm:$0x1]
      %v196 = vld [vmem:[%s1] sm:$0xf]
      %v197 = vld [vmem:[%s1 + $0x4] sm:$0xf]
      %v198 = vld [vmem:[%s1 + $0x8] sm:$0xf]
      %v199 = vld [vmem:[%s1 + $0xc] sm:$0xf]
      %v200 = vld [vmem:[%s1 + $0x10] sm:$0xf]
      %v201 = vld [vmem:[%s1 + $0x14] sm:$0xf]
      %v202 = vld [vmem:[%s1 + $0x18] sm:$0xf]
      %v203 = vld [vmem:[%s1 + $0x1c] sm:$0xf]
      %v204 = vld [vmem:[%s1 + $0x20] sm:$0xf]
      %v205 = vld [vmem:[%s1 + $0x24] sm:$0xf]
      %v206 = vld [vmem:[%s1 + $0x28] sm:$0xf]
      %v207 = vld [vmem:[%s1 + $0x2c] sm:$0xf]
      %v208 = vld [vmem:[%s1 + $0x30] sm:$0xf]
      %v209 = vld [vmem:[%s1 + $0x34] sm:$0xf]
      %v210 = vld [vmem:[%s1 + $0x38] sm:$0xf]
      %v211 = vld [vmem:[%s1 + $0x3c] sm:$0xf]
      %v212 = vld [vmem:[%s2] sm:$0x1]
      %v214 = vlaneseq
      %v215 = vshrl.u32 %v214, 7
      %v216 = vsub.s32 0, %v215
      %v217 = vrot.slane %v212, %v216
      %v221 = vcombine.low %v194, %v195
      %v223 = vunpack.c.l.s4 1966171168
      %v224 = vunpack.c.0.s8 %v223
      %v225 = vlaneseq
      %v226 = vshrl.u32 %v225, 7
      %v227 = vsub.s32 %v224, %v226
      %v228 = vrot.slane %v221, %v227
      %v230 = vunpack.c.l.s4 1966171168
      %v231 = vunpack.c.0.s8 %v230
      %v232 = vlaneseq
      %v233 = vshrl.u32 %v232, 7
      %v234 = vsub.s32 %v231, %v233
      %v235 = vrot.slane %v228, %v234
      %v253 = vunpack.c.l.b16 %v196
      %v254 = vunpack.c.l.b16 %v197
      %v255 = vunpack.c.l.b16 %v198
      %v256 = vunpack.c.l.b16 %v199
      %v257 = vunpack.c.l.b16 %v200
      %v258 = vunpack.c.l.b16 %v201
      %v259 = vunpack.c.l.b16 %v202
      %v260 = vunpack.c.l.b16 %v203
      %v261 = vunpack.c.l.b16 %v204
      %v262 = vunpack.c.l.b16 %v205
      %v263 = vunpack.c.l.b16 %v206
      %v264 = vunpack.c.l.b16 %v207
      %v265 = vunpack.c.l.b16 %v208
      %v266 = vunpack.c.l.b16 %v209
      %v267 = vunpack.c.l.b16 %v210
      %v268 = vunpack.c.l.b16 %v211
      %v269 = vpack.c.b16 %v254, %v253
      %v270 = vpack.c.b16 %v256, %v255
      %v271 = vpack.c.b16 %v258, %v257
      %v272 = vpack.c.b16 %v260, %v259
      %v273 = vpack.c.b16 %v262, %v261
      %v274 = vpack.c.b16 %v264, %v263
      %v275 = vpack.c.b16 %v266, %v265
      %v276 = vpack.c.b16 %v268, %v267
      %285 = vmatprep.subr.bf16.mxu0 0
      %286 = vmatpush1.bf16.msra.mxu0 %v269
      %287 = vmatprep.subr.bf16.mxu0 0
      %288 = vmatpush1.bf16.msra.mxu0 %v270
      %289 = vmatprep.subr.bf16.mxu0 0
      %290 = vmatpush1.bf16.msra.mxu0 %v271
      %291 = vmatprep.subr.bf16.mxu0 0
      %292 = vmatpush1.bf16.msra.mxu0 %v272
      %293 = vmatprep.subr.bf16.mxu0 0
      %294 = vmatpush1.bf16.msra.mxu0 %v273
      %295 = vmatprep.subr.bf16.mxu0 0
      %296 = vmatpush1.bf16.msra.mxu0 %v274
      %297 = vmatprep.subr.bf16.mxu0 0
      %298 = vmatpush1.bf16.msra.mxu0 %v275
      %299 = vmatprep.subr.bf16.mxu0 0
      %300 = vmatpush1.bf16.msra.mxu0 %v276
      %301 = vmatprep.subr.bf16.mxu0 0
      %302 = vmatpush1.bf16.msra.mxu0 0
      %303 = vmatprep.subr.bf16.mxu0 0
      %304 = vmatpush1.bf16.msra.mxu0 0
      %305 = vmatprep.subr.bf16.mxu0 0
      %306 = vmatpush1.bf16.msra.mxu0 0
      %307 = vmatprep.subr.bf16.mxu0 0
      %308 = vmatpush1.bf16.msra.mxu0 0
      %309 = vmatprep.subr.bf16.mxu0 0
      %310 = vmatpush1.bf16.msra.mxu0 0
      %311 = vmatprep.subr.bf16.mxu0 0
      %312 = vmatpush1.bf16.msra.mxu0 0
      %313 = vmatprep.subr.bf16.mxu0 0
      %314 = vmatpush1.bf16.msra.mxu0 0
      %315 = vmatprep.subr.bf16.mxu0 0
      %316 = vmatpush1.bf16.msra.mxu0 0
      %317 = vmatprep.mubr.bf16.mxu0 0
      %318 = vmatmul.mubr.bf16.gmra.mrb[0].mxu0 %v235
      %v319 = vpop.f32.mrb[0].mxu0
      %v320 = vadd.f32 %v217, %v319
      %v321 = vpop.f32.mrb[0].mxu0
      %v322 = vpop.f32.mrb[0].mxu0
      %v323 = vpop.f32.mrb[0].mxu0
      %324 = vdwg.mxu0
      %v327 = vunpack.c.l.s4 1983009808
      %v328 = vunpack.c.0.s8 %v327
      %v329 = vlaneseq
      %v330 = vshrl.u32 %v329, 7
      %v331 = vsub.s32 %v328, %v330
      %v332 = vrot.slane %v320, %v331
      %v333 = vcombine.high %v332, %v332
      %336 = vst [vmem:[%s189] sm:$0x3] %v332
      %337 = vst [vmem:[%s189 + $0x2] sm:$0x3] %v333
      %s338 = smul.u32 2, %s19
      %p339 = scmp.lt.s32.totalorder %s18, 1
      %s340 = scalar_select %p339, %s18, 1
      %p341 = scmp.lt.s32.totalorder %s338, 1
      %s342 = scalar_select %p341, %s338, 1
      %s343 = smul.addr %s340, 2
      %s344 = sadd.s32 %s342, %s343
      %s345 = smul.addr %s344, 2
      %s346 = scalar_lea.vmem %s3, %s345
      // Predicated region
      $region33: #{cenet_forward.14} parent=31 // pred_check
        %p347 = pneg %p114
      $region34: #{cenet_forward.14} parent=31 // pred_check_branch
        %349 = sbr.rel (%p347) target = $region36
      $region35: #{cenet_forward.14} parent=31 // pred_region
        %s350 = smul.u32 2, %s19
      $region36: #{cenet_forward.14} parent=31 // pred_fallthru
        _
    $region32: #{cenet_forward.14} parent=5 // pred_fallthru
      _
    %p351 = scmp.le.s32.totalorder 2, %s9
    // Predicated region
    $region37: #{cenet_forward.14} parent=5 // pred_check
      %p352 = pneg %p351
    $region38: #{cenet_forward.14} parent=5 // pred_check_branch
      %354 = sbr.rel (%p352) target = $region40
    $region39: #{cenet_forward.14} parent=5 // pred_region
      %s355 = ssub.s32 %s9, 2
      // Predicated region
      $region41: #{cenet_forward.14} parent=39 // pred_check
        %p356 = pneg %p120
      $region42: #{cenet_forward.14} parent=39 // pred_check_branch
        %358 = sbr.rel (%p356) target = $region44
      $region43: #{cenet_forward.14} parent=39 // pred_region
        %s359 = smul.u32 2, %s21
        %p360 = scmp.lt.s32.totalorder %s20, 1
        %s361 = scalar_select %p360, %s20, 1
        %p362 = scmp.lt.s32.totalorder %s359, 1
        %s363 = scalar_select %p362, %s359, 1
        %s364 = smul.addr %s361, 2
        %s365 = sadd.s32 %s363, %s364
        %s366 = smul.addr %s365, 2
        %s367 = scalar_lea.vmem %s3, %s366
      $region44: #{cenet_forward.14} parent=39 // pred_fallthru
        _
    $region40: #{cenet_forward.14} parent=5 // pred_fallthru
      _
  $region6: #{cenet_forward.14} parent=0 // loop_footer
    %s13 = sadd.s32 1, %s9
  $region7: #{cenet_forward.14} parent=0 // loop_footer_branch
    %8 = sbr.rel target = $region3
  $region8: #{cenet_forward.14} parent=0 // loop_exit
    _

// kernel: cenet_forward.12
$region0: #{cenet_forward.12}
  #allocation0 [shape = 'u32[]', space=smem, size = 0x4, offset = 0x4, fixed_abs, tag = 'smem constant byte address 0x4 - core index']
  #allocation1 [shape = 'u32[144,128]{1,0:T(1,128)}', space=vmem, size = 0x12000, scoped, tag = 'internal scratch']
  #allocation2 [shape = 'bf16[4,1152]{1,0:T(4,128)(2,1)}', space=vmem, size = 0x2400, scoped, tag = 'scratch operand']
  %s0 = inlined_call_operand.vmem [shape: bf16[2,4,4,128], index: 0, kind: input, shape index: {}]
  %s1 = inlined_call_operand.vmem [shape: bf16[1152,128], index: 1, kind: input, shape index: {}]
  %s2 = inlined_call_operand.vmem [shape: f32[1,128], index: 2, kind: input, shape index: {}]
  %s3 = inlined_call_operand.vmem [shape: bf16[2,2,2,128], index: 3, kind: output, shape index: {}]
  %s4 = sld [smem:[#allocation0]]
  $region45: #{cenet_forward.12} parent=0
    _
  %s6 = ssub.s32 1, %s4
  %s7 = scalar_select 0, %s6, %s4
  loop: start=0, step=1, limit=4
  $region2: #{cenet_forward.12} parent=0 // loop_pre_header
    _
  $region3: #{cenet_forward.12} parent=0 // loop_header
    %s9 = sphi 0, %s13
    %p10 = scmp.ge.s32.totalorder %s9, 4
    %s16 = sphi 0, %s28
    %s17 = sphi 0, %s24
    %s18 = sphi 0, %s16
    %s19 = sphi 0, %s17
    %s20 = sphi 0, %s18
    %s21 = sphi 0, %s19
    %s31 = sphi 0, %s33
    %s34 = sphi 0, %s31
    %s35 = sphi 0, %s34
    %s51 = sphi 0, %s35
    %s55 = sphi 0, %s55
    %s57 = sphi 0, %s55
    %s58 = sphi 0, %s57
    %s72 = sphi 0, %s58
    %s76 = sphi 0, %s76
    %s78 = sphi 0, %s76
    %s79 = sphi 0, %s78
    %s93 = sphi 0, %s79
    %s101 = sphi 0, %s103
    %s104 = sphi 0, %s101
    %s105 = sphi 0, %s104
    %s121 = sphi 0, %s105
  $region4: #{cenet_forward.12} parent=0 // loop_header_branch
    %12 = sbr.rel (%p10) target = $region8
  $region5: #{cenet_forward.12} parent=0 // loop_body
    %s14 = ssub.s32 %s9, 1
    %s15 = ssub.s32 %s9, 2
    %s22 = sadd.s32 1, %s17
    %p23 = scmp.ge.s32.totalorder %s22, 1
    %s24 = scalar_select %p23, 0, %s22
    %s25 = sadd.s32 1, %s16
    %s26 = scalar_select %p23, %s25, %s16
    %p27 = scmp.ge.s32.totalorder %s26, 2
    %s28 = scalar_select %p27, 0, %s26
    %s29 = ssub.s32 %s16, %s28
    %p30 = scmp.eq.s32.totalorder %s29, 0
    %s32 = sadd.s32 %s31, 1
    %s33 = scalar_select %p30, %s31, %s32
    %p36 = pneg %p30
    %p37 = scmp.eq.s32.totalorder %s9, 1
    %p38 = por %p36, %p37
    %p39 = scmp.ne.s32.totalorder %s31, %s34
    %p40 = scmp.eq.s32.totalorder %s9, 0
    %p41 = por %p39, %p40
    %p42 = scmp.ne.s32.totalorder %s31, %s34
    %p43 = scmp.eq.s32.totalorder %s14, 1
    %p44 = por %p42, %p43
    %p45 = scmp.ne.s32.totalorder %s34, %s35
    %p46 = scmp.eq.s32.totalorder %s14, 0
    %p47 = por %p45, %p46
    %p48 = scmp.ne.s32.totalorder %s34, %s35
    %p49 = scmp.eq.s32.totalorder %s15, 1
    %p50 = por %p48, %p49
    %p52 = scmp.ne.s32.totalorder %s35, %s51
    %p53 = scmp.eq.s32.totalorder %s15, 0
    %p54 = por %p52, %p53
    %s56 = sadd.s32 %s55, 1
    %p59 = scmp.eq.s32.totalorder %s9, 1
    %p60 = scmp.ne.s32.totalorder %s55, %s57
    %p61 = scmp.eq.s32.totalorder %s9, 0
    %p62 = por %p60, %p61
    %p63 = scmp.ne.s32.totalorder %s55, %s57
    %p64 = scmp.eq.s32.totalorder %s14, 1
    %p65 = por %p63, %p64
    %p66 = scmp.ne.s32.totalorder %s57, %s58
    %p67 = scmp.eq.s32.totalorder %s14, 0
    %p68 = por %p66, %p67
    %p69 = scmp.ne.s32.totalorder %s57, %s58
    %p70 = scmp.eq.s32.totalorder %s15, 1
    %p71 = por %p69, %p70
    %p73 = scmp.ne.s32.totalorder %s58, %s72
    %p74 = scmp.eq.s32.totalorder %s15, 0
    %p75 = por %p73, %p74
    %s77 = sadd.s32 %s76, 1
    %p80 = scmp.eq.s32.totalorder %s9, 1
    %p81 = scmp.ne.s32.totalorder %s76, %s78
    %p82 = scmp.eq.s32.totalorder %s9, 0
    %p83 = por %p81, %p82
    %p84 = scmp.ne.s32.totalorder %s76, %s78
    %p85 = scmp.eq.s32.totalorder %s14, 1
    %p86 = por %p84, %p85
    %p87 = scmp.ne.s32.totalorder %s78, %s79
    %p88 = scmp.eq.s32.totalorder %s14, 0
    %p89 = por %p87, %p88
    %p90 = scmp.ne.s32.totalorder %s78, %s79
    %p91 = scmp.eq.s32.totalorder %s15, 1
    %p92 = por %p90, %p91
    %p94 = scmp.ne.s32.totalorder %s79, %s93
    %p95 = scmp.eq.s32.totalorder %s15, 0
    %p96 = por %p94, %p95
    %s97 = ssub.s32 %s16, %s28
    %s98 = ssub.s32 %s17, %s24
    %s99 = sor.u32 %s97, %s98
    %p100 = scmp.eq.s32.totalorder %s99, 0
    %s102 = sadd.s32 %s101, 1
    %s103 = scalar_select %p100, %s101, %s102
    %p106 = pneg %p100
    %p107 = scmp.eq.s32.totalorder %s9, 1
    %p108 = por %p106, %p107
    %p109 = scmp.ne.s32.totalorder %s101, %s104
    %p110 = scmp.eq.s32.totalorder %s9, 0
    %p111 = por %p109, %p110
    %p112 = scmp.ne.s32.totalorder %s101, %s104
    %p113 = scmp.eq.s32.totalorder %s14, 1
    %p114 = por %p112, %p113
    %p115 = scmp.ne.s32.totalorder %s104, %s105
    %p116 = scmp.eq.s32.totalorder %s14, 0
    %p117 = por %p115, %p116
    %p118 = scmp.ne.s32.totalorder %s104, %s105
    %p119 = scmp.eq.s32.totalorder %s15, 1
    %p120 = por %p118, %p119
    %p122 = scmp.ne.s32.totalorder %s105, %s121
    %p123 = scmp.eq.s32.totalorder %s15, 0
    %p124 = por %p122, %p123
    %p125 = scmp.le.s32.totalorder 1, %s9
    %p126 = scmp.lt.s32.totalorder %s9, 3
    %p127 = pnand %p125, %p126
    %p128 = pneg %p127
    // Predicated region
    $region9: #{cenet_forward.12} parent=5 // pred_check
      _
    $region10: #{cenet_forward.12} parent=5 // pred_check_branch
      %130 = sbr.rel (%p127) target = $region12
    $region11: #{cenet_forward.12} parent=5 // pred_region
      %s131 = ssub.s32 %s9, 1
      // Predicated region
      $region13: #{cenet_forward.12} parent=11 // pred_check
        %p132 = pneg %p68
      $region14: #{cenet_forward.12} parent=11 // pred_check_branch
        %134 = sbr.rel (%p132) target = $region16
      $region15: #{cenet_forward.12} parent=11 // pred_region
        _
      $region16: #{cenet_forward.12} parent=11 // pred_fallthru
        _
      // Predicated region
      $region17: #{cenet_forward.12} parent=11 // pred_check
        %p135 = pneg %p89
      $region18: #{cenet_forward.12} parent=11 // pred_check_branch
        %137 = sbr.rel (%p135) target = $region20
      $region19: #{cenet_forward.12} parent=11 // pred_region
        _
      $region20: #{cenet_forward.12} parent=11 // pred_fallthru
        _
    $region12: #{cenet_forward.12} parent=5 // pred_fallthru
      _
    %p138 = scmp.lt.s32.totalorder %s9, 2
    // Predicated region
    $region21: #{cenet_forward.12} parent=5 // pred_check
      %p139 = pneg %p138
    $region22: #{cenet_forward.12} parent=5 // pred_check_branch
      %141 = sbr.rel (%p139) target = $region24
    $region23: #{cenet_forward.12} parent=5 // pred_region
      // Predicated region
      $region25: #{cenet_forward.12} parent=23 // pred_check
        %p142 = pneg %p41
      $region26: #{cenet_forward.12} parent=23 // pred_check_branch
        %144 = sbr.rel (%p142) target = $region28
      $region27: #{cenet_forward.12} parent=23 // pred_region
        %p145 = scmp.lt.s32.totalorder %s16, 1
        %s146 = scalar_select %p145, %s16, 1
        %s147 = smul.addr %s146, 4
        %s148 = smul.addr %s147, 2
        %s149 = scalar_lea.vmem %s0, %s148
      $region28: #{cenet_forward.12} parent=23 // pred_fallthru
        _
    $region24: #{cenet_forward.12} parent=5 // pred_fallthru
      _
    %p150 = scmp.le.s32.totalorder 1, %s9
    %p151 = scmp.lt.s32.totalorder %s9, 3
    %p152 = pnand %p150, %p151
    %p153 = pneg %p152
    // Predicated region
    $region29: #{cenet_forward.12} parent=5 // pred_check
      _
    $region30: #{cenet_forward.12} parent=5 // pred_check_branch
      %155 = sbr.rel (%p152) target = $region32
    $region31: #{cenet_forward.12} parent=5 // pred_region
      %s156 = ssub.s32 %s9, 1
      %p157 = scmp.lt.s32.totalorder %s18, 1
      %s158 = scalar_select %p157, %s18, 1
      %s159 = smul.addr %s158, 4
      %s160 = smul.addr %s159, 2
      %s161 = scalar_lea.vmem %s0, %s160
      %p162 = pneg %p47
      %p163 = pneg %p44
      %p164 = pneg %p68
      %p165 = pneg %p65
      %p166 = pneg %p89
      %p167 = pneg %p86
      %p168 = pneg %p117
      %p169 = pneg %p114
      %s170 = smul.u32 2, %s19
      %p171 = scmp.lt.s32.totalorder %s18, 1
      %s172 = scalar_select %p171, %s18, 1
      %p173 = scmp.lt.s32.totalorder %s170, 1
      %s174 = scalar_select %p173, %s170, 1
      %s175 = smul.addr %s172, 2
      %s176 = sadd.s32 %s174, %s175
      %s177 = scalar_lea.vmem %s3, %s176
      %p178 = scmp.lt.s32.totalorder %s18, 1
      %s179 = scalar_select %p178, %s18, 1
      %s180 = smul.addr %s179, 4
      %s181 = smul.addr %s180, 2
      %s182 = scalar_lea.vmem %s0, %s181
      %s183 = smul.u32 2, %s19
      %p184 = scmp.lt.s32.totalorder %s18, 1
      %s185 = scalar_select %p184, %s18, 1
      %p186 = scmp.lt.s32.totalorder %s183, 1
      %s187 = scalar_select %p186, %s183, 1
      %s188 = smul.addr %s185, 2
      %s189 = sadd.s32 %s187, %s188
      %s190 = scalar_lea.vmem %s3, %s189
      %s191 = smul.u32 2, %s19
      %s193 = smul.u32 %s19, 2
      %s194 = smul.addr %s193, 2
      %s195 = scalar_lea.vmem %s182, %s194
      %v196 = vld [vmem:[%s195] sm:$0x3]
      %v197 = vld [vmem:[%s195 + $0x2] sm:$0x3]
      %v198 = vld [vmem:[%s195 + $0x4] sm:$0x3]
      %v199 = vld [vmem:[%s195 + $0x6] sm:$0x3]
      %v202 = vcombine.low %v196, %v197
      %v204 = vunpack.c.l.s4 1935823168
      %v205 = vunpack.c.0.s8 %v204
      %v206 = vlaneseq
      %v207 = vshrl.u32 %v206, 7
      %v208 = vsub.s32 %v205, %v207
      %v209 = vrot.slane %v202, %v208
      %211 = vst [vmem:[#allocation2] sm:$0x3] %v209
      %v213 = vunpack.c.l.s4 1966171168
      %v214 = vunpack.c.0.s8 %v213
      %v215 = vlaneseq
      %v216 = vshrl.u32 %v215, 7
      %v217 = vsub.s32 %v214, %v216
      %v218 = vrot.slane %v196, %v217
      %v219 = vcombine.high %v218, %v218
      %v221 = vunpack.c.l.s4 1966171168
      %v222 = vunpack.c.0.s8 %v221
      %v223 = vlaneseq
      %v224 = vshrl.u32 %v223, 7
      %v225 = vsub.s32 %v222, %v224
      %v226 = vrot.slane %v197, %v225
      %v227 = vcombine.high %v226, %v226
      %vm228 = vsmask.f32 256
      %vm229 = vsmask.f32 1284
      %vm230 = vmor %vm228, %vm229
      %vm231 = vsmask.f32 2312
      %vm232 = vmor %vm230, %vm231
      %vm233 = vsmask.f32 3340
      %vm234 = vmor %vm232, %vm233
      %vm235 = vsmask.f32 4368
      %vm236 = vmor %vm234, %vm235
      %vm237 = vsmask.f32 5396
      %vm238 = vmor %vm236, %vm237
      %vm239 = vsmask.f32 6424
      %vm240 = vmor %vm238, %vm239
      %vm241 = vsmask.f32 7452
      %vm242 = vmor %vm240, %vm241
      %v244 = vshrl.u32 %v218, 16
      %v246 = vrot.slane %v244, 7
      %v247 = vrot.slane %v246, 1
      %v249 = vshll.u32 %v219, 16
      %v251 = vsel %vm242, %v247, %v249
      %v253 = vshrl.u32 %v226, 16
      %v255 = vrot.slane %v253, 7
      %v256 = vrot.slane %v255, 1
      %v258 = vshll.u32 %v227, 16
      %v260 = vsel %vm242, %v256, %v258
      %v261 = vcombine.low %v251, %v260
      %v263 = vunpack.c.l.s4 1935823168
      %v264 = vunpack.c.0.s8 %v263
      %v265 = vlaneseq
      %v266 = vshrl.u32 %v265, 7
      %v267 = vsub.s32 %v264, %v266
      %v268 = vrot.slane %v261, %v267
      %270 = vst [vmem:[#allocation2 + $0x2] sm:$0x3] %v268
      %v271 = vcombine.low %v219, %v227
      %v273 = vunpack.c.l.s4 1935823168
      %v274 = vunpack.c.0.s8 %v273
      %v275 = vlaneseq
      %v276 = vshrl.u32 %v275, 7
      %v277 = vsub.s32 %v274, %v276
      %v278 = vrot.slane %v271, %v277
      %280 = vst [vmem:[#allocation2 + $0x4] sm:$0x3] %v278
      %v282 = vcombine.low %v197, %v198
      %v284 = vunpack.c.l.s4 1935823168
      %v285 = vunpack.c.0.s8 %v284
      %v286 = vlaneseq
      %v287 = vshrl.u32 %v286, 7
      %v288 = vsub.s32 %v285, %v287
      %v289 = vrot.slane %v282, %v288
      %291 = vst [vmem:[#allocation2 + $0x6] sm:$0x3] %v289
      %v293 = vunpack.c.l.s4 1966171168
      %v294 = vunpack.c.0.s8 %v293
      %v295 = vlaneseq
      %v296 = vshrl.u32 %v295, 7
      %v297 = vsub.s32 %v294, %v296
      %v298 = vrot.slane %v198, %v297
      %v299 = vcombine.high %v298, %v298
      %v301 = vshrl.u32 %v298, 16
      %v303 = vrot.slane %v301, 7
      %v304 = vrot.slane %v303, 1
      %v306 = vshll.u32 %v299, 16
      %v308 = vsel %vm242, %v304, %v306
      %v309 = vcombine.low %v260, %v308
      %v311 = vunpack.c.l.s4 1935823168
      %v312 = vunpack.c.0.s8 %v311
      %v313 = vlaneseq
      %v314 = vshrl.u32 %v313, 7
      %v315 = vsub.s32 %v312, %v314
      %v316 = vrot.slane %v309, %v315
      %318 = vst [vmem:[#allocation2 + $0x8] sm:$0x3] %v316
      %v319 = vcombine.low %v227, %v299
      %v321 = vunpack.c.l.s4 1935823168
      %v322 = vunpack.c.0.s8 %v321
      %v323 = vlaneseq
      %v324 = vshrl.u32 %v323, 7
      %v325 = vsub.s32 %v322, %v324
      %v326 = vrot.slane %v319, %v325
      %328 = vst [vmem:[#allocation2 + $0xa] sm:$0x3] %v326
      %v330 = vcombine.low %v198, %v199
      %v332 = vunpack.c.l.s4 1935823168
      %v333 = vunpack.c.0.s8 %v332
      %v334 = vlaneseq
      %v335 = vshrl.u32 %v334, 7
      %v336 = vsub.s32 %v333, %v335
      %v337 = vrot.slane %v330, %v336
      %339 = vst [vmem:[#allocation2 + $0xc] sm:$0x3] %v337
      %v341 = vunpack.c.l.s4 1966171168
      %v342 = vunpack.c.0.s8 %v341
      %v343 = vlaneseq
      %v344 = vshrl.u32 %v343, 7
      %v345 = vsub.s32 %v342, %v344
      %v346 = vrot.slane %v199, %v345
      %v347 = vcombine.high %v346, %v346
      %v349 = vshrl.u32 %v346, 16
      %v351 = vrot.slane %v349, 7
      %v352 = vrot.slane %v351, 1
      %v354 = vshll.u32 %v347, 16
      %v356 = vsel %vm242, %v352, %v354
      %v357 = vcombine.low %v308, %v356
      %v359 = vunpack.c.l.s4 1935823168
      %v360 = vunpack.c.0.s8 %v359
      %v361 = vlaneseq
      %v362 = vshrl.u32 %v361, 7
      %v363 = vsub.s32 %v360, %v362
      %v364 = vrot.slane %v357, %v363
      %366 = vst [vmem:[#allocation2 + $0xe] sm:$0x3] %v364
      %v367 = vcombine.low %v299, %v347
      %v369 = vunpack.c.l.s4 1935823168
      %v370 = vunpack.c.0.s8 %v369
      %v371 = vlaneseq
      %v372 = vshrl.u32 %v371, 7
      %v373 = vsub.s32 %v370, %v372
      %v374 = vrot.slane %v367, %v373
      %376 = vst [vmem:[#allocation2 + $0x10] sm:$0x3] %v374
      %v377 = vld [vmem:[#allocation2] sm:$0xff]
      %v378 = vld [vmem:[#allocation2 + $0x8] sm:$0xff]
      %v379 = vld [vmem:[#allocation2 + $0x10] sm:$0x3]
      %v380 = vld [vmem:[%s1] sm:$0xf]
      %v381 = vld [vmem:[%s1 + $0x4] sm:$0xf]
      %v382 = vld [vmem:[%s1 + $0x8] sm:$0xf]
      %v383 = vld [vmem:[%s1 + $0xc] sm:$0xf]
      %v384 = vld [vmem:[%s1 + $0x10] sm:$0xf]
      %v385 = vld [vmem:[%s1 + $0x14] sm:$0xf]
      %v386 = vld [vmem:[%s1 + $0x18] sm:$0xf]
      %v387 = vld [vmem:[%s1 + $0x1c] sm:$0xf]
      %v388 = vld [vmem:[%s1 + $0x20] sm:$0xf]
      %v389 = vld [vmem:[%s1 + $0x24] sm:$0xf]
      %v390 = vld [vmem:[%s1 + $0x28] sm:$0xf]
      %v391 = vld [vmem:[%s1 + $0x2c] sm:$0xf]
      %v392 = vld [vmem:[%s1 + $0x30] sm:$0xf]
      %v393 = vld [vmem:[%s1 + $0x34] sm:$0xf]
      %v394 = vld [vmem:[%s1 + $0x38] sm:$0xf]
      %v395 = vld [vmem:[%s1 + $0x3c] sm:$0xf]
      %v396 = vld [vmem:[%s1 + $0x40] sm:$0xf]
      %v397 = vld [vmem:[%s1 + $0x44] sm:$0xf]
      %v398 = vld [vmem:[%s1 + $0x48] sm:$0xf]
      %v399 = vld [vmem:[%s1 + $0x4c] sm:$0xf]
      %v400 = vld [vmem:[%s1 + $0x50] sm:$0xf]
      %v401 = vld [vmem:[%s1 + $0x54] sm:$0xf]
      %v402 = vld [vmem:[%s1 + $0x58] sm:$0xf]
      %v403 = vld [vmem:[%s1 + $0x5c] sm:$0xf]
      %v404 = vld [vmem:[%s1 + $0x60] sm:$0xf]
      %v405 = vld [vmem:[%s1 + $0x64] sm:$0xf]
      %v406 = vld [vmem:[%s1 + $0x68] sm:$0xf]
      %v407 = vld [vmem:[%s1 + $0x6c] sm:$0xf]
      %v408 = vld [vmem:[%s1 + $0x70] sm:$0xf]
      %v409 = vld [vmem:[%s1 + $0x74] sm:$0xf]
      %v410 = vld [vmem:[%s1 + $0x78] sm:$0xf]
      %v411 = vld [vmem:[%s1 + $0x7c] sm:$0xf]
      %v412 = vld [vmem:[%s1 + $0x80] sm:$0xf]
      %v413 = vld [vmem:[%s1 + $0x84] sm:$0xf]
      %v414 = vld [vmem:[%s1 + $0x88] sm:$0xf]
      %v415 = vld [vmem:[%s1 + $0x8c] sm:$0xf]
      %v416 = vld [vmem:[%s1 + $0x90] sm:$0xf]
      %v417 = vld [vmem:[%s1 + $0x94] sm:$0xf]
      %v418 = vld [vmem:[%s1 + $0x98] sm:$0xf]
      %v419 = vld [vmem:[%s1 + $0x9c] sm:$0xf]
      %v420 = vld [vmem:[%s1 + $0xa0] sm:$0xf]
      %v421 = vld [vmem:[%s1 + $0xa4] sm:$0xf]
      %v422 = vld [vmem:[%s1 + $0xa8] sm:$0xf]
      %v423 = vld [vmem:[%s1 + $0xac] sm:$0xf]
      %v424 = vld [vmem:[%s1 + $0xb0] sm:$0xf]
      %v425 = vld [vmem:[%s1 + $0xb4] sm:$0xf]
      %v426 = vld [vmem:[%s1 + $0xb8] sm:$0xf]
      %v427 = vld [vmem:[%s1 + $0xbc] sm:$0xf]
      %v428 = vld [vmem:[%s1 + $0xc0] sm:$0xf]
      %v429 = vld [vmem:[%s1 + $0xc4] sm:$0xf]
      %v430 = vld [vmem:[%s1 + $0xc8] sm:$0xf]
      %v431 = vld [vmem:[%s1 + $0xcc] sm:$0xf]
      %v432 = vld [vmem:[%s1 + $0xd0] sm:$0xf]
      %v433 = vld [vmem:[%s1 + $0xd4] sm:$0xf]
      %v434 = vld [vmem:[%s1 + $0xd8] sm:$0xf]
      %v435 = vld [vmem:[%s1 + $0xdc] sm:$0xf]
      %v436 = vld [vmem:[%s1 + $0xe0] sm:$0xf]
      %v437 = vld [vmem:[%s1 + $0xe4] sm:$0xf]
      %v438 = vld [vmem:[%s1 + $0xe8] sm:$0xf]
      %v439 = vld [vmem:[%s1 + $0xec] sm:$0xf]
      %v440 = vld [vmem:[%s1 + $0xf0] sm:$0xf]
      %v441 = vld [vmem:[%s1 + $0xf4] sm:$0xf]
      %v442 = vld [vmem:[%s1 + $0xf8] sm:$0xf]
      %v443 = vld [vmem:[%s1 + $0xfc] sm:$0xf]
      %v444 = vld [vmem:[%s1 + $0x100] sm:$0xf]
      %v445 = vld [vmem:[%s1 + $0x104] sm:$0xf]
      %v446 = vld [vmem:[%s1 + $0x108] sm:$0xf]
      %v447 = vld [vmem:[%s1 + $0x10c] sm:$0xf]
      %v448 = vld [vmem:[%s1 + $0x110] sm:$0xf]
      %v449 = vld [vmem:[%s1 + $0x114] sm:$0xf]
      %v450 = vld [vmem:[%s1 + $0x118] sm:$0xf]
      %v451 = vld [vmem:[%s1 + $0x11c] sm:$0xf]
      %v452 = vld [vmem:[%s1 + $0x120] sm:$0xf]
      %v453 = vld [vmem:[%s1 + $0x124] sm:$0xf]
      %v454 = vld [vmem:[%s1 + $0x128] sm:$0xf]
      %v455 = vld [vmem:[%s1 + $0x12c] sm:$0xf]
      %v456 = vld [vmem:[%s1 + $0x130] sm:$0xf]
      %v457 = vld [vmem:[%s1 + $0x134] sm:$0xf]
      %v458 = vld [vmem:[%s1 + $0x138] sm:$0xf]
      %v459 = vld [vmem:[%s1 + $0x13c] sm:$0xf]
      %v460 = vld [vmem:[%s1 + $0x140] sm:$0xf]
      %v461 = vld [vmem:[%s1 + $0x144] sm:$0xf]
      %v462 = vld [vmem:[%s1 + $0x148] sm:$0xf]
      %v463 = vld [vmem:[%s1 + $0x14c] sm:$0xf]
      %v464 = vld [vmem:[%s1 + $0x150] sm:$0xf]
      %v465 = vld [vmem:[%s1 + $0x154] sm:$0xf]
      %v466 = vld [vmem:[%s1 + $0x158] sm:$0xf]
      %v467 = vld [vmem:[%s1 + $0x15c] sm:$0xf]
      %v468 = vld [vmem:[%s1 + $0x160] sm:$0xf]
      %v469 = vld [vmem:[%s1 + $0x164] sm:$0xf]
      %v470 = vld [vmem:[%s1 + $0x168] sm:$0xf]
      %v471 = vld [vmem:[%s1 + $0x16c] sm:$0xf]
      %v472 = vld [vmem:[%s1 + $0x170] sm:$0xf]
      %v473 = vld [vmem:[%s1 + $0x174] sm:$0xf]
      %v474 = vld [vmem:[%s1 + $0x178] sm:$0xf]
      %v475 = vld [vmem:[%s1 + $0x17c] sm:$0xf]
      %v476 = vld [vmem:[%s1 + $0x180] sm:$0xf]
      %v477 = vld [vmem:[%s1 + $0x184] sm:$0xf]
      %v478 = vld [vmem:[%s1 + $0x188] sm:$0xf]
      %v479 = vld [vmem:[%s1 + $0x18c] sm:$0xf]
      %v480 = vld [vmem:[%s1 + $0x190] sm:$0xf]
      %v481 = vld [vmem:[%s1 + $0x194] sm:$0xf]
      %v482 = vld [vmem:[%s1 + $0x198] sm:$0xf]
      %v483 = vld [vmem:[%s1 + $0x19c] sm:$0xf]
      %v484 = vld [vmem:[%s1 + $0x1a0] sm:$0xf]
      %v485 = vld [vmem:[%s1 + $0x1a4] sm:$0xf]
      %v486 = vld [vmem:[%s1 + $0x1a8] sm:$0xf]
      %v487 = vld [vmem:[%s1 + $0x1ac] sm:$0xf]
      %v488 = vld [vmem:[%s1 + $0x1b0] sm:$0xf]
      %v489 = vld [vmem:[%s1 + $0x1b4] sm:$0xf]
      %v490 = vld [vmem:[%s1 + $0x1b8] sm:$0xf]
      %v491 = vld [vmem:[%s1 + $0x1bc] sm:$0xf]
      %v492 = vld [vmem:[%s1 + $0x1c0] sm:$0xf]
      %v493 = vld [vmem:[%s1 + $0x1c4] sm:$0xf]
      %v494 = vld [vmem:[%s1 + $0x1c8] sm:$0xf]
      %v495 = vld [vmem:[%s1 + $0x1cc] sm:$0xf]
      %v496 = vld [vmem:[%s1 + $0x1d0] sm:$0xf]
      %v497 = vld [vmem:[%s1 + $0x1d4] sm:$0xf]
      %v498 = vld [vmem:[%s1 + $0x1d8] sm:$0xf]
      %v499 = vld [vmem:[%s1 + $0x1dc] sm:$0xf]
      %v500 = vld [vmem:[%s1 + $0x1e0] sm:$0xf]
      %v501 = vld [vmem:[%s1 + $0x1e4] sm:$0xf]
      %v502 = vld [vmem:[%s1 + $0x1e8] sm:$0xf]
      %v503 = vld [vmem:[%s1 + $0x1ec] sm:$0xf]
      %v504 = vld [vmem:[%s1 + $0x1f0] sm:$0xf]
      %v505 = vld [vmem:[%s1 + $0x1f4] sm:$0xf]
      %v506 = vld [vmem:[%s1 + $0x1f8] sm:$0xf]
      %v507 = vld [vmem:[%s1 + $0x1fc] sm:$0xf]
      %v508 = vld [vmem:[%s1 + $0x200] sm:$0xf]
      %v509 = vld [vmem:[%s1 + $0x204] sm:$0xf]
      %v510 = vld [vmem:[%s1 + $0x208] sm:$0xf]
      %v511 = vld [vmem:[%s1 + $0x20c] sm:$0xf]
      %v512 = vld [vmem:[%s1 + $0x210] sm:$0xf]
      %v513 = vld [vmem:[%s1 + $0x214] sm:$0xf]
      %v514 = vld [vmem:[%s1 + $0x218] sm:$0xf]
      %v515 = vld [vmem:[%s1 + $0x21c] sm:$0xf]
      %v516 = vld [vmem:[%s1 + $0x220] sm:$0xf]
      %v517 = vld [vmem:[%s1 + $0x224] sm:$0xf]
      %v518 = vld [vmem:[%s1 + $0x228] sm:$0xf]
      %v519 = vld [vmem:[%s1 + $0x22c] sm:$0xf]
      %v520 = vld [vmem:[%s1 + $0x230] sm:$0xf]
      %v521 = vld [vmem:[%s1 + $0x234] sm:$0xf]
      %v522 = vld [vmem:[%s1 + $0x238] sm:$0xf]
      %v523 = vld [vmem:[%s1 + $0x23c] sm:$0xf]
      %v524 = vld [vmem:[%s2] sm:$0x1]
      %v526 = vlaneseq
      %v527 = vshrl.u32 %v526, 7
      %v528 = vsub.s32 0, %v527
      %v529 = vrot.slane %v524, %v528
      %v534 = vcombine.high %v377, %v377
      %v536 = vunpack.c.l.s4 1983009808
      %v537 = vunpack.c.0.s8 %v536
      %v538 = vlaneseq
      %v539 = vshrl.u32 %v538, 7
      %v540 = vsub.s32 %v537, %v539
      %v541 = vrot.slane %v377, %v540
      %v543 = vunpack.c.l.s4 1983009808
      %v544 = vunpack.c.0.s8 %v543
      %v545 = vlaneseq
      %v546 = vshrl.u32 %v545, 7
      %v547 = vsub.s32 %v544, %v546
      %v548 = vrot.slane %v534, %v547
      %v549 = vcombine.high %v541, %v541
      %v550 = vcombine.high %v548, %v548
      %v551 = vcombine.high %v378, %v378
      %v553 = vunpack.c.l.s4 1983009808
      %v554 = vunpack.c.0.s8 %v553
      %v555 = vlaneseq
      %v556 = vshrl.u32 %v555, 7
      %v557 = vsub.s32 %v554, %v556
      %v558 = vrot.slane %v378, %v557
      %v560 = vunpack.c.l.s4 1983009808
      %v561 = vunpack.c.0.s8 %v560
      %v562 = vlaneseq
      %v563 = vshrl.u32 %v562, 7
      %v564 = vsub.s32 %v561, %v563
      %v565 = vrot.slane %v551, %v564
      %v566 = vcombine.high %v558, %v558
      %v567 = vcombine.high %v565, %v565
      %v569 = vunpack.c.l.s4 1983009808
      %v570 = vunpack.c.0.s8 %v569
      %v571 = vlaneseq
      %v572 = vshrl.u32 %v571, 7
      %v573 = vsub.s32 %v570, %v572
      %v574 = vrot.slane %v379, %v573
      %v728 = vunpack.c.l.b16 %v380
      %v729 = vunpack.c.l.b16 %v381
      %v730 = vunpack.c.l.b16 %v382
      %v731 = vunpack.c.l.b16 %v383
      %v732 = vunpack.c.l.b16 %v384
      %v733 = vunpack.c.l.b16 %v385
      %v734 = vunpack.c.l.b16 %v386
      %v735 = vunpack.c.l.b16 %v387
      %v736 = vunpack.c.l.b16 %v388
      %v737 = vunpack.c.l.b16 %v389
      %v738 = vunpack.c.l.b16 %v390
      %v739 = vunpack.c.l.b16 %v391
      %v740 = vunpack.c.l.b16 %v392
      %v741 = vunpack.c.l.b16 %v393
      %v742 = vunpack.c.l.b16 %v394
      %v743 = vunpack.c.l.b16 %v395
      %v744 = vunpack.c.l.b16 %v396
      %v745 = vunpack.c.l.b16 %v397
      %v746 = vunpack.c.l.b16 %v398
      %v747 = vunpack.c.l.b16 %v399
      %v748 = vunpack.c.l.b16 %v400
      %v749 = vunpack.c.l.b16 %v401
      %v750 = vunpack.c.l.b16 %v402
      %v751 = vunpack.c.l.b16 %v403
      %v752 = vunpack.c.l.b16 %v404
      %v753 = vunpack.c.l.b16 %v405
      %v754 = vunpack.c.l.b16 %v406
      %v755 = vunpack.c.l.b16 %v407
      %v756 = vunpack.c.l.b16 %v408
      %v757 = vunpack.c.l.b16 %v409
      %v758 = vunpack.c.l.b16 %v410
      %v759 = vunpack.c.l.b16 %v411
      %v760 = vunpack.c.l.b16 %v412
      %v761 = vunpack.c.l.b16 %v413
      %v762 = vunpack.c.l.b16 %v414
      %v763 = vunpack.c.l.b16 %v415
      %v764 = vunpack.c.l.b16 %v416
      %v765 = vunpack.c.l.b16 %v417
      %v766 = vunpack.c.l.b16 %v418
      %v767 = vunpack.c.l.b16 %v419
      %v768 = vunpack.c.l.b16 %v420
      %v769 = vunpack.c.l.b16 %v421
      %v770 = vunpack.c.l.b16 %v422
      %v771 = vunpack.c.l.b16 %v423
      %v772 = vunpack.c.l.b16 %v424
      %v773 = vunpack.c.l.b16 %v425
      %v774 = vunpack.c.l.b16 %v426
      %v775 = vunpack.c.l.b16 %v427
      %v776 = vunpack.c.l.b16 %v428
      %v777 = vunpack.c.l.b16 %v429
      %v778 = vunpack.c.l.b16 %v430
      %v779 = vunpack.c.l.b16 %v431
      %v780 = vunpack.c.l.b16 %v432
      %v781 = vunpack.c.l.b16 %v433
      %v782 = vunpack.c.l.b16 %v434
      %v783 = vunpack.c.l.b16 %v435
      %v784 = vunpack.c.l.b16 %v436
      %v785 = vunpack.c.l.b16 %v437
      %v786 = vunpack.c.l.b16 %v438
      %v787 = vunpack.c.l.b16 %v439
      %v788 = vunpack.c.l.b16 %v440
      %v789 = vunpack.c.l.b16 %v441
      %v790 = vunpack.c.l.b16 %v442
      %v791 = vunpack.c.l.b16 %v443
      %v792 = vunpack.c.l.b16 %v444
      %v793 = vunpack.c.l.b16 %v445
      %v794 = vunpack.c.l.b16 %v446
      %v795 = vunpack.c.l.b16 %v447
      %v796 = vunpack.c.l.b16 %v448
      %v797 = vunpack.c.l.b16 %v449
      %v798 = vunpack.c.l.b16 %v450
      %v799 = vunpack.c.l.b16 %v451
      %v800 = vunpack.c.l.b16 %v452
      %v801 = vunpack.c.l.b16 %v453
      %v802 = vunpack.c.l.b16 %v454
      %v803 = vunpack.c.l.b16 %v455
      %v804 = vunpack.c.l.b16 %v456
      %v805 = vunpack.c.l.b16 %v457
      %v806 = vunpack.c.l.b16 %v458
      %v807 = vunpack.c.l.b16 %v459
      %v808 = vunpack.c.l.b16 %v460
      %v809 = vunpack.c.l.b16 %v461
      %v810 = vunpack.c.l.b16 %v462
      %v811 = vunpack.c.l.b16 %v463
      %v812 = vunpack.c.l.b16 %v464
      %v813 = vunpack.c.l.b16 %v465
      %v814 = vunpack.c.l.b16 %v466
      %v815 = vunpack.c.l.b16 %v467
      %v816 = vunpack.c.l.b16 %v468
      %v817 = vunpack.c.l.b16 %v469
      %v818 = vunpack.c.l.b16 %v470
      %v819 = vunpack.c.l.b16 %v471
      %v820 = vunpack.c.l.b16 %v472
      %v821 = vunpack.c.l.b16 %v473
      %v822 = vunpack.c.l.b16 %v474
      %v823 = vunpack.c.l.b16 %v475
      %v824 = vunpack.c.l.b16 %v476
      %v825 = vunpack.c.l.b16 %v477
      %v826 = vunpack.c.l.b16 %v478
      %v827 = vunpack.c.l.b16 %v479
      %v828 = vunpack.c.l.b16 %v480
      %v829 = vunpack.c.l.b16 %v481
      %v830 = vunpack.c.l.b16 %v482
      %v831 = vunpack.c.l.b16 %v483
      %v832 = vunpack.c.l.b16 %v484
      %v833 = vunpack.c.l.b16 %v485
      %v834 = vunpack.c.l.b16 %v486
      %v835 = vunpack.c.l.b16 %v487
      %v836 = vunpack.c.l.b16 %v488
      %v837 = vunpack.c.l.b16 %v489
      %v838 = vunpack.c.l.b16 %v490
      %v839 = vunpack.c.l.b16 %v491
      %v840 = vunpack.c.l.b16 %v492
      %v841 = vunpack.c.l.b16 %v493
      %v842 = vunpack.c.l.b16 %v494
      %v843 = vunpack.c.l.b16 %v495
      %v844 = vunpack.c.l.b16 %v496
      %v845 = vunpack.c.l.b16 %v497
      %v846 = vunpack.c.l.b16 %v498
      %v847 = vunpack.c.l.b16 %v499
      %v848 = vunpack.c.l.b16 %v500
      %v849 = vunpack.c.l.b16 %v501
      %v850 = vunpack.c.l.b16 %v502
      %v851 = vunpack.c.l.b16 %v503
      %v852 = vunpack.c.l.b16 %v504
      %v853 = vunpack.c.l.b16 %v505
      %v854 = vunpack.c.l.b16 %v506
      %v855 = vunpack.c.l.b16 %v507
      %v856 = vunpack.c.l.b16 %v508
      %v857 = vunpack.c.l.b16 %v509
      %v858 = vunpack.c.l.b16 %v510
      %v859 = vunpack.c.l.b16 %v511
      %v860 = vunpack.c.l.b16 %v512
      %v861 = vunpack.c.l.b16 %v513
      %v862 = vunpack.c.l.b16 %v514
      %v863 = vunpack.c.l.b16 %v515
      %v864 = vunpack.c.l.b16 %v516
      %v865 = vunpack.c.l.b16 %v517
      %v866 = vunpack.c.l.b16 %v518
      %v867 = vunpack.c.l.b16 %v519
      %v868 = vunpack.c.l.b16 %v520
      %v869 = vunpack.c.l.b16 %v521
      %v870 = vunpack.c.l.b16 %v522
      %v871 = vunpack.c.l.b16 %v523
      %v872 = vpack.c.b16 %v729, %v728
      %v873 = vpack.c.b16 %v731, %v730
      %v874 = vpack.c.b16 %v733, %v732
      %v875 = vpack.c.b16 %v735, %v734
      %v876 = vpack.c.b16 %v737, %v736
      %v877 = vpack.c.b16 %v739, %v738
      %v878 = vpack.c.b16 %v741, %v740
      %v879 = vpack.c.b16 %v743, %v742
      %v880 = vpack.c.b16 %v745, %v744
      %v881 = vpack.c.b16 %v747, %v746
      %v882 = vpack.c.b16 %v749, %v748
      %v883 = vpack.c.b16 %v751, %v750
      %v884 = vpack.c.b16 %v753, %v752
      %v885 = vpack.c.b16 %v755, %v754
      %v886 = vpack.c.b16 %v757, %v756
      %v887 = vpack.c.b16 %v759, %v758
      %v888 = vpack.c.b16 %v761, %v760
      %v889 = vpack.c.b16 %v763, %v762
      %v890 = vpack.c.b16 %v765, %v764
      %v891 = vpack.c.b16 %v767, %v766
      %v892 = vpack.c.b16 %v769, %v768
      %v893 = vpack.c.b16 %v771, %v770
      %v894 = vpack.c.b16 %v773, %v772
      %v895 = vpack.c.b16 %v775, %v774
      %v896 = vpack.c.b16 %v777, %v776
      %v897 = vpack.c.b16 %v779, %v778
      %v898 = vpack.c.b16 %v781, %v780
      %v899 = vpack.c.b16 %v783, %v782
      %v900 = vpack.c.b16 %v785, %v784
      %v901 = vpack.c.b16 %v787, %v786
      %v902 = vpack.c.b16 %v789, %v788
      %v903 = vpack.c.b16 %v791, %v790
      %v904 = vpack.c.b16 %v793, %v792
      %v905 = vpack.c.b16 %v795, %v794
      %v906 = vpack.c.b16 %v797, %v796
      %v907 = vpack.c.b16 %v799, %v798
      %v908 = vpack.c.b16 %v801, %v800
      %v909 = vpack.c.b16 %v803, %v802
      %v910 = vpack.c.b16 %v805, %v804
      %v911 = vpack.c.b16 %v807, %v806
      %v912 = vpack.c.b16 %v809, %v808
      %v913 = vpack.c.b16 %v811, %v810
      %v914 = vpack.c.b16 %v813, %v812
      %v915 = vpack.c.b16 %v815, %v814
      %v916 = vpack.c.b16 %v817, %v816
      %v917 = vpack.c.b16 %v819, %v818
      %v918 = vpack.c.b16 %v821, %v820
      %v919 = vpack.c.b16 %v823, %v822
      %v920 = vpack.c.b16 %v825, %v824
      %v921 = vpack.c.b16 %v827, %v826
      %v922 = vpack.c.b16 %v829, %v828
      %v923 = vpack.c.b16 %v831, %v830
      %v924 = vpack.c.b16 %v833, %v832
      %v925 = vpack.c.b16 %v835, %v834
      %v926 = vpack.c.b16 %v837, %v836
      %v927 = vpack.c.b16 %v839, %v838
      %v928 = vpack.c.b16 %v841, %v840
      %v929 = vpack.c.b16 %v843, %v842
      %v930 = vpack.c.b16 %v845, %v844
      %v931 = vpack.c.b16 %v847, %v846
      %v932 = vpack.c.b16 %v849, %v848
      %v933 = vpack.c.b16 %v851, %v850
      %v934 = vpack.c.b16 %v853, %v852
      %v935 = vpack.c.b16 %v855, %v854
      %v936 = vpack.c.b16 %v857, %v856
      %v937 = vpack.c.b16 %v859, %v858
      %v938 = vpack.c.b16 %v861, %v860
      %v939 = vpack.c.b16 %v863, %v862
      %v940 = vpack.c.b16 %v865, %v864
      %v941 = vpack.c.b16 %v867, %v866
      %v942 = vpack.c.b16 %v869, %v868
      %v943 = vpack.c.b16 %v871, %v870
      %1016 = vmatprep.subr.bf16.mxu0 0
      %1017 = vmatpush1.bf16.msra.mxu0 %v872
      %1018 = vmatprep.subr.bf16.mxu0 0
      %1019 = vmatpush1.bf16.msra.mxu0 %v873
      %1020 = vmatprep.subr.bf16.mxu0 0
      %1021 = vmatpush1.bf16.msra.mxu0 %v874
      %1022 = vmatprep.subr.bf16.mxu0 0
      %1023 = vmatpush1.bf16.msra.mxu0 %v875
      %1024 = vmatprep.subr.bf16.mxu0 0
      %1025 = vmatpush1.bf16.msra.mxu0 %v876
      %1026 = vmatprep.subr.bf16.mxu0 0
      %1027 = vmatpush1.bf16.msra.mxu0 %v877
      %1028 = vmatprep.subr.bf16.mxu0 0
      %1029 = vmatpush1.bf16.msra.mxu0 %v878
      %1030 = vmatprep.subr.bf16.mxu0 0
      %1031 = vmatpush1.bf16.msra.mxu0 %v879
      %1032 = vmatprep.subr.bf16.mxu0 0
      %1033 = vmatpush1.bf16.msra.mxu0 %v880
      %1034 = vmatprep.subr.bf16.mxu0 0
      %1035 = vmatpush1.bf16.msra.mxu0 %v881
      %1036 = vmatprep.subr.bf16.mxu0 0
      %1037 = vmatpush1.bf16.msra.mxu0 %v882
      %1038 = vmatprep.subr.bf16.mxu0 0
      %1039 = vmatpush1.bf16.msra.mxu0 %v883
      %1040 = vmatprep.subr.bf16.mxu0 0
      %1041 = vmatpush1.bf16.msra.mxu0 %v884
      %1042 = vmatprep.subr.bf16.mxu0 0
      %1043 = vmatpush1.bf16.msra.mxu0 %v885
      %1044 = vmatprep.subr.bf16.mxu0 0
      %1045 = vmatpush1.bf16.msra.mxu0 %v886
      %1046 = vmatprep.subr.bf16.mxu0 0
      %1047 = vmatpush1.bf16.msra.mxu0 %v887
      %1048 = vmatprep.mubr.bf16.mxu0 %v549
      %1049 = vmatmul.mubr.bf16.gmra.mrb[0].mxu0 %v541
      %v1050 = vpop.f32.mrb[0].mxu0
      %v1051 = vadd.f32 %v529, %v1050
      %v1052 = vpop.f32.mrb[0].mxu0
      %v1053 = vpop.f32.mrb[0].mxu0
      %v1054 = vpop.f32.mrb[0].mxu0
      %1055 = vdwg.mxu0
      %1056 = vmatprep.subr.bf16.mxu0 0
      %1057 = vmatpush1.bf16.msra.mxu0 %v888
      %1058 = vmatprep.subr.bf16.mxu0 0
      %1059 = vmatpush1.bf16.msra.mxu0 %v889
      %1060 = vmatprep.subr.bf16.mxu0 0
      %1061 = vmatpush1.bf16.msra.mxu0 %v890
      %1062 = vmatprep.subr.bf16.mxu0 0
      %1063 = vmatpush1.bf16.msra.mxu0 %v891
      %1064 = vmatprep.subr.bf16.mxu0 0
      %1065 = vmatpush1.bf16.msra.mxu0 %v892
      %1066 = vmatprep.subr.bf16.mxu0 0
      %1067 = vmatpush1.bf16.msra.mxu0 %v893
      %1068 = vmatprep.subr.bf16.mxu0 0
      %1069 = vmatpush1.bf16.msra.mxu0 %v894
      %1070 = vmatprep.subr.bf16.mxu0 0
      %1071 = vmatpush1.bf16.msra.mxu0 %v895
      %1072 = vmatprep.subr.bf16.mxu0 0
      %1073 = vmatpush1.bf16.msra.mxu0 %v896
      %1074 = vmatprep.subr.bf16.mxu0 0
      %1075 = vmatpush1.bf16.msra.mxu0 %v897
      %1076 = vmatprep.subr.bf16.mxu0 0
      %1077 = vmatpush1.bf16.msra.mxu0 %v898
      %1078 = vmatprep.subr.bf16.mxu0 0
      %1079 = vmatpush1.bf16.msra.mxu0 %v899
      %1080 = vmatprep.subr.bf16.mxu0 0
      %1081 = vmatpush1.bf16.msra.mxu0 %v900
      %1082 = vmatprep.subr.bf16.mxu0 0
      %1083 = vmatpush1.bf16.msra.mxu0 %v901
      %1084 = vmatprep.subr.bf16.mxu0 0
      %1085 = vmatpush1.bf16.msra.mxu0 %v902
      %1086 = vmatprep.subr.bf16.mxu0 0
      %1087 = vmatpush1.bf16.msra.mxu0 %v903
      %1088 = vmatprep.mubr.bf16.mxu0 %v550
      %1089 = vmatmul.mubr.bf16.gmra.mrb[0].mxu0 %v548
      %v1090 = vpop.f32.mrb[0].mxu0
      %v1091 = vadd.f32 %v1051, %v1090
      %v1092 = vpop.f32.mrb[0].mxu0
      %v1093 = vpop.f32.mrb[0].mxu0
      %v1094 = vpop.f32.mrb[0].mxu0
      %1095 = vdwg.mxu0
      %1096 = vmatprep.subr.bf16.mxu0 0
      %1097 = vmatpush1.bf16.msra.mxu0 %v904
      %1098 = vmatprep.subr.bf16.mxu0 0
      %1099 = vmatpush1.bf16.msra.mxu0 %v905
      %1100 = vmatprep.subr.bf16.mxu0 0
      %1101 = vmatpush1.bf16.msra.mxu0 %v906
      %1102 = vmatprep.subr.bf16.mxu0 0
      %1103 = vmatpush1.bf16.msra.mxu0 %v907
      %1104 = vmatprep.subr.bf16.mxu0 0
      %1105 = vmatpush1.bf16.msra.mxu0 %v908
      %1106 = vmatprep.subr.bf16.mxu0 0
      %1107 = vmatpush1.bf16.msra.mxu0 %v909
      %1108 = vmatprep.subr.bf16.mxu0 0
      %1109 = vmatpush1.bf16.msra.mxu0 %v910
      %1110 = vmatprep.subr.bf16.mxu0 0
      %1111 = vmatpush1.bf16.msra.mxu0 %v911
      %1112 = vmatprep.subr.bf16.mxu0 0
      %1113 = vmatpush1.bf16.msra.mxu0 %v912
      %1114 = vmatprep.subr.bf16.mxu0 0
      %1115 = vmatpush1.bf16.msra.mxu0 %v913
      %1116 = vmatprep.subr.bf16.mxu0 0
      %1117 = vmatpush1.bf16.msra.mxu0 %v914
      %1118 = vmatprep.subr.bf16.mxu0 0
      %1119 = vmatpush1.bf16.msra.mxu0 %v915
      %1120 = vmatprep.subr.bf16.mxu0 0
      %1121 = vmatpush1.bf16.msra.mxu0 %v916
      %1122 = vmatprep.subr.bf16.mxu0 0
      %1123 = vmatpush1.bf16.msra.mxu0 %v917
      %1124 = vmatprep.subr.bf16.mxu0 0
      %1125 = vmatpush1.bf16.msra.mxu0 %v918
      %1126 = vmatprep.subr.bf16.mxu0 0
      %1127 = vmatpush1.bf16.msra.mxu0 %v919
      %1128 = vmatprep.mubr.bf16.mxu0 %v566
      %1129 = vmatmul.mubr.bf16.gmra.mrb[0].mxu0 %v558
      %v1130 = vpop.f32.mrb[0].mxu0
      %v1131 = vadd.f32 %v1091, %v1130
      %v1132 = vpop.f32.mrb[0].mxu0
      %v1133 = vpop.f32.mrb[0].mxu0
      %v1134 = vpop.f32.mrb[0].mxu0
      %1135 = vdwg.mxu0
      %1136 = vmatprep.subr.bf16.mxu0 0
      %1137 = vmatpush1.bf16.msra.mxu0 %v920
      %1138 = vmatprep.subr.bf16.mxu0 0
      %1139 = vmatpush1.bf16.msra.mxu0 %v921
      %1140 = vmatprep.subr.bf16.mxu0 0
      %1141 = vmatpush1.bf16.msra.mxu0 %v922
      %1142 = vmatprep.subr.bf16.mxu0 0
      %1143 = vmatpush1.bf16.msra.mxu0 %v923
      %1144 = vmatprep.subr.bf16.mxu0 0
      %1145 = vmatpush1.bf16.msra.mxu0 %v924
      %1146 = vmatprep.subr.bf16.mxu0 0
      %1147 = vmatpush1.bf16.msra.mxu0 %v925
      %1148 = vmatprep.subr.bf16.mxu0 0
      %1149 = vmatpush1.bf16.msra.mxu0 %v926
      %1150 = vmatprep.subr.bf16.mxu0 0
      %1151 = vmatpush1.bf16.msra.mxu0 %v927
      %1152 = vmatprep.subr.bf16.mxu0 0
      %1153 = vmatpush1.bf16.msra.mxu0 %v928
      %1154 = vmatprep.subr.bf16.mxu0 0
      %1155 = vmatpush1.bf16.msra.mxu0 %v929
      %1156 = vmatprep.subr.bf16.mxu0 0
      %1157 = vmatpush1.bf16.msra.mxu0 %v930
      %1158 = vmatprep.subr.bf16.mxu0 0
      %1159 = vmatpush1.bf16.msra.mxu0 %v931
      %1160 = vmatprep.subr.bf16.mxu0 0
      %1161 = vmatpush1.bf16.msra.mxu0 %v932
      %1162 = vmatprep.subr.bf16.mxu0 0
      %1163 = vmatpush1.bf16.msra.mxu0 %v933
      %1164 = vmatprep.subr.bf16.mxu0 0
      %1165 = vmatpush1.bf16.msra.mxu0 %v934
      %1166 = vmatprep.subr.bf16.mxu0 0
      %1167 = vmatpush1.bf16.msra.mxu0 %v935
      %1168 = vmatprep.mubr.bf16.mxu0 %v567
      %1169 = vmatmul.mubr.bf16.gmra.mrb[0].mxu0 %v565
      %v1170 = vpop.f32.mrb[0].mxu0
      %v1171 = vadd.f32 %v1131, %v1170
      %v1172 = vpop.f32.mrb[0].mxu0
      %v1173 = vpop.f32.mrb[0].mxu0
      %v1174 = vpop.f32.mrb[0].mxu0
      %1175 = vdwg.mxu0
      %1176 = vmatprep.subr.bf16.mxu0 0
      %1177 = vmatpush1.bf16.msra.mxu0 %v936
      %1178 = vmatprep.subr.bf16.mxu0 0
      %1179 = vmatpush1.bf16.msra.mxu0 %v937
      %1180 = vmatprep.subr.bf16.mxu0 0
      %1181 = vmatpush1.bf16.msra.mxu0 %v938
      %1182 = vmatprep.subr.bf16.mxu0 0
      %1183 = vmatpush1.bf16.msra.mxu0 %v939
      %1184 = vmatprep.subr.bf16.mxu0 0
      %1185 = vmatpush1.bf16.msra.mxu0 %v940
      %1186 = vmatprep.subr.bf16.mxu0 0
      %1187 = vmatpush1.bf16.msra.mxu0 %v941
      %1188 = vmatprep.subr.bf16.mxu0 0
      %1189 = vmatpush1.bf16.msra.mxu0 %v942
      %1190 = vmatprep.subr.bf16.mxu0 0
      %1191 = vmatpush1.bf16.msra.mxu0 %v943
      %1192 = vmatprep.subr.bf16.mxu0 0
      %1193 = vmatpush1.bf16.msra.mxu0 0
      %1194 = vmatprep.subr.bf16.mxu0 0
      %1195 = vmatpush1.bf16.msra.mxu0 0
      %1196 = vmatprep.subr.bf16.mxu0 0
      %1197 = vmatpush1.bf16.msra.mxu0 0
      %1198 = vmatprep.subr.bf16.mxu0 0
      %1199 = vmatpush1.bf16.msra.mxu0 0
      %1200 = vmatprep.subr.bf16.mxu0 0
      %1201 = vmatpush1.bf16.msra.mxu0 0
      %1202 = vmatprep.subr.bf16.mxu0 0
      %1203 = vmatpush1.bf16.msra.mxu0 0
      %1204 = vmatprep.subr.bf16.mxu0 0
      %1205 = vmatpush1.bf16.msra.mxu0 0
      %1206 = vmatprep.subr.bf16.mxu0 0
      %1207 = vmatpush1.bf16.msra.mxu0 0
      %1208 = vmatprep.mubr.bf16.mxu0 0
      %1209 = vmatmul.mubr.bf16.gmra.mrb[0].mxu0 %v574
      %v1210 = vpop.f32.mrb[0].mxu0
      %v1211 = vadd.f32 %v1171, %v1210
      %v1212 = vpop.f32.mrb[0].mxu0
      %v1213 = vpop.f32.mrb[0].mxu0
      %v1214 = vpop.f32.mrb[0].mxu0
      %1215 = vdwg.mxu0
      %v1216 = vmax.f32 %v1211, 0.0
      %v1219 = vunpack.c.l.s4 1983009808
      %v1220 = vunpack.c.0.s8 %v1219
      %v1221 = vlaneseq
      %v1222 = vshrl.u32 %v1221, 7
      %v1223 = vsub.s32 %v1220, %v1222
      %v1224 = vrot.slane %v1216, %v1223
      %v1225 = vcombine.high %v1224, %v1224
      %v1228 = vpack.c.bf16 %v1224, %v1224
      %v1229 = vpack.c.bf16 %v1225, %v1225
      %1230 = vst [vmem:[%s190] sm:$0x1] %v1228
      %1231 = vst [vmem:[%s190 + $0x1] sm:$0x1] %v1229
      %s1232 = smul.u32 2, %s19
      %p1233 = scmp.lt.s32.totalorder %s18, 1
      %s1234 = scalar_select %p1233, %s18, 1
      %p1235 = scmp.lt.s32.totalorder %s1232, 1
      %s1236 = scalar_select %p1235, %s1232, 1
      %s1237 = smul.addr %s1234, 2
      %s1238 = sadd.s32 %s1236, %s1237
      %s1239 = scalar_lea.vmem %s3, %s1238
      // Predicated region
      $region33: #{cenet_forward.12} parent=31 // pred_check
        %p1240 = pneg %p114
      $region34: #{cenet_forward.12} parent=31 // pred_check_branch
        %1242 = sbr.rel (%p1240) target = $region36
      $region35: #{cenet_forward.12} parent=31 // pred_region
        %s1243 = smul.u32 2, %s19
      $region36: #{cenet_forward.12} parent=31 // pred_fallthru
        _
    $region32: #{cenet_forward.12} parent=5 // pred_fallthru
      _
    %p1244 = scmp.le.s32.totalorder 2, %s9
    // Predicated region
    $region37: #{cenet_forward.12} parent=5 // pred_check
      %p1245 = pneg %p1244
    $region38: #{cenet_forward.12} parent=5 // pred_check_branch
      %1247 = sbr.rel (%p1245) target = $region40
    $region39: #{cenet_forward.12} parent=5 // pred_region
      %s1248 = ssub.s32 %s9, 2
      // Predicated region
      $region41: #{cenet_forward.12} parent=39 // pred_check
        %p1249 = pneg %p120
      $region42: #{cenet_forward.12} parent=39 // pred_check_branch
        %1251 = sbr.rel (%p1249) target = $region44
      $region43: #{cenet_forward.12} parent=39 // pred_region
        %s1252 = smul.u32 2, %s21
        %p1253 = scmp.lt.s32.totalorder %s20, 1
        %s1254 = scalar_select %p1253, %s20, 1
        %p1255 = scmp.lt.s32.totalorder %s1252, 1
        %s1256 = scalar_select %p1255, %s1252, 1
        %s1257 = smul.addr %s1254, 2
        %s1258 = sadd.s32 %s1256, %s1257
        %s1259 = scalar_lea.vmem %s3, %s1258
      $region44: #{cenet_forward.12} parent=39 // pred_fallthru
        _
    $region40: #{cenet_forward.12} parent=5 // pred_fallthru
      _
  $region6: #{cenet_forward.12} parent=0 // loop_footer
    %s13 = sadd.s32 1, %s9
  $region7: #{cenet_forward.12} parent=0 // loop_footer_branch
    %8 = sbr.rel target = $region3
  $region8: #{cenet_forward.12} parent=0 // loop_exit
    _

// kernel: cenet_forward.13
$region0: #{cenet_forward.13}
  #allocation0 [shape = 'u32[]', space=smem, size = 0x4, offset = 0x4, fixed_abs, tag = 'smem constant byte address 0x4 - core index']
  #allocation1 [shape = 'u32[144,128]{1,0:T(1,128)}', space=vmem, size = 0x12000, scoped, tag = 'internal scratch']
  %s0 = inlined_call_operand.vmem [shape: bf16[2,16,16,128], index: 0, kind: input, shape index: {}]
  %s1 = inlined_call_operand.vmem [shape: bf16[128,128], index: 1, kind: input, shape index: {}]
  %s2 = inlined_call_operand.vmem [shape: f32[1,128], index: 2, kind: input, shape index: {}]
  %s3 = inlined_call_operand.vmem [shape: f32[2,16,16,128], index: 3, kind: output, shape index: {}]
  %s4 = sld [smem:[#allocation0]]
  $region45: #{cenet_forward.13} parent=0
    _
  %s6 = ssub.s32 1, %s4
  %s7 = scalar_select 0, %s6, %s4
  loop: start=0, step=1, limit=6
  $region2: #{cenet_forward.13} parent=0 // loop_pre_header
    _
  $region3: #{cenet_forward.13} parent=0 // loop_header
    %s9 = sphi 0, %s13
    %p10 = scmp.ge.s32.totalorder %s9, 6
    %s16 = sphi 0, %s28
    %s17 = sphi 0, %s24
    %s18 = sphi 0, %s16
    %s19 = sphi 0, %s17
    %s20 = sphi 0, %s18
    %s21 = sphi 0, %s19
    %s31 = sphi 0, %s33
    %s34 = sphi 0, %s31
    %s35 = sphi 0, %s34
    %s51 = sphi 0, %s35
    %s55 = sphi 0, %s55
    %s57 = sphi 0, %s55
    %s58 = sphi 0, %s57
    %s72 = sphi 0, %s58
    %s76 = sphi 0, %s76
    %s78 = sphi 0, %s76
    %s79 = sphi 0, %s78
    %s93 = sphi 0, %s79
    %s101 = sphi 0, %s103
    %s104 = sphi 0, %s101
    %s105 = sphi 0, %s104
    %s121 = sphi 0, %s105
  $region4: #{cenet_forward.13} parent=0 // loop_header_branch
    %12 = sbr.rel (%p10) target = $region8
  $region5: #{cenet_forward.13} parent=0 // loop_body
    %s14 = ssub.s32 %s9, 1
    %s15 = ssub.s32 %s9, 2
    %s22 = sadd.s32 1, %s17
    %p23 = scmp.ge.s32.totalorder %s22, 2
    %s24 = scalar_select %p23, 0, %s22
    %s25 = sadd.s32 1, %s16
    %s26 = scalar_select %p23, %s25, %s16
    %p27 = scmp.ge.s32.totalorder %s26, 2
    %s28 = scalar_select %p27, 0, %s26
    %s29 = ssub.s32 %s16, %s28
    %p30 = scmp.eq.s32.totalorder %s29, 0
    %s32 = sadd.s32 %s31, 1
    %s33 = scalar_select %p30, %s31, %s32
    %p36 = pneg %p30
    %p37 = scmp.eq.s32.totalorder %s9, 3
    %p38 = por %p36, %p37
    %p39 = scmp.ne.s32.totalorder %s31, %s34
    %p40 = scmp.eq.s32.totalorder %s9, 0
    %p41 = por %p39, %p40
    %p42 = scmp.ne.s32.totalorder %s31, %s34
    %p43 = scmp.eq.s32.totalorder %s14, 3
    %p44 = por %p42, %p43
    %p45 = scmp.ne.s32.totalorder %s34, %s35
    %p46 = scmp.eq.s32.totalorder %s14, 0
    %p47 = por %p45, %p46
    %p48 = scmp.ne.s32.totalorder %s34, %s35
    %p49 = scmp.eq.s32.totalorder %s15, 3
    %p50 = por %p48, %p49
    %p52 = scmp.ne.s32.totalorder %s35, %s51
    %p53 = scmp.eq.s32.totalorder %s15, 0
    %p54 = por %p52, %p53
    %s56 = sadd.s32 %s55, 1
    %p59 = scmp.eq.s32.totalorder %s9, 3
    %p60 = scmp.ne.s32.totalorder %s55, %s57
    %p61 = scmp.eq.s32.totalorder %s9, 0
    %p62 = por %p60, %p61
    %p63 = scmp.ne.s32.totalorder %s55, %s57
    %p64 = scmp.eq.s32.totalorder %s14, 3
    %p65 = por %p63, %p64
    %p66 = scmp.ne.s32.totalorder %s57, %s58
    %p67 = scmp.eq.s32.totalorder %s14, 0
    %p68 = por %p66, %p67
    %p69 = scmp.ne.s32.totalorder %s57, %s58
    %p70 = scmp.eq.s32.totalorder %s15, 3
    %p71 = por %p69, %p70
    %p73 = scmp.ne.s32.totalorder %s58, %s72
    %p74 = scmp.eq.s32.totalorder %s15, 0
    %p75 = por %p73, %p74
    %s77 = sadd.s32 %s76, 1
    %p80 = scmp.eq.s32.totalorder %s9, 3
    %p81 = scmp.ne.s32.totalorder %s76, %s78
    %p82 = scmp.eq.s32.totalorder %s9, 0
    %p83 = por %p81, %p82
    %p84 = scmp.ne.s32.totalorder %s76, %s78
    %p85 = scmp.eq.s32.totalorder %s14, 3
    %p86 = por %p84, %p85
    %p87 = scmp.ne.s32.totalorder %s78, %s79
    %p88 = scmp.eq.s32.totalorder %s14, 0
    %p89 = por %p87, %p88
    %p90 = scmp.ne.s32.totalorder %s78, %s79
    %p91 = scmp.eq.s32.totalorder %s15, 3
    %p92 = por %p90, %p91
    %p94 = scmp.ne.s32.totalorder %s79, %s93
    %p95 = scmp.eq.s32.totalorder %s15, 0
    %p96 = por %p94, %p95
    %s97 = ssub.s32 %s16, %s28
    %s98 = ssub.s32 %s17, %s24
    %s99 = sor.u32 %s97, %s98
    %p100 = scmp.eq.s32.totalorder %s99, 0
    %s102 = sadd.s32 %s101, 1
    %s103 = scalar_select %p100, %s101, %s102
    %p106 = pneg %p100
    %p107 = scmp.eq.s32.totalorder %s9, 3
    %p108 = por %p106, %p107
    %p109 = scmp.ne.s32.totalorder %s101, %s104
    %p110 = scmp.eq.s32.totalorder %s9, 0
    %p111 = por %p109, %p110
    %p112 = scmp.ne.s32.totalorder %s101, %s104
    %p113 = scmp.eq.s32.totalorder %s14, 3
    %p114 = por %p112, %p113
    %p115 = scmp.ne.s32.totalorder %s104, %s105
    %p116 = scmp.eq.s32.totalorder %s14, 0
    %p117 = por %p115, %p116
    %p118 = scmp.ne.s32.totalorder %s104, %s105
    %p119 = scmp.eq.s32.totalorder %s15, 3
    %p120 = por %p118, %p119
    %p122 = scmp.ne.s32.totalorder %s105, %s121
    %p123 = scmp.eq.s32.totalorder %s15, 0
    %p124 = por %p122, %p123
    %p125 = scmp.le.s32.totalorder 1, %s9
    %p126 = scmp.lt.s32.totalorder %s9, 5
    %p127 = pnand %p125, %p126
    %p128 = pneg %p127
    // Predicated region
    $region9: #{cenet_forward.13} parent=5 // pred_check
      _
    $region10: #{cenet_forward.13} parent=5 // pred_check_branch
      %130 = sbr.rel (%p127) target = $region12
    $region11: #{cenet_forward.13} parent=5 // pred_region
      %s131 = ssub.s32 %s9, 1
      // Predicated region
      $region13: #{cenet_forward.13} parent=11 // pred_check
        %p132 = pneg %p68
      $region14: #{cenet_forward.13} parent=11 // pred_check_branch
        %134 = sbr.rel (%p132) target = $region16
      $region15: #{cenet_forward.13} parent=11 // pred_region
        _
      $region16: #{cenet_forward.13} parent=11 // pred_fallthru
        _
      // Predicated region
      $region17: #{cenet_forward.13} parent=11 // pred_check
        %p135 = pneg %p89
      $region18: #{cenet_forward.13} parent=11 // pred_check_branch
        %137 = sbr.rel (%p135) target = $region20
      $region19: #{cenet_forward.13} parent=11 // pred_region
        _
      $region20: #{cenet_forward.13} parent=11 // pred_fallthru
        _
    $region12: #{cenet_forward.13} parent=5 // pred_fallthru
      _
    %p138 = scmp.lt.s32.totalorder %s9, 4
    // Predicated region
    $region21: #{cenet_forward.13} parent=5 // pred_check
      %p139 = pneg %p138
    $region22: #{cenet_forward.13} parent=5 // pred_check_branch
      %141 = sbr.rel (%p139) target = $region24
    $region23: #{cenet_forward.13} parent=5 // pred_region
      // Predicated region
      $region25: #{cenet_forward.13} parent=23 // pred_check
        %p142 = pneg %p41
      $region26: #{cenet_forward.13} parent=23 // pred_check_branch
        %144 = sbr.rel (%p142) target = $region28
      $region27: #{cenet_forward.13} parent=23 // pred_region
        %p145 = scmp.lt.s32.totalorder %s16, 1
        %s146 = scalar_select %p145, %s16, 1
        %s147 = smul.addr %s146, 32
        %s148 = smul.addr %s147, 4
        %s149 = scalar_lea.vmem %s0, %s148
      $region28: #{cenet_forward.13} parent=23 // pred_fallthru
        _
    $region24: #{cenet_forward.13} parent=5 // pred_fallthru
      _
    %p150 = scmp.le.s32.totalorder 1, %s9
    %p151 = scmp.lt.s32.totalorder %s9, 5
    %p152 = pnand %p150, %p151
    %p153 = pneg %p152
    // Predicated region
    $region29: #{cenet_forward.13} parent=5 // pred_check
      _
    $region30: #{cenet_forward.13} parent=5 // pred_check_branch
      %155 = sbr.rel (%p152) target = $region32
    $region31: #{cenet_forward.13} parent=5 // pred_region
      %s156 = ssub.s32 %s9, 1
      %p157 = scmp.lt.s32.totalorder %s18, 1
      %s158 = scalar_select %p157, %s18, 1
      %s159 = smul.addr %s158, 32
      %s160 = smul.addr %s159, 4
      %s161 = scalar_lea.vmem %s0, %s160
      %p162 = pneg %p47
      %p163 = pneg %p44
      %p164 = pneg %p68
      %p165 = pneg %p65
      %p166 = pneg %p89
      %p167 = pneg %p86
      %p168 = pneg %p117
      %p169 = pneg %p114
      %s170 = smul.u32 8, %s19
      %p171 = scmp.lt.s32.totalorder %s18, 1
      %s172 = scalar_select %p171, %s18, 1
      %p173 = scmp.lt.s32.totalorder %s170, 15
      %s174 = scalar_select %p173, %s170, 15
      %s175 = smul.addr %s174, 2
      %s176 = smul.addr %s172, 32
      %s177 = sadd.s32 %s175, %s176
      %s178 = smul.addr %s177, 8
      %s179 = scalar_lea.vmem %s3, %s178
      %p180 = scmp.lt.s32.totalorder %s18, 1
      %s181 = scalar_select %p180, %s18, 1
      %s182 = smul.addr %s181, 32
      %s183 = smul.addr %s182, 4
      %s184 = scalar_lea.vmem %s0, %s183
      %s185 = smul.u32 8, %s19
      %p186 = scmp.lt.s32.totalorder %s18, 1
      %s187 = scalar_select %p186, %s18, 1
      %p188 = scmp.lt.s32.totalorder %s185, 15
      %s189 = scalar_select %p188, %s185, 15
      %s190 = smul.addr %s189, 2
      %s191 = smul.addr %s187, 32
      %s192 = sadd.s32 %s190, %s191
      %s193 = smul.addr %s192, 8
      %s194 = scalar_lea.vmem %s3, %s193
      %s195 = smul.u32 8, %s19
      %s197 = smul.u32 %s19, 8
      %s198 = smul.u32 %s197, 2
      %s199 = smul.addr %s198, 4
      %s200 = scalar_lea.vmem %s184, %s199
      %v201 = vld [vmem:[%s200] sm:$0xf]
      %v202 = vld [vmem:[%s200 + $0x4] sm:$0xf]
      %v203 = vld [vmem:[%s200 + $0x8] sm:$0xf]
      %v204 = vld [vmem:[%s200 + $0xc] sm:$0xf]
      %v205 = vld [vmem:[%s200 + $0x10] sm:$0xf]
      %v206 = vld [vmem:[%s200 + $0x14] sm:$0xf]
      %v207 = vld [vmem:[%s200 + $0x18] sm:$0xf]
      %v208 = vld [vmem:[%s200 + $0x1c] sm:$0xf]
      %v209 = vld [vmem:[%s200 + $0x20] sm:$0xf]
      %v210 = vld [vmem:[%s200 + $0x24] sm:$0xf]
      %v211 = vld [vmem:[%s200 + $0x28] sm:$0xf]
      %v212 = vld [vmem:[%s200 + $0x2c] sm:$0xf]
      %v213 = vld [vmem:[%s200 + $0x30] sm:$0xf]
      %v214 = vld [vmem:[%s200 + $0x34] sm:$0xf]
      %v215 = vld [vmem:[%s200 + $0x38] sm:$0xf]
      %v216 = vld [vmem:[%s200 + $0x3c] sm:$0xf]
      %v217 = vld [vmem:[%s1] sm:$0xf]
      %v218 = vld [vmem:[%s1 + $0x4] sm:$0xf]
      %v219 = vld [vmem:[%s1 + $0x8] sm:$0xf]
      %v220 = vld [vmem:[%s1 + $0xc] sm:$0xf]
      %v221 = vld [vmem:[%s1 + $0x10] sm:$0xf]
      %v222 = vld [vmem:[%s1 + $0x14] sm:$0xf]
      %v223 = vld [vmem:[%s1 + $0x18] sm:$0xf]
      %v224 = vld [vmem:[%s1 + $0x1c] sm:$0xf]
      %v225 = vld [vmem:[%s1 + $0x20] sm:$0xf]
      %v226 = vld [vmem:[%s1 + $0x24] sm:$0xf]
      %v227 = vld [vmem:[%s1 + $0x28] sm:$0xf]
      %v228 = vld [vmem:[%s1 + $0x2c] sm:$0xf]
      %v229 = vld [vmem:[%s1 + $0x30] sm:$0xf]
      %v230 = vld [vmem:[%s1 + $0x34] sm:$0xf]
      %v231 = vld [vmem:[%s1 + $0x38] sm:$0xf]
      %v232 = vld [vmem:[%s1 + $0x3c] sm:$0xf]
      %v233 = vld [vmem:[%s2] sm:$0x1]
      %v235 = vlaneseq
      %v236 = vshrl.u32 %v235, 7
      %v237 = vsub.s32 0, %v236
      %v238 = vrot.slane %v233, %v237
      %v256 = vunpack.c.l.b16 %v201
      %v257 = vunpack.c.l.b16 %v202
      %v258 = vunpack.c.l.b16 %v203
      %v259 = vunpack.c.l.b16 %v204
      %v260 = vunpack.c.l.b16 %v205
      %v261 = vunpack.c.l.b16 %v206
      %v262 = vunpack.c.l.b16 %v207
      %v263 = vunpack.c.l.b16 %v208
      %v264 = vunpack.c.l.b16 %v209
      %v265 = vunpack.c.l.b16 %v210
      %v266 = vunpack.c.l.b16 %v211
      %v267 = vunpack.c.l.b16 %v212
      %v268 = vunpack.c.l.b16 %v213
      %v269 = vunpack.c.l.b16 %v214
      %v270 = vunpack.c.l.b16 %v215
      %v271 = vunpack.c.l.b16 %v216
      %v272 = vpack.c.b16 %v257, %v256
      %v273 = vpack.c.b16 %v259, %v258
      %v274 = vpack.c.b16 %v261, %v260
      %v275 = vpack.c.b16 %v263, %v262
      %v276 = vpack.c.b16 %v265, %v264
      %v277 = vpack.c.b16 %v267, %v266
      %v278 = vpack.c.b16 %v269, %v268
      %v279 = vpack.c.b16 %v271, %v270
      %v304 = vunpack.c.l.b16 %v217
      %v305 = vunpack.c.l.b16 %v218
      %v306 = vunpack.c.l.b16 %v219
      %v307 = vunpack.c.l.b16 %v220
      %v308 = vunpack.c.l.b16 %v221
      %v309 = vunpack.c.l.b16 %v222
      %v310 = vunpack.c.l.b16 %v223
      %v311 = vunpack.c.l.b16 %v224
      %v312 = vunpack.c.l.b16 %v225
      %v313 = vunpack.c.l.b16 %v226
      %v314 = vunpack.c.l.b16 %v227
      %v315 = vunpack.c.l.b16 %v228
      %v316 = vunpack.c.l.b16 %v229
      %v317 = vunpack.c.l.b16 %v230
      %v318 = vunpack.c.l.b16 %v231
      %v319 = vunpack.c.l.b16 %v232
      %v320 = vpack.c.b16 %v305, %v304
      %v321 = vpack.c.b16 %v307, %v306
      %v322 = vpack.c.b16 %v309, %v308
      %v323 = vpack.c.b16 %v311, %v310
      %v324 = vpack.c.b16 %v313, %v312
      %v325 = vpack.c.b16 %v315, %v314
      %v326 = vpack.c.b16 %v317, %v316
      %v327 = vpack.c.b16 %v319, %v318
      %336 = vmatprep.subr.bf16.mxu0 0
      %337 = vmatpush1.bf16.msra.mxu0 %v320
      %338 = vmatprep.subr.bf16.mxu0 0
      %339 = vmatpush1.bf16.msra.mxu0 %v321
      %340 = vmatprep.subr.bf16.mxu0 0
      %341 = vmatpush1.bf16.msra.mxu0 %v322
      %342 = vmatprep.subr.bf16.mxu0 0
      %343 = vmatpush1.bf16.msra.mxu0 %v323
      %344 = vmatprep.subr.bf16.mxu0 0
      %345 = vmatpush1.bf16.msra.mxu0 %v324
      %346 = vmatprep.subr.bf16.mxu0 0
      %347 = vmatpush1.bf16.msra.mxu0 %v325
      %348 = vmatprep.subr.bf16.mxu0 0
      %349 = vmatpush1.bf16.msra.mxu0 %v326
      %350 = vmatprep.subr.bf16.mxu0 0
      %351 = vmatpush1.bf16.msra.mxu0 %v327
      %352 = vmatprep.subr.bf16.mxu0 0
      %353 = vmatpush1.bf16.msra.mxu0 0
      %354 = vmatprep.subr.bf16.mxu0 0
      %355 = vmatpush1.bf16.msra.mxu0 0
      %356 = vmatprep.subr.bf16.mxu0 0
      %357 = vmatpush1.bf16.msra.mxu0 0
      %358 = vmatprep.subr.bf16.mxu0 0
      %359 = vmatpush1.bf16.msra.mxu0 0
      %360 = vmatprep.subr.bf16.mxu0 0
      %361 = vmatpush1.bf16.msra.mxu0 0
      %362 = vmatprep.subr.bf16.mxu0 0
      %363 = vmatpush1.bf16.msra.mxu0 0
      %364 = vmatprep.subr.bf16.mxu0 0
      %365 = vmatpush1.bf16.msra.mxu0 0
      %366 = vmatprep.subr.bf16.mxu0 0
      %367 = vmatpush1.bf16.msra.mxu0 0
      %368 = vmatprep.mubr.bf16.mxu0 0
      %369 = vmatmul.mubr.bf16.gmra.mrb[0].mxu0 %v272
      %v370 = vpop.f32.mrb[0].mxu0
      %v371 = vadd.f32 %v238, %v370
      %v372 = vpop.f32.mrb[0].mxu0
      %v373 = vpop.f32.mrb[0].mxu0
      %v374 = vadd.f32 %v238, %v373
      %v375 = vpop.f32.mrb[0].mxu0
      %376 = vmatprep.mubr.bf16.mxu0 0
      %377 = vmatmul.mubr.bf16.gmra.mrb[0].mxu0 %v273
      %v378 = vpop.f32.mrb[0].mxu0
      %v379 = vadd.f32 %v238, %v378
      %v380 = vpop.f32.mrb[0].mxu0
      %v381 = vpop.f32.mrb[0].mxu0
      %v382 = vadd.f32 %v238, %v381
      %v383 = vpop.f32.mrb[0].mxu0
      %384 = vmatprep.mubr.bf16.mxu0 0
      %385 = vmatmul.mubr.bf16.gmra.mrb[0].mxu0 %v274
      %v386 = vpop.f32.mrb[0].mxu0
      %v387 = vadd.f32 %v238, %v386
      %v388 = vpop.f32.mrb[0].mxu0
      %v389 = vpop.f32.mrb[0].mxu0
      %v390 = vadd.f32 %v238, %v389
      %v391 = vpop.f32.mrb[0].mxu0
      %392 = vmatprep.mubr.bf16.mxu0 0
      %393 = vmatmul.mubr.bf16.gmra.mrb[0].mxu0 %v275
      %v394 = vpop.f32.mrb[0].mxu0
      %v395 = vadd.f32 %v238, %v394
      %v396 = vpop.f32.mrb[0].mxu0
      %v397 = vpop.f32.mrb[0].mxu0
      %v398 = vadd.f32 %v238, %v397
      %v399 = vpop.f32.mrb[0].mxu0
      %400 = vmatprep.mubr.bf16.mxu0 0
      %401 = vmatmul.mubr.bf16.gmra.mrb[0].mxu0 %v276
      %v402 = vpop.f32.mrb[0].mxu0
      %v403 = vadd.f32 %v238, %v402
      %v404 = vpop.f32.mrb[0].mxu0
      %v405 = vpop.f32.mrb[0].mxu0
      %v406 = vadd.f32 %v238, %v405
      %v407 = vpop.f32.mrb[0].mxu0
      %408 = vmatprep.mubr.bf16.mxu0 0
      %409 = vmatmul.mubr.bf16.gmra.mrb[0].mxu0 %v277
      %v410 = vpop.f32.mrb[0].mxu0
      %v411 = vadd.f32 %v238, %v410
      %v412 = vpop.f32.mrb[0].mxu0
      %v413 = vpop.f32.mrb[0].mxu0
      %v414 = vadd.f32 %v238, %v413
      %v415 = vpop.f32.mrb[0].mxu0
      %416 = vmatprep.mubr.bf16.mxu0 0
      %417 = vmatmul.mubr.bf16.gmra.mrb[0].mxu0 %v278
      %v418 = vpop.f32.mrb[0].mxu0
      %v419 = vadd.f32 %v238, %v418
      %v420 = vpop.f32.mrb[0].mxu0
      %v421 = vpop.f32.mrb[0].mxu0
      %v422 = vadd.f32 %v238, %v421
      %v423 = vpop.f32.mrb[0].mxu0
      %424 = vmatprep.mubr.bf16.mxu0 0
      %425 = vmatmul.mubr.bf16.gmra.mrb[0].mxu0 %v279
      %v426 = vpop.f32.mrb[0].mxu0
      %v427 = vadd.f32 %v238, %v426
      %v428 = vpop.f32.mrb[0].mxu0
      %v429 = vpop.f32.mrb[0].mxu0
      %v430 = vadd.f32 %v238, %v429
      %v431 = vpop.f32.mrb[0].mxu0
      %432 = vdwg.mxu0
      %433 = vst [vmem:[%s194] sm:$0xff] %v371
      %434 = vst [vmem:[%s194 + $0x8] sm:$0xff] %v374
      %435 = vst [vmem:[%s194 + $0x10] sm:$0xff] %v379
      %436 = vst [vmem:[%s194 + $0x18] sm:$0xff] %v382
      %437 = vst [vmem:[%s194 + $0x20] sm:$0xff] %v387
      %438 = vst [vmem:[%s194 + $0x28] sm:$0xff] %v390
      %439 = vst [vmem:[%s194 + $0x30] sm:$0xff] %v395
      %440 = vst [vmem:[%s194 + $0x38] sm:$0xff] %v398
      %441 = vst [vmem:[%s194 + $0x40] sm:$0xff] %v403
      %442 = vst [vmem:[%s194 + $0x48] sm:$0xff] %v406
      %443 = vst [vmem:[%s194 + $0x50] sm:$0xff] %v411
      %444 = vst [vmem:[%s194 + $0x58] sm:$0xff] %v414
      %445 = vst [vmem:[%s194 + $0x60] sm:$0xff] %v419
      %446 = vst [vmem:[%s194 + $0x68] sm:$0xff] %v422
      %447 = vst [vmem:[%s194 + $0x70] sm:$0xff] %v427
      %448 = vst [vmem:[%s194 + $0x78] sm:$0xff] %v430
      %s449 = smul.u32 8, %s19
      %p450 = scmp.lt.s32.totalorder %s18, 1
      %s451 = scalar_select %p450, %s18, 1
      %p452 = scmp.lt.s32.totalorder %s449, 15
      %s453 = scalar_select %p452, %s449, 15
      %s454 = smul.addr %s453, 2
      %s455 = smul.addr %s451, 32
      %s456 = sadd.s32 %s454, %s455
      %s457 = smul.addr %s456, 8
      %s458 = scalar_lea.vmem %s3, %s457
      // Predicated region
      $region33: #{cenet_forward.13} parent=31 // pred_check
        %p459 = pneg %p114
      $region34: #{cenet_forward.13} parent=31 // pred_check_branch
        %461 = sbr.rel (%p459) target = $region36
      $region35: #{cenet_forward.13} parent=31 // pred_region
        %s462 = smul.u32 8, %s19
      $region36: #{cenet_forward.13} parent=31 // pred_fallthru
        _
    $region32: #{cenet_forward.13} parent=5 // pred_fallthru
      _
    %p463 = scmp.le.s32.totalorder 2, %s9
    // Predicated region
    $region37: #{cenet_forward.13} parent=5 // pred_check
      %p464 = pneg %p463
    $region38: #{cenet_forward.13} parent=5 // pred_check_branch
      %466 = sbr.rel (%p464) target = $region40
    $region39: #{cenet_forward.13} parent=5 // pred_region
      %s467 = ssub.s32 %s9, 2
      // Predicated region
      $region41: #{cenet_forward.13} parent=39 // pred_check
        %p468 = pneg %p120
      $region42: #{cenet_forward.13} parent=39 // pred_check_branch
        %470 = sbr.rel (%p468) target = $region44
      $region43: #{cenet_forward.13} parent=39 // pred_region
        %s471 = smul.u32 8, %s21
        %p472 = scmp.lt.s32.totalorder %s20, 1
        %s473 = scalar_select %p472, %s20, 1
        %p474 = scmp.lt.s32.totalorder %s471, 15
        %s475 = scalar_select %p474, %s471, 15
        %s476 = smul.addr %s475, 2
        %s477 = smul.addr %s473, 32
        %s478 = sadd.s32 %s476, %s477
        %s479 = smul.addr %s478, 8
        %s480 = scalar_lea.vmem %s3, %s479
      $region44: #{cenet_forward.13} parent=39 // pred_fallthru
        _
    $region40: #{cenet_forward.13} parent=5 // pred_fallthru
      _
  $region6: #{cenet_forward.13} parent=0 // loop_footer
    %s13 = sadd.s32 1, %s9
  $region7: #{cenet_forward.13} parent=0 // loop_footer_branch
    %8 = sbr.rel target = $region3
  $region8: #{cenet_forward.13} parent=0 // loop_exit
    _

// kernel: cenet_forward.16
$region0: #{cenet_forward.16}
  #allocation0 [shape = 'u32[]', space=smem, size = 0x4, offset = 0x4, fixed_abs, tag = 'smem constant byte address 0x4 - core index']
  #allocation1 [shape = 'u32[144,128]{1,0:T(1,128)}', space=vmem, size = 0x12000, scoped, tag = 'internal scratch']
  %s0 = inlined_call_operand.vmem [shape: bf16[2,4,4,128], index: 0, kind: input, shape index: {}]
  %s1 = inlined_call_operand.vmem [shape: bf16[128,128], index: 1, kind: input, shape index: {}]
  %s2 = inlined_call_operand.vmem [shape: f32[1,128], index: 2, kind: input, shape index: {}]
  %s3 = inlined_call_operand.vmem [shape: f32[2,4,4,128], index: 3, kind: output, shape index: {}]
  %s4 = sld [smem:[#allocation0]]
  $region45: #{cenet_forward.16} parent=0
    _
  %s6 = ssub.s32 1, %s4
  %s7 = scalar_select 0, %s6, %s4
  loop: start=0, step=1, limit=4
  $region2: #{cenet_forward.16} parent=0 // loop_pre_header
    _
  $region3: #{cenet_forward.16} parent=0 // loop_header
    %s9 = sphi 0, %s13
    %p10 = scmp.ge.s32.totalorder %s9, 4
    %s16 = sphi 0, %s28
    %s17 = sphi 0, %s24
    %s18 = sphi 0, %s16
    %s19 = sphi 0, %s17
    %s20 = sphi 0, %s18
    %s21 = sphi 0, %s19
    %s31 = sphi 0, %s33
    %s34 = sphi 0, %s31
    %s35 = sphi 0, %s34
    %s51 = sphi 0, %s35
    %s55 = sphi 0, %s55
    %s57 = sphi 0, %s55
    %s58 = sphi 0, %s57
    %s72 = sphi 0, %s58
    %s76 = sphi 0, %s76
    %s78 = sphi 0, %s76
    %s79 = sphi 0, %s78
    %s93 = sphi 0, %s79
    %s101 = sphi 0, %s103
    %s104 = sphi 0, %s101
    %s105 = sphi 0, %s104
    %s121 = sphi 0, %s105
  $region4: #{cenet_forward.16} parent=0 // loop_header_branch
    %12 = sbr.rel (%p10) target = $region8
  $region5: #{cenet_forward.16} parent=0 // loop_body
    %s14 = ssub.s32 %s9, 1
    %s15 = ssub.s32 %s9, 2
    %s22 = sadd.s32 1, %s17
    %p23 = scmp.ge.s32.totalorder %s22, 1
    %s24 = scalar_select %p23, 0, %s22
    %s25 = sadd.s32 1, %s16
    %s26 = scalar_select %p23, %s25, %s16
    %p27 = scmp.ge.s32.totalorder %s26, 2
    %s28 = scalar_select %p27, 0, %s26
    %s29 = ssub.s32 %s16, %s28
    %p30 = scmp.eq.s32.totalorder %s29, 0
    %s32 = sadd.s32 %s31, 1
    %s33 = scalar_select %p30, %s31, %s32
    %p36 = pneg %p30
    %p37 = scmp.eq.s32.totalorder %s9, 1
    %p38 = por %p36, %p37
    %p39 = scmp.ne.s32.totalorder %s31, %s34
    %p40 = scmp.eq.s32.totalorder %s9, 0
    %p41 = por %p39, %p40
    %p42 = scmp.ne.s32.totalorder %s31, %s34
    %p43 = scmp.eq.s32.totalorder %s14, 1
    %p44 = por %p42, %p43
    %p45 = scmp.ne.s32.totalorder %s34, %s35
    %p46 = scmp.eq.s32.totalorder %s14, 0
    %p47 = por %p45, %p46
    %p48 = scmp.ne.s32.totalorder %s34, %s35
    %p49 = scmp.eq.s32.totalorder %s15, 1
    %p50 = por %p48, %p49
    %p52 = scmp.ne.s32.totalorder %s35, %s51
    %p53 = scmp.eq.s32.totalorder %s15, 0
    %p54 = por %p52, %p53
    %s56 = sadd.s32 %s55, 1
    %p59 = scmp.eq.s32.totalorder %s9, 1
    %p60 = scmp.ne.s32.totalorder %s55, %s57
    %p61 = scmp.eq.s32.totalorder %s9, 0
    %p62 = por %p60, %p61
    %p63 = scmp.ne.s32.totalorder %s55, %s57
    %p64 = scmp.eq.s32.totalorder %s14, 1
    %p65 = por %p63, %p64
    %p66 = scmp.ne.s32.totalorder %s57, %s58
    %p67 = scmp.eq.s32.totalorder %s14, 0
    %p68 = por %p66, %p67
    %p69 = scmp.ne.s32.totalorder %s57, %s58
    %p70 = scmp.eq.s32.totalorder %s15, 1
    %p71 = por %p69, %p70
    %p73 = scmp.ne.s32.totalorder %s58, %s72
    %p74 = scmp.eq.s32.totalorder %s15, 0
    %p75 = por %p73, %p74
    %s77 = sadd.s32 %s76, 1
    %p80 = scmp.eq.s32.totalorder %s9, 1
    %p81 = scmp.ne.s32.totalorder %s76, %s78
    %p82 = scmp.eq.s32.totalorder %s9, 0
    %p83 = por %p81, %p82
    %p84 = scmp.ne.s32.totalorder %s76, %s78
    %p85 = scmp.eq.s32.totalorder %s14, 1
    %p86 = por %p84, %p85
    %p87 = scmp.ne.s32.totalorder %s78, %s79
    %p88 = scmp.eq.s32.totalorder %s14, 0
    %p89 = por %p87, %p88
    %p90 = scmp.ne.s32.totalorder %s78, %s79
    %p91 = scmp.eq.s32.totalorder %s15, 1
    %p92 = por %p90, %p91
    %p94 = scmp.ne.s32.totalorder %s79, %s93
    %p95 = scmp.eq.s32.totalorder %s15, 0
    %p96 = por %p94, %p95
    %s97 = ssub.s32 %s16, %s28
    %s98 = ssub.s32 %s17, %s24
    %s99 = sor.u32 %s97, %s98
    %p100 = scmp.eq.s32.totalorder %s99, 0
    %s102 = sadd.s32 %s101, 1
    %s103 = scalar_select %p100, %s101, %s102
    %p106 = pneg %p100
    %p107 = scmp.eq.s32.totalorder %s9, 1
    %p108 = por %p106, %p107
    %p109 = scmp.ne.s32.totalorder %s101, %s104
    %p110 = scmp.eq.s32.totalorder %s9, 0
    %p111 = por %p109, %p110
    %p112 = scmp.ne.s32.totalorder %s101, %s104
    %p113 = scmp.eq.s32.totalorder %s14, 1
    %p114 = por %p112, %p113
    %p115 = scmp.ne.s32.totalorder %s104, %s105
    %p116 = scmp.eq.s32.totalorder %s14, 0
    %p117 = por %p115, %p116
    %p118 = scmp.ne.s32.totalorder %s104, %s105
    %p119 = scmp.eq.s32.totalorder %s15, 1
    %p120 = por %p118, %p119
    %p122 = scmp.ne.s32.totalorder %s105, %s121
    %p123 = scmp.eq.s32.totalorder %s15, 0
    %p124 = por %p122, %p123
    %p125 = scmp.le.s32.totalorder 1, %s9
    %p126 = scmp.lt.s32.totalorder %s9, 3
    %p127 = pnand %p125, %p126
    %p128 = pneg %p127
    // Predicated region
    $region9: #{cenet_forward.16} parent=5 // pred_check
      _
    $region10: #{cenet_forward.16} parent=5 // pred_check_branch
      %130 = sbr.rel (%p127) target = $region12
    $region11: #{cenet_forward.16} parent=5 // pred_region
      %s131 = ssub.s32 %s9, 1
      // Predicated region
      $region13: #{cenet_forward.16} parent=11 // pred_check
        %p132 = pneg %p68
      $region14: #{cenet_forward.16} parent=11 // pred_check_branch
        %134 = sbr.rel (%p132) target = $region16
      $region15: #{cenet_forward.16} parent=11 // pred_region
        _
      $region16: #{cenet_forward.16} parent=11 // pred_fallthru
        _
      // Predicated region
      $region17: #{cenet_forward.16} parent=11 // pred_check
        %p135 = pneg %p89
      $region18: #{cenet_forward.16} parent=11 // pred_check_branch
        %137 = sbr.rel (%p135) target = $region20
      $region19: #{cenet_forward.16} parent=11 // pred_region
        _
      $region20: #{cenet_forward.16} parent=11 // pred_fallthru
        _
    $region12: #{cenet_forward.16} parent=5 // pred_fallthru
      _
    %p138 = scmp.lt.s32.totalorder %s9, 2
    // Predicated region
    $region21: #{cenet_forward.16} parent=5 // pred_check
      %p139 = pneg %p138
    $region22: #{cenet_forward.16} parent=5 // pred_check_branch
      %141 = sbr.rel (%p139) target = $region24
    $region23: #{cenet_forward.16} parent=5 // pred_region
      // Predicated region
      $region25: #{cenet_forward.16} parent=23 // pred_check
        %p142 = pneg %p41
      $region26: #{cenet_forward.16} parent=23 // pred_check_branch
        %144 = sbr.rel (%p142) target = $region28
      $region27: #{cenet_forward.16} parent=23 // pred_region
        %p145 = scmp.lt.s32.totalorder %s16, 1
        %s146 = scalar_select %p145, %s16, 1
        %s147 = smul.addr %s146, 4
        %s148 = smul.addr %s147, 2
        %s149 = scalar_lea.vmem %s0, %s148
      $region28: #{cenet_forward.16} parent=23 // pred_fallthru
        _
    $region24: #{cenet_forward.16} parent=5 // pred_fallthru
      _
    %p150 = scmp.le.s32.totalorder 1, %s9
    %p151 = scmp.lt.s32.totalorder %s9, 3
    %p152 = pnand %p150, %p151
    %p153 = pneg %p152
    // Predicated region
    $region29: #{cenet_forward.16} parent=5 // pred_check
      _
    $region30: #{cenet_forward.16} parent=5 // pred_check_branch
      %155 = sbr.rel (%p152) target = $region32
    $region31: #{cenet_forward.16} parent=5 // pred_region
      %s156 = ssub.s32 %s9, 1
      %p157 = scmp.lt.s32.totalorder %s18, 1
      %s158 = scalar_select %p157, %s18, 1
      %s159 = smul.addr %s158, 4
      %s160 = smul.addr %s159, 2
      %s161 = scalar_lea.vmem %s0, %s160
      %p162 = pneg %p47
      %p163 = pneg %p44
      %p164 = pneg %p68
      %p165 = pneg %p65
      %p166 = pneg %p89
      %p167 = pneg %p86
      %p168 = pneg %p117
      %p169 = pneg %p114
      %s170 = smul.u32 4, %s19
      %p171 = scmp.lt.s32.totalorder %s18, 1
      %s172 = scalar_select %p171, %s18, 1
      %p173 = scmp.lt.s32.totalorder %s170, 3
      %s174 = scalar_select %p173, %s170, 3
      %s175 = smul.addr %s172, 4
      %s176 = sadd.s32 %s174, %s175
      %s177 = smul.addr %s176, 4
      %s178 = scalar_lea.vmem %s3, %s177
      %p179 = scmp.lt.s32.totalorder %s18, 1
      %s180 = scalar_select %p179, %s18, 1
      %s181 = smul.addr %s180, 4
      %s182 = smul.addr %s181, 2
      %s183 = scalar_lea.vmem %s0, %s182
      %s184 = smul.u32 4, %s19
      %p185 = scmp.lt.s32.totalorder %s18, 1
      %s186 = scalar_select %p185, %s18, 1
      %p187 = scmp.lt.s32.totalorder %s184, 3
      %s188 = scalar_select %p187, %s184, 3
      %s189 = smul.addr %s186, 4
      %s190 = sadd.s32 %s188, %s189
      %s191 = smul.addr %s190, 4
      %s192 = scalar_lea.vmem %s3, %s191
      %s193 = smul.u32 4, %s19
      %s195 = smul.u32 %s19, 4
      %s196 = smul.addr %s195, 2
      %s197 = scalar_lea.vmem %s183, %s196
      %v198 = vld [vmem:[%s197] sm:$0x3]
      %v199 = vld [vmem:[%s197 + $0x2] sm:$0x3]
      %v200 = vld [vmem:[%s197 + $0x4] sm:$0x3]
      %v201 = vld [vmem:[%s197 + $0x6] sm:$0x3]
      %v202 = vld [vmem:[%s1] sm:$0xf]
      %v203 = vld [vmem:[%s1 + $0x4] sm:$0xf]
      %v204 = vld [vmem:[%s1 + $0x8] sm:$0xf]
      %v205 = vld [vmem:[%s1 + $0xc] sm:$0xf]
      %v206 = vld [vmem:[%s1 + $0x10] sm:$0xf]
      %v207 = vld [vmem:[%s1 + $0x14] sm:$0xf]
      %v208 = vld [vmem:[%s1 + $0x18] sm:$0xf]
      %v209 = vld [vmem:[%s1 + $0x1c] sm:$0xf]
      %v210 = vld [vmem:[%s1 + $0x20] sm:$0xf]
      %v211 = vld [vmem:[%s1 + $0x24] sm:$0xf]
      %v212 = vld [vmem:[%s1 + $0x28] sm:$0xf]
      %v213 = vld [vmem:[%s1 + $0x2c] sm:$0xf]
      %v214 = vld [vmem:[%s1 + $0x30] sm:$0xf]
      %v215 = vld [vmem:[%s1 + $0x34] sm:$0xf]
      %v216 = vld [vmem:[%s1 + $0x38] sm:$0xf]
      %v217 = vld [vmem:[%s1 + $0x3c] sm:$0xf]
      %v218 = vld [vmem:[%s2] sm:$0x1]
      %v220 = vlaneseq
      %v221 = vshrl.u32 %v220, 7
      %v222 = vsub.s32 0, %v221
      %v223 = vrot.slane %v218, %v222
      %v229 = vcombine.low %v198, %v199
      %v230 = vcombine.low %v200, %v201
      %v232 = vunpack.c.l.s4 1983009808
      %v233 = vunpack.c.0.s8 %v232
      %v234 = vlaneseq
      %v235 = vshrl.u32 %v234, 7
      %v236 = vsub.s32 %v233, %v235
      %v237 = vrot.slane %v229, %v236
      %v239 = vunpack.c.l.s4 1983009808
      %v240 = vunpack.c.0.s8 %v239
      %v241 = vlaneseq
      %v242 = vshrl.u32 %v241, 7
      %v243 = vsub.s32 %v240, %v242
      %v244 = vrot.slane %v230, %v243
      %v245 = vcombine.low %v237, %v244
      %v263 = vunpack.c.l.b16 %v202
      %v264 = vunpack.c.l.b16 %v203
      %v265 = vunpack.c.l.b16 %v204
      %v266 = vunpack.c.l.b16 %v205
      %v267 = vunpack.c.l.b16 %v206
      %v268 = vunpack.c.l.b16 %v207
      %v269 = vunpack.c.l.b16 %v208
      %v270 = vunpack.c.l.b16 %v209
      %v271 = vunpack.c.l.b16 %v210
      %v272 = vunpack.c.l.b16 %v211
      %v273 = vunpack.c.l.b16 %v212
      %v274 = vunpack.c.l.b16 %v213
      %v275 = vunpack.c.l.b16 %v214
      %v276 = vunpack.c.l.b16 %v215
      %v277 = vunpack.c.l.b16 %v216
      %v278 = vunpack.c.l.b16 %v217
      %v279 = vpack.c.b16 %v264, %v263
      %v280 = vpack.c.b16 %v266, %v265
      %v281 = vpack.c.b16 %v268, %v267
      %v282 = vpack.c.b16 %v270, %v269
      %v283 = vpack.c.b16 %v272, %v271
      %v284 = vpack.c.b16 %v274, %v273
      %v285 = vpack.c.b16 %v276, %v275
      %v286 = vpack.c.b16 %v278, %v277
      %295 = vmatprep.subr.bf16.mxu0 0
      %296 = vmatpush1.bf16.msra.mxu0 %v279
      %297 = vmatprep.subr.bf16.mxu0 0
      %298 = vmatpush1.bf16.msra.mxu0 %v280
      %299 = vmatprep.subr.bf16.mxu0 0
      %300 = vmatpush1.bf16.msra.mxu0 %v281
      %301 = vmatprep.subr.bf16.mxu0 0
      %302 = vmatpush1.bf16.msra.mxu0 %v282
      %303 = vmatprep.subr.bf16.mxu0 0
      %304 = vmatpush1.bf16.msra.mxu0 %v283
      %305 = vmatprep.subr.bf16.mxu0 0
      %306 = vmatpush1.bf16.msra.mxu0 %v284
      %307 = vmatprep.subr.bf16.mxu0 0
      %308 = vmatpush1.bf16.msra.mxu0 %v285
      %309 = vmatprep.subr.bf16.mxu0 0
      %310 = vmatpush1.bf16.msra.mxu0 %v286
      %311 = vmatprep.subr.bf16.mxu0 0
      %312 = vmatpush1.bf16.msra.mxu0 0
      %313 = vmatprep.subr.bf16.mxu0 0
      %314 = vmatpush1.bf16.msra.mxu0 0
      %315 = vmatprep.subr.bf16.mxu0 0
      %316 = vmatpush1.bf16.msra.mxu0 0
      %317 = vmatprep.subr.bf16.mxu0 0
      %318 = vmatpush1.bf16.msra.mxu0 0
      %319 = vmatprep.subr.bf16.mxu0 0
      %320 = vmatpush1.bf16.msra.mxu0 0
      %321 = vmatprep.subr.bf16.mxu0 0
      %322 = vmatpush1.bf16.msra.mxu0 0
      %323 = vmatprep.subr.bf16.mxu0 0
      %324 = vmatpush1.bf16.msra.mxu0 0
      %325 = vmatprep.subr.bf16.mxu0 0
      %326 = vmatpush1.bf16.msra.mxu0 0
      %327 = vmatprep.mubr.bf16.mxu0 0
      %328 = vmatmul.mubr.bf16.gmra.mrb[0].mxu0 %v245
      %v329 = vpop.f32.mrb[0].mxu0
      %v330 = vadd.f32 %v223, %v329
      %v331 = vpop.f32.mrb[0].mxu0
      %v332 = vpop.f32.mrb[0].mxu0
      %v333 = vadd.f32 %v223, %v332
      %v334 = vpop.f32.mrb[0].mxu0
      %335 = vdwg.mxu0
      %v338 = vcombine.high %v330, %v330
      %v339 = vcombine.high %v333, %v333
      %342 = vst [vmem:[%s192] sm:$0xf] %v330
      %343 = vst [vmem:[%s192 + $0x4] sm:$0xf] %v338
      %344 = vst [vmem:[%s192 + $0x8] sm:$0xf] %v333
      %345 = vst [vmem:[%s192 + $0xc] sm:$0xf] %v339
      %s346 = smul.u32 4, %s19
      %p347 = scmp.lt.s32.totalorder %s18, 1
      %s348 = scalar_select %p347, %s18, 1
      %p349 = scmp.lt.s32.totalorder %s346, 3
      %s350 = scalar_select %p349, %s346, 3
      %s351 = smul.addr %s348, 4
      %s352 = sadd.s32 %s350, %s351
      %s353 = smul.addr %s352, 4
      %s354 = scalar_lea.vmem %s3, %s353
      // Predicated region
      $region33: #{cenet_forward.16} parent=31 // pred_check
        %p355 = pneg %p114
      $region34: #{cenet_forward.16} parent=31 // pred_check_branch
        %357 = sbr.rel (%p355) target = $region36
      $region35: #{cenet_forward.16} parent=31 // pred_region
        %s358 = smul.u32 4, %s19
      $region36: #{cenet_forward.16} parent=31 // pred_fallthru
        _
    $region32: #{cenet_forward.16} parent=5 // pred_fallthru
      _
    %p359 = scmp.le.s32.totalorder 2, %s9
    // Predicated region
    $region37: #{cenet_forward.16} parent=5 // pred_check
      %p360 = pneg %p359
    $region38: #{cenet_forward.16} parent=5 // pred_check_branch
      %362 = sbr.rel (%p360) target = $region40
    $region39: #{cenet_forward.16} parent=5 // pred_region
      %s363 = ssub.s32 %s9, 2
      // Predicated region
      $region41: #{cenet_forward.16} parent=39 // pred_check
        %p364 = pneg %p120
      $region42: #{cenet_forward.16} parent=39 // pred_check_branch
        %366 = sbr.rel (%p364) target = $region44
      $region43: #{cenet_forward.16} parent=39 // pred_region
        %s367 = smul.u32 4, %s21
        %p368 = scmp.lt.s32.totalorder %s20, 1
        %s369 = scalar_select %p368, %s20, 1
        %p370 = scmp.lt.s32.totalorder %s367, 3
        %s371 = scalar_select %p370, %s367, 3
        %s372 = smul.addr %s369, 4
        %s373 = sadd.s32 %s371, %s372
        %s374 = smul.addr %s373, 4
        %s375 = scalar_lea.vmem %s3, %s374
      $region44: #{cenet_forward.16} parent=39 // pred_fallthru
        _
    $region40: #{cenet_forward.16} parent=5 // pred_fallthru
      _
  $region6: #{cenet_forward.16} parent=0 // loop_footer
    %s13 = sadd.s32 1, %s9
  $region7: #{cenet_forward.16} parent=0 // loop_footer_branch
    %8 = sbr.rel target = $region3
  $region8: #{cenet_forward.16} parent=0 // loop_exit
    _

// kernel: cenet_forward.15
$region0: #{cenet_forward.15}
  #allocation0 [shape = 'u32[]', space=smem, size = 0x4, offset = 0x4, fixed_abs, tag = 'smem constant byte address 0x4 - core index']
  #allocation1 [shape = 'u32[144,128]{1,0:T(1,128)}', space=vmem, size = 0x12000, scoped, tag = 'internal scratch']
  %s0 = inlined_call_operand.vmem [shape: bf16[2,8,8,128], index: 0, kind: input, shape index: {}]
  %s1 = inlined_call_operand.vmem [shape: bf16[128,128], index: 1, kind: input, shape index: {}]
  %s2 = inlined_call_operand.vmem [shape: f32[1,128], index: 2, kind: input, shape index: {}]
  %s3 = inlined_call_operand.vmem [shape: f32[2,8,8,128], index: 3, kind: output, shape index: {}]
  %s4 = sld [smem:[#allocation0]]
  $region45: #{cenet_forward.15} parent=0
    _
  %s6 = ssub.s32 1, %s4
  %s7 = scalar_select 0, %s6, %s4
  loop: start=0, step=1, limit=4
  $region2: #{cenet_forward.15} parent=0 // loop_pre_header
    _
  $region3: #{cenet_forward.15} parent=0 // loop_header
    %s9 = sphi 0, %s13
    %p10 = scmp.ge.s32.totalorder %s9, 4
    %s16 = sphi 0, %s28
    %s17 = sphi 0, %s24
    %s18 = sphi 0, %s16
    %s19 = sphi 0, %s17
    %s20 = sphi 0, %s18
    %s21 = sphi 0, %s19
    %s31 = sphi 0, %s33
    %s34 = sphi 0, %s31
    %s35 = sphi 0, %s34
    %s51 = sphi 0, %s35
    %s55 = sphi 0, %s55
    %s57 = sphi 0, %s55
    %s58 = sphi 0, %s57
    %s72 = sphi 0, %s58
    %s76 = sphi 0, %s76
    %s78 = sphi 0, %s76
    %s79 = sphi 0, %s78
    %s93 = sphi 0, %s79
    %s101 = sphi 0, %s103
    %s104 = sphi 0, %s101
    %s105 = sphi 0, %s104
    %s121 = sphi 0, %s105
  $region4: #{cenet_forward.15} parent=0 // loop_header_branch
    %12 = sbr.rel (%p10) target = $region8
  $region5: #{cenet_forward.15} parent=0 // loop_body
    %s14 = ssub.s32 %s9, 1
    %s15 = ssub.s32 %s9, 2
    %s22 = sadd.s32 1, %s17
    %p23 = scmp.ge.s32.totalorder %s22, 1
    %s24 = scalar_select %p23, 0, %s22
    %s25 = sadd.s32 1, %s16
    %s26 = scalar_select %p23, %s25, %s16
    %p27 = scmp.ge.s32.totalorder %s26, 2
    %s28 = scalar_select %p27, 0, %s26
    %s29 = ssub.s32 %s16, %s28
    %p30 = scmp.eq.s32.totalorder %s29, 0
    %s32 = sadd.s32 %s31, 1
    %s33 = scalar_select %p30, %s31, %s32
    %p36 = pneg %p30
    %p37 = scmp.eq.s32.totalorder %s9, 1
    %p38 = por %p36, %p37
    %p39 = scmp.ne.s32.totalorder %s31, %s34
    %p40 = scmp.eq.s32.totalorder %s9, 0
    %p41 = por %p39, %p40
    %p42 = scmp.ne.s32.totalorder %s31, %s34
    %p43 = scmp.eq.s32.totalorder %s14, 1
    %p44 = por %p42, %p43
    %p45 = scmp.ne.s32.totalorder %s34, %s35
    %p46 = scmp.eq.s32.totalorder %s14, 0
    %p47 = por %p45, %p46
    %p48 = scmp.ne.s32.totalorder %s34, %s35
    %p49 = scmp.eq.s32.totalorder %s15, 1
    %p50 = por %p48, %p49
    %p52 = scmp.ne.s32.totalorder %s35, %s51
    %p53 = scmp.eq.s32.totalorder %s15, 0
    %p54 = por %p52, %p53
    %s56 = sadd.s32 %s55, 1
    %p59 = scmp.eq.s32.totalorder %s9, 1
    %p60 = scmp.ne.s32.totalorder %s55, %s57
    %p61 = scmp.eq.s32.totalorder %s9, 0
    %p62 = por %p60, %p61
    %p63 = scmp.ne.s32.totalorder %s55, %s57
    %p64 = scmp.eq.s32.totalorder %s14, 1
    %p65 = por %p63, %p64
    %p66 = scmp.ne.s32.totalorder %s57, %s58
    %p67 = scmp.eq.s32.totalorder %s14, 0
    %p68 = por %p66, %p67
    %p69 = scmp.ne.s32.totalorder %s57, %s58
    %p70 = scmp.eq.s32.totalorder %s15, 1
    %p71 = por %p69, %p70
    %p73 = scmp.ne.s32.totalorder %s58, %s72
    %p74 = scmp.eq.s32.totalorder %s15, 0
    %p75 = por %p73, %p74
    %s77 = sadd.s32 %s76, 1
    %p80 = scmp.eq.s32.totalorder %s9, 1
    %p81 = scmp.ne.s32.totalorder %s76, %s78
    %p82 = scmp.eq.s32.totalorder %s9, 0
    %p83 = por %p81, %p82
    %p84 = scmp.ne.s32.totalorder %s76, %s78
    %p85 = scmp.eq.s32.totalorder %s14, 1
    %p86 = por %p84, %p85
    %p87 = scmp.ne.s32.totalorder %s78, %s79
    %p88 = scmp.eq.s32.totalorder %s14, 0
    %p89 = por %p87, %p88
    %p90 = scmp.ne.s32.totalorder %s78, %s79
    %p91 = scmp.eq.s32.totalorder %s15, 1
    %p92 = por %p90, %p91
    %p94 = scmp.ne.s32.totalorder %s79, %s93
    %p95 = scmp.eq.s32.totalorder %s15, 0
    %p96 = por %p94, %p95
    %s97 = ssub.s32 %s16, %s28
    %s98 = ssub.s32 %s17, %s24
    %s99 = sor.u32 %s97, %s98
    %p100 = scmp.eq.s32.totalorder %s99, 0
    %s102 = sadd.s32 %s101, 1
    %s103 = scalar_select %p100, %s101, %s102
    %p106 = pneg %p100
    %p107 = scmp.eq.s32.totalorder %s9, 1
    %p108 = por %p106, %p107
    %p109 = scmp.ne.s32.totalorder %s101, %s104
    %p110 = scmp.eq.s32.totalorder %s9, 0
    %p111 = por %p109, %p110
    %p112 = scmp.ne.s32.totalorder %s101, %s104
    %p113 = scmp.eq.s32.totalorder %s14, 1
    %p114 = por %p112, %p113
    %p115 = scmp.ne.s32.totalorder %s104, %s105
    %p116 = scmp.eq.s32.totalorder %s14, 0
    %p117 = por %p115, %p116
    %p118 = scmp.ne.s32.totalorder %s104, %s105
    %p119 = scmp.eq.s32.totalorder %s15, 1
    %p120 = por %p118, %p119
    %p122 = scmp.ne.s32.totalorder %s105, %s121
    %p123 = scmp.eq.s32.totalorder %s15, 0
    %p124 = por %p122, %p123
    %p125 = scmp.le.s32.totalorder 1, %s9
    %p126 = scmp.lt.s32.totalorder %s9, 3
    %p127 = pnand %p125, %p126
    %p128 = pneg %p127
    // Predicated region
    $region9: #{cenet_forward.15} parent=5 // pred_check
      _
    $region10: #{cenet_forward.15} parent=5 // pred_check_branch
      %130 = sbr.rel (%p127) target = $region12
    $region11: #{cenet_forward.15} parent=5 // pred_region
      %s131 = ssub.s32 %s9, 1
      // Predicated region
      $region13: #{cenet_forward.15} parent=11 // pred_check
        %p132 = pneg %p68
      $region14: #{cenet_forward.15} parent=11 // pred_check_branch
        %134 = sbr.rel (%p132) target = $region16
      $region15: #{cenet_forward.15} parent=11 // pred_region
        _
      $region16: #{cenet_forward.15} parent=11 // pred_fallthru
        _
      // Predicated region
      $region17: #{cenet_forward.15} parent=11 // pred_check
        %p135 = pneg %p89
      $region18: #{cenet_forward.15} parent=11 // pred_check_branch
        %137 = sbr.rel (%p135) target = $region20
      $region19: #{cenet_forward.15} parent=11 // pred_region
        _
      $region20: #{cenet_forward.15} parent=11 // pred_fallthru
        _
    $region12: #{cenet_forward.15} parent=5 // pred_fallthru
      _
    %p138 = scmp.lt.s32.totalorder %s9, 2
    // Predicated region
    $region21: #{cenet_forward.15} parent=5 // pred_check
      %p139 = pneg %p138
    $region22: #{cenet_forward.15} parent=5 // pred_check_branch
      %141 = sbr.rel (%p139) target = $region24
    $region23: #{cenet_forward.15} parent=5 // pred_region
      // Predicated region
      $region25: #{cenet_forward.15} parent=23 // pred_check
        %p142 = pneg %p41
      $region26: #{cenet_forward.15} parent=23 // pred_check_branch
        %144 = sbr.rel (%p142) target = $region28
      $region27: #{cenet_forward.15} parent=23 // pred_region
        %p145 = scmp.lt.s32.totalorder %s16, 1
        %s146 = scalar_select %p145, %s16, 1
        %s147 = smul.addr %s146, 8
        %s148 = smul.addr %s147, 4
        %s149 = scalar_lea.vmem %s0, %s148
      $region28: #{cenet_forward.15} parent=23 // pred_fallthru
        _
    $region24: #{cenet_forward.15} parent=5 // pred_fallthru
      _
    %p150 = scmp.le.s32.totalorder 1, %s9
    %p151 = scmp.lt.s32.totalorder %s9, 3
    %p152 = pnand %p150, %p151
    %p153 = pneg %p152
    // Predicated region
    $region29: #{cenet_forward.15} parent=5 // pred_check
      _
    $region30: #{cenet_forward.15} parent=5 // pred_check_branch
      %155 = sbr.rel (%p152) target = $region32
    $region31: #{cenet_forward.15} parent=5 // pred_region
      %s156 = ssub.s32 %s9, 1
      %p157 = scmp.lt.s32.totalorder %s18, 1
      %s158 = scalar_select %p157, %s18, 1
      %s159 = smul.addr %s158, 8
      %s160 = smul.addr %s159, 4
      %s161 = scalar_lea.vmem %s0, %s160
      %p162 = pneg %p47
      %p163 = pneg %p44
      %p164 = pneg %p68
      %p165 = pneg %p65
      %p166 = pneg %p89
      %p167 = pneg %p86
      %p168 = pneg %p117
      %p169 = pneg %p114
      %s170 = smul.u32 8, %s19
      %p171 = scmp.lt.s32.totalorder %s18, 1
      %s172 = scalar_select %p171, %s18, 1
      %p173 = scmp.lt.s32.totalorder %s170, 7
      %s174 = scalar_select %p173, %s170, 7
      %s175 = smul.addr %s172, 8
      %s176 = sadd.s32 %s174, %s175
      %s177 = smul.addr %s176, 8
      %s178 = scalar_lea.vmem %s3, %s177
      %p179 = scmp.lt.s32.totalorder %s18, 1
      %s180 = scalar_select %p179, %s18, 1
      %s181 = smul.addr %s180, 8
      %s182 = smul.addr %s181, 4
      %s183 = scalar_lea.vmem %s0, %s182
      %s184 = smul.u32 8, %s19
      %p185 = scmp.lt.s32.totalorder %s18, 1
      %s186 = scalar_select %p185, %s18, 1
      %p187 = scmp.lt.s32.totalorder %s184, 7
      %s188 = scalar_select %p187, %s184, 7
      %s189 = smul.addr %s186, 8
      %s190 = sadd.s32 %s188, %s189
      %s191 = smul.addr %s190, 8
      %s192 = scalar_lea.vmem %s3, %s191
      %s193 = smul.u32 8, %s19
      %s195 = smul.u32 %s19, 8
      %s196 = smul.addr %s195, 4
      %s197 = scalar_lea.vmem %s183, %s196
      %v198 = vld [vmem:[%s197] sm:$0xf]
      %v199 = vld [vmem:[%s197 + $0x4] sm:$0xf]
      %v200 = vld [vmem:[%s197 + $0x8] sm:$0xf]
      %v201 = vld [vmem:[%s197 + $0xc] sm:$0xf]
      %v202 = vld [vmem:[%s197 + $0x10] sm:$0xf]
      %v203 = vld [vmem:[%s197 + $0x14] sm:$0xf]
      %v204 = vld [vmem:[%s197 + $0x18] sm:$0xf]
      %v205 = vld [vmem:[%s197 + $0x1c] sm:$0xf]
      %v206 = vld [vmem:[%s1] sm:$0xf]
      %v207 = vld [vmem:[%s1 + $0x4] sm:$0xf]
      %v208 = vld [vmem:[%s1 + $0x8] sm:$0xf]
      %v209 = vld [vmem:[%s1 + $0xc] sm:$0xf]
      %v210 = vld [vmem:[%s1 + $0x10] sm:$0xf]
      %v211 = vld [vmem:[%s1 + $0x14] sm:$0xf]
      %v212 = vld [vmem:[%s1 + $0x18] sm:$0xf]
      %v213 = vld [vmem:[%s1 + $0x1c] sm:$0xf]
      %v214 = vld [vmem:[%s1 + $0x20] sm:$0xf]
      %v215 = vld [vmem:[%s1 + $0x24] sm:$0xf]
      %v216 = vld [vmem:[%s1 + $0x28] sm:$0xf]
      %v217 = vld [vmem:[%s1 + $0x2c] sm:$0xf]
      %v218 = vld [vmem:[%s1 + $0x30] sm:$0xf]
      %v219 = vld [vmem:[%s1 + $0x34] sm:$0xf]
      %v220 = vld [vmem:[%s1 + $0x38] sm:$0xf]
      %v221 = vld [vmem:[%s1 + $0x3c] sm:$0xf]
      %v222 = vld [vmem:[%s2] sm:$0x1]
      %v224 = vlaneseq
      %v225 = vshrl.u32 %v224, 7
      %v226 = vsub.s32 0, %v225
      %v227 = vrot.slane %v222, %v226
      %v237 = vunpack.c.l.b16 %v198
      %v238 = vunpack.c.l.b16 %v199
      %v239 = vunpack.c.l.b16 %v200
      %v240 = vunpack.c.l.b16 %v201
      %v241 = vunpack.c.l.b16 %v202
      %v242 = vunpack.c.l.b16 %v203
      %v243 = vunpack.c.l.b16 %v204
      %v244 = vunpack.c.l.b16 %v205
      %v245 = vpack.c.b16 %v238, %v237
      %v246 = vpack.c.b16 %v240, %v239
      %v247 = vpack.c.b16 %v242, %v241
      %v248 = vpack.c.b16 %v244, %v243
      %v269 = vunpack.c.l.b16 %v206
      %v270 = vunpack.c.l.b16 %v207
      %v271 = vunpack.c.l.b16 %v208
      %v272 = vunpack.c.l.b16 %v209
      %v273 = vunpack.c.l.b16 %v210
      %v274 = vunpack.c.l.b16 %v211
      %v275 = vunpack.c.l.b16 %v212
      %v276 = vunpack.c.l.b16 %v213
      %v277 = vunpack.c.l.b16 %v214
      %v278 = vunpack.c.l.b16 %v215
      %v279 = vunpack.c.l.b16 %v216
      %v280 = vunpack.c.l.b16 %v217
      %v281 = vunpack.c.l.b16 %v218
      %v282 = vunpack.c.l.b16 %v219
      %v283 = vunpack.c.l.b16 %v220
      %v284 = vunpack.c.l.b16 %v221
      %v285 = vpack.c.b16 %v270, %v269
      %v286 = vpack.c.b16 %v272, %v271
      %v287 = vpack.c.b16 %v274, %v273
      %v288 = vpack.c.b16 %v276, %v275
      %v289 = vpack.c.b16 %v278, %v277
      %v290 = vpack.c.b16 %v280, %v279
      %v291 = vpack.c.b16 %v282, %v281
      %v292 = vpack.c.b16 %v284, %v283
      %301 = vmatprep.subr.bf16.mxu0 0
      %302 = vmatpush1.bf16.msra.mxu0 %v285
      %303 = vmatprep.subr.bf16.mxu0 0
      %304 = vmatpush1.bf16.msra.mxu0 %v286
      %305 = vmatprep.subr.bf16.mxu0 0
      %306 = vmatpush1.bf16.msra.mxu0 %v287
      %307 = vmatprep.subr.bf16.mxu0 0
      %308 = vmatpush1.bf16.msra.mxu0 %v288
      %309 = vmatprep.subr.bf16.mxu0 0
      %310 = vmatpush1.bf16.msra.mxu0 %v289
      %311 = vmatprep.subr.bf16.mxu0 0
      %312 = vmatpush1.bf16.msra.mxu0 %v290
      %313 = vmatprep.subr.bf16.mxu0 0
      %314 = vmatpush1.bf16.msra.mxu0 %v291
      %315 = vmatprep.subr.bf16.mxu0 0
      %316 = vmatpush1.bf16.msra.mxu0 %v292
      %317 = vmatprep.subr.bf16.mxu0 0
      %318 = vmatpush1.bf16.msra.mxu0 0
      %319 = vmatprep.subr.bf16.mxu0 0
      %320 = vmatpush1.bf16.msra.mxu0 0
      %321 = vmatprep.subr.bf16.mxu0 0
      %322 = vmatpush1.bf16.msra.mxu0 0
      %323 = vmatprep.subr.bf16.mxu0 0
      %324 = vmatpush1.bf16.msra.mxu0 0
      %325 = vmatprep.subr.bf16.mxu0 0
      %326 = vmatpush1.bf16.msra.mxu0 0
      %327 = vmatprep.subr.bf16.mxu0 0
      %328 = vmatpush1.bf16.msra.mxu0 0
      %329 = vmatprep.subr.bf16.mxu0 0
      %330 = vmatpush1.bf16.msra.mxu0 0
      %331 = vmatprep.subr.bf16.mxu0 0
      %332 = vmatpush1.bf16.msra.mxu0 0
      %333 = vmatprep.mubr.bf16.mxu0 0
      %334 = vmatmul.mubr.bf16.gmra.mrb[0].mxu0 %v245
      %v335 = vpop.f32.mrb[0].mxu0
      %v336 = vadd.f32 %v227, %v335
      %v337 = vpop.f32.mrb[0].mxu0
      %v338 = vpop.f32.mrb[0].mxu0
      %v339 = vadd.f32 %v227, %v338
      %v340 = vpop.f32.mrb[0].mxu0
      %341 = vmatprep.mubr.bf16.mxu0 0
      %342 = vmatmul.mubr.bf16.gmra.mrb[0].mxu0 %v246
      %v343 = vpop.f32.mrb[0].mxu0
      %v344 = vadd.f32 %v227, %v343
      %v345 = vpop.f32.mrb[0].mxu0
      %v346 = vpop.f32.mrb[0].mxu0
      %v347 = vadd.f32 %v227, %v346
      %v348 = vpop.f32.mrb[0].mxu0
      %349 = vmatprep.mubr.bf16.mxu0 0
      %350 = vmatmul.mubr.bf16.gmra.mrb[0].mxu0 %v247
      %v351 = vpop.f32.mrb[0].mxu0
      %v352 = vadd.f32 %v227, %v351
      %v353 = vpop.f32.mrb[0].mxu0
      %v354 = vpop.f32.mrb[0].mxu0
      %v355 = vadd.f32 %v227, %v354
      %v356 = vpop.f32.mrb[0].mxu0
      %357 = vmatprep.mubr.bf16.mxu0 0
      %358 = vmatmul.mubr.bf16.gmra.mrb[0].mxu0 %v248
      %v359 = vpop.f32.mrb[0].mxu0
      %v360 = vadd.f32 %v227, %v359
      %v361 = vpop.f32.mrb[0].mxu0
      %v362 = vpop.f32.mrb[0].mxu0
      %v363 = vadd.f32 %v227, %v362
      %v364 = vpop.f32.mrb[0].mxu0
      %365 = vdwg.mxu0
      %366 = vst [vmem:[%s192] sm:$0xff] %v336
      %367 = vst [vmem:[%s192 + $0x8] sm:$0xff] %v339
      %368 = vst [vmem:[%s192 + $0x10] sm:$0xff] %v344
      %369 = vst [vmem:[%s192 + $0x18] sm:$0xff] %v347
      %370 = vst [vmem:[%s192 + $0x20] sm:$0xff] %v352
      %371 = vst [vmem:[%s192 + $0x28] sm:$0xff] %v355
      %372 = vst [vmem:[%s192 + $0x30] sm:$0xff] %v360
      %373 = vst [vmem:[%s192 + $0x38] sm:$0xff] %v363
      %s374 = smul.u32 8, %s19
      %p375 = scmp.lt.s32.totalorder %s18, 1
      %s376 = scalar_select %p375, %s18, 1
      %p377 = scmp.lt.s32.totalorder %s374, 7
      %s378 = scalar_select %p377, %s374, 7
      %s379 = smul.addr %s376, 8
      %s380 = sadd.s32 %s378, %s379
      %s381 = smul.addr %s380, 8
      %s382 = scalar_lea.vmem %s3, %s381
      // Predicated region
      $region33: #{cenet_forward.15} parent=31 // pred_check
        %p383 = pneg %p114
      $region34: #{cenet_forward.15} parent=31 // pred_check_branch
        %385 = sbr.rel (%p383) target = $region36
      $region35: #{cenet_forward.15} parent=31 // pred_region
        %s386 = smul.u32 8, %s19
      $region36: #{cenet_forward.15} parent=31 // pred_fallthru
        _
    $region32: #{cenet_forward.15} parent=5 // pred_fallthru
      _
    %p387 = scmp.le.s32.totalorder 2, %s9
    // Predicated region
    $region37: #{cenet_forward.15} parent=5 // pred_check
      %p388 = pneg %p387
    $region38: #{cenet_forward.15} parent=5 // pred_check_branch
      %390 = sbr.rel (%p388) target = $region40
    $region39: #{cenet_forward.15} parent=5 // pred_region
      %s391 = ssub.s32 %s9, 2
      // Predicated region
      $region41: #{cenet_forward.15} parent=39 // pred_check
        %p392 = pneg %p120
      $region42: #{cenet_forward.15} parent=39 // pred_check_branch
        %394 = sbr.rel (%p392) target = $region44
      $region43: #{cenet_forward.15} parent=39 // pred_region
        %s395 = smul.u32 8, %s21
        %p396 = scmp.lt.s32.totalorder %s20, 1
        %s397 = scalar_select %p396, %s20, 1
        %p398 = scmp.lt.s32.totalorder %s395, 7
        %s399 = scalar_select %p398, %s395, 7
        %s400 = smul.addr %s397, 8
        %s401 = sadd.s32 %s399, %s400
        %s402 = smul.addr %s401, 8
        %s403 = scalar_lea.vmem %s3, %s402
      $region44: #{cenet_forward.15} parent=39 // pred_fallthru
        _
    $region40: #{cenet_forward.15} parent=5 // pred_fallthru
      _
  $region6: #{cenet_forward.15} parent=0 // loop_footer
    %s13 = sadd.s32 1, %s9
  $region7: #{cenet_forward.15} parent=0 // loop_footer_branch
    %8 = sbr.rel target = $region3
  $region8: #{cenet_forward.15} parent=0 // loop_exit
    _

</llo_original>
